<compile_context>
chip_gen: v7x
topology: tpu7x:2x2x1
jax: 0.10.0
libtpu: 0.0.40
codegen_flags: <defaults>
</compile_context>

<pallas_src>
import jax
import jax.numpy as jnp
from jax import lax
from jax.experimental import pallas as pl
from jax.experimental.pallas import tpu as pltpu

B, S, IN, H = 2, 8, 2, 256   # batch, seq, input_dim, hidden
OUT = 9
SB = S * B                   # rows of the time-major activation slab: row = t*B + b


# ----------------------------------------------------------------------------
# Fused kernel: input gates -> unrolled GRU -> attention MLP -> softmax -> fc
# ----------------------------------------------------------------------------
def fused_kernel(x_ref, wih_ref, gb_ref, bhn_ref, whh_ref,
                 w1_ref, b1_ref, w2_ref, b2_ref, w3_ref,
                 wfc_ref, bfc_ref, out_ref, gx_scr, o_scr):
    # ---- input-side gates for every (t, b): row = t*B + b -------------------
    # (b_ih + b_hr + b_hz are pre-folded into gb_ref; b_hn handled below.)
    x2d = x_ref[...]                                        # (SB, IN)
    wih = wih_ref[...]                                      # (IN, 3H)
    gx = gb_ref[...]                                        # (1, 3H) -> broadcast
    for i in range(IN):
        gx = gx + x2d[:, i:i + 1] * wih[i:i + 1, :]         # VPU broadcasts
    gx_scr[...] = gx                                        # (SB, 3H)

    # ---- GRU recurrence: fully unrolled time loop, h carried in vregs -------
    # (fully unrolled like fori_loop(..., unroll=True), but static slice
    #  offsets keep every slab access a plain masked load/store; S == 8 so
    #  live ranges are tiny.)
    h = jnp.zeros((B, H), jnp.float32)
    for t in range(S):
        r0 = t * B
        gx_t = gx_scr[pl.ds(r0, B), :]                      # (B, 3H)
        gh = jnp.dot(h.astype(jnp.bfloat16), whh_ref[...],
                     preferred_element_type=jnp.float32)    # (B, 3H) bf16 MXU
        r = jax.nn.sigmoid(gx_t[:, 0:H] + gh[:, 0:H])
        z = jax.nn.sigmoid(gx_t[:, H:2 * H] + gh[:, H:2 * H])
        n = jnp.tanh(gx_t[:, 2 * H:3 * H]
                     + r * (gh[:, 2 * H:3 * H] + bhn_ref[...]))   # b_hn inside r*( )
        h = (1.0 - z) * n + z * h
        o_scr[pl.ds(r0, B), :] = h                          # rows t*B .. t*B+B-1

    # ---- attention MLP on the dense (SB, H) slab -----------------------------
    o = o_scr[...]                                          # (SB, H) f32
    a1 = jnp.maximum(
        jnp.dot(o.astype(jnp.bfloat16), w1_ref[...],
                preferred_element_type=jnp.float32) + b1_ref[...], 0.0)   # (SB, 512)
    a2 = jnp.maximum(
        jnp.dot(a1.astype(jnp.bfloat16), w2_ref[...],
                preferred_element_type=jnp.float32) + b2_ref[...], 0.0)   # (SB, H)
    # Linear(256 -> 1) as VPU mul + lane reduce; b3 cancels in the softmax.
    score = jnp.sum(a2 * w3_ref[...], axis=-1, keepdims=True)            # (SB, 1)

    # ---- softmax over the sequence, per batch --------------------------------
    # Slab rows are t*B + b, so rows of the same batch share (row % B).
    # A global max shift is valid for softmax stability (constants cancel).
    e = jnp.exp(score - jnp.max(score, axis=0, keepdims=True))           # (SB, 1)
    ri = lax.broadcasted_iota(jnp.int32, (SB, SB), 0)
    ci = lax.broadcasted_iota(jnp.int32, (SB, SB), 1)
    same_b = (ri % B == ci % B).astype(jnp.float32)                      # (SB, SB)
    num = jnp.dot(same_b, o * e, preferred_element_type=jnp.float32)     # (SB, H)
    den = jnp.dot(same_b, e, preferred_element_type=jnp.float32)         # (SB, 1)
    ctx = num[0:B, :] / den[0:B, :]                                      # (B, H)

    # ---- final fc (256 -> 9) --------------------------------------------------
    out_ref[...] = (jnp.dot(ctx, wfc_ref[...],
                            preferred_element_type=jnp.float32) + bfc_ref[...])


def _fused_forward(x_tm, kp):
    return pl.pallas_call(
        fused_kernel,
        out_shape=jax.ShapeDtypeStruct((B, OUT), jnp.float32),
        scratch_shapes=[
            pltpu.VMEM((SB, 3 * H), jnp.float32),   # precomputed input gates
            pltpu.VMEM((SB, H), jnp.float32),       # GRU output slab
        ],
    )(x_tm, kp['wih_t'], kp['gbias'], kp['bhn'], kp['whh_t'],
      kp['w1_t'], kp['b1'], kp['w2_t'], kp['b2'], kp['w3'],
      kp['wfc_t'], kp['bfc'])


# ----------------------------------------------------------------------------
# One-time host-side weight prep (transposes / bf16 casts / bias folds)
# ----------------------------------------------------------------------------
def prepare_params(p):
    b_hh = p['b_hh']
    # fold b_ih + b_hr + b_hz into the precomputed gates; b_hn must stay in
    # the recurrence (PyTorch GRU: n = tanh(W_in x + b_in + r*(W_hn h + b_hn)))
    gbias = p['b_ih'] + jnp.concatenate(
        [b_hh[:2 * H], jnp.zeros((H,), jnp.float32)])
    return {
        'wih_t': p['w_ih'].T.astype(jnp.float32),             # (IN, 3H)
        'gbias': gbias[None, :].astype(jnp.float32),          # (1, 3H)
        'bhn':   b_hh[2 * H:][None, :].astype(jnp.float32),   # (1, H)
        'whh_t': p['w_hh'].T.astype(jnp.bfloat16),            # (H, 3H)
        'w1_t':  p['w1'].T.astype(jnp.bfloat16),              # (H, 512)
        'b1':    p['b1'][None, :].astype(jnp.float32),
        'w2_t':  p['w2'].T.astype(jnp.bfloat16),              # (512, H)
        'b2':    p['b2'][None, :].astype(jnp.float32),
        'w3':    p['w3'].astype(jnp.float32),                 # (1, H)
        'wfc_t': p['wfc'].T.astype(jnp.float32),              # (H, OUT)
        'bfc':   p['bfc'][None, :].astype(jnp.float32),
    }


@jax.jit
def attention_pos_rnn_forward(x, kp):
    # x: (B, S, IN) -> time-major (S*B, IN) rows (t*B + b); 128-byte reshape.
    x_tm = jnp.transpose(x, (1, 0, 2)).reshape(SB, IN).astype(jnp.float32)
    return _fused_forward(x_tm, kp)


# ----------------------------------------------------------------------------
# Parameters (deterministic, PyTorch-style uniform(-1/sqrt(fan), 1/sqrt(fan)))
# ----------------------------------------------------------------------------
def init_params(key):
    def u(key, shape, fan):
        bound = 1.0 / jnp.sqrt(float(fan))
        return jax.random.uniform(key, shape, jnp.float32, -bound, bound)

    ks = jax.random.split(key, 12)
    p = {}
    # GRU: weight_ih (3H, IN), weight_hh (3H, H), biases (3H,), gate order r,z,n
    p['w_ih'] = u(ks[0], (3 * H, IN), H)
    p['w_hh'] = u(ks[1], (3 * H, H), H)
    p['b_ih'] = u(ks[2], (3 * H,), H)
    p['b_hh'] = u(ks[3], (3 * H,), H)
    # AttentionNet
    p['w1'] = u(ks[4], (512, H), H)
    p['b1'] = u(ks[5], (512,), H)
    p['w2'] = u(ks[6], (H, 512), 512)
    p['b2'] = u(ks[7], (H,), 512)
    p['w3'] = u(ks[8], (1, H), H)
    p['b3'] = u(ks[9], (1,), H)
    # fc
    p['wfc'] = u(ks[10], (OUT, H), H)
    p['bfc'] = u(ks[11], (OUT,), H)
    return p


# ----------------------------------------------------------------------------
# Pure-JAX f32 reference (mirrors the PyTorch eval-mode forward exactly)
# ----------------------------------------------------------------------------
def reference_forward(x, p):
    def step(h, xt):
        gx = xt @ p['w_ih'].T + p['b_ih']
        gh = h @ p['w_hh'].T + p['b_hh']
        r = jax.nn.sigmoid(gx[:, :H] + gh[:, :H])
        z = jax.nn.sigmoid(gx[:, H:2 * H] + gh[:, H:2 * H])
        n = jnp.tanh(gx[:, 2 * H:] + r * gh[:, 2 * H:])
        h = (1.0 - z) * n + z * h
        return h, h

    h0 = jnp.zeros((B, H), jnp.float32)
    _, hs = lax.scan(step, h0, jnp.transpose(x, (1, 0, 2)))   # (S, B, H)
    o = jnp.transpose(hs, (1, 0, 2))                          # (B, S, H)

    a1 = jax.nn.relu(o @ p['w1'].T + p['b1'])
    a2 = jax.nn.relu(a1 @ p['w2'].T + p['b2'])
    score = a2 @ p['w3'].T + p['b3']                          # (B, S, 1)
    attn = jax.nn.softmax(score, axis=1)
    ctx = jnp.sum(o * attn, axis=1)                           # (B, H)
    return ctx @ p['wfc'].T + p['bfc']


if __name__ == "__main__":
    key = jax.random.PRNGKey(0)
    kx, kpkey = jax.random.split(key)
    x = jax.random.normal(kx, (B, S, IN), jnp.float32)
    params = init_params(kpkey)
    kparams = prepare_params(params)

    out = attention_pos_rnn_forward(x, kparams)
    out = jax.block_until_ready(out)

    ref = reference_forward(x, params)
    assert out.shape == (B, OUT)
    # bf16 storage of W_hh/W1/W2 (with f32 accumulation) introduces ~1e-4
    # deviations vs the pure-f32 reference; 2e-3 still catches any real bug.
    assert jnp.allclose(out, ref, atol=2e-3, rtol=2e-3), (out, ref)

    print("KERNEL_OK")
</pallas_src>

<mosaic_0001>
module attributes {stable_mosaic.version = 11 : i64} {
  func.func @fused_kernel(%arg0: memref<16x2xf32, #tpu.memory_space<vmem>>, %arg1: memref<2x768xf32, #tpu.memory_space<vmem>>, %arg2: memref<1x768xf32, #tpu.memory_space<vmem>>, %arg3: memref<1x256xf32, #tpu.memory_space<vmem>>, %arg4: memref<256x768xbf16, #tpu.memory_space<vmem>>, %arg5: memref<256x512xbf16, #tpu.memory_space<vmem>>, %arg6: memref<1x512xf32, #tpu.memory_space<vmem>>, %arg7: memref<512x256xbf16, #tpu.memory_space<vmem>>, %arg8: memref<1x256xf32, #tpu.memory_space<vmem>>, %arg9: memref<1x256xf32, #tpu.memory_space<vmem>>, %arg10: memref<256x9xf32, #tpu.memory_space<vmem>>, %arg11: memref<1x9xf32, #tpu.memory_space<vmem>>, %arg12: memref<2x9xf32, #tpu.memory_space<vmem>>, %arg13: memref<16x768xf32, #tpu.memory_space<vmem>>, %arg14: memref<16x256xf32, #tpu.memory_space<vmem>>) attributes {dimension_semantics = [], scalar_prefetch = 0 : i64, scratch_operands = 2 : i64, tpu.core_type = #tpu.core_type<tc>} {
    %c0 = arith.constant 0 : index
    %c0_0 = arith.constant 0 : index
    %0 = vector.load %arg0[%c0, %c0_0] : memref<16x2xf32, #tpu.memory_space<vmem>>, vector<16x2xf32>
    %c0_1 = arith.constant 0 : index
    %c0_2 = arith.constant 0 : index
    %1 = vector.load %arg1[%c0_1, %c0_2] : memref<2x768xf32, #tpu.memory_space<vmem>>, vector<2x768xf32>
    %c0_3 = arith.constant 0 : index
    %c0_4 = arith.constant 0 : index
    %2 = vector.load %arg2[%c0_3, %c0_4] : memref<1x768xf32, #tpu.memory_space<vmem>>, vector<1x768xf32>
    %3 = vector.extract_strided_slice %0 {offsets = [0, 0], sizes = [16, 1], strides = [1, 1]} : vector<16x2xf32> to vector<16x1xf32>
    %4 = vector.extract_strided_slice %1 {offsets = [0, 0], sizes = [1, 768], strides = [1, 1]} : vector<2x768xf32> to vector<1x768xf32>
    %5 = vector.broadcast %3 : vector<16x1xf32> to vector<16x768xf32>
    %6 = vector.broadcast %4 : vector<1x768xf32> to vector<16x768xf32>
    %7 = arith.mulf %5, %6 : vector<16x768xf32>
    %8 = vector.broadcast %2 : vector<1x768xf32> to vector<16x768xf32>
    %9 = arith.addf %8, %7 : vector<16x768xf32>
    %10 = vector.extract_strided_slice %0 {offsets = [0, 1], sizes = [16, 1], strides = [1, 1]} : vector<16x2xf32> to vector<16x1xf32>
    %11 = vector.extract_strided_slice %1 {offsets = [1, 0], sizes = [1, 768], strides = [1, 1]} : vector<2x768xf32> to vector<1x768xf32>
    %12 = vector.broadcast %10 : vector<16x1xf32> to vector<16x768xf32>
    %13 = vector.broadcast %11 : vector<1x768xf32> to vector<16x768xf32>
    %14 = arith.mulf %12, %13 : vector<16x768xf32>
    %15 = arith.addf %9, %14 : vector<16x768xf32>
    %c0_5 = arith.constant 0 : index
    %c0_6 = arith.constant 0 : index
    %16 = vector.load %arg13[%c0_5, %c0_6] : memref<16x768xf32, #tpu.memory_space<vmem>>, vector<16x768xf32>
    tpu.vector_store %arg13[%c0_5, %c0_6], %15 {strides = array<i32>} : memref<16x768xf32, #tpu.memory_space<vmem>>, vector<16x768xf32>,
    %cst = arith.constant 0.000000e+00 : f32
    %17 = vector.broadcast %cst : f32 to vector<2x256xf32>
    %c0_7 = arith.constant 0 : index
    %c0_8 = arith.constant 0 : index
    %18 = vector.load %arg13[%c0_7, %c0_8] : memref<16x768xf32, #tpu.memory_space<vmem>>, vector<2x768xf32>
    %19 = arith.truncf %17 : vector<2x256xf32> to vector<2x256xbf16>
    %c0_9 = arith.constant 0 : index
    %c0_10 = arith.constant 0 : index
    %20 = vector.load %arg4[%c0_9, %c0_10] : memref<256x768xbf16, #tpu.memory_space<vmem>>, vector<256x768xbf16>
    %cst_11 = arith.constant dense<0.000000e+00> : vector<2x768xf32>
    %21 = tpu.matmul %19, %20, %cst_11 {dimension_numbers = #tpu.dot_dimension_numbers<[1], [0], [0], [1], [0, 0, 1, 1], [], []>} : vector<2x256xbf16>, vector<256x768xbf16>, vector<2x768xf32> -> vector<2x768xf32>
    %22 = vector.extract_strided_slice %18 {offsets = [0, 0], sizes = [2, 256], strides = [1, 1]} : vector<2x768xf32> to vector<2x256xf32>
    %23 = vector.extract_strided_slice %21 {offsets = [0, 0], sizes = [2, 256], strides = [1, 1]} : vector<2x768xf32> to vector<2x256xf32>
    %24 = arith.addf %22, %23 : vector<2x256xf32>
    %25 = arith.negf %24 : vector<2x256xf32>
    %26 = math.exp %25 : vector<2x256xf32>
    %cst_12 = arith.constant 1.000000e+00 : f32
    %27 = vector.broadcast %cst_12 : f32 to vector<2x256xf32>
    %28 = arith.addf %27, %26 : vector<2x256xf32>
    %29 = arith.divf %27, %28 : vector<2x256xf32>
    %30 = vector.extract_strided_slice %18 {offsets = [0, 256], sizes = [2, 256], strides = [1, 1]} : vector<2x768xf32> to vector<2x256xf32>
    %31 = vector.extract_strided_slice %21 {offsets = [0, 256], sizes = [2, 256], strides = [1, 1]} : vector<2x768xf32> to vector<2x256xf32>
    %32 = arith.addf %30, %31 : vector<2x256xf32>
    %33 = arith.negf %32 : vector<2x256xf32>
    %34 = math.exp %33 : vector<2x256xf32>
    %cst_13 = arith.constant 1.000000e+00 : f32
    %35 = vector.broadcast %cst_13 : f32 to vector<2x256xf32>
    %36 = arith.addf %35, %34 : vector<2x256xf32>
    %37 = arith.divf %35, %36 : vector<2x256xf32>
    %38 = vector.extract_strided_slice %18 {offsets = [0, 512], sizes = [2, 256], strides = [1, 1]} : vector<2x768xf32> to vector<2x256xf32>
    %39 = vector.extract_strided_slice %21 {offsets = [0, 512], sizes = [2, 256], strides = [1, 1]} : vector<2x768xf32> to vector<2x256xf32>
    %c0_14 = arith.constant 0 : index
    %c0_15 = arith.constant 0 : index
    %40 = vector.load %arg3[%c0_14, %c0_15] : memref<1x256xf32, #tpu.memory_space<vmem>>, vector<1x256xf32>
    %41 = vector.broadcast %40 : vector<1x256xf32> to vector<2x256xf32>
    %42 = arith.addf %39, %41 : vector<2x256xf32>
    %43 = arith.mulf %29, %42 : vector<2x256xf32>
    %44 = arith.addf %38, %43 : vector<2x256xf32>
    %45 = math.tanh %44 : vector<2x256xf32>
    %cst_16 = arith.constant 1.000000e+00 : f32
    %46 = vector.broadcast %cst_16 : f32 to vector<2x256xf32>
    %47 = arith.subf %46, %37 : vector<2x256xf32>
    %48 = arith.mulf %47, %45 : vector<2x256xf32>
    %49 = arith.mulf %37, %17 : vector<2x256xf32>
    %50 = arith.addf %48, %49 : vector<2x256xf32>
    %c0_17 = arith.constant 0 : index
    %c0_18 = arith.constant 0 : index
    %51 = vector.load %arg14[%c0_17, %c0_18] : memref<16x256xf32, #tpu.memory_space<vmem>>, vector<2x256xf32>
    tpu.vector_store %arg14[%c0_17, %c0_18], %50 {strides = array<i32>} : memref<16x256xf32, #tpu.memory_space<vmem>>, vector<2x256xf32>,
    %c2 = arith.constant 2 : index
    %c0_19 = arith.constant 0 : index
    %52 = vector.load %arg13[%c2, %c0_19] : memref<16x768xf32, #tpu.memory_space<vmem>>, vector<2x768xf32>
    %53 = arith.truncf %50 : vector<2x256xf32> to vector<2x256xbf16>
    %c0_20 = arith.constant 0 : index
    %c0_21 = arith.constant 0 : index
    %54 = vector.load %arg4[%c0_20, %c0_21] : memref<256x768xbf16, #tpu.memory_space<vmem>>, vector<256x768xbf16>
    %cst_22 = arith.constant dense<0.000000e+00> : vector<2x768xf32>
    %55 = tpu.matmul %53, %54, %cst_22 {dimension_numbers = #tpu.dot_dimension_numbers<[1], [0], [0], [1], [0, 0, 1, 1], [], []>} : vector<2x256xbf16>, vector<256x768xbf16>, vector<2x768xf32> -> vector<2x768xf32>
    %56 = vector.extract_strided_slice %52 {offsets = [0, 0], sizes = [2, 256], strides = [1, 1]} : vector<2x768xf32> to vector<2x256xf32>
    %57 = vector.extract_strided_slice %55 {offsets = [0, 0], sizes = [2, 256], strides = [1, 1]} : vector<2x768xf32> to vector<2x256xf32>
    %58 = arith.addf %56, %57 : vector<2x256xf32>
    %59 = arith.negf %58 : vector<2x256xf32>
    %60 = math.exp %59 : vector<2x256xf32>
    %cst_23 = arith.constant 1.000000e+00 : f32
    %61 = vector.broadcast %cst_23 : f32 to vector<2x256xf32>
    %62 = arith.addf %61, %60 : vector<2x256xf32>
    %63 = arith.divf %61, %62 : vector<2x256xf32>
    %64 = vector.extract_strided_slice %52 {offsets = [0, 256], sizes = [2, 256], strides = [1, 1]} : vector<2x768xf32> to vector<2x256xf32>
    %65 = vector.extract_strided_slice %55 {offsets = [0, 256], sizes = [2, 256], strides = [1, 1]} : vector<2x768xf32> to vector<2x256xf32>
    %66 = arith.addf %64, %65 : vector<2x256xf32>
    %67 = arith.negf %66 : vector<2x256xf32>
    %68 = math.exp %67 : vector<2x256xf32>
    %cst_24 = arith.constant 1.000000e+00 : f32
    %69 = vector.broadcast %cst_24 : f32 to vector<2x256xf32>
    %70 = arith.addf %69, %68 : vector<2x256xf32>
    %71 = arith.divf %69, %70 : vector<2x256xf32>
    %72 = vector.extract_strided_slice %52 {offsets = [0, 512], sizes = [2, 256], strides = [1, 1]} : vector<2x768xf32> to vector<2x256xf32>
    %73 = vector.extract_strided_slice %55 {offsets = [0, 512], sizes = [2, 256], strides = [1, 1]} : vector<2x768xf32> to vector<2x256xf32>
    %c0_25 = arith.constant 0 : index
    %c0_26 = arith.constant 0 : index
    %74 = vector.load %arg3[%c0_25, %c0_26] : memref<1x256xf32, #tpu.memory_space<vmem>>, vector<1x256xf32>
    %75 = vector.broadcast %74 : vector<1x256xf32> to vector<2x256xf32>
    %76 = arith.addf %73, %75 : vector<2x256xf32>
    %77 = arith.mulf %63, %76 : vector<2x256xf32>
    %78 = arith.addf %72, %77 : vector<2x256xf32>
    %79 = math.tanh %78 : vector<2x256xf32>
    %cst_27 = arith.constant 1.000000e+00 : f32
    %80 = vector.broadcast %cst_27 : f32 to vector<2x256xf32>
    %81 = arith.subf %80, %71 : vector<2x256xf32>
    %82 = arith.mulf %81, %79 : vector<2x256xf32>
    %83 = arith.mulf %71, %50 : vector<2x256xf32>
    %84 = arith.addf %82, %83 : vector<2x256xf32>
    %c2_28 = arith.constant 2 : index
    %c0_29 = arith.constant 0 : index
    %85 = vector.load %arg14[%c2_28, %c0_29] : memref<16x256xf32, #tpu.memory_space<vmem>>, vector<2x256xf32>
    tpu.vector_store %arg14[%c2_28, %c0_29], %84 {strides = array<i32>} : memref<16x256xf32, #tpu.memory_space<vmem>>, vector<2x256xf32>,
    %c4 = arith.constant 4 : index
    %c0_30 = arith.constant 0 : index
    %86 = vector.load %arg13[%c4, %c0_30] : memref<16x768xf32, #tpu.memory_space<vmem>>, vector<2x768xf32>
    %87 = arith.truncf %84 : vector<2x256xf32> to vector<2x256xbf16>
    %c0_31 = arith.constant 0 : index
    %c0_32 = arith.constant 0 : index
    %88 = vector.load %arg4[%c0_31, %c0_32] : memref<256x768xbf16, #tpu.memory_space<vmem>>, vector<256x768xbf16>
    %cst_33 = arith.constant dense<0.000000e+00> : vector<2x768xf32>
    %89 = tpu.matmul %87, %88, %cst_33 {dimension_numbers = #tpu.dot_dimension_numbers<[1], [0], [0], [1], [0, 0, 1, 1], [], []>} : vector<2x256xbf16>, vector<256x768xbf16>, vector<2x768xf32> -> vector<2x768xf32>
    %90 = vector.extract_strided_slice %86 {offsets = [0, 0], sizes = [2, 256], strides = [1, 1]} : vector<2x768xf32> to vector<2x256xf32>
    %91 = vector.extract_strided_slice %89 {offsets = [0, 0], sizes = [2, 256], strides = [1, 1]} : vector<2x768xf32> to vector<2x256xf32>
    %92 = arith.addf %90, %91 : vector<2x256xf32>
    %93 = arith.negf %92 : vector<2x256xf32>
    %94 = math.exp %93 : vector<2x256xf32>
    %cst_34 = arith.constant 1.000000e+00 : f32
    %95 = vector.broadcast %cst_34 : f32 to vector<2x256xf32>
    %96 = arith.addf %95, %94 : vector<2x256xf32>
    %97 = arith.divf %95, %96 : vector<2x256xf32>
    %98 = vector.extract_strided_slice %86 {offsets = [0, 256], sizes = [2, 256], strides = [1, 1]} : vector<2x768xf32> to vector<2x256xf32>
    %99 = vector.extract_strided_slice %89 {offsets = [0, 256], sizes = [2, 256], strides = [1, 1]} : vector<2x768xf32> to vector<2x256xf32>
    %100 = arith.addf %98, %99 : vector<2x256xf32>
    %101 = arith.negf %100 : vector<2x256xf32>
    %102 = math.exp %101 : vector<2x256xf32>
    %cst_35 = arith.constant 1.000000e+00 : f32
    %103 = vector.broadcast %cst_35 : f32 to vector<2x256xf32>
    %104 = arith.addf %103, %102 : vector<2x256xf32>
    %105 = arith.divf %103, %104 : vector<2x256xf32>
    %106 = vector.extract_strided_slice %86 {offsets = [0, 512], sizes = [2, 256], strides = [1, 1]} : vector<2x768xf32> to vector<2x256xf32>
    %107 = vector.extract_strided_slice %89 {offsets = [0, 512], sizes = [2, 256], strides = [1, 1]} : vector<2x768xf32> to vector<2x256xf32>
    %c0_36 = arith.constant 0 : index
    %c0_37 = arith.constant 0 : index
    %108 = vector.load %arg3[%c0_36, %c0_37] : memref<1x256xf32, #tpu.memory_space<vmem>>, vector<1x256xf32>
    %109 = vector.broadcast %108 : vector<1x256xf32> to vector<2x256xf32>
    %110 = arith.addf %107, %109 : vector<2x256xf32>
    %111 = arith.mulf %97, %110 : vector<2x256xf32>
    %112 = arith.addf %106, %111 : vector<2x256xf32>
    %113 = math.tanh %112 : vector<2x256xf32>
    %cst_38 = arith.constant 1.000000e+00 : f32
    %114 = vector.broadcast %cst_38 : f32 to vector<2x256xf32>
    %115 = arith.subf %114, %105 : vector<2x256xf32>
    %116 = arith.mulf %115, %113 : vector<2x256xf32>
    %117 = arith.mulf %105, %84 : vector<2x256xf32>
    %118 = arith.addf %116, %117 : vector<2x256xf32>
    %c4_39 = arith.constant 4 : index
    %c0_40 = arith.constant 0 : index
    %119 = vector.load %arg14[%c4_39, %c0_40] : memref<16x256xf32, #tpu.memory_space<vmem>>, vector<2x256xf32>
    tpu.vector_store %arg14[%c4_39, %c0_40], %118 {strides = array<i32>} : memref<16x256xf32, #tpu.memory_space<vmem>>, vector<2x256xf32>,
    %c6 = arith.constant 6 : index
    %c0_41 = arith.constant 0 : index
    %120 = vector.load %arg13[%c6, %c0_41] : memref<16x768xf32, #tpu.memory_space<vmem>>, vector<2x768xf32>
    %121 = arith.truncf %118 : vector<2x256xf32> to vector<2x256xbf16>
    %c0_42 = arith.constant 0 : index
    %c0_43 = arith.constant 0 : index
    %122 = vector.load %arg4[%c0_42, %c0_43] : memref<256x768xbf16, #tpu.memory_space<vmem>>, vector<256x768xbf16>
    %cst_44 = arith.constant dense<0.000000e+00> : vector<2x768xf32>
    %123 = tpu.matmul %121, %122, %cst_44 {dimension_numbers = #tpu.dot_dimension_numbers<[1], [0], [0], [1], [0, 0, 1, 1], [], []>} : vector<2x256xbf16>, vector<256x768xbf16>, vector<2x768xf32> -> vector<2x768xf32>
    %124 = vector.extract_strided_slice %120 {offsets = [0, 0], sizes = [2, 256], strides = [1, 1]} : vector<2x768xf32> to vector<2x256xf32>
    %125 = vector.extract_strided_slice %123 {offsets = [0, 0], sizes = [2, 256], strides = [1, 1]} : vector<2x768xf32> to vector<2x256xf32>
    %126 = arith.addf %124, %125 : vector<2x256xf32>
    %127 = arith.negf %126 : vector<2x256xf32>
    %128 = math.exp %127 : vector<2x256xf32>
    %cst_45 = arith.constant 1.000000e+00 : f32
    %129 = vector.broadcast %cst_45 : f32 to vector<2x256xf32>
    %130 = arith.addf %129, %128 : vector<2x256xf32>
    %131 = arith.divf %129, %130 : vector<2x256xf32>
    %132 = vector.extract_strided_slice %120 {offsets = [0, 256], sizes = [2, 256], strides = [1, 1]} : vector<2x768xf32> to vector<2x256xf32>
    %133 = vector.extract_strided_slice %123 {offsets = [0, 256], sizes = [2, 256], strides = [1, 1]} : vector<2x768xf32> to vector<2x256xf32>
    %134 = arith.addf %132, %133 : vector<2x256xf32>
    %135 = arith.negf %134 : vector<2x256xf32>
    %136 = math.exp %135 : vector<2x256xf32>
    %cst_46 = arith.constant 1.000000e+00 : f32
    %137 = vector.broadcast %cst_46 : f32 to vector<2x256xf32>
    %138 = arith.addf %137, %136 : vector<2x256xf32>
    %139 = arith.divf %137, %138 : vector<2x256xf32>
    %140 = vector.extract_strided_slice %120 {offsets = [0, 512], sizes = [2, 256], strides = [1, 1]} : vector<2x768xf32> to vector<2x256xf32>
    %141 = vector.extract_strided_slice %123 {offsets = [0, 512], sizes = [2, 256], strides = [1, 1]} : vector<2x768xf32> to vector<2x256xf32>
    %c0_47 = arith.constant 0 : index
    %c0_48 = arith.constant 0 : index
    %142 = vector.load %arg3[%c0_47, %c0_48] : memref<1x256xf32, #tpu.memory_space<vmem>>, vector<1x256xf32>
    %143 = vector.broadcast %142 : vector<1x256xf32> to vector<2x256xf32>
    %144 = arith.addf %141, %143 : vector<2x256xf32>
    %145 = arith.mulf %131, %144 : vector<2x256xf32>
    %146 = arith.addf %140, %145 : vector<2x256xf32>
    %147 = math.tanh %146 : vector<2x256xf32>
    %cst_49 = arith.constant 1.000000e+00 : f32
    %148 = vector.broadcast %cst_49 : f32 to vector<2x256xf32>
    %149 = arith.subf %148, %139 : vector<2x256xf32>
    %150 = arith.mulf %149, %147 : vector<2x256xf32>
    %151 = arith.mulf %139, %118 : vector<2x256xf32>
    %152 = arith.addf %150, %151 : vector<2x256xf32>
    %c6_50 = arith.constant 6 : index
    %c0_51 = arith.constant 0 : index
    %153 = vector.load %arg14[%c6_50, %c0_51] : memref<16x256xf32, #tpu.memory_space<vmem>>, vector<2x256xf32>
    tpu.vector_store %arg14[%c6_50, %c0_51], %152 {strides = array<i32>} : memref<16x256xf32, #tpu.memory_space<vmem>>, vector<2x256xf32>,
    %c8 = arith.constant 8 : index
    %c0_52 = arith.constant 0 : index
    %154 = vector.load %arg13[%c8, %c0_52] : memref<16x768xf32, #tpu.memory_space<vmem>>, vector<2x768xf32>
    %155 = arith.truncf %152 : vector<2x256xf32> to vector<2x256xbf16>
    %c0_53 = arith.constant 0 : index
    %c0_54 = arith.constant 0 : index
    %156 = vector.load %arg4[%c0_53, %c0_54] : memref<256x768xbf16, #tpu.memory_space<vmem>>, vector<256x768xbf16>
    %cst_55 = arith.constant dense<0.000000e+00> : vector<2x768xf32>
    %157 = tpu.matmul %155, %156, %cst_55 {dimension_numbers = #tpu.dot_dimension_numbers<[1], [0], [0], [1], [0, 0, 1, 1], [], []>} : vector<2x256xbf16>, vector<256x768xbf16>, vector<2x768xf32> -> vector<2x768xf32>
    %158 = vector.extract_strided_slice %154 {offsets = [0, 0], sizes = [2, 256], strides = [1, 1]} : vector<2x768xf32> to vector<2x256xf32>
    %159 = vector.extract_strided_slice %157 {offsets = [0, 0], sizes = [2, 256], strides = [1, 1]} : vector<2x768xf32> to vector<2x256xf32>
    %160 = arith.addf %158, %159 : vector<2x256xf32>
    %161 = arith.negf %160 : vector<2x256xf32>
    %162 = math.exp %161 : vector<2x256xf32>
    %cst_56 = arith.constant 1.000000e+00 : f32
    %163 = vector.broadcast %cst_56 : f32 to vector<2x256xf32>
    %164 = arith.addf %163, %162 : vector<2x256xf32>
    %165 = arith.divf %163, %164 : vector<2x256xf32>
    %166 = vector.extract_strided_slice %154 {offsets = [0, 256], sizes = [2, 256], strides = [1, 1]} : vector<2x768xf32> to vector<2x256xf32>
    %167 = vector.extract_strided_slice %157 {offsets = [0, 256], sizes = [2, 256], strides = [1, 1]} : vector<2x768xf32> to vector<2x256xf32>
    %168 = arith.addf %166, %167 : vector<2x256xf32>
    %169 = arith.negf %168 : vector<2x256xf32>
    %170 = math.exp %169 : vector<2x256xf32>
    %cst_57 = arith.constant 1.000000e+00 : f32
    %171 = vector.broadcast %cst_57 : f32 to vector<2x256xf32>
    %172 = arith.addf %171, %170 : vector<2x256xf32>
    %173 = arith.divf %171, %172 : vector<2x256xf32>
    %174 = vector.extract_strided_slice %154 {offsets = [0, 512], sizes = [2, 256], strides = [1, 1]} : vector<2x768xf32> to vector<2x256xf32>
    %175 = vector.extract_strided_slice %157 {offsets = [0, 512], sizes = [2, 256], strides = [1, 1]} : vector<2x768xf32> to vector<2x256xf32>
    %c0_58 = arith.constant 0 : index
    %c0_59 = arith.constant 0 : index
    %176 = vector.load %arg3[%c0_58, %c0_59] : memref<1x256xf32, #tpu.memory_space<vmem>>, vector<1x256xf32>
    %177 = vector.broadcast %176 : vector<1x256xf32> to vector<2x256xf32>
    %178 = arith.addf %175, %177 : vector<2x256xf32>
    %179 = arith.mulf %165, %178 : vector<2x256xf32>
    %180 = arith.addf %174, %179 : vector<2x256xf32>
    %181 = math.tanh %180 : vector<2x256xf32>
    %cst_60 = arith.constant 1.000000e+00 : f32
    %182 = vector.broadcast %cst_60 : f32 to vector<2x256xf32>
    %183 = arith.subf %182, %173 : vector<2x256xf32>
    %184 = arith.mulf %183, %181 : vector<2x256xf32>
    %185 = arith.mulf %173, %152 : vector<2x256xf32>
    %186 = arith.addf %184, %185 : vector<2x256xf32>
    %c8_61 = arith.constant 8 : index
    %c0_62 = arith.constant 0 : index
    %187 = vector.load %arg14[%c8_61, %c0_62] : memref<16x256xf32, #tpu.memory_space<vmem>>, vector<2x256xf32>
    tpu.vector_store %arg14[%c8_61, %c0_62], %186 {strides = array<i32>} : memref<16x256xf32, #tpu.memory_space<vmem>>, vector<2x256xf32>,
    %c10 = arith.constant 10 : index
    %c0_63 = arith.constant 0 : index
    %188 = vector.load %arg13[%c10, %c0_63] : memref<16x768xf32, #tpu.memory_space<vmem>>, vector<2x768xf32>
    %189 = arith.truncf %186 : vector<2x256xf32> to vector<2x256xbf16>
    %c0_64 = arith.constant 0 : index
    %c0_65 = arith.constant 0 : index
    %190 = vector.load %arg4[%c0_64, %c0_65] : memref<256x768xbf16, #tpu.memory_space<vmem>>, vector<256x768xbf16>
    %cst_66 = arith.constant dense<0.000000e+00> : vector<2x768xf32>
    %191 = tpu.matmul %189, %190, %cst_66 {dimension_numbers = #tpu.dot_dimension_numbers<[1], [0], [0], [1], [0, 0, 1, 1], [], []>} : vector<2x256xbf16>, vector<256x768xbf16>, vector<2x768xf32> -> vector<2x768xf32>
    %192 = vector.extract_strided_slice %188 {offsets = [0, 0], sizes = [2, 256], strides = [1, 1]} : vector<2x768xf32> to vector<2x256xf32>
    %193 = vector.extract_strided_slice %191 {offsets = [0, 0], sizes = [2, 256], strides = [1, 1]} : vector<2x768xf32> to vector<2x256xf32>
    %194 = arith.addf %192, %193 : vector<2x256xf32>
    %195 = arith.negf %194 : vector<2x256xf32>
    %196 = math.exp %195 : vector<2x256xf32>
    %cst_67 = arith.constant 1.000000e+00 : f32
    %197 = vector.broadcast %cst_67 : f32 to vector<2x256xf32>
    %198 = arith.addf %197, %196 : vector<2x256xf32>
    %199 = arith.divf %197, %198 : vector<2x256xf32>
    %200 = vector.extract_strided_slice %188 {offsets = [0, 256], sizes = [2, 256], strides = [1, 1]} : vector<2x768xf32> to vector<2x256xf32>
    %201 = vector.extract_strided_slice %191 {offsets = [0, 256], sizes = [2, 256], strides = [1, 1]} : vector<2x768xf32> to vector<2x256xf32>
    %202 = arith.addf %200, %201 : vector<2x256xf32>
    %203 = arith.negf %202 : vector<2x256xf32>
    %204 = math.exp %203 : vector<2x256xf32>
    %cst_68 = arith.constant 1.000000e+00 : f32
    %205 = vector.broadcast %cst_68 : f32 to vector<2x256xf32>
    %206 = arith.addf %205, %204 : vector<2x256xf32>
    %207 = arith.divf %205, %206 : vector<2x256xf32>
    %208 = vector.extract_strided_slice %188 {offsets = [0, 512], sizes = [2, 256], strides = [1, 1]} : vector<2x768xf32> to vector<2x256xf32>
    %209 = vector.extract_strided_slice %191 {offsets = [0, 512], sizes = [2, 256], strides = [1, 1]} : vector<2x768xf32> to vector<2x256xf32>
    %c0_69 = arith.constant 0 : index
    %c0_70 = arith.constant 0 : index
    %210 = vector.load %arg3[%c0_69, %c0_70] : memref<1x256xf32, #tpu.memory_space<vmem>>, vector<1x256xf32>
    %211 = vector.broadcast %210 : vector<1x256xf32> to vector<2x256xf32>
    %212 = arith.addf %209, %211 : vector<2x256xf32>
    %213 = arith.mulf %199, %212 : vector<2x256xf32>
    %214 = arith.addf %208, %213 : vector<2x256xf32>
    %215 = math.tanh %214 : vector<2x256xf32>
    %cst_71 = arith.constant 1.000000e+00 : f32
    %216 = vector.broadcast %cst_71 : f32 to vector<2x256xf32>
    %217 = arith.subf %216, %207 : vector<2x256xf32>
    %218 = arith.mulf %217, %215 : vector<2x256xf32>
    %219 = arith.mulf %207, %186 : vector<2x256xf32>
    %220 = arith.addf %218, %219 : vector<2x256xf32>
    %c10_72 = arith.constant 10 : index
    %c0_73 = arith.constant 0 : index
    %221 = vector.load %arg14[%c10_72, %c0_73] : memref<16x256xf32, #tpu.memory_space<vmem>>, vector<2x256xf32>
    tpu.vector_store %arg14[%c10_72, %c0_73], %220 {strides = array<i32>} : memref<16x256xf32, #tpu.memory_space<vmem>>, vector<2x256xf32>,
    %c12 = arith.constant 12 : index
    %c0_74 = arith.constant 0 : index
    %222 = vector.load %arg13[%c12, %c0_74] : memref<16x768xf32, #tpu.memory_space<vmem>>, vector<2x768xf32>
    %223 = arith.truncf %220 : vector<2x256xf32> to vector<2x256xbf16>
    %c0_75 = arith.constant 0 : index
    %c0_76 = arith.constant 0 : index
    %224 = vector.load %arg4[%c0_75, %c0_76] : memref<256x768xbf16, #tpu.memory_space<vmem>>, vector<256x768xbf16>
    %cst_77 = arith.constant dense<0.000000e+00> : vector<2x768xf32>
    %225 = tpu.matmul %223, %224, %cst_77 {dimension_numbers = #tpu.dot_dimension_numbers<[1], [0], [0], [1], [0, 0, 1, 1], [], []>} : vector<2x256xbf16>, vector<256x768xbf16>, vector<2x768xf32> -> vector<2x768xf32>
    %226 = vector.extract_strided_slice %222 {offsets = [0, 0], sizes = [2, 256], strides = [1, 1]} : vector<2x768xf32> to vector<2x256xf32>
    %227 = vector.extract_strided_slice %225 {offsets = [0, 0], sizes = [2, 256], strides = [1, 1]} : vector<2x768xf32> to vector<2x256xf32>
    %228 = arith.addf %226, %227 : vector<2x256xf32>
    %229 = arith.negf %228 : vector<2x256xf32>
    %230 = math.exp %229 : vector<2x256xf32>
    %cst_78 = arith.constant 1.000000e+00 : f32
    %231 = vector.broadcast %cst_78 : f32 to vector<2x256xf32>
    %232 = arith.addf %231, %230 : vector<2x256xf32>
    %233 = arith.divf %231, %232 : vector<2x256xf32>
    %234 = vector.extract_strided_slice %222 {offsets = [0, 256], sizes = [2, 256], strides = [1, 1]} : vector<2x768xf32> to vector<2x256xf32>
    %235 = vector.extract_strided_slice %225 {offsets = [0, 256], sizes = [2, 256], strides = [1, 1]} : vector<2x768xf32> to vector<2x256xf32>
    %236 = arith.addf %234, %235 : vector<2x256xf32>
    %237 = arith.negf %236 : vector<2x256xf32>
    %238 = math.exp %237 : vector<2x256xf32>
    %cst_79 = arith.constant 1.000000e+00 : f32
    %239 = vector.broadcast %cst_79 : f32 to vector<2x256xf32>
    %240 = arith.addf %239, %238 : vector<2x256xf32>
    %241 = arith.divf %239, %240 : vector<2x256xf32>
    %242 = vector.extract_strided_slice %222 {offsets = [0, 512], sizes = [2, 256], strides = [1, 1]} : vector<2x768xf32> to vector<2x256xf32>
    %243 = vector.extract_strided_slice %225 {offsets = [0, 512], sizes = [2, 256], strides = [1, 1]} : vector<2x768xf32> to vector<2x256xf32>
    %c0_80 = arith.constant 0 : index
    %c0_81 = arith.constant 0 : index
    %244 = vector.load %arg3[%c0_80, %c0_81] : memref<1x256xf32, #tpu.memory_space<vmem>>, vector<1x256xf32>
    %245 = vector.broadcast %244 : vector<1x256xf32> to vector<2x256xf32>
    %246 = arith.addf %243, %245 : vector<2x256xf32>
    %247 = arith.mulf %233, %246 : vector<2x256xf32>
    %248 = arith.addf %242, %247 : vector<2x256xf32>
    %249 = math.tanh %248 : vector<2x256xf32>
    %cst_82 = arith.constant 1.000000e+00 : f32
    %250 = vector.broadcast %cst_82 : f32 to vector<2x256xf32>
    %251 = arith.subf %250, %241 : vector<2x256xf32>
    %252 = arith.mulf %251, %249 : vector<2x256xf32>
    %253 = arith.mulf %241, %220 : vector<2x256xf32>
    %254 = arith.addf %252, %253 : vector<2x256xf32>
    %c12_83 = arith.constant 12 : index
    %c0_84 = arith.constant 0 : index
    %255 = vector.load %arg14[%c12_83, %c0_84] : memref<16x256xf32, #tpu.memory_space<vmem>>, vector<2x256xf32>
    tpu.vector_store %arg14[%c12_83, %c0_84], %254 {strides = array<i32>} : memref<16x256xf32, #tpu.memory_space<vmem>>, vector<2x256xf32>,
    %c14 = arith.constant 14 : index
    %c0_85 = arith.constant 0 : index
    %256 = vector.load %arg13[%c14, %c0_85] : memref<16x768xf32, #tpu.memory_space<vmem>>, vector<2x768xf32>
    %257 = arith.truncf %254 : vector<2x256xf32> to vector<2x256xbf16>
    %c0_86 = arith.constant 0 : index
    %c0_87 = arith.constant 0 : index
    %258 = vector.load %arg4[%c0_86, %c0_87] : memref<256x768xbf16, #tpu.memory_space<vmem>>, vector<256x768xbf16>
    %cst_88 = arith.constant dense<0.000000e+00> : vector<2x768xf32>
    %259 = tpu.matmul %257, %258, %cst_88 {dimension_numbers = #tpu.dot_dimension_numbers<[1], [0], [0], [1], [0, 0, 1, 1], [], []>} : vector<2x256xbf16>, vector<256x768xbf16>, vector<2x768xf32> -> vector<2x768xf32>
    %260 = vector.extract_strided_slice %256 {offsets = [0, 0], sizes = [2, 256], strides = [1, 1]} : vector<2x768xf32> to vector<2x256xf32>
    %261 = vector.extract_strided_slice %259 {offsets = [0, 0], sizes = [2, 256], strides = [1, 1]} : vector<2x768xf32> to vector<2x256xf32>
    %262 = arith.addf %260, %261 : vector<2x256xf32>
    %263 = arith.negf %262 : vector<2x256xf32>
    %264 = math.exp %263 : vector<2x256xf32>
    %cst_89 = arith.constant 1.000000e+00 : f32
    %265 = vector.broadcast %cst_89 : f32 to vector<2x256xf32>
    %266 = arith.addf %265, %264 : vector<2x256xf32>
    %267 = arith.divf %265, %266 : vector<2x256xf32>
    %268 = vector.extract_strided_slice %256 {offsets = [0, 256], sizes = [2, 256], strides = [1, 1]} : vector<2x768xf32> to vector<2x256xf32>
    %269 = vector.extract_strided_slice %259 {offsets = [0, 256], sizes = [2, 256], strides = [1, 1]} : vector<2x768xf32> to vector<2x256xf32>
    %270 = arith.addf %268, %269 : vector<2x256xf32>
    %271 = arith.negf %270 : vector<2x256xf32>
    %272 = math.exp %271 : vector<2x256xf32>
    %cst_90 = arith.constant 1.000000e+00 : f32
    %273 = vector.broadcast %cst_90 : f32 to vector<2x256xf32>
    %274 = arith.addf %273, %272 : vector<2x256xf32>
    %275 = arith.divf %273, %274 : vector<2x256xf32>
    %276 = vector.extract_strided_slice %256 {offsets = [0, 512], sizes = [2, 256], strides = [1, 1]} : vector<2x768xf32> to vector<2x256xf32>
    %277 = vector.extract_strided_slice %259 {offsets = [0, 512], sizes = [2, 256], strides = [1, 1]} : vector<2x768xf32> to vector<2x256xf32>
    %c0_91 = arith.constant 0 : index
    %c0_92 = arith.constant 0 : index
    %278 = vector.load %arg3[%c0_91, %c0_92] : memref<1x256xf32, #tpu.memory_space<vmem>>, vector<1x256xf32>
    %279 = vector.broadcast %278 : vector<1x256xf32> to vector<2x256xf32>
    %280 = arith.addf %277, %279 : vector<2x256xf32>
    %281 = arith.mulf %267, %280 : vector<2x256xf32>
    %282 = arith.addf %276, %281 : vector<2x256xf32>
    %283 = math.tanh %282 : vector<2x256xf32>
    %cst_93 = arith.constant 1.000000e+00 : f32
    %284 = vector.broadcast %cst_93 : f32 to vector<2x256xf32>
    %285 = arith.subf %284, %275 : vector<2x256xf32>
    %286 = arith.mulf %285, %283 : vector<2x256xf32>
    %287 = arith.mulf %275, %254 : vector<2x256xf32>
    %288 = arith.addf %286, %287 : vector<2x256xf32>
    %c14_94 = arith.constant 14 : index
    %c0_95 = arith.constant 0 : index
    %289 = vector.load %arg14[%c14_94, %c0_95] : memref<16x256xf32, #tpu.memory_space<vmem>>, vector<2x256xf32>
    tpu.vector_store %arg14[%c14_94, %c0_95], %288 {strides = array<i32>} : memref<16x256xf32, #tpu.memory_space<vmem>>, vector<2x256xf32>,
    %c0_96 = arith.constant 0 : index
    %c0_97 = arith.constant 0 : index
    %290 = vector.load %arg14[%c0_96, %c0_97] : memref<16x256xf32, #tpu.memory_space<vmem>>, vector<16x256xf32>
    %291 = arith.truncf %290 : vector<16x256xf32> to vector<16x256xbf16>
    %c0_98 = arith.constant 0 : index
    %c0_99 = arith.constant 0 : index
    %292 = vector.load %arg5[%c0_98, %c0_99] : memref<256x512xbf16, #tpu.memory_space<vmem>>, vector<256x512xbf16>
    %cst_100 = arith.constant dense<0.000000e+00> : vector<16x512xf32>
    %293 = tpu.matmul %291, %292, %cst_100 {dimension_numbers = #tpu.dot_dimension_numbers<[1], [0], [0], [1], [0, 0, 1, 1], [], []>} : vector<16x256xbf16>, vector<256x512xbf16>, vector<16x512xf32> -> vector<16x512xf32>
    %c0_101 = arith.constant 0 : index
    %c0_102 = arith.constant 0 : index
    %294 = vector.load %arg6[%c0_101, %c0_102] : memref<1x512xf32, #tpu.memory_space<vmem>>, vector<1x512xf32>
    %295 = vector.broadcast %294 : vector<1x512xf32> to vector<16x512xf32>
    %296 = arith.addf %293, %295 : vector<16x512xf32>
    %cst_103 = arith.constant 0.000000e+00 : f32
    %297 = vector.broadcast %cst_103 : f32 to vector<16x512xf32>
    %298 = arith.maximumf %296, %297 : vector<16x512xf32>
    %299 = arith.truncf %298 : vector<16x512xf32> to vector<16x512xbf16>
    %c0_104 = arith.constant 0 : index
    %c0_105 = arith.constant 0 : index
    %300 = vector.load %arg7[%c0_104, %c0_105] : memref<512x256xbf16, #tpu.memory_space<vmem>>, vector<512x256xbf16>
    %cst_106 = arith.constant dense<0.000000e+00> : vector<16x256xf32>
    %301 = tpu.matmul %299, %300, %cst_106 {dimension_numbers = #tpu.dot_dimension_numbers<[1], [0], [0], [1], [0, 0, 1, 1], [], []>} : vector<16x512xbf16>, vector<512x256xbf16>, vector<16x256xf32> -> vector<16x256xf32>
    %c0_107 = arith.constant 0 : index
    %c0_108 = arith.constant 0 : index
    %302 = vector.load %arg8[%c0_107, %c0_108] : memref<1x256xf32, #tpu.memory_space<vmem>>, vector<1x256xf32>
    %303 = vector.broadcast %302 : vector<1x256xf32> to vector<16x256xf32>
    %304 = arith.addf %301, %303 : vector<16x256xf32>
    %cst_109 = arith.constant 0.000000e+00 : f32
    %305 = vector.broadcast %cst_109 : f32 to vector<16x256xf32>
    %306 = arith.maximumf %304, %305 : vector<16x256xf32>
    %c0_110 = arith.constant 0 : index
    %c0_111 = arith.constant 0 : index
    %307 = vector.load %arg9[%c0_110, %c0_111] : memref<1x256xf32, #tpu.memory_space<vmem>>, vector<1x256xf32>
    %308 = vector.broadcast %307 : vector<1x256xf32> to vector<16x256xf32>
    %309 = arith.mulf %306, %308 : vector<16x256xf32>
    %cst_112 = arith.constant dense<0.000000e+00> : vector<16xf32>
    %310 = vector.multi_reduction <add>, %309, %cst_112 [1] : vector<16x256xf32> to vector<16xf32>
    %311 = vector.shape_cast %310 : vector<16xf32> to vector<16x1xf32>
    %cst_113 = arith.constant dense<0xFF800000> : vector<1xf32>
    %312 = vector.multi_reduction <maximumf>, %311, %cst_113 [0] : vector<16x1xf32> to vector<1xf32>
    %313 = vector.shape_cast %312 : vector<1xf32> to vector<1x1xf32>
    %314 = vector.broadcast %313 : vector<1x1xf32> to vector<16x1xf32>
    %315 = arith.subf %311, %314 : vector<16x1xf32>
    %316 = math.exp %315 : vector<16x1xf32>
    %317 = tpu.iota {dimensions = array<i32: 0>} : vector<16x16xi32>
    %318 = tpu.iota {dimensions = array<i32: 1>} : vector<16x16xi32>
    %c2_i32 = arith.constant 2 : i32
    %c0_i32 = arith.constant 0 : i32
    %319 = arith.cmpi eq, %c2_i32, %c0_i32 : i32
    %c1_i32 = arith.constant 1 : i32
    %320 = arith.select %319, %c1_i32, %c2_i32 : i32
    %321 = vector.broadcast %320 : i32 to vector<16x16xi32>
    %322 = arith.remsi %317, %321 : vector<16x16xi32>
    %c0_i32_114 = arith.constant 0 : i32
    %323 = vector.broadcast %c0_i32_114 : i32 to vector<16x16xi32>
    %324 = arith.cmpi ne, %322, %323 : vector<16x16xi32>
    %c0_i32_115 = arith.constant 0 : i32
    %325 = vector.broadcast %c0_i32_115 : i32 to vector<16x16xi32>
    %326 = arith.cmpi slt, %322, %325 : vector<16x16xi32>
    %c0_i32_116 = arith.constant 0 : i32
    %327 = arith.cmpi slt, %320, %c0_i32_116 : i32
    %328 = vector.broadcast %327 : i1 to vector<16x16xi1>
    %329 = vector.broadcast %328 : vector<16x16xi1> to vector<16x16xi1>
    %330 = arith.xori %326, %329 : vector<16x16xi1>
    %331 = arith.andi %330, %324 : vector<16x16xi1>
    %332 = vector.broadcast %320 : i32 to vector<16x16xi32>
    %333 = arith.addi %322, %332 : vector<16x16xi32>
    %334 = arith.select %331, %333, %322 : vector<16x16xi1>, vector<16x16xi32>
    %c2_i32_117 = arith.constant 2 : i32
    %c0_i32_118 = arith.constant 0 : i32
    %335 = arith.cmpi eq, %c2_i32_117, %c0_i32_118 : i32
    %c1_i32_119 = arith.constant 1 : i32
    %336 = arith.select %335, %c1_i32_119, %c2_i32_117 : i32
    %337 = vector.broadcast %336 : i32 to vector<16x16xi32>
    %338 = arith.remsi %318, %337 : vector<16x16xi32>
    %c0_i32_120 = arith.constant 0 : i32
    %339 = vector.broadcast %c0_i32_120 : i32 to vector<16x16xi32>
    %340 = arith.cmpi ne, %338, %339 : vector<16x16xi32>
    %c0_i32_121 = arith.constant 0 : i32
    %341 = vector.broadcast %c0_i32_121 : i32 to vector<16x16xi32>
    %342 = arith.cmpi slt, %338, %341 : vector<16x16xi32>
    %c0_i32_122 = arith.constant 0 : i32
    %343 = arith.cmpi slt, %336, %c0_i32_122 : i32
    %344 = vector.broadcast %343 : i1 to vector<16x16xi1>
    %345 = vector.broadcast %344 : vector<16x16xi1> to vector<16x16xi1>
    %346 = arith.xori %342, %345 : vector<16x16xi1>
    %347 = arith.andi %346, %340 : vector<16x16xi1>
    %348 = vector.broadcast %336 : i32 to vector<16x16xi32>
    %349 = arith.addi %338, %348 : vector<16x16xi32>
    %350 = arith.select %347, %349, %338 : vector<16x16xi1>, vector<16x16xi32>
    %351 = arith.cmpi eq, %334, %350 : vector<16x16xi32>
    %352 = arith.extui %351 : vector<16x16xi1> to vector<16x16xi32>
    %353 = arith.sitofp %352 : vector<16x16xi32> to vector<16x16xf32>
    %354 = vector.broadcast %316 : vector<16x1xf32> to vector<16x256xf32>
    %355 = arith.mulf %290, %354 : vector<16x256xf32>
    %cst_123 = arith.constant dense<0.000000e+00> : vector<16x256xf32>
    %356 = tpu.matmul %353, %355, %cst_123 {dimension_numbers = #tpu.dot_dimension_numbers<[1], [0], [0], [1], [0, 0, 1, 1], [], []>} : vector<16x16xf32>, vector<16x256xf32>, vector<16x256xf32> -> vector<16x256xf32>
    %cst_124 = arith.constant dense<0.000000e+00> : vector<16x1xf32>
    %357 = tpu.matmul %353, %316, %cst_124 {dimension_numbers = #tpu.dot_dimension_numbers<[1], [0], [0], [1], [0, 0, 1, 1], [], []>} : vector<16x16xf32>, vector<16x1xf32>, vector<16x1xf32> -> vector<16x1xf32>
    %358 = vector.extract_strided_slice %356 {offsets = [0, 0], sizes = [2, 256], strides = [1, 1]} : vector<16x256xf32> to vector<2x256xf32>
    %359 = vector.extract_strided_slice %357 {offsets = [0, 0], sizes = [2, 1], strides = [1, 1]} : vector<16x1xf32> to vector<2x1xf32>
    %360 = vector.broadcast %359 : vector<2x1xf32> to vector<2x256xf32>
    %361 = arith.divf %358, %360 : vector<2x256xf32>
    %c0_125 = arith.constant 0 : index
    %c0_126 = arith.constant 0 : index
    %362 = vector.load %arg10[%c0_125, %c0_126] : memref<256x9xf32, #tpu.memory_space<vmem>>, vector<256x9xf32>
    %cst_127 = arith.constant dense<0.000000e+00> : vector<2x9xf32>
    %363 = tpu.matmul %361, %362, %cst_127 {dimension_numbers = #tpu.dot_dimension_numbers<[1], [0], [0], [1], [0, 0, 1, 1], [], []>} : vector<2x256xf32>, vector<256x9xf32>, vector<2x9xf32> -> vector<2x9xf32>
    %c0_128 = arith.constant 0 : index
    %c0_129 = arith.constant 0 : index
    %364 = vector.load %arg11[%c0_128, %c0_129] : memref<1x9xf32, #tpu.memory_space<vmem>>, vector<1x9xf32>
    %365 = vector.broadcast %364 : vector<1x9xf32> to vector<2x9xf32>
    %366 = arith.addf %363, %365 : vector<2x9xf32>
    %c0_130 = arith.constant 0 : index
    %c0_131 = arith.constant 0 : index
    %367 = vector.load %arg12[%c0_130, %c0_131] : memref<2x9xf32, #tpu.memory_space<vmem>>, vector<2x9xf32>
    tpu.vector_store %arg12[%c0_130, %c0_131], %366 {strides = array<i32>} : memref<2x9xf32, #tpu.memory_space<vmem>>, vector<2x9xf32>,
    return
  }
}

</mosaic_0001>

<llo_original>
// kernel: attention_pos_rnn_forward.1
$region0: #{attention_pos_rnn_forward.1}
  #allocation0 [shape = 'u32[]', space=smem, size = 0x4, offset = 0x4, fixed_abs, tag = 'smem constant byte address 0x4 - core index']
  #allocation1 [shape = 'u32[144,128]{1,0:T(1,128)}', space=vmem, size = 0x12000, scoped, tag = 'internal scratch']
  #allocation2 [shape = 'f32[16,768]{1,0:T(8,128)}', space=vmem, size = 0xc000, scoped, tag = 'scratch operand']
  #allocation3 [shape = 'f32[16,256]{1,0:T(8,128)}', space=vmem, size = 0x4000, scoped, tag = 'scratch operand']
  %s0 = inlined_call_operand.vmem [shape: f32[16,2], index: 0, kind: input, shape index: {}]
  %s1 = inlined_call_operand.vmem [shape: f32[2,768], index: 1, kind: input, shape index: {}]
  %s2 = inlined_call_operand.vmem [shape: f32[1,768], index: 2, kind: input, shape index: {}]
  %s3 = inlined_call_operand.vmem [shape: f32[1,256], index: 3, kind: input, shape index: {}]
  %s4 = inlined_call_operand.hbm [shape: bf16[256,768], index: 4, kind: input, shape index: {}]
  %s5 = inlined_call_operand.hbm [shape: bf16[256,512], index: 5, kind: input, shape index: {}]
  %s6 = inlined_call_operand.vmem [shape: f32[1,512], index: 6, kind: input, shape index: {}]
  %s7 = inlined_call_operand.hbm [shape: bf16[512,256], index: 7, kind: input, shape index: {}]
  %s8 = inlined_call_operand.vmem [shape: f32[1,256], index: 8, kind: input, shape index: {}]
  %s9 = inlined_call_operand.vmem [shape: f32[1,256], index: 9, kind: input, shape index: {}]
  %s10 = inlined_call_operand.vmem [shape: f32[256,9], index: 10, kind: input, shape index: {}]
  %s11 = inlined_call_operand.vmem [shape: f32[1,9], index: 11, kind: input, shape index: {}]
  %s12 = inlined_call_operand.hbm [shape: f32[2,9], index: 12, kind: output, shape index: {}]
  %s13 = sld [smem:[#allocation0]]
  $region70: #{attention_pos_rnn_forward.1} parent=0
    _
  %s15 = ssub.s32 1, %s13
  %s16 = scalar_select 0, %s15, %s13
  $region1: #{attention_pos_rnn_forward.1} parent=0
    #allocation4 [shape = 'u8[393216]{0}', space=vmem, size = 0x60000, scoped, tag = 'input window, operand 4, single buffered']
    #allocation5 [shape = 's32[1]{0}', space=sflag, size = 0x4, scoped, tag = 'scoped memory for attention_pos_rnn_forward.1']
    #allocation6 [shape = 's32[1]{0}', space=sflag, size = 0x4, scoped, tag = 'scoped memory for attention_pos_rnn_forward.1']
    #allocation7 [shape = 'u8[262144]{0}', space=vmem, size = 0x40000, scoped, tag = 'input window, operand 5, single buffered']
    #allocation8 [shape = 's32[1]{0}', space=sflag, size = 0x4, scoped, tag = 'scoped memory for attention_pos_rnn_forward.1']
    #allocation9 [shape = 'u8[262144]{0}', space=vmem, size = 0x40000, scoped, tag = 'input window, operand 7, single buffered']
    #allocation10 [shape = 'u8[1024]{0}', space=vmem, size = 0x400, scoped, tag = 'output window, operand 0, single buffered']
    %17 = vsyncpa [#allocation5], 0
    %18 = vsyncpa [#allocation8], 0
    %19 = vsyncpa [#allocation6], 0
    // Predicated region
    $region2: #{attention_pos_rnn_forward.1} parent=1 // pred_check
      _
    $region3: #{attention_pos_rnn_forward.1} parent=1 // pred_check_branch
      %21 = sbr.rel (0) target = $region5
    $region4: #{attention_pos_rnn_forward.1} parent=1 // pred_region
      _
    $region5: #{attention_pos_rnn_forward.1} parent=1 // pred_fallthru
      _
    // Predicated region
    $region6: #{attention_pos_rnn_forward.1} parent=1 // pred_check
      _
    $region7: #{attention_pos_rnn_forward.1} parent=1 // pred_check_branch
      %23 = sbr.rel (0) target = $region9
    $region8: #{attention_pos_rnn_forward.1} parent=1 // pred_region
      _
    $region9: #{attention_pos_rnn_forward.1} parent=1 // pred_fallthru
      _
    // Predicated region
    $region10: #{attention_pos_rnn_forward.1} parent=1 // pred_check
      _
    $region11: #{attention_pos_rnn_forward.1} parent=1 // pred_check_branch
      %25 = sbr.rel (0) target = $region13
    $region12: #{attention_pos_rnn_forward.1} parent=1 // pred_region
      _
    $region13: #{attention_pos_rnn_forward.1} parent=1 // pred_fallthru
      _
    // Predicated region
    $region14: #{attention_pos_rnn_forward.1} parent=1 // pred_check
      _
    $region15: #{attention_pos_rnn_forward.1} parent=1 // pred_check_branch
      %27 = sbr.rel (0) target = $region17
    $region16: #{attention_pos_rnn_forward.1} parent=1 // pred_region
      _
    $region17: #{attention_pos_rnn_forward.1} parent=1 // pred_fallthru
      _
    // Predicated region
    $region18: #{attention_pos_rnn_forward.1} parent=1 // pred_check
      _
    $region19: #{attention_pos_rnn_forward.1} parent=1 // pred_check_branch
      %29 = sbr.rel (0) target = $region21
    $region20: #{attention_pos_rnn_forward.1} parent=1 // pred_region
      %s31 = ssub.s32 12288, 12288
      %32 = vsyncadd [#allocation5], %s31
      %s33 = sshll.u32 [#allocation4], 4
      %s34 = int_to_ptr.vmem [resolvable:$true] %s33
      %39 = dma.hbm_to_vmem [thread:$0]  %s4, 12288, %s34, [#allocation5], 384, 384, 24
    $region21: #{attention_pos_rnn_forward.1} parent=1 // pred_fallthru
      _
    // Predicated region
    $region22: #{attention_pos_rnn_forward.1} parent=1 // pred_check
      _
    $region23: #{attention_pos_rnn_forward.1} parent=1 // pred_check_branch
      %41 = sbr.rel (0) target = $region25
    $region24: #{attention_pos_rnn_forward.1} parent=1 // pred_region
      %s43 = ssub.s32 8192, 8192
      %44 = vsyncadd [#allocation8], %s43
      %s45 = sshll.u32 [#allocation7], 4
      %s46 = int_to_ptr.vmem [resolvable:$true] %s45
      %51 = dma.hbm_to_vmem [thread:$0]  %s5, 8192, %s46, [#allocation8], 256, 256, 16
    $region25: #{attention_pos_rnn_forward.1} parent=1 // pred_fallthru
      _
    // Predicated region
    $region26: #{attention_pos_rnn_forward.1} parent=1 // pred_check
      _
    $region27: #{attention_pos_rnn_forward.1} parent=1 // pred_check_branch
      %53 = sbr.rel (0) target = $region29
    $region28: #{attention_pos_rnn_forward.1} parent=1 // pred_region
      _
    $region29: #{attention_pos_rnn_forward.1} parent=1 // pred_fallthru
      _
    // Predicated region
    $region30: #{attention_pos_rnn_forward.1} parent=1 // pred_check
      _
    $region31: #{attention_pos_rnn_forward.1} parent=1 // pred_check_branch
      %55 = sbr.rel (0) target = $region33
    $region32: #{attention_pos_rnn_forward.1} parent=1 // pred_region
      %s57 = ssub.s32 8192, 8192
      %58 = vsyncadd [#allocation8], %s57
      %s59 = sshll.u32 [#allocation9], 4
      %s60 = int_to_ptr.vmem [resolvable:$true] %s59
      %65 = dma.hbm_to_vmem [thread:$0]  %s7, 8192, %s60, [#allocation8], 128, 128, 8
    $region33: #{attention_pos_rnn_forward.1} parent=1 // pred_fallthru
      _
    // Predicated region
    $region34: #{attention_pos_rnn_forward.1} parent=1 // pred_check
      _
    $region35: #{attention_pos_rnn_forward.1} parent=1 // pred_check_branch
      %67 = sbr.rel (0) target = $region37
    $region36: #{attention_pos_rnn_forward.1} parent=1 // pred_region
      _
    $region37: #{attention_pos_rnn_forward.1} parent=1 // pred_fallthru
      _
    // Predicated region
    $region38: #{attention_pos_rnn_forward.1} parent=1 // pred_check
      _
    $region39: #{attention_pos_rnn_forward.1} parent=1 // pred_check_branch
      %69 = sbr.rel (0) target = $region41
    $region40: #{attention_pos_rnn_forward.1} parent=1 // pred_region
      _
    $region41: #{attention_pos_rnn_forward.1} parent=1 // pred_fallthru
      _
    // Predicated region
    $region42: #{attention_pos_rnn_forward.1} parent=1 // pred_check
      _
    $region43: #{attention_pos_rnn_forward.1} parent=1 // pred_check_branch
      %71 = sbr.rel (0) target = $region45
    $region44: #{attention_pos_rnn_forward.1} parent=1 // pred_region
      _
    $region45: #{attention_pos_rnn_forward.1} parent=1 // pred_fallthru
      _
    // Predicated region
    $region46: #{attention_pos_rnn_forward.1} parent=1 // pred_check
      _
    $region47: #{attention_pos_rnn_forward.1} parent=1 // pred_check_branch
      %73 = sbr.rel (0) target = $region49
    $region48: #{attention_pos_rnn_forward.1} parent=1 // pred_region
      _
    $region49: #{attention_pos_rnn_forward.1} parent=1 // pred_fallthru
      _
    // Predicated region
    $region50: #{attention_pos_rnn_forward.1} parent=1 // pred_check
      _
    $region51: #{attention_pos_rnn_forward.1} parent=1 // pred_check_branch
      %75 = sbr.rel (0) target = $region53
    $region52: #{attention_pos_rnn_forward.1} parent=1 // pred_region
      %76 = dma.done [#allocation5], 12288
    $region53: #{attention_pos_rnn_forward.1} parent=1 // pred_fallthru
      _
    // Predicated region
    $region54: #{attention_pos_rnn_forward.1} parent=1 // pred_check
      _
    $region55: #{attention_pos_rnn_forward.1} parent=1 // pred_check_branch
      %78 = sbr.rel (0) target = $region57
    $region56: #{attention_pos_rnn_forward.1} parent=1 // pred_region
      %79 = dma.done [#allocation8], 8192
    $region57: #{attention_pos_rnn_forward.1} parent=1 // pred_fallthru
      _
    // Predicated region
    $region58: #{attention_pos_rnn_forward.1} parent=1 // pred_check
      _
    $region59: #{attention_pos_rnn_forward.1} parent=1 // pred_check_branch
      %81 = sbr.rel (0) target = $region61
    $region60: #{attention_pos_rnn_forward.1} parent=1 // pred_region
      %82 = dma.done [#allocation8], 8192
    $region61: #{attention_pos_rnn_forward.1} parent=1 // pred_fallthru
      _
    %v84 = vld [vmem:[%s0] sm:$0xff]
    %v85 = vld [vmem:[%s0 + $0x8] sm:$0xff]
    %v86 = vld [vmem:[%s1] sm:$0xff]
    %v87 = vld [vmem:[%s1 + $0x8] sm:$0xf]
    %v88 = vld [vmem:[%s2] sm:$0x3f]
    %90 = vset.pattern.permute.xlu0 0
    %91 = vperm.xlu0 %90, %v84
    %v92 = vpop.permute.xlu0 %91
    %95 = vset.pattern.permute.xlu0 0
    %96 = vperm.xlu0 %95, %v85
    %v97 = vpop.permute.xlu0 %96
    %v101 = vlaneseq
    %v102 = vshrl.u32 %v101, 7
    %v103 = vsub.s32 0, %v102
    %v104 = vrot.slane %v86, %v103
    %v105 = vlaneseq
    %v106 = vshrl.u32 %v105, 7
    %v107 = vsub.s32 2, %v106
    %v108 = vrot.slane %v86, %v107
    %v109 = vlaneseq
    %v110 = vshrl.u32 %v109, 7
    %v111 = vsub.s32 4, %v110
    %v112 = vrot.slane %v86, %v111
    %v113 = vlaneseq
    %v114 = vshrl.u32 %v113, 7
    %v115 = vsub.s32 6, %v114
    %v116 = vrot.slane %v86, %v115
    %v117 = vlaneseq
    %v118 = vshrl.u32 %v117, 7
    %v119 = vsub.s32 0, %v118
    %v120 = vrot.slane %v87, %v119
    %v121 = vlaneseq
    %v122 = vshrl.u32 %v121, 7
    %v123 = vsub.s32 2, %v122
    %v124 = vrot.slane %v87, %v123
    %v131 = vlaneseq
    %v132 = vshrl.u32 %v131, 7
    %v133 = vsub.s32 0, %v132
    %v134 = vrot.slane %v104, %v133
    %v135 = vlaneseq
    %v136 = vshrl.u32 %v135, 7
    %v137 = vsub.s32 0, %v136
    %v138 = vrot.slane %v108, %v137
    %v139 = vlaneseq
    %v140 = vshrl.u32 %v139, 7
    %v141 = vsub.s32 0, %v140
    %v142 = vrot.slane %v112, %v141
    %v143 = vlaneseq
    %v144 = vshrl.u32 %v143, 7
    %v145 = vsub.s32 0, %v144
    %v146 = vrot.slane %v116, %v145
    %v147 = vlaneseq
    %v148 = vshrl.u32 %v147, 7
    %v149 = vsub.s32 0, %v148
    %v150 = vrot.slane %v120, %v149
    %v151 = vlaneseq
    %v152 = vshrl.u32 %v151, 7
    %v153 = vsub.s32 0, %v152
    %v154 = vrot.slane %v124, %v153
    %v155 = vmul.f32 %v92, %v134
    %v156 = vmul.f32 %v92, %v138
    %v157 = vmul.f32 %v92, %v142
    %v158 = vmul.f32 %v92, %v146
    %v159 = vmul.f32 %v92, %v150
    %v160 = vmul.f32 %v92, %v154
    %v161 = vmul.f32 %v97, %v134
    %v162 = vmul.f32 %v97, %v138
    %v163 = vmul.f32 %v97, %v142
    %v164 = vmul.f32 %v97, %v146
    %v165 = vmul.f32 %v97, %v150
    %v166 = vmul.f32 %v97, %v154
    %v168 = vlaneseq
    %v169 = vshrl.u32 %v168, 7
    %v170 = vsub.s32 0, %v169
    %v171 = vrot.slane %v88, %v170
    %v172 = vlaneseq
    %v173 = vshrl.u32 %v172, 7
    %v174 = vsub.s32 1, %v173
    %v175 = vrot.slane %v88, %v174
    %v176 = vlaneseq
    %v177 = vshrl.u32 %v176, 7
    %v178 = vsub.s32 2, %v177
    %v179 = vrot.slane %v88, %v178
    %v180 = vlaneseq
    %v181 = vshrl.u32 %v180, 7
    %v182 = vsub.s32 3, %v181
    %v183 = vrot.slane %v88, %v182
    %v184 = vlaneseq
    %v185 = vshrl.u32 %v184, 7
    %v186 = vsub.s32 4, %v185
    %v187 = vrot.slane %v88, %v186
    %v188 = vlaneseq
    %v189 = vshrl.u32 %v188, 7
    %v190 = vsub.s32 5, %v189
    %v191 = vrot.slane %v88, %v190
    %v198 = vadd.f32 %v171, %v155
    %v199 = vadd.f32 %v175, %v156
    %v200 = vadd.f32 %v179, %v157
    %v201 = vadd.f32 %v183, %v158
    %v202 = vadd.f32 %v187, %v159
    %v203 = vadd.f32 %v191, %v160
    %v204 = vadd.f32 %v171, %v161
    %v205 = vadd.f32 %v175, %v162
    %v206 = vadd.f32 %v179, %v163
    %v207 = vadd.f32 %v183, %v164
    %v208 = vadd.f32 %v187, %v165
    %v209 = vadd.f32 %v191, %v166
    %210 = vset.pattern.permute.xlu0 1
    %211 = vperm.xlu0 %210, %v84
    %v212 = vpop.permute.xlu0 %211
    %214 = vset.pattern.permute.xlu0 1
    %215 = vperm.xlu0 %214, %v85
    %v216 = vpop.permute.xlu0 %215
    %v218 = vlaneseq
    %v219 = vshrl.u32 %v218, 7
    %v220 = vsub.s32 1, %v219
    %v221 = vrot.slane %v86, %v220
    %v222 = vlaneseq
    %v223 = vshrl.u32 %v222, 7
    %v224 = vsub.s32 3, %v223
    %v225 = vrot.slane %v86, %v224
    %v226 = vlaneseq
    %v227 = vshrl.u32 %v226, 7
    %v228 = vsub.s32 5, %v227
    %v229 = vrot.slane %v86, %v228
    %v230 = vlaneseq
    %v231 = vshrl.u32 %v230, 7
    %v232 = vsub.s32 7, %v231
    %v233 = vrot.slane %v86, %v232
    %v234 = vlaneseq
    %v235 = vshrl.u32 %v234, 7
    %v236 = vsub.s32 1, %v235
    %v237 = vrot.slane %v87, %v236
    %v238 = vlaneseq
    %v239 = vshrl.u32 %v238, 7
    %v240 = vsub.s32 3, %v239
    %v241 = vrot.slane %v87, %v240
    %v248 = vlaneseq
    %v249 = vshrl.u32 %v248, 7
    %v250 = vsub.s32 1, %v249
    %v251 = vrot.slane %v221, %v250
    %v252 = vlaneseq
    %v253 = vshrl.u32 %v252, 7
    %v254 = vsub.s32 1, %v253
    %v255 = vrot.slane %v225, %v254
    %v256 = vlaneseq
    %v257 = vshrl.u32 %v256, 7
    %v258 = vsub.s32 1, %v257
    %v259 = vrot.slane %v229, %v258
    %v260 = vlaneseq
    %v261 = vshrl.u32 %v260, 7
    %v262 = vsub.s32 1, %v261
    %v263 = vrot.slane %v233, %v262
    %v264 = vlaneseq
    %v265 = vshrl.u32 %v264, 7
    %v266 = vsub.s32 1, %v265
    %v267 = vrot.slane %v237, %v266
    %v268 = vlaneseq
    %v269 = vshrl.u32 %v268, 7
    %v270 = vsub.s32 1, %v269
    %v271 = vrot.slane %v241, %v270
    %v272 = vmul.f32 %v212, %v251
    %v273 = vmul.f32 %v212, %v255
    %v274 = vmul.f32 %v212, %v259
    %v275 = vmul.f32 %v212, %v263
    %v276 = vmul.f32 %v212, %v267
    %v277 = vmul.f32 %v212, %v271
    %v278 = vmul.f32 %v216, %v251
    %v279 = vmul.f32 %v216, %v255
    %v280 = vmul.f32 %v216, %v259
    %v281 = vmul.f32 %v216, %v263
    %v282 = vmul.f32 %v216, %v267
    %v283 = vmul.f32 %v216, %v271
    %v284 = vadd.f32 %v198, %v272
    %v285 = vadd.f32 %v199, %v273
    %v286 = vadd.f32 %v200, %v274
    %v287 = vadd.f32 %v201, %v275
    %v288 = vadd.f32 %v202, %v276
    %v289 = vadd.f32 %v203, %v277
    %v290 = vadd.f32 %v204, %v278
    %v291 = vadd.f32 %v205, %v279
    %v292 = vadd.f32 %v206, %v280
    %v293 = vadd.f32 %v207, %v281
    %v294 = vadd.f32 %v208, %v282
    %v295 = vadd.f32 %v209, %v283
    %296 = vst [vmem:[#allocation2] sm:$0xff] %v284
    %297 = vst [vmem:[#allocation2 + $0x8] sm:$0xff] %v285
    %298 = vst [vmem:[#allocation2 + $0x10] sm:$0xff] %v286
    %299 = vst [vmem:[#allocation2 + $0x18] sm:$0xff] %v287
    %300 = vst [vmem:[#allocation2 + $0x20] sm:$0xff] %v288
    %301 = vst [vmem:[#allocation2 + $0x28] sm:$0xff] %v289
    %302 = vst [vmem:[#allocation2 + $0x30] sm:$0xff] %v290
    %303 = vst [vmem:[#allocation2 + $0x38] sm:$0xff] %v291
    %304 = vst [vmem:[#allocation2 + $0x40] sm:$0xff] %v292
    %305 = vst [vmem:[#allocation2 + $0x48] sm:$0xff] %v293
    %306 = vst [vmem:[#allocation2 + $0x50] sm:$0xff] %v294
    %307 = vst [vmem:[#allocation2 + $0x58] sm:$0xff] %v295
    %v308 = vld [vmem:[#allocation2] sm:$0x3]
    %v309 = vld [vmem:[#allocation2 + $0x8] sm:$0x3]
    %v310 = vld [vmem:[#allocation2 + $0x10] sm:$0x3]
    %v311 = vld [vmem:[#allocation2 + $0x18] sm:$0x3]
    %v312 = vld [vmem:[#allocation2 + $0x20] sm:$0x3]
    %v313 = vld [vmem:[#allocation2 + $0x28] sm:$0x3]
    %v314 = vld [vmem:[#allocation4] sm:$0xff]
    %v315 = vld [vmem:[#allocation4 + $0x8] sm:$0xff]
    %v316 = vld [vmem:[#allocation4 + $0x10] sm:$0xff]
    %v317 = vld [vmem:[#allocation4 + $0x18] sm:$0xff]
    %v318 = vld [vmem:[#allocation4 + $0x20] sm:$0xff]
    %v319 = vld [vmem:[#allocation4 + $0x28] sm:$0xff]
    %v320 = vld [vmem:[#allocation4 + $0x30] sm:$0xff]
    %v321 = vld [vmem:[#allocation4 + $0x38] sm:$0xff]
    %v322 = vld [vmem:[#allocation4 + $0x40] sm:$0xff]
    %v323 = vld [vmem:[#allocation4 + $0x48] sm:$0xff]
    %v324 = vld [vmem:[#allocation4 + $0x50] sm:$0xff]
    %v325 = vld [vmem:[#allocation4 + $0x58] sm:$0xff]
    %v326 = vld [vmem:[#allocation4 + $0x60] sm:$0xff]
    %v327 = vld [vmem:[#allocation4 + $0x68] sm:$0xff]
    %v328 = vld [vmem:[#allocation4 + $0x70] sm:$0xff]
    %v329 = vld [vmem:[#allocation4 + $0x78] sm:$0xff]
    %v330 = vld [vmem:[#allocation4 + $0x80] sm:$0xff]
    %v331 = vld [vmem:[#allocation4 + $0x88] sm:$0xff]
    %v332 = vld [vmem:[#allocation4 + $0x90] sm:$0xff]
    %v333 = vld [vmem:[#allocation4 + $0x98] sm:$0xff]
    %v334 = vld [vmem:[#allocation4 + $0xa0] sm:$0xff]
    %v335 = vld [vmem:[#allocation4 + $0xa8] sm:$0xff]
    %v336 = vld [vmem:[#allocation4 + $0xb0] sm:$0xff]
    %v337 = vld [vmem:[#allocation4 + $0xb8] sm:$0xff]
    %v338 = vld [vmem:[#allocation4 + $0xc0] sm:$0xff]
    %v339 = vld [vmem:[#allocation4 + $0xc8] sm:$0xff]
    %v340 = vld [vmem:[#allocation4 + $0xd0] sm:$0xff]
    %v341 = vld [vmem:[#allocation4 + $0xd8] sm:$0xff]
    %v342 = vld [vmem:[#allocation4 + $0xe0] sm:$0xff]
    %v343 = vld [vmem:[#allocation4 + $0xe8] sm:$0xff]
    %v344 = vld [vmem:[#allocation4 + $0xf0] sm:$0xff]
    %v345 = vld [vmem:[#allocation4 + $0xf8] sm:$0xff]
    %v346 = vld [vmem:[#allocation4 + $0x100] sm:$0xff]
    %v347 = vld [vmem:[#allocation4 + $0x108] sm:$0xff]
    %v348 = vld [vmem:[#allocation4 + $0x110] sm:$0xff]
    %v349 = vld [vmem:[#allocation4 + $0x118] sm:$0xff]
    %v350 = vld [vmem:[#allocation4 + $0x120] sm:$0xff]
    %v351 = vld [vmem:[#allocation4 + $0x128] sm:$0xff]
    %v352 = vld [vmem:[#allocation4 + $0x130] sm:$0xff]
    %v353 = vld [vmem:[#allocation4 + $0x138] sm:$0xff]
    %v354 = vld [vmem:[#allocation4 + $0x140] sm:$0xff]
    %v355 = vld [vmem:[#allocation4 + $0x148] sm:$0xff]
    %v356 = vld [vmem:[#allocation4 + $0x150] sm:$0xff]
    %v357 = vld [vmem:[#allocation4 + $0x158] sm:$0xff]
    %v358 = vld [vmem:[#allocation4 + $0x160] sm:$0xff]
    %v359 = vld [vmem:[#allocation4 + $0x168] sm:$0xff]
    %v360 = vld [vmem:[#allocation4 + $0x170] sm:$0xff]
    %v361 = vld [vmem:[#allocation4 + $0x178] sm:$0xff]
    %v362 = vld [vmem:[#allocation4 + $0x180] sm:$0xff]
    %v363 = vld [vmem:[#allocation4 + $0x188] sm:$0xff]
    %v364 = vld [vmem:[#allocation4 + $0x190] sm:$0xff]
    %v365 = vld [vmem:[#allocation4 + $0x198] sm:$0xff]
    %v366 = vld [vmem:[#allocation4 + $0x1a0] sm:$0xff]
    %v367 = vld [vmem:[#allocation4 + $0x1a8] sm:$0xff]
    %v368 = vld [vmem:[#allocation4 + $0x1b0] sm:$0xff]
    %v369 = vld [vmem:[#allocation4 + $0x1b8] sm:$0xff]
    %v370 = vld [vmem:[#allocation4 + $0x1c0] sm:$0xff]
    %v371 = vld [vmem:[#allocation4 + $0x1c8] sm:$0xff]
    %v372 = vld [vmem:[#allocation4 + $0x1d0] sm:$0xff]
    %v373 = vld [vmem:[#allocation4 + $0x1d8] sm:$0xff]
    %v374 = vld [vmem:[#allocation4 + $0x1e0] sm:$0xff]
    %v375 = vld [vmem:[#allocation4 + $0x1e8] sm:$0xff]
    %v376 = vld [vmem:[#allocation4 + $0x1f0] sm:$0xff]
    %v377 = vld [vmem:[#allocation4 + $0x1f8] sm:$0xff]
    %v378 = vld [vmem:[#allocation4 + $0x200] sm:$0xff]
    %v379 = vld [vmem:[#allocation4 + $0x208] sm:$0xff]
    %v380 = vld [vmem:[#allocation4 + $0x210] sm:$0xff]
    %v381 = vld [vmem:[#allocation4 + $0x218] sm:$0xff]
    %v382 = vld [vmem:[#allocation4 + $0x220] sm:$0xff]
    %v383 = vld [vmem:[#allocation4 + $0x228] sm:$0xff]
    %v384 = vld [vmem:[#allocation4 + $0x230] sm:$0xff]
    %v385 = vld [vmem:[#allocation4 + $0x238] sm:$0xff]
    %v386 = vld [vmem:[#allocation4 + $0x240] sm:$0xff]
    %v387 = vld [vmem:[#allocation4 + $0x248] sm:$0xff]
    %v388 = vld [vmem:[#allocation4 + $0x250] sm:$0xff]
    %v389 = vld [vmem:[#allocation4 + $0x258] sm:$0xff]
    %v390 = vld [vmem:[#allocation4 + $0x260] sm:$0xff]
    %v391 = vld [vmem:[#allocation4 + $0x268] sm:$0xff]
    %v392 = vld [vmem:[#allocation4 + $0x270] sm:$0xff]
    %v393 = vld [vmem:[#allocation4 + $0x278] sm:$0xff]
    %v394 = vld [vmem:[#allocation4 + $0x280] sm:$0xff]
    %v395 = vld [vmem:[#allocation4 + $0x288] sm:$0xff]
    %v396 = vld [vmem:[#allocation4 + $0x290] sm:$0xff]
    %v397 = vld [vmem:[#allocation4 + $0x298] sm:$0xff]
    %v398 = vld [vmem:[#allocation4 + $0x2a0] sm:$0xff]
    %v399 = vld [vmem:[#allocation4 + $0x2a8] sm:$0xff]
    %v400 = vld [vmem:[#allocation4 + $0x2b0] sm:$0xff]
    %v401 = vld [vmem:[#allocation4 + $0x2b8] sm:$0xff]
    %v402 = vld [vmem:[#allocation4 + $0x2c0] sm:$0xff]
    %v403 = vld [vmem:[#allocation4 + $0x2c8] sm:$0xff]
    %v404 = vld [vmem:[#allocation4 + $0x2d0] sm:$0xff]
    %v405 = vld [vmem:[#allocation4 + $0x2d8] sm:$0xff]
    %v406 = vld [vmem:[#allocation4 + $0x2e0] sm:$0xff]
    %v407 = vld [vmem:[#allocation4 + $0x2e8] sm:$0xff]
    %v408 = vld [vmem:[#allocation4 + $0x2f0] sm:$0xff]
    %v409 = vld [vmem:[#allocation4 + $0x2f8] sm:$0xff]
    %v506 = vunpack.c.l.b16 %v314
    %v507 = vunpack.c.h.b16 %v314
    %v508 = vunpack.c.l.b16 %v315
    %v509 = vunpack.c.h.b16 %v315
    %v510 = vunpack.c.l.b16 %v316
    %v511 = vunpack.c.h.b16 %v316
    %v512 = vunpack.c.l.b16 %v317
    %v513 = vunpack.c.h.b16 %v317
    %v514 = vunpack.c.l.b16 %v318
    %v515 = vunpack.c.h.b16 %v318
    %v516 = vunpack.c.l.b16 %v319
    %v517 = vunpack.c.h.b16 %v319
    %v518 = vunpack.c.l.b16 %v320
    %v519 = vunpack.c.h.b16 %v320
    %v520 = vunpack.c.l.b16 %v321
    %v521 = vunpack.c.h.b16 %v321
    %v522 = vunpack.c.l.b16 %v322
    %v523 = vunpack.c.h.b16 %v322
    %v524 = vunpack.c.l.b16 %v323
    %v525 = vunpack.c.h.b16 %v323
    %v526 = vunpack.c.l.b16 %v324
    %v527 = vunpack.c.h.b16 %v324
    %v528 = vunpack.c.l.b16 %v325
    %v529 = vunpack.c.h.b16 %v325
    %v530 = vunpack.c.l.b16 %v326
    %v531 = vunpack.c.h.b16 %v326
    %v532 = vunpack.c.l.b16 %v327
    %v533 = vunpack.c.h.b16 %v327
    %v534 = vunpack.c.l.b16 %v328
    %v535 = vunpack.c.h.b16 %v328
    %v536 = vunpack.c.l.b16 %v329
    %v537 = vunpack.c.h.b16 %v329
    %v538 = vunpack.c.l.b16 %v330
    %v539 = vunpack.c.h.b16 %v330
    %v540 = vunpack.c.l.b16 %v331
    %v541 = vunpack.c.h.b16 %v331
    %v542 = vunpack.c.l.b16 %v332
    %v543 = vunpack.c.h.b16 %v332
    %v544 = vunpack.c.l.b16 %v333
    %v545 = vunpack.c.h.b16 %v333
    %v546 = vunpack.c.l.b16 %v334
    %v547 = vunpack.c.h.b16 %v334
    %v548 = vunpack.c.l.b16 %v335
    %v549 = vunpack.c.h.b16 %v335
    %v550 = vunpack.c.l.b16 %v336
    %v551 = vunpack.c.h.b16 %v336
    %v552 = vunpack.c.l.b16 %v337
    %v553 = vunpack.c.h.b16 %v337
    %v554 = vunpack.c.l.b16 %v338
    %v555 = vunpack.c.h.b16 %v338
    %v556 = vunpack.c.l.b16 %v339
    %v557 = vunpack.c.h.b16 %v339
    %v558 = vunpack.c.l.b16 %v340
    %v559 = vunpack.c.h.b16 %v340
    %v560 = vunpack.c.l.b16 %v341
    %v561 = vunpack.c.h.b16 %v341
    %v562 = vunpack.c.l.b16 %v342
    %v563 = vunpack.c.h.b16 %v342
    %v564 = vunpack.c.l.b16 %v343
    %v565 = vunpack.c.h.b16 %v343
    %v566 = vunpack.c.l.b16 %v344
    %v567 = vunpack.c.h.b16 %v344
    %v568 = vunpack.c.l.b16 %v345
    %v569 = vunpack.c.h.b16 %v345
    %v570 = vunpack.c.l.b16 %v346
    %v571 = vunpack.c.h.b16 %v346
    %v572 = vunpack.c.l.b16 %v347
    %v573 = vunpack.c.h.b16 %v347
    %v574 = vunpack.c.l.b16 %v348
    %v575 = vunpack.c.h.b16 %v348
    %v576 = vunpack.c.l.b16 %v349
    %v577 = vunpack.c.h.b16 %v349
    %v578 = vunpack.c.l.b16 %v350
    %v579 = vunpack.c.h.b16 %v350
    %v580 = vunpack.c.l.b16 %v351
    %v581 = vunpack.c.h.b16 %v351
    %v582 = vunpack.c.l.b16 %v352
    %v583 = vunpack.c.h.b16 %v352
    %v584 = vunpack.c.l.b16 %v353
    %v585 = vunpack.c.h.b16 %v353
    %v586 = vunpack.c.l.b16 %v354
    %v587 = vunpack.c.h.b16 %v354
    %v588 = vunpack.c.l.b16 %v355
    %v589 = vunpack.c.h.b16 %v355
    %v590 = vunpack.c.l.b16 %v356
    %v591 = vunpack.c.h.b16 %v356
    %v592 = vunpack.c.l.b16 %v357
    %v593 = vunpack.c.h.b16 %v357
    %v594 = vunpack.c.l.b16 %v358
    %v595 = vunpack.c.h.b16 %v358
    %v596 = vunpack.c.l.b16 %v359
    %v597 = vunpack.c.h.b16 %v359
    %v598 = vunpack.c.l.b16 %v360
    %v599 = vunpack.c.h.b16 %v360
    %v600 = vunpack.c.l.b16 %v361
    %v601 = vunpack.c.h.b16 %v361
    %v602 = vunpack.c.l.b16 %v362
    %v603 = vunpack.c.h.b16 %v362
    %v604 = vunpack.c.l.b16 %v363
    %v605 = vunpack.c.h.b16 %v363
    %v606 = vunpack.c.l.b16 %v364
    %v607 = vunpack.c.h.b16 %v364
    %v608 = vunpack.c.l.b16 %v365
    %v609 = vunpack.c.h.b16 %v365
    %v610 = vunpack.c.l.b16 %v366
    %v611 = vunpack.c.h.b16 %v366
    %v612 = vunpack.c.l.b16 %v367
    %v613 = vunpack.c.h.b16 %v367
    %v614 = vunpack.c.l.b16 %v368
    %v615 = vunpack.c.h.b16 %v368
    %v616 = vunpack.c.l.b16 %v369
    %v617 = vunpack.c.h.b16 %v369
    %v618 = vunpack.c.l.b16 %v370
    %v619 = vunpack.c.h.b16 %v370
    %v620 = vunpack.c.l.b16 %v371
    %v621 = vunpack.c.h.b16 %v371
    %v622 = vunpack.c.l.b16 %v372
    %v623 = vunpack.c.h.b16 %v372
    %v624 = vunpack.c.l.b16 %v373
    %v625 = vunpack.c.h.b16 %v373
    %v626 = vunpack.c.l.b16 %v374
    %v627 = vunpack.c.h.b16 %v374
    %v628 = vunpack.c.l.b16 %v375
    %v629 = vunpack.c.h.b16 %v375
    %v630 = vunpack.c.l.b16 %v376
    %v631 = vunpack.c.h.b16 %v376
    %v632 = vunpack.c.l.b16 %v377
    %v633 = vunpack.c.h.b16 %v377
    %v634 = vunpack.c.l.b16 %v378
    %v635 = vunpack.c.h.b16 %v378
    %v636 = vunpack.c.l.b16 %v379
    %v637 = vunpack.c.h.b16 %v379
    %v638 = vunpack.c.l.b16 %v380
    %v639 = vunpack.c.h.b16 %v380
    %v640 = vunpack.c.l.b16 %v381
    %v641 = vunpack.c.h.b16 %v381
    %v642 = vunpack.c.l.b16 %v382
    %v643 = vunpack.c.h.b16 %v382
    %v644 = vunpack.c.l.b16 %v383
    %v645 = vunpack.c.h.b16 %v383
    %v646 = vunpack.c.l.b16 %v384
    %v647 = vunpack.c.h.b16 %v384
    %v648 = vunpack.c.l.b16 %v385
    %v649 = vunpack.c.h.b16 %v385
    %v650 = vunpack.c.l.b16 %v386
    %v651 = vunpack.c.h.b16 %v386
    %v652 = vunpack.c.l.b16 %v387
    %v653 = vunpack.c.h.b16 %v387
    %v654 = vunpack.c.l.b16 %v388
    %v655 = vunpack.c.h.b16 %v388
    %v656 = vunpack.c.l.b16 %v389
    %v657 = vunpack.c.h.b16 %v389
    %v658 = vunpack.c.l.b16 %v390
    %v659 = vunpack.c.h.b16 %v390
    %v660 = vunpack.c.l.b16 %v391
    %v661 = vunpack.c.h.b16 %v391
    %v662 = vunpack.c.l.b16 %v392
    %v663 = vunpack.c.h.b16 %v392
    %v664 = vunpack.c.l.b16 %v393
    %v665 = vunpack.c.h.b16 %v393
    %v666 = vunpack.c.l.b16 %v394
    %v667 = vunpack.c.h.b16 %v394
    %v668 = vunpack.c.l.b16 %v395
    %v669 = vunpack.c.h.b16 %v395
    %v670 = vunpack.c.l.b16 %v396
    %v671 = vunpack.c.h.b16 %v396
    %v672 = vunpack.c.l.b16 %v397
    %v673 = vunpack.c.h.b16 %v397
    %v674 = vunpack.c.l.b16 %v398
    %v675 = vunpack.c.h.b16 %v398
    %v676 = vunpack.c.l.b16 %v399
    %v677 = vunpack.c.h.b16 %v399
    %v678 = vunpack.c.l.b16 %v400
    %v679 = vunpack.c.h.b16 %v400
    %v680 = vunpack.c.l.b16 %v401
    %v681 = vunpack.c.h.b16 %v401
    %v682 = vunpack.c.l.b16 %v402
    %v683 = vunpack.c.h.b16 %v402
    %v684 = vunpack.c.l.b16 %v403
    %v685 = vunpack.c.h.b16 %v403
    %v686 = vunpack.c.l.b16 %v404
    %v687 = vunpack.c.h.b16 %v404
    %v688 = vunpack.c.l.b16 %v405
    %v689 = vunpack.c.h.b16 %v405
    %v690 = vunpack.c.l.b16 %v406
    %v691 = vunpack.c.h.b16 %v406
    %v692 = vunpack.c.l.b16 %v407
    %v693 = vunpack.c.h.b16 %v407
    %v694 = vunpack.c.l.b16 %v408
    %v695 = vunpack.c.h.b16 %v408
    %v696 = vunpack.c.l.b16 %v409
    %v697 = vunpack.c.h.b16 %v409
    %v698 = vpack.c.b16 %v512, %v506
    %v699 = vpack.c.b16 %v513, %v507
    %v700 = vpack.c.b16 %v514, %v508
    %v701 = vpack.c.b16 %v515, %v509
    %v702 = vpack.c.b16 %v516, %v510
    %v703 = vpack.c.b16 %v517, %v511
    %v704 = vpack.c.b16 %v524, %v518
    %v705 = vpack.c.b16 %v525, %v519
    %v706 = vpack.c.b16 %v526, %v520
    %v707 = vpack.c.b16 %v527, %v521
    %v708 = vpack.c.b16 %v528, %v522
    %v709 = vpack.c.b16 %v529, %v523
    %v710 = vpack.c.b16 %v536, %v530
    %v711 = vpack.c.b16 %v537, %v531
    %v712 = vpack.c.b16 %v538, %v532
    %v713 = vpack.c.b16 %v539, %v533
    %v714 = vpack.c.b16 %v540, %v534
    %v715 = vpack.c.b16 %v541, %v535
    %v716 = vpack.c.b16 %v548, %v542
    %v717 = vpack.c.b16 %v549, %v543
    %v718 = vpack.c.b16 %v550, %v544
    %v719 = vpack.c.b16 %v551, %v545
    %v720 = vpack.c.b16 %v552, %v546
    %v721 = vpack.c.b16 %v553, %v547
    %v722 = vpack.c.b16 %v560, %v554
    %v723 = vpack.c.b16 %v561, %v555
    %v724 = vpack.c.b16 %v562, %v556
    %v725 = vpack.c.b16 %v563, %v557
    %v726 = vpack.c.b16 %v564, %v558
    %v727 = vpack.c.b16 %v565, %v559
    %v728 = vpack.c.b16 %v572, %v566
    %v729 = vpack.c.b16 %v573, %v567
    %v730 = vpack.c.b16 %v574, %v568
    %v731 = vpack.c.b16 %v575, %v569
    %v732 = vpack.c.b16 %v576, %v570
    %v733 = vpack.c.b16 %v577, %v571
    %v734 = vpack.c.b16 %v584, %v578
    %v735 = vpack.c.b16 %v585, %v579
    %v736 = vpack.c.b16 %v586, %v580
    %v737 = vpack.c.b16 %v587, %v581
    %v738 = vpack.c.b16 %v588, %v582
    %v739 = vpack.c.b16 %v589, %v583
    %v740 = vpack.c.b16 %v596, %v590
    %v741 = vpack.c.b16 %v597, %v591
    %v742 = vpack.c.b16 %v598, %v592
    %v743 = vpack.c.b16 %v599, %v593
    %v744 = vpack.c.b16 %v600, %v594
    %v745 = vpack.c.b16 %v601, %v595
    %v746 = vpack.c.b16 %v608, %v602
    %v747 = vpack.c.b16 %v609, %v603
    %v748 = vpack.c.b16 %v610, %v604
    %v749 = vpack.c.b16 %v611, %v605
    %v750 = vpack.c.b16 %v612, %v606
    %v751 = vpack.c.b16 %v613, %v607
    %v752 = vpack.c.b16 %v620, %v614
    %v753 = vpack.c.b16 %v621, %v615
    %v754 = vpack.c.b16 %v622, %v616
    %v755 = vpack.c.b16 %v623, %v617
    %v756 = vpack.c.b16 %v624, %v618
    %v757 = vpack.c.b16 %v625, %v619
    %v758 = vpack.c.b16 %v632, %v626
    %v759 = vpack.c.b16 %v633, %v627
    %v760 = vpack.c.b16 %v634, %v628
    %v761 = vpack.c.b16 %v635, %v629
    %v762 = vpack.c.b16 %v636, %v630
    %v763 = vpack.c.b16 %v637, %v631
    %v764 = vpack.c.b16 %v644, %v638
    %v765 = vpack.c.b16 %v645, %v639
    %v766 = vpack.c.b16 %v646, %v640
    %v767 = vpack.c.b16 %v647, %v641
    %v768 = vpack.c.b16 %v648, %v642
    %v769 = vpack.c.b16 %v649, %v643
    %v770 = vpack.c.b16 %v656, %v650
    %v771 = vpack.c.b16 %v657, %v651
    %v772 = vpack.c.b16 %v658, %v652
    %v773 = vpack.c.b16 %v659, %v653
    %v774 = vpack.c.b16 %v660, %v654
    %v775 = vpack.c.b16 %v661, %v655
    %v776 = vpack.c.b16 %v668, %v662
    %v777 = vpack.c.b16 %v669, %v663
    %v778 = vpack.c.b16 %v670, %v664
    %v779 = vpack.c.b16 %v671, %v665
    %v780 = vpack.c.b16 %v672, %v666
    %v781 = vpack.c.b16 %v673, %v667
    %v782 = vpack.c.b16 %v680, %v674
    %v783 = vpack.c.b16 %v681, %v675
    %v784 = vpack.c.b16 %v682, %v676
    %v785 = vpack.c.b16 %v683, %v677
    %v786 = vpack.c.b16 %v684, %v678
    %v787 = vpack.c.b16 %v685, %v679
    %v788 = vpack.c.b16 %v692, %v686
    %v789 = vpack.c.b16 %v693, %v687
    %v790 = vpack.c.b16 %v694, %v688
    %v791 = vpack.c.b16 %v695, %v689
    %v792 = vpack.c.b16 %v696, %v690
    %v793 = vpack.c.b16 %v697, %v691
    %890 = vmatprep.subr.bf16.mxu0 %v699
    %891 = vmatpush1.bf16.msra.mxu0 %v698
    %892 = vmatprep.subr.bf16.mxu0 %v705
    %893 = vmatpush1.bf16.msra.mxu0 %v704
    %894 = vmatprep.subr.bf16.mxu0 %v711
    %895 = vmatpush1.bf16.msra.mxu0 %v710
    %896 = vmatprep.subr.bf16.mxu0 %v717
    %897 = vmatpush1.bf16.msra.mxu0 %v716
    %898 = vmatprep.subr.bf16.mxu0 %v723
    %899 = vmatpush1.bf16.msra.mxu0 %v722
    %900 = vmatprep.subr.bf16.mxu0 %v729
    %901 = vmatpush1.bf16.msra.mxu0 %v728
    %902 = vmatprep.subr.bf16.mxu0 %v735
    %903 = vmatpush1.bf16.msra.mxu0 %v734
    %904 = vmatprep.subr.bf16.mxu0 %v741
    %905 = vmatpush1.bf16.msra.mxu0 %v740
    %906 = vmatprep.subr.bf16.mxu0 %v747
    %907 = vmatpush1.bf16.msra.mxu0 %v746
    %908 = vmatprep.subr.bf16.mxu0 %v753
    %909 = vmatpush1.bf16.msra.mxu0 %v752
    %910 = vmatprep.subr.bf16.mxu0 %v759
    %911 = vmatpush1.bf16.msra.mxu0 %v758
    %912 = vmatprep.subr.bf16.mxu0 %v765
    %913 = vmatpush1.bf16.msra.mxu0 %v764
    %914 = vmatprep.subr.bf16.mxu0 %v771
    %915 = vmatpush1.bf16.msra.mxu0 %v770
    %916 = vmatprep.subr.bf16.mxu0 %v777
    %917 = vmatpush1.bf16.msra.mxu0 %v776
    %918 = vmatprep.subr.bf16.mxu0 %v783
    %919 = vmatpush1.bf16.msra.mxu0 %v782
    %920 = vmatprep.subr.bf16.mxu0 %v789
    %921 = vmatpush1.bf16.msra.mxu0 %v788
    %922 = vmatprep.mubr.bf16.mxu0 0
    %923 = vmatmul.mubr.bf16.gmra.mrb[0].mxu0 0
    %v924 = vpop.f32.mrb[0].mxu0
    %v925 = vadd.f32 0.0, %v924
    %v926 = vpop.f32.mrb[0].mxu0
    %v927 = vadd.f32 0.0, %v926
    %v928 = vpop.f32.mrb[0].mxu0
    %v929 = vpop.f32.mrb[0].mxu0
    %930 = vdwg.mxu0
    %931 = vmatprep.subr.bf16.mxu0 %v701
    %932 = vmatpush1.bf16.msra.mxu0 %v700
    %933 = vmatprep.subr.bf16.mxu0 %v707
    %934 = vmatpush1.bf16.msra.mxu0 %v706
    %935 = vmatprep.subr.bf16.mxu0 %v713
    %936 = vmatpush1.bf16.msra.mxu0 %v712
    %937 = vmatprep.subr.bf16.mxu0 %v719
    %938 = vmatpush1.bf16.msra.mxu0 %v718
    %939 = vmatprep.subr.bf16.mxu0 %v725
    %940 = vmatpush1.bf16.msra.mxu0 %v724
    %941 = vmatprep.subr.bf16.mxu0 %v731
    %942 = vmatpush1.bf16.msra.mxu0 %v730
    %943 = vmatprep.subr.bf16.mxu0 %v737
    %944 = vmatpush1.bf16.msra.mxu0 %v736
    %945 = vmatprep.subr.bf16.mxu0 %v743
    %946 = vmatpush1.bf16.msra.mxu0 %v742
    %947 = vmatprep.subr.bf16.mxu0 %v749
    %948 = vmatpush1.bf16.msra.mxu0 %v748
    %949 = vmatprep.subr.bf16.mxu0 %v755
    %950 = vmatpush1.bf16.msra.mxu0 %v754
    %951 = vmatprep.subr.bf16.mxu0 %v761
    %952 = vmatpush1.bf16.msra.mxu0 %v760
    %953 = vmatprep.subr.bf16.mxu0 %v767
    %954 = vmatpush1.bf16.msra.mxu0 %v766
    %955 = vmatprep.subr.bf16.mxu0 %v773
    %956 = vmatpush1.bf16.msra.mxu0 %v772
    %957 = vmatprep.subr.bf16.mxu0 %v779
    %958 = vmatpush1.bf16.msra.mxu0 %v778
    %959 = vmatprep.subr.bf16.mxu0 %v785
    %960 = vmatpush1.bf16.msra.mxu0 %v784
    %961 = vmatprep.subr.bf16.mxu0 %v791
    %962 = vmatpush1.bf16.msra.mxu0 %v790
    %963 = vmatprep.mubr.bf16.mxu0 0
    %964 = vmatmul.mubr.bf16.gmra.mrb[0].mxu0 0
    %v965 = vpop.f32.mrb[0].mxu0
    %v966 = vadd.f32 0.0, %v965
    %v967 = vpop.f32.mrb[0].mxu0
    %v968 = vadd.f32 0.0, %v967
    %v969 = vpop.f32.mrb[0].mxu0
    %v970 = vpop.f32.mrb[0].mxu0
    %971 = vdwg.mxu0
    %972 = vmatprep.subr.bf16.mxu0 %v703
    %973 = vmatpush1.bf16.msra.mxu0 %v702
    %974 = vmatprep.subr.bf16.mxu0 %v709
    %975 = vmatpush1.bf16.msra.mxu0 %v708
    %976 = vmatprep.subr.bf16.mxu0 %v715
    %977 = vmatpush1.bf16.msra.mxu0 %v714
    %978 = vmatprep.subr.bf16.mxu0 %v721
    %979 = vmatpush1.bf16.msra.mxu0 %v720
    %980 = vmatprep.subr.bf16.mxu0 %v727
    %981 = vmatpush1.bf16.msra.mxu0 %v726
    %982 = vmatprep.subr.bf16.mxu0 %v733
    %983 = vmatpush1.bf16.msra.mxu0 %v732
    %984 = vmatprep.subr.bf16.mxu0 %v739
    %985 = vmatpush1.bf16.msra.mxu0 %v738
    %986 = vmatprep.subr.bf16.mxu0 %v745
    %987 = vmatpush1.bf16.msra.mxu0 %v744
    %988 = vmatprep.subr.bf16.mxu0 %v751
    %989 = vmatpush1.bf16.msra.mxu0 %v750
    %990 = vmatprep.subr.bf16.mxu0 %v757
    %991 = vmatpush1.bf16.msra.mxu0 %v756
    %992 = vmatprep.subr.bf16.mxu0 %v763
    %993 = vmatpush1.bf16.msra.mxu0 %v762
    %994 = vmatprep.subr.bf16.mxu0 %v769
    %995 = vmatpush1.bf16.msra.mxu0 %v768
    %996 = vmatprep.subr.bf16.mxu0 %v775
    %997 = vmatpush1.bf16.msra.mxu0 %v774
    %998 = vmatprep.subr.bf16.mxu0 %v781
    %999 = vmatpush1.bf16.msra.mxu0 %v780
    %1000 = vmatprep.subr.bf16.mxu0 %v787
    %1001 = vmatpush1.bf16.msra.mxu0 %v786
    %1002 = vmatprep.subr.bf16.mxu0 %v793
    %1003 = vmatpush1.bf16.msra.mxu0 %v792
    %1004 = vmatprep.mubr.bf16.mxu0 0
    %1005 = vmatmul.mubr.bf16.gmra.mrb[0].mxu0 0
    %v1006 = vpop.f32.mrb[0].mxu0
    %v1007 = vadd.f32 0.0, %v1006
    %v1008 = vpop.f32.mrb[0].mxu0
    %v1009 = vadd.f32 0.0, %v1008
    %v1010 = vpop.f32.mrb[0].mxu0
    %v1011 = vpop.f32.mrb[0].mxu0
    %1012 = vdwg.mxu0
    %v1013 = vadd.f32 %v308, %v925
    %v1014 = vadd.f32 %v309, %v927
    %v1015 = vxor.u32 %v1013, 2147483648
    %v1016 = vxor.u32 %v1014, 2147483648
    %v1017 = vmul.f32 %v1015, 1.442695
    %v1018 = vpow.pop %v1017
    %v1019 = vmul.f32 %v1016, 1.442695
    %v1020 = vpow.pop %v1019
    %v1021 = vadd.f32 %v1018, 1.0
    %v1022 = vadd.f32 %v1020, 1.0
    %v1023 = vrcp.pop %v1021
    %v1024 = vmul.f32 1.0, %v1023
    %v1025 = vrcp.pop %v1022
    %v1026 = vmul.f32 1.0, %v1025
    %v1027 = vadd.f32 %v310, %v966
    %v1028 = vadd.f32 %v311, %v968
    %v1029 = vxor.u32 %v1027, 2147483648
    %v1030 = vxor.u32 %v1028, 2147483648
    %v1031 = vmul.f32 %v1029, 1.442695
    %v1032 = vpow.pop %v1031
    %v1033 = vmul.f32 %v1030, 1.442695
    %v1034 = vpow.pop %v1033
    %v1035 = vadd.f32 %v1032, 1.0
    %v1036 = vadd.f32 %v1034, 1.0
    %v1037 = vrcp.pop %v1035
    %v1038 = vmul.f32 1.0, %v1037
    %v1039 = vrcp.pop %v1036
    %v1040 = vmul.f32 1.0, %v1039
    %v1041 = vld [vmem:[%s3] sm:$0x3]
    %v1043 = vlaneseq
    %v1044 = vshrl.u32 %v1043, 7
    %v1045 = vsub.s32 0, %v1044
    %v1046 = vrot.slane %v1041, %v1045
    %v1047 = vlaneseq
    %v1048 = vshrl.u32 %v1047, 7
    %v1049 = vsub.s32 1, %v1048
    %v1050 = vrot.slane %v1041, %v1049
    %v1053 = vadd.f32 %v1007, %v1046
    %v1054 = vadd.f32 %v1009, %v1050
    %v1055 = vmul.f32 %v1024, %v1053
    %v1056 = vmul.f32 %v1026, %v1054
    %v1057 = vadd.f32 %v312, %v1055
    %v1058 = vadd.f32 %v313, %v1056
    %v1059 = vtanh.pop %v1057
    %v1060 = vtanh.pop %v1058
    %v1061 = vsub.f32 1.0, %v1038
    %v1062 = vsub.f32 1.0, %v1040
    %v1063 = vmul.f32 %v1061, %v1059
    %v1064 = vmul.f32 %v1062, %v1060
    %v1065 = vmul.f32 %v1038, 0.0
    %v1066 = vmul.f32 %v1040, 0.0
    %v1067 = vadd.f32 %v1063, %v1065
    %v1068 = vadd.f32 %v1064, %v1066
    %1069 = vst [vmem:[#allocation3] sm:$0x3] %v1067
    %1070 = vst [vmem:[#allocation3 + $0x8] sm:$0x3] %v1068
    %v1071 = vld [vmem:[#allocation2] sm:$0xc]
    %v1072 = vld [vmem:[#allocation2 + $0x8] sm:$0xc]
    %v1073 = vld [vmem:[#allocation2 + $0x10] sm:$0xc]
    %v1074 = vld [vmem:[#allocation2 + $0x18] sm:$0xc]
    %v1075 = vld [vmem:[#allocation2 + $0x20] sm:$0xc]
    %v1076 = vld [vmem:[#allocation2 + $0x28] sm:$0xc]
    %v1077 = vpack.c.bf16 %v1067, %v1067
    %v1078 = vpack.c.bf16 %v1068, %v1068
    %v1079 = vld [vmem:[#allocation4] sm:$0xff]
    %v1080 = vld [vmem:[#allocation4 + $0x8] sm:$0xff]
    %v1081 = vld [vmem:[#allocation4 + $0x10] sm:$0xff]
    %v1082 = vld [vmem:[#allocation4 + $0x18] sm:$0xff]
    %v1083 = vld [vmem:[#allocation4 + $0x20] sm:$0xff]
    %v1084 = vld [vmem:[#allocation4 + $0x28] sm:$0xff]
    %v1085 = vld [vmem:[#allocation4 + $0x30] sm:$0xff]
    %v1086 = vld [vmem:[#allocation4 + $0x38] sm:$0xff]
    %v1087 = vld [vmem:[#allocation4 + $0x40] sm:$0xff]
    %v1088 = vld [vmem:[#allocation4 + $0x48] sm:$0xff]
    %v1089 = vld [vmem:[#allocation4 + $0x50] sm:$0xff]
    %v1090 = vld [vmem:[#allocation4 + $0x58] sm:$0xff]
    %v1091 = vld [vmem:[#allocation4 + $0x60] sm:$0xff]
    %v1092 = vld [vmem:[#allocation4 + $0x68] sm:$0xff]
    %v1093 = vld [vmem:[#allocation4 + $0x70] sm:$0xff]
    %v1094 = vld [vmem:[#allocation4 + $0x78] sm:$0xff]
    %v1095 = vld [vmem:[#allocation4 + $0x80] sm:$0xff]
    %v1096 = vld [vmem:[#allocation4 + $0x88] sm:$0xff]
    %v1097 = vld [vmem:[#allocation4 + $0x90] sm:$0xff]
    %v1098 = vld [vmem:[#allocation4 + $0x98] sm:$0xff]
    %v1099 = vld [vmem:[#allocation4 + $0xa0] sm:$0xff]
    %v1100 = vld [vmem:[#allocation4 + $0xa8] sm:$0xff]
    %v1101 = vld [vmem:[#allocation4 + $0xb0] sm:$0xff]
    %v1102 = vld [vmem:[#allocation4 + $0xb8] sm:$0xff]
    %v1103 = vld [vmem:[#allocation4 + $0xc0] sm:$0xff]
    %v1104 = vld [vmem:[#allocation4 + $0xc8] sm:$0xff]
    %v1105 = vld [vmem:[#allocation4 + $0xd0] sm:$0xff]
    %v1106 = vld [vmem:[#allocation4 + $0xd8] sm:$0xff]
    %v1107 = vld [vmem:[#allocation4 + $0xe0] sm:$0xff]
    %v1108 = vld [vmem:[#allocation4 + $0xe8] sm:$0xff]
    %v1109 = vld [vmem:[#allocation4 + $0xf0] sm:$0xff]
    %v1110 = vld [vmem:[#allocation4 + $0xf8] sm:$0xff]
    %v1111 = vld [vmem:[#allocation4 + $0x100] sm:$0xff]
    %v1112 = vld [vmem:[#allocation4 + $0x108] sm:$0xff]
    %v1113 = vld [vmem:[#allocation4 + $0x110] sm:$0xff]
    %v1114 = vld [vmem:[#allocation4 + $0x118] sm:$0xff]
    %v1115 = vld [vmem:[#allocation4 + $0x120] sm:$0xff]
    %v1116 = vld [vmem:[#allocation4 + $0x128] sm:$0xff]
    %v1117 = vld [vmem:[#allocation4 + $0x130] sm:$0xff]
    %v1118 = vld [vmem:[#allocation4 + $0x138] sm:$0xff]
    %v1119 = vld [vmem:[#allocation4 + $0x140] sm:$0xff]
    %v1120 = vld [vmem:[#allocation4 + $0x148] sm:$0xff]
    %v1121 = vld [vmem:[#allocation4 + $0x150] sm:$0xff]
    %v1122 = vld [vmem:[#allocation4 + $0x158] sm:$0xff]
    %v1123 = vld [vmem:[#allocation4 + $0x160] sm:$0xff]
    %v1124 = vld [vmem:[#allocation4 + $0x168] sm:$0xff]
    %v1125 = vld [vmem:[#allocation4 + $0x170] sm:$0xff]
    %v1126 = vld [vmem:[#allocation4 + $0x178] sm:$0xff]
    %v1127 = vld [vmem:[#allocation4 + $0x180] sm:$0xff]
    %v1128 = vld [vmem:[#allocation4 + $0x188] sm:$0xff]
    %v1129 = vld [vmem:[#allocation4 + $0x190] sm:$0xff]
    %v1130 = vld [vmem:[#allocation4 + $0x198] sm:$0xff]
    %v1131 = vld [vmem:[#allocation4 + $0x1a0] sm:$0xff]
    %v1132 = vld [vmem:[#allocation4 + $0x1a8] sm:$0xff]
    %v1133 = vld [vmem:[#allocation4 + $0x1b0] sm:$0xff]
    %v1134 = vld [vmem:[#allocation4 + $0x1b8] sm:$0xff]
    %v1135 = vld [vmem:[#allocation4 + $0x1c0] sm:$0xff]
    %v1136 = vld [vmem:[#allocation4 + $0x1c8] sm:$0xff]
    %v1137 = vld [vmem:[#allocation4 + $0x1d0] sm:$0xff]
    %v1138 = vld [vmem:[#allocation4 + $0x1d8] sm:$0xff]
    %v1139 = vld [vmem:[#allocation4 + $0x1e0] sm:$0xff]
    %v1140 = vld [vmem:[#allocation4 + $0x1e8] sm:$0xff]
    %v1141 = vld [vmem:[#allocation4 + $0x1f0] sm:$0xff]
    %v1142 = vld [vmem:[#allocation4 + $0x1f8] sm:$0xff]
    %v1143 = vld [vmem:[#allocation4 + $0x200] sm:$0xff]
    %v1144 = vld [vmem:[#allocation4 + $0x208] sm:$0xff]
    %v1145 = vld [vmem:[#allocation4 + $0x210] sm:$0xff]
    %v1146 = vld [vmem:[#allocation4 + $0x218] sm:$0xff]
    %v1147 = vld [vmem:[#allocation4 + $0x220] sm:$0xff]
    %v1148 = vld [vmem:[#allocation4 + $0x228] sm:$0xff]
    %v1149 = vld [vmem:[#allocation4 + $0x230] sm:$0xff]
    %v1150 = vld [vmem:[#allocation4 + $0x238] sm:$0xff]
    %v1151 = vld [vmem:[#allocation4 + $0x240] sm:$0xff]
    %v1152 = vld [vmem:[#allocation4 + $0x248] sm:$0xff]
    %v1153 = vld [vmem:[#allocation4 + $0x250] sm:$0xff]
    %v1154 = vld [vmem:[#allocation4 + $0x258] sm:$0xff]
    %v1155 = vld [vmem:[#allocation4 + $0x260] sm:$0xff]
    %v1156 = vld [vmem:[#allocation4 + $0x268] sm:$0xff]
    %v1157 = vld [vmem:[#allocation4 + $0x270] sm:$0xff]
    %v1158 = vld [vmem:[#allocation4 + $0x278] sm:$0xff]
    %v1159 = vld [vmem:[#allocation4 + $0x280] sm:$0xff]
    %v1160 = vld [vmem:[#allocation4 + $0x288] sm:$0xff]
    %v1161 = vld [vmem:[#allocation4 + $0x290] sm:$0xff]
    %v1162 = vld [vmem:[#allocation4 + $0x298] sm:$0xff]
    %v1163 = vld [vmem:[#allocation4 + $0x2a0] sm:$0xff]
    %v1164 = vld [vmem:[#allocation4 + $0x2a8] sm:$0xff]
    %v1165 = vld [vmem:[#allocation4 + $0x2b0] sm:$0xff]
    %v1166 = vld [vmem:[#allocation4 + $0x2b8] sm:$0xff]
    %v1167 = vld [vmem:[#allocation4 + $0x2c0] sm:$0xff]
    %v1168 = vld [vmem:[#allocation4 + $0x2c8] sm:$0xff]
    %v1169 = vld [vmem:[#allocation4 + $0x2d0] sm:$0xff]
    %v1170 = vld [vmem:[#allocation4 + $0x2d8] sm:$0xff]
    %v1171 = vld [vmem:[#allocation4 + $0x2e0] sm:$0xff]
    %v1172 = vld [vmem:[#allocation4 + $0x2e8] sm:$0xff]
    %v1173 = vld [vmem:[#allocation4 + $0x2f0] sm:$0xff]
    %v1174 = vld [vmem:[#allocation4 + $0x2f8] sm:$0xff]
    %v1271 = vunpack.c.l.b16 %v1079
    %v1272 = vunpack.c.h.b16 %v1079
    %v1273 = vunpack.c.l.b16 %v1080
    %v1274 = vunpack.c.h.b16 %v1080
    %v1275 = vunpack.c.l.b16 %v1081
    %v1276 = vunpack.c.h.b16 %v1081
    %v1277 = vunpack.c.l.b16 %v1082
    %v1278 = vunpack.c.h.b16 %v1082
    %v1279 = vunpack.c.l.b16 %v1083
    %v1280 = vunpack.c.h.b16 %v1083
    %v1281 = vunpack.c.l.b16 %v1084
    %v1282 = vunpack.c.h.b16 %v1084
    %v1283 = vunpack.c.l.b16 %v1085
    %v1284 = vunpack.c.h.b16 %v1085
    %v1285 = vunpack.c.l.b16 %v1086
    %v1286 = vunpack.c.h.b16 %v1086
    %v1287 = vunpack.c.l.b16 %v1087
    %v1288 = vunpack.c.h.b16 %v1087
    %v1289 = vunpack.c.l.b16 %v1088
    %v1290 = vunpack.c.h.b16 %v1088
    %v1291 = vunpack.c.l.b16 %v1089
    %v1292 = vunpack.c.h.b16 %v1089
    %v1293 = vunpack.c.l.b16 %v1090
    %v1294 = vunpack.c.h.b16 %v1090
    %v1295 = vunpack.c.l.b16 %v1091
    %v1296 = vunpack.c.h.b16 %v1091
    %v1297 = vunpack.c.l.b16 %v1092
    %v1298 = vunpack.c.h.b16 %v1092
    %v1299 = vunpack.c.l.b16 %v1093
    %v1300 = vunpack.c.h.b16 %v1093
    %v1301 = vunpack.c.l.b16 %v1094
    %v1302 = vunpack.c.h.b16 %v1094
    %v1303 = vunpack.c.l.b16 %v1095
    %v1304 = vunpack.c.h.b16 %v1095
    %v1305 = vunpack.c.l.b16 %v1096
    %v1306 = vunpack.c.h.b16 %v1096
    %v1307 = vunpack.c.l.b16 %v1097
    %v1308 = vunpack.c.h.b16 %v1097
    %v1309 = vunpack.c.l.b16 %v1098
    %v1310 = vunpack.c.h.b16 %v1098
    %v1311 = vunpack.c.l.b16 %v1099
    %v1312 = vunpack.c.h.b16 %v1099
    %v1313 = vunpack.c.l.b16 %v1100
    %v1314 = vunpack.c.h.b16 %v1100
    %v1315 = vunpack.c.l.b16 %v1101
    %v1316 = vunpack.c.h.b16 %v1101
    %v1317 = vunpack.c.l.b16 %v1102
    %v1318 = vunpack.c.h.b16 %v1102
    %v1319 = vunpack.c.l.b16 %v1103
    %v1320 = vunpack.c.h.b16 %v1103
    %v1321 = vunpack.c.l.b16 %v1104
    %v1322 = vunpack.c.h.b16 %v1104
    %v1323 = vunpack.c.l.b16 %v1105
    %v1324 = vunpack.c.h.b16 %v1105
    %v1325 = vunpack.c.l.b16 %v1106
    %v1326 = vunpack.c.h.b16 %v1106
    %v1327 = vunpack.c.l.b16 %v1107
    %v1328 = vunpack.c.h.b16 %v1107
    %v1329 = vunpack.c.l.b16 %v1108
    %v1330 = vunpack.c.h.b16 %v1108
    %v1331 = vunpack.c.l.b16 %v1109
    %v1332 = vunpack.c.h.b16 %v1109
    %v1333 = vunpack.c.l.b16 %v1110
    %v1334 = vunpack.c.h.b16 %v1110
    %v1335 = vunpack.c.l.b16 %v1111
    %v1336 = vunpack.c.h.b16 %v1111
    %v1337 = vunpack.c.l.b16 %v1112
    %v1338 = vunpack.c.h.b16 %v1112
    %v1339 = vunpack.c.l.b16 %v1113
    %v1340 = vunpack.c.h.b16 %v1113
    %v1341 = vunpack.c.l.b16 %v1114
    %v1342 = vunpack.c.h.b16 %v1114
    %v1343 = vunpack.c.l.b16 %v1115
    %v1344 = vunpack.c.h.b16 %v1115
    %v1345 = vunpack.c.l.b16 %v1116
    %v1346 = vunpack.c.h.b16 %v1116
    %v1347 = vunpack.c.l.b16 %v1117
    %v1348 = vunpack.c.h.b16 %v1117
    %v1349 = vunpack.c.l.b16 %v1118
    %v1350 = vunpack.c.h.b16 %v1118
    %v1351 = vunpack.c.l.b16 %v1119
    %v1352 = vunpack.c.h.b16 %v1119
    %v1353 = vunpack.c.l.b16 %v1120
    %v1354 = vunpack.c.h.b16 %v1120
    %v1355 = vunpack.c.l.b16 %v1121
    %v1356 = vunpack.c.h.b16 %v1121
    %v1357 = vunpack.c.l.b16 %v1122
    %v1358 = vunpack.c.h.b16 %v1122
    %v1359 = vunpack.c.l.b16 %v1123
    %v1360 = vunpack.c.h.b16 %v1123
    %v1361 = vunpack.c.l.b16 %v1124
    %v1362 = vunpack.c.h.b16 %v1124
    %v1363 = vunpack.c.l.b16 %v1125
    %v1364 = vunpack.c.h.b16 %v1125
    %v1365 = vunpack.c.l.b16 %v1126
    %v1366 = vunpack.c.h.b16 %v1126
    %v1367 = vunpack.c.l.b16 %v1127
    %v1368 = vunpack.c.h.b16 %v1127
    %v1369 = vunpack.c.l.b16 %v1128
    %v1370 = vunpack.c.h.b16 %v1128
    %v1371 = vunpack.c.l.b16 %v1129
    %v1372 = vunpack.c.h.b16 %v1129
    %v1373 = vunpack.c.l.b16 %v1130
    %v1374 = vunpack.c.h.b16 %v1130
    %v1375 = vunpack.c.l.b16 %v1131
    %v1376 = vunpack.c.h.b16 %v1131
    %v1377 = vunpack.c.l.b16 %v1132
    %v1378 = vunpack.c.h.b16 %v1132
    %v1379 = vunpack.c.l.b16 %v1133
    %v1380 = vunpack.c.h.b16 %v1133
    %v1381 = vunpack.c.l.b16 %v1134
    %v1382 = vunpack.c.h.b16 %v1134
    %v1383 = vunpack.c.l.b16 %v1135
    %v1384 = vunpack.c.h.b16 %v1135
    %v1385 = vunpack.c.l.b16 %v1136
    %v1386 = vunpack.c.h.b16 %v1136
    %v1387 = vunpack.c.l.b16 %v1137
    %v1388 = vunpack.c.h.b16 %v1137
    %v1389 = vunpack.c.l.b16 %v1138
    %v1390 = vunpack.c.h.b16 %v1138
    %v1391 = vunpack.c.l.b16 %v1139
    %v1392 = vunpack.c.h.b16 %v1139
    %v1393 = vunpack.c.l.b16 %v1140
    %v1394 = vunpack.c.h.b16 %v1140
    %v1395 = vunpack.c.l.b16 %v1141
    %v1396 = vunpack.c.h.b16 %v1141
    %v1397 = vunpack.c.l.b16 %v1142
    %v1398 = vunpack.c.h.b16 %v1142
    %v1399 = vunpack.c.l.b16 %v1143
    %v1400 = vunpack.c.h.b16 %v1143
    %v1401 = vunpack.c.l.b16 %v1144
    %v1402 = vunpack.c.h.b16 %v1144
    %v1403 = vunpack.c.l.b16 %v1145
    %v1404 = vunpack.c.h.b16 %v1145
    %v1405 = vunpack.c.l.b16 %v1146
    %v1406 = vunpack.c.h.b16 %v1146
    %v1407 = vunpack.c.l.b16 %v1147
    %v1408 = vunpack.c.h.b16 %v1147
    %v1409 = vunpack.c.l.b16 %v1148
    %v1410 = vunpack.c.h.b16 %v1148
    %v1411 = vunpack.c.l.b16 %v1149
    %v1412 = vunpack.c.h.b16 %v1149
    %v1413 = vunpack.c.l.b16 %v1150
    %v1414 = vunpack.c.h.b16 %v1150
    %v1415 = vunpack.c.l.b16 %v1151
    %v1416 = vunpack.c.h.b16 %v1151
    %v1417 = vunpack.c.l.b16 %v1152
    %v1418 = vunpack.c.h.b16 %v1152
    %v1419 = vunpack.c.l.b16 %v1153
    %v1420 = vunpack.c.h.b16 %v1153
    %v1421 = vunpack.c.l.b16 %v1154
    %v1422 = vunpack.c.h.b16 %v1154
    %v1423 = vunpack.c.l.b16 %v1155
    %v1424 = vunpack.c.h.b16 %v1155
    %v1425 = vunpack.c.l.b16 %v1156
    %v1426 = vunpack.c.h.b16 %v1156
    %v1427 = vunpack.c.l.b16 %v1157
    %v1428 = vunpack.c.h.b16 %v1157
    %v1429 = vunpack.c.l.b16 %v1158
    %v1430 = vunpack.c.h.b16 %v1158
    %v1431 = vunpack.c.l.b16 %v1159
    %v1432 = vunpack.c.h.b16 %v1159
    %v1433 = vunpack.c.l.b16 %v1160
    %v1434 = vunpack.c.h.b16 %v1160
    %v1435 = vunpack.c.l.b16 %v1161
    %v1436 = vunpack.c.h.b16 %v1161
    %v1437 = vunpack.c.l.b16 %v1162
    %v1438 = vunpack.c.h.b16 %v1162
    %v1439 = vunpack.c.l.b16 %v1163
    %v1440 = vunpack.c.h.b16 %v1163
    %v1441 = vunpack.c.l.b16 %v1164
    %v1442 = vunpack.c.h.b16 %v1164
    %v1443 = vunpack.c.l.b16 %v1165
    %v1444 = vunpack.c.h.b16 %v1165
    %v1445 = vunpack.c.l.b16 %v1166
    %v1446 = vunpack.c.h.b16 %v1166
    %v1447 = vunpack.c.l.b16 %v1167
    %v1448 = vunpack.c.h.b16 %v1167
    %v1449 = vunpack.c.l.b16 %v1168
    %v1450 = vunpack.c.h.b16 %v1168
    %v1451 = vunpack.c.l.b16 %v1169
    %v1452 = vunpack.c.h.b16 %v1169
    %v1453 = vunpack.c.l.b16 %v1170
    %v1454 = vunpack.c.h.b16 %v1170
    %v1455 = vunpack.c.l.b16 %v1171
    %v1456 = vunpack.c.h.b16 %v1171
    %v1457 = vunpack.c.l.b16 %v1172
    %v1458 = vunpack.c.h.b16 %v1172
    %v1459 = vunpack.c.l.b16 %v1173
    %v1460 = vunpack.c.h.b16 %v1173
    %v1461 = vunpack.c.l.b16 %v1174
    %v1462 = vunpack.c.h.b16 %v1174
    %v1463 = vpack.c.b16 %v1277, %v1271
    %v1464 = vpack.c.b16 %v1278, %v1272
    %v1465 = vpack.c.b16 %v1279, %v1273
    %v1466 = vpack.c.b16 %v1280, %v1274
    %v1467 = vpack.c.b16 %v1281, %v1275
    %v1468 = vpack.c.b16 %v1282, %v1276
    %v1469 = vpack.c.b16 %v1289, %v1283
    %v1470 = vpack.c.b16 %v1290, %v1284
    %v1471 = vpack.c.b16 %v1291, %v1285
    %v1472 = vpack.c.b16 %v1292, %v1286
    %v1473 = vpack.c.b16 %v1293, %v1287
    %v1474 = vpack.c.b16 %v1294, %v1288
    %v1475 = vpack.c.b16 %v1301, %v1295
    %v1476 = vpack.c.b16 %v1302, %v1296
    %v1477 = vpack.c.b16 %v1303, %v1297
    %v1478 = vpack.c.b16 %v1304, %v1298
    %v1479 = vpack.c.b16 %v1305, %v1299
    %v1480 = vpack.c.b16 %v1306, %v1300
    %v1481 = vpack.c.b16 %v1313, %v1307
    %v1482 = vpack.c.b16 %v1314, %v1308
    %v1483 = vpack.c.b16 %v1315, %v1309
    %v1484 = vpack.c.b16 %v1316, %v1310
    %v1485 = vpack.c.b16 %v1317, %v1311
    %v1486 = vpack.c.b16 %v1318, %v1312
    %v1487 = vpack.c.b16 %v1325, %v1319
    %v1488 = vpack.c.b16 %v1326, %v1320
    %v1489 = vpack.c.b16 %v1327, %v1321
    %v1490 = vpack.c.b16 %v1328, %v1322
    %v1491 = vpack.c.b16 %v1329, %v1323
    %v1492 = vpack.c.b16 %v1330, %v1324
    %v1493 = vpack.c.b16 %v1337, %v1331
    %v1494 = vpack.c.b16 %v1338, %v1332
    %v1495 = vpack.c.b16 %v1339, %v1333
    %v1496 = vpack.c.b16 %v1340, %v1334
    %v1497 = vpack.c.b16 %v1341, %v1335
    %v1498 = vpack.c.b16 %v1342, %v1336
    %v1499 = vpack.c.b16 %v1349, %v1343
    %v1500 = vpack.c.b16 %v1350, %v1344
    %v1501 = vpack.c.b16 %v1351, %v1345
    %v1502 = vpack.c.b16 %v1352, %v1346
    %v1503 = vpack.c.b16 %v1353, %v1347
    %v1504 = vpack.c.b16 %v1354, %v1348
    %v1505 = vpack.c.b16 %v1361, %v1355
    %v1506 = vpack.c.b16 %v1362, %v1356
    %v1507 = vpack.c.b16 %v1363, %v1357
    %v1508 = vpack.c.b16 %v1364, %v1358
    %v1509 = vpack.c.b16 %v1365, %v1359
    %v1510 = vpack.c.b16 %v1366, %v1360
    %v1511 = vpack.c.b16 %v1373, %v1367
    %v1512 = vpack.c.b16 %v1374, %v1368
    %v1513 = vpack.c.b16 %v1375, %v1369
    %v1514 = vpack.c.b16 %v1376, %v1370
    %v1515 = vpack.c.b16 %v1377, %v1371
    %v1516 = vpack.c.b16 %v1378, %v1372
    %v1517 = vpack.c.b16 %v1385, %v1379
    %v1518 = vpack.c.b16 %v1386, %v1380
    %v1519 = vpack.c.b16 %v1387, %v1381
    %v1520 = vpack.c.b16 %v1388, %v1382
    %v1521 = vpack.c.b16 %v1389, %v1383
    %v1522 = vpack.c.b16 %v1390, %v1384
    %v1523 = vpack.c.b16 %v1397, %v1391
    %v1524 = vpack.c.b16 %v1398, %v1392
    %v1525 = vpack.c.b16 %v1399, %v1393
    %v1526 = vpack.c.b16 %v1400, %v1394
    %v1527 = vpack.c.b16 %v1401, %v1395
    %v1528 = vpack.c.b16 %v1402, %v1396
    %v1529 = vpack.c.b16 %v1409, %v1403
    %v1530 = vpack.c.b16 %v1410, %v1404
    %v1531 = vpack.c.b16 %v1411, %v1405
    %v1532 = vpack.c.b16 %v1412, %v1406
    %v1533 = vpack.c.b16 %v1413, %v1407
    %v1534 = vpack.c.b16 %v1414, %v1408
    %v1535 = vpack.c.b16 %v1421, %v1415
    %v1536 = vpack.c.b16 %v1422, %v1416
    %v1537 = vpack.c.b16 %v1423, %v1417
    %v1538 = vpack.c.b16 %v1424, %v1418
    %v1539 = vpack.c.b16 %v1425, %v1419
    %v1540 = vpack.c.b16 %v1426, %v1420
    %v1541 = vpack.c.b16 %v1433, %v1427
    %v1542 = vpack.c.b16 %v1434, %v1428
    %v1543 = vpack.c.b16 %v1435, %v1429
    %v1544 = vpack.c.b16 %v1436, %v1430
    %v1545 = vpack.c.b16 %v1437, %v1431
    %v1546 = vpack.c.b16 %v1438, %v1432
    %v1547 = vpack.c.b16 %v1445, %v1439
    %v1548 = vpack.c.b16 %v1446, %v1440
    %v1549 = vpack.c.b16 %v1447, %v1441
    %v1550 = vpack.c.b16 %v1448, %v1442
    %v1551 = vpack.c.b16 %v1449, %v1443
    %v1552 = vpack.c.b16 %v1450, %v1444
    %v1553 = vpack.c.b16 %v1457, %v1451
    %v1554 = vpack.c.b16 %v1458, %v1452
    %v1555 = vpack.c.b16 %v1459, %v1453
    %v1556 = vpack.c.b16 %v1460, %v1454
    %v1557 = vpack.c.b16 %v1461, %v1455
    %v1558 = vpack.c.b16 %v1462, %v1456
    %1655 = vmatprep.subr.bf16.mxu0 %v1464
    %1656 = vmatpush1.bf16.msra.mxu0 %v1463
    %1657 = vmatprep.subr.bf16.mxu0 %v1470
    %1658 = vmatpush1.bf16.msra.mxu0 %v1469
    %1659 = vmatprep.subr.bf16.mxu0 %v1476
    %1660 = vmatpush1.bf16.msra.mxu0 %v1475
    %1661 = vmatprep.subr.bf16.mxu0 %v1482
    %1662 = vmatpush1.bf16.msra.mxu0 %v1481
    %1663 = vmatprep.subr.bf16.mxu0 %v1488
    %1664 = vmatpush1.bf16.msra.mxu0 %v1487
    %1665 = vmatprep.subr.bf16.mxu0 %v1494
    %1666 = vmatpush1.bf16.msra.mxu0 %v1493
    %1667 = vmatprep.subr.bf16.mxu0 %v1500
    %1668 = vmatpush1.bf16.msra.mxu0 %v1499
    %1669 = vmatprep.subr.bf16.mxu0 %v1506
    %1670 = vmatpush1.bf16.msra.mxu0 %v1505
    %1671 = vmatprep.subr.bf16.mxu0 %v1512
    %1672 = vmatpush1.bf16.msra.mxu0 %v1511
    %1673 = vmatprep.subr.bf16.mxu0 %v1518
    %1674 = vmatpush1.bf16.msra.mxu0 %v1517
    %1675 = vmatprep.subr.bf16.mxu0 %v1524
    %1676 = vmatpush1.bf16.msra.mxu0 %v1523
    %1677 = vmatprep.subr.bf16.mxu0 %v1530
    %1678 = vmatpush1.bf16.msra.mxu0 %v1529
    %1679 = vmatprep.subr.bf16.mxu0 %v1536
    %1680 = vmatpush1.bf16.msra.mxu0 %v1535
    %1681 = vmatprep.subr.bf16.mxu0 %v1542
    %1682 = vmatpush1.bf16.msra.mxu0 %v1541
    %1683 = vmatprep.subr.bf16.mxu0 %v1548
    %1684 = vmatpush1.bf16.msra.mxu0 %v1547
    %1685 = vmatprep.subr.bf16.mxu0 %v1554
    %1686 = vmatpush1.bf16.msra.mxu0 %v1553
    %1687 = vmatprep.mubr.bf16.mxu0 %v1078
    %1688 = vmatmul.mubr.bf16.gmra.mrb[0].mxu0 %v1077
    %v1689 = vpop.f32.mrb[0].mxu0
    %v1690 = vadd.f32 0.0, %v1689
    %v1691 = vpop.f32.mrb[0].mxu0
    %v1692 = vadd.f32 0.0, %v1691
    %v1693 = vpop.f32.mrb[0].mxu0
    %v1694 = vpop.f32.mrb[0].mxu0
    %1695 = vdwg.mxu0
    %1696 = vmatprep.subr.bf16.mxu0 %v1466
    %1697 = vmatpush1.bf16.msra.mxu0 %v1465
    %1698 = vmatprep.subr.bf16.mxu0 %v1472
    %1699 = vmatpush1.bf16.msra.mxu0 %v1471
    %1700 = vmatprep.subr.bf16.mxu0 %v1478
    %1701 = vmatpush1.bf16.msra.mxu0 %v1477
    %1702 = vmatprep.subr.bf16.mxu0 %v1484
    %1703 = vmatpush1.bf16.msra.mxu0 %v1483
    %1704 = vmatprep.subr.bf16.mxu0 %v1490
    %1705 = vmatpush1.bf16.msra.mxu0 %v1489
    %1706 = vmatprep.subr.bf16.mxu0 %v1496
    %1707 = vmatpush1.bf16.msra.mxu0 %v1495
    %1708 = vmatprep.subr.bf16.mxu0 %v1502
    %1709 = vmatpush1.bf16.msra.mxu0 %v1501
    %1710 = vmatprep.subr.bf16.mxu0 %v1508
    %1711 = vmatpush1.bf16.msra.mxu0 %v1507
    %1712 = vmatprep.subr.bf16.mxu0 %v1514
    %1713 = vmatpush1.bf16.msra.mxu0 %v1513
    %1714 = vmatprep.subr.bf16.mxu0 %v1520
    %1715 = vmatpush1.bf16.msra.mxu0 %v1519
    %1716 = vmatprep.subr.bf16.mxu0 %v1526
    %1717 = vmatpush1.bf16.msra.mxu0 %v1525
    %1718 = vmatprep.subr.bf16.mxu0 %v1532
    %1719 = vmatpush1.bf16.msra.mxu0 %v1531
    %1720 = vmatprep.subr.bf16.mxu0 %v1538
    %1721 = vmatpush1.bf16.msra.mxu0 %v1537
    %1722 = vmatprep.subr.bf16.mxu0 %v1544
    %1723 = vmatpush1.bf16.msra.mxu0 %v1543
    %1724 = vmatprep.subr.bf16.mxu0 %v1550
    %1725 = vmatpush1.bf16.msra.mxu0 %v1549
    %1726 = vmatprep.subr.bf16.mxu0 %v1556
    %1727 = vmatpush1.bf16.msra.mxu0 %v1555
    %1728 = vmatprep.mubr.bf16.mxu0 %v1078
    %1729 = vmatmul.mubr.bf16.gmra.mrb[0].mxu0 %v1077
    %v1730 = vpop.f32.mrb[0].mxu0
    %v1731 = vadd.f32 0.0, %v1730
    %v1732 = vpop.f32.mrb[0].mxu0
    %v1733 = vadd.f32 0.0, %v1732
    %v1734 = vpop.f32.mrb[0].mxu0
    %v1735 = vpop.f32.mrb[0].mxu0
    %1736 = vdwg.mxu0
    %1737 = vmatprep.subr.bf16.mxu0 %v1468
    %1738 = vmatpush1.bf16.msra.mxu0 %v1467
    %1739 = vmatprep.subr.bf16.mxu0 %v1474
    %1740 = vmatpush1.bf16.msra.mxu0 %v1473
    %1741 = vmatprep.subr.bf16.mxu0 %v1480
    %1742 = vmatpush1.bf16.msra.mxu0 %v1479
    %1743 = vmatprep.subr.bf16.mxu0 %v1486
    %1744 = vmatpush1.bf16.msra.mxu0 %v1485
    %1745 = vmatprep.subr.bf16.mxu0 %v1492
    %1746 = vmatpush1.bf16.msra.mxu0 %v1491
    %1747 = vmatprep.subr.bf16.mxu0 %v1498
    %1748 = vmatpush1.bf16.msra.mxu0 %v1497
    %1749 = vmatprep.subr.bf16.mxu0 %v1504
    %1750 = vmatpush1.bf16.msra.mxu0 %v1503
    %1751 = vmatprep.subr.bf16.mxu0 %v1510
    %1752 = vmatpush1.bf16.msra.mxu0 %v1509
    %1753 = vmatprep.subr.bf16.mxu0 %v1516
    %1754 = vmatpush1.bf16.msra.mxu0 %v1515
    %1755 = vmatprep.subr.bf16.mxu0 %v1522
    %1756 = vmatpush1.bf16.msra.mxu0 %v1521
    %1757 = vmatprep.subr.bf16.mxu0 %v1528
    %1758 = vmatpush1.bf16.msra.mxu0 %v1527
    %1759 = vmatprep.subr.bf16.mxu0 %v1534
    %1760 = vmatpush1.bf16.msra.mxu0 %v1533
    %1761 = vmatprep.subr.bf16.mxu0 %v1540
    %1762 = vmatpush1.bf16.msra.mxu0 %v1539
    %1763 = vmatprep.subr.bf16.mxu0 %v1546
    %1764 = vmatpush1.bf16.msra.mxu0 %v1545
    %1765 = vmatprep.subr.bf16.mxu0 %v1552
    %1766 = vmatpush1.bf16.msra.mxu0 %v1551
    %1767 = vmatprep.subr.bf16.mxu0 %v1558
    %1768 = vmatpush1.bf16.msra.mxu0 %v1557
    %1769 = vmatprep.mubr.bf16.mxu0 %v1078
    %1770 = vmatmul.mubr.bf16.gmra.mrb[0].mxu0 %v1077
    %v1771 = vpop.f32.mrb[0].mxu0
    %v1772 = vadd.f32 0.0, %v1771
    %v1773 = vpop.f32.mrb[0].mxu0
    %v1774 = vadd.f32 0.0, %v1773
    %v1775 = vpop.f32.mrb[0].mxu0
    %v1776 = vpop.f32.mrb[0].mxu0
    %1777 = vdwg.mxu0
    %v1780 = vrot.slane %v1690, 6
    %v1781 = vrot.slane %v1692, 6
    %v1784 = vadd.f32 %v1071, %v1780
    %v1785 = vadd.f32 %v1072, %v1781
    %v1786 = vxor.u32 %v1784, 2147483648
    %v1787 = vxor.u32 %v1785, 2147483648
    %v1788 = vmul.f32 %v1786, 1.442695
    %v1789 = vpow.pop %v1788
    %v1790 = vmul.f32 %v1787, 1.442695
    %v1791 = vpow.pop %v1790
    %v1792 = vadd.f32 %v1789, 1.0
    %v1793 = vadd.f32 %v1791, 1.0
    %v1794 = vrcp.pop %v1792
    %v1795 = vmul.f32 1.0, %v1794
    %v1796 = vrcp.pop %v1793
    %v1797 = vmul.f32 1.0, %v1796
    %v1800 = vrot.slane %v1731, 6
    %v1801 = vrot.slane %v1733, 6
    %v1804 = vadd.f32 %v1073, %v1800
    %v1805 = vadd.f32 %v1074, %v1801
    %v1806 = vxor.u32 %v1804, 2147483648
    %v1807 = vxor.u32 %v1805, 2147483648
    %v1808 = vmul.f32 %v1806, 1.442695
    %v1809 = vpow.pop %v1808
    %v1810 = vmul.f32 %v1807, 1.442695
    %v1811 = vpow.pop %v1810
    %v1812 = vadd.f32 %v1809, 1.0
    %v1813 = vadd.f32 %v1811, 1.0
    %v1814 = vrcp.pop %v1812
    %v1815 = vmul.f32 1.0, %v1814
    %v1816 = vrcp.pop %v1813
    %v1817 = vmul.f32 1.0, %v1816
    %v1818 = vld [vmem:[%s3] sm:$0x3]
    %v1820 = vlaneseq
    %v1821 = vshrl.u32 %v1820, 7
    %v1822 = vsub.s32 0, %v1821
    %v1823 = vrot.slane %v1818, %v1822
    %v1824 = vlaneseq
    %v1825 = vshrl.u32 %v1824, 7
    %v1826 = vsub.s32 1, %v1825
    %v1827 = vrot.slane %v1818, %v1826
    %v1830 = vadd.f32 %v1772, %v1823
    %v1831 = vadd.f32 %v1774, %v1827
    %v1834 = vrot.slane %v1830, 6
    %v1835 = vrot.slane %v1831, 6
    %v1838 = vmul.f32 %v1795, %v1834
    %v1839 = vmul.f32 %v1797, %v1835
    %v1840 = vadd.f32 %v1075, %v1838
    %v1841 = vadd.f32 %v1076, %v1839
    %v1842 = vtanh.pop %v1840
    %v1843 = vtanh.pop %v1841
    %v1844 = vsub.f32 1.0, %v1815
    %v1845 = vsub.f32 1.0, %v1817
    %v1846 = vmul.f32 %v1844, %v1842
    %v1847 = vmul.f32 %v1845, %v1843
    %v1850 = vrot.slane %v1067, 6
    %v1851 = vrot.slane %v1068, 6
    %v1854 = vmul.f32 %v1815, %v1850
    %v1855 = vmul.f32 %v1817, %v1851
    %v1856 = vadd.f32 %v1846, %v1854
    %v1857 = vadd.f32 %v1847, %v1855
    %1858 = vst [vmem:[#allocation3] sm:$0xc] %v1856
    %1859 = vst [vmem:[#allocation3 + $0x8] sm:$0xc] %v1857
    %v1860 = vld [vmem:[#allocation2] sm:$0x30]
    %v1861 = vld [vmem:[#allocation2 + $0x8] sm:$0x30]
    %v1862 = vld [vmem:[#allocation2 + $0x10] sm:$0x30]
    %v1863 = vld [vmem:[#allocation2 + $0x18] sm:$0x30]
    %v1864 = vld [vmem:[#allocation2 + $0x20] sm:$0x30]
    %v1865 = vld [vmem:[#allocation2 + $0x28] sm:$0x30]
    %v1866 = vpack.c.bf16 %v1856, %v1856
    %v1867 = vpack.c.bf16 %v1857, %v1857
    %v1868 = vld [vmem:[#allocation4] sm:$0xff]
    %v1869 = vld [vmem:[#allocation4 + $0x8] sm:$0xff]
    %v1870 = vld [vmem:[#allocation4 + $0x10] sm:$0xff]
    %v1871 = vld [vmem:[#allocation4 + $0x18] sm:$0xff]
    %v1872 = vld [vmem:[#allocation4 + $0x20] sm:$0xff]
    %v1873 = vld [vmem:[#allocation4 + $0x28] sm:$0xff]
    %v1874 = vld [vmem:[#allocation4 + $0x30] sm:$0xff]
    %v1875 = vld [vmem:[#allocation4 + $0x38] sm:$0xff]
    %v1876 = vld [vmem:[#allocation4 + $0x40] sm:$0xff]
    %v1877 = vld [vmem:[#allocation4 + $0x48] sm:$0xff]
    %v1878 = vld [vmem:[#allocation4 + $0x50] sm:$0xff]
    %v1879 = vld [vmem:[#allocation4 + $0x58] sm:$0xff]
    %v1880 = vld [vmem:[#allocation4 + $0x60] sm:$0xff]
    %v1881 = vld [vmem:[#allocation4 + $0x68] sm:$0xff]
    %v1882 = vld [vmem:[#allocation4 + $0x70] sm:$0xff]
    %v1883 = vld [vmem:[#allocation4 + $0x78] sm:$0xff]
    %v1884 = vld [vmem:[#allocation4 + $0x80] sm:$0xff]
    %v1885 = vld [vmem:[#allocation4 + $0x88] sm:$0xff]
    %v1886 = vld [vmem:[#allocation4 + $0x90] sm:$0xff]
    %v1887 = vld [vmem:[#allocation4 + $0x98] sm:$0xff]
    %v1888 = vld [vmem:[#allocation4 + $0xa0] sm:$0xff]
    %v1889 = vld [vmem:[#allocation4 + $0xa8] sm:$0xff]
    %v1890 = vld [vmem:[#allocation4 + $0xb0] sm:$0xff]
    %v1891 = vld [vmem:[#allocation4 + $0xb8] sm:$0xff]
    %v1892 = vld [vmem:[#allocation4 + $0xc0] sm:$0xff]
    %v1893 = vld [vmem:[#allocation4 + $0xc8] sm:$0xff]
    %v1894 = vld [vmem:[#allocation4 + $0xd0] sm:$0xff]
    %v1895 = vld [vmem:[#allocation4 + $0xd8] sm:$0xff]
    %v1896 = vld [vmem:[#allocation4 + $0xe0] sm:$0xff]
    %v1897 = vld [vmem:[#allocation4 + $0xe8] sm:$0xff]
    %v1898 = vld [vmem:[#allocation4 + $0xf0] sm:$0xff]
    %v1899 = vld [vmem:[#allocation4 + $0xf8] sm:$0xff]
    %v1900 = vld [vmem:[#allocation4 + $0x100] sm:$0xff]
    %v1901 = vld [vmem:[#allocation4 + $0x108] sm:$0xff]
    %v1902 = vld [vmem:[#allocation4 + $0x110] sm:$0xff]
    %v1903 = vld [vmem:[#allocation4 + $0x118] sm:$0xff]
    %v1904 = vld [vmem:[#allocation4 + $0x120] sm:$0xff]
    %v1905 = vld [vmem:[#allocation4 + $0x128] sm:$0xff]
    %v1906 = vld [vmem:[#allocation4 + $0x130] sm:$0xff]
    %v1907 = vld [vmem:[#allocation4 + $0x138] sm:$0xff]
    %v1908 = vld [vmem:[#allocation4 + $0x140] sm:$0xff]
    %v1909 = vld [vmem:[#allocation4 + $0x148] sm:$0xff]
    %v1910 = vld [vmem:[#allocation4 + $0x150] sm:$0xff]
    %v1911 = vld [vmem:[#allocation4 + $0x158] sm:$0xff]
    %v1912 = vld [vmem:[#allocation4 + $0x160] sm:$0xff]
    %v1913 = vld [vmem:[#allocation4 + $0x168] sm:$0xff]
    %v1914 = vld [vmem:[#allocation4 + $0x170] sm:$0xff]
    %v1915 = vld [vmem:[#allocation4 + $0x178] sm:$0xff]
    %v1916 = vld [vmem:[#allocation4 + $0x180] sm:$0xff]
    %v1917 = vld [vmem:[#allocation4 + $0x188] sm:$0xff]
    %v1918 = vld [vmem:[#allocation4 + $0x190] sm:$0xff]
    %v1919 = vld [vmem:[#allocation4 + $0x198] sm:$0xff]
    %v1920 = vld [vmem:[#allocation4 + $0x1a0] sm:$0xff]
    %v1921 = vld [vmem:[#allocation4 + $0x1a8] sm:$0xff]
    %v1922 = vld [vmem:[#allocation4 + $0x1b0] sm:$0xff]
    %v1923 = vld [vmem:[#allocation4 + $0x1b8] sm:$0xff]
    %v1924 = vld [vmem:[#allocation4 + $0x1c0] sm:$0xff]
    %v1925 = vld [vmem:[#allocation4 + $0x1c8] sm:$0xff]
    %v1926 = vld [vmem:[#allocation4 + $0x1d0] sm:$0xff]
    %v1927 = vld [vmem:[#allocation4 + $0x1d8] sm:$0xff]
    %v1928 = vld [vmem:[#allocation4 + $0x1e0] sm:$0xff]
    %v1929 = vld [vmem:[#allocation4 + $0x1e8] sm:$0xff]
    %v1930 = vld [vmem:[#allocation4 + $0x1f0] sm:$0xff]
    %v1931 = vld [vmem:[#allocation4 + $0x1f8] sm:$0xff]
    %v1932 = vld [vmem:[#allocation4 + $0x200] sm:$0xff]
    %v1933 = vld [vmem:[#allocation4 + $0x208] sm:$0xff]
    %v1934 = vld [vmem:[#allocation4 + $0x210] sm:$0xff]
    %v1935 = vld [vmem:[#allocation4 + $0x218] sm:$0xff]
    %v1936 = vld [vmem:[#allocation4 + $0x220] sm:$0xff]
    %v1937 = vld [vmem:[#allocation4 + $0x228] sm:$0xff]
    %v1938 = vld [vmem:[#allocation4 + $0x230] sm:$0xff]
    %v1939 = vld [vmem:[#allocation4 + $0x238] sm:$0xff]
    %v1940 = vld [vmem:[#allocation4 + $0x240] sm:$0xff]
    %v1941 = vld [vmem:[#allocation4 + $0x248] sm:$0xff]
    %v1942 = vld [vmem:[#allocation4 + $0x250] sm:$0xff]
    %v1943 = vld [vmem:[#allocation4 + $0x258] sm:$0xff]
    %v1944 = vld [vmem:[#allocation4 + $0x260] sm:$0xff]
    %v1945 = vld [vmem:[#allocation4 + $0x268] sm:$0xff]
    %v1946 = vld [vmem:[#allocation4 + $0x270] sm:$0xff]
    %v1947 = vld [vmem:[#allocation4 + $0x278] sm:$0xff]
    %v1948 = vld [vmem:[#allocation4 + $0x280] sm:$0xff]
    %v1949 = vld [vmem:[#allocation4 + $0x288] sm:$0xff]
    %v1950 = vld [vmem:[#allocation4 + $0x290] sm:$0xff]
    %v1951 = vld [vmem:[#allocation4 + $0x298] sm:$0xff]
    %v1952 = vld [vmem:[#allocation4 + $0x2a0] sm:$0xff]
    %v1953 = vld [vmem:[#allocation4 + $0x2a8] sm:$0xff]
    %v1954 = vld [vmem:[#allocation4 + $0x2b0] sm:$0xff]
    %v1955 = vld [vmem:[#allocation4 + $0x2b8] sm:$0xff]
    %v1956 = vld [vmem:[#allocation4 + $0x2c0] sm:$0xff]
    %v1957 = vld [vmem:[#allocation4 + $0x2c8] sm:$0xff]
    %v1958 = vld [vmem:[#allocation4 + $0x2d0] sm:$0xff]
    %v1959 = vld [vmem:[#allocation4 + $0x2d8] sm:$0xff]
    %v1960 = vld [vmem:[#allocation4 + $0x2e0] sm:$0xff]
    %v1961 = vld [vmem:[#allocation4 + $0x2e8] sm:$0xff]
    %v1962 = vld [vmem:[#allocation4 + $0x2f0] sm:$0xff]
    %v1963 = vld [vmem:[#allocation4 + $0x2f8] sm:$0xff]
    %v1966 = vrot.slane %v1866, 1
    %v1967 = vrot.slane %v1867, 1
    %v2066 = vunpack.c.l.b16 %v1868
    %v2067 = vunpack.c.h.b16 %v1868
    %v2068 = vunpack.c.l.b16 %v1869
    %v2069 = vunpack.c.h.b16 %v1869
    %v2070 = vunpack.c.l.b16 %v1870
    %v2071 = vunpack.c.h.b16 %v1870
    %v2072 = vunpack.c.l.b16 %v1871
    %v2073 = vunpack.c.h.b16 %v1871
    %v2074 = vunpack.c.l.b16 %v1872
    %v2075 = vunpack.c.h.b16 %v1872
    %v2076 = vunpack.c.l.b16 %v1873
    %v2077 = vunpack.c.h.b16 %v1873
    %v2078 = vunpack.c.l.b16 %v1874
    %v2079 = vunpack.c.h.b16 %v1874
    %v2080 = vunpack.c.l.b16 %v1875
    %v2081 = vunpack.c.h.b16 %v1875
    %v2082 = vunpack.c.l.b16 %v1876
    %v2083 = vunpack.c.h.b16 %v1876
    %v2084 = vunpack.c.l.b16 %v1877
    %v2085 = vunpack.c.h.b16 %v1877
    %v2086 = vunpack.c.l.b16 %v1878
    %v2087 = vunpack.c.h.b16 %v1878
    %v2088 = vunpack.c.l.b16 %v1879
    %v2089 = vunpack.c.h.b16 %v1879
    %v2090 = vunpack.c.l.b16 %v1880
    %v2091 = vunpack.c.h.b16 %v1880
    %v2092 = vunpack.c.l.b16 %v1881
    %v2093 = vunpack.c.h.b16 %v1881
    %v2094 = vunpack.c.l.b16 %v1882
    %v2095 = vunpack.c.h.b16 %v1882
    %v2096 = vunpack.c.l.b16 %v1883
    %v2097 = vunpack.c.h.b16 %v1883
    %v2098 = vunpack.c.l.b16 %v1884
    %v2099 = vunpack.c.h.b16 %v1884
    %v2100 = vunpack.c.l.b16 %v1885
    %v2101 = vunpack.c.h.b16 %v1885
    %v2102 = vunpack.c.l.b16 %v1886
    %v2103 = vunpack.c.h.b16 %v1886
    %v2104 = vunpack.c.l.b16 %v1887
    %v2105 = vunpack.c.h.b16 %v1887
    %v2106 = vunpack.c.l.b16 %v1888
    %v2107 = vunpack.c.h.b16 %v1888
    %v2108 = vunpack.c.l.b16 %v1889
    %v2109 = vunpack.c.h.b16 %v1889
    %v2110 = vunpack.c.l.b16 %v1890
    %v2111 = vunpack.c.h.b16 %v1890
    %v2112 = vunpack.c.l.b16 %v1891
    %v2113 = vunpack.c.h.b16 %v1891
    %v2114 = vunpack.c.l.b16 %v1892
    %v2115 = vunpack.c.h.b16 %v1892
    %v2116 = vunpack.c.l.b16 %v1893
    %v2117 = vunpack.c.h.b16 %v1893
    %v2118 = vunpack.c.l.b16 %v1894
    %v2119 = vunpack.c.h.b16 %v1894
    %v2120 = vunpack.c.l.b16 %v1895
    %v2121 = vunpack.c.h.b16 %v1895
    %v2122 = vunpack.c.l.b16 %v1896
    %v2123 = vunpack.c.h.b16 %v1896
    %v2124 = vunpack.c.l.b16 %v1897
    %v2125 = vunpack.c.h.b16 %v1897
    %v2126 = vunpack.c.l.b16 %v1898
    %v2127 = vunpack.c.h.b16 %v1898
    %v2128 = vunpack.c.l.b16 %v1899
    %v2129 = vunpack.c.h.b16 %v1899
    %v2130 = vunpack.c.l.b16 %v1900
    %v2131 = vunpack.c.h.b16 %v1900
    %v2132 = vunpack.c.l.b16 %v1901
    %v2133 = vunpack.c.h.b16 %v1901
    %v2134 = vunpack.c.l.b16 %v1902
    %v2135 = vunpack.c.h.b16 %v1902
    %v2136 = vunpack.c.l.b16 %v1903
    %v2137 = vunpack.c.h.b16 %v1903
    %v2138 = vunpack.c.l.b16 %v1904
    %v2139 = vunpack.c.h.b16 %v1904
    %v2140 = vunpack.c.l.b16 %v1905
    %v2141 = vunpack.c.h.b16 %v1905
    %v2142 = vunpack.c.l.b16 %v1906
    %v2143 = vunpack.c.h.b16 %v1906
    %v2144 = vunpack.c.l.b16 %v1907
    %v2145 = vunpack.c.h.b16 %v1907
    %v2146 = vunpack.c.l.b16 %v1908
    %v2147 = vunpack.c.h.b16 %v1908
    %v2148 = vunpack.c.l.b16 %v1909
    %v2149 = vunpack.c.h.b16 %v1909
    %v2150 = vunpack.c.l.b16 %v1910
    %v2151 = vunpack.c.h.b16 %v1910
    %v2152 = vunpack.c.l.b16 %v1911
    %v2153 = vunpack.c.h.b16 %v1911
    %v2154 = vunpack.c.l.b16 %v1912
    %v2155 = vunpack.c.h.b16 %v1912
    %v2156 = vunpack.c.l.b16 %v1913
    %v2157 = vunpack.c.h.b16 %v1913
    %v2158 = vunpack.c.l.b16 %v1914
    %v2159 = vunpack.c.h.b16 %v1914
    %v2160 = vunpack.c.l.b16 %v1915
    %v2161 = vunpack.c.h.b16 %v1915
    %v2162 = vunpack.c.l.b16 %v1916
    %v2163 = vunpack.c.h.b16 %v1916
    %v2164 = vunpack.c.l.b16 %v1917
    %v2165 = vunpack.c.h.b16 %v1917
    %v2166 = vunpack.c.l.b16 %v1918
    %v2167 = vunpack.c.h.b16 %v1918
    %v2168 = vunpack.c.l.b16 %v1919
    %v2169 = vunpack.c.h.b16 %v1919
    %v2170 = vunpack.c.l.b16 %v1920
    %v2171 = vunpack.c.h.b16 %v1920
    %v2172 = vunpack.c.l.b16 %v1921
    %v2173 = vunpack.c.h.b16 %v1921
    %v2174 = vunpack.c.l.b16 %v1922
    %v2175 = vunpack.c.h.b16 %v1922
    %v2176 = vunpack.c.l.b16 %v1923
    %v2177 = vunpack.c.h.b16 %v1923
    %v2178 = vunpack.c.l.b16 %v1924
    %v2179 = vunpack.c.h.b16 %v1924
    %v2180 = vunpack.c.l.b16 %v1925
    %v2181 = vunpack.c.h.b16 %v1925
    %v2182 = vunpack.c.l.b16 %v1926
    %v2183 = vunpack.c.h.b16 %v1926
    %v2184 = vunpack.c.l.b16 %v1927
    %v2185 = vunpack.c.h.b16 %v1927
    %v2186 = vunpack.c.l.b16 %v1928
    %v2187 = vunpack.c.h.b16 %v1928
    %v2188 = vunpack.c.l.b16 %v1929
    %v2189 = vunpack.c.h.b16 %v1929
    %v2190 = vunpack.c.l.b16 %v1930
    %v2191 = vunpack.c.h.b16 %v1930
    %v2192 = vunpack.c.l.b16 %v1931
    %v2193 = vunpack.c.h.b16 %v1931
    %v2194 = vunpack.c.l.b16 %v1932
    %v2195 = vunpack.c.h.b16 %v1932
    %v2196 = vunpack.c.l.b16 %v1933
    %v2197 = vunpack.c.h.b16 %v1933
    %v2198 = vunpack.c.l.b16 %v1934
    %v2199 = vunpack.c.h.b16 %v1934
    %v2200 = vunpack.c.l.b16 %v1935
    %v2201 = vunpack.c.h.b16 %v1935
    %v2202 = vunpack.c.l.b16 %v1936
    %v2203 = vunpack.c.h.b16 %v1936
    %v2204 = vunpack.c.l.b16 %v1937
    %v2205 = vunpack.c.h.b16 %v1937
    %v2206 = vunpack.c.l.b16 %v1938
    %v2207 = vunpack.c.h.b16 %v1938
    %v2208 = vunpack.c.l.b16 %v1939
    %v2209 = vunpack.c.h.b16 %v1939
    %v2210 = vunpack.c.l.b16 %v1940
    %v2211 = vunpack.c.h.b16 %v1940
    %v2212 = vunpack.c.l.b16 %v1941
    %v2213 = vunpack.c.h.b16 %v1941
    %v2214 = vunpack.c.l.b16 %v1942
    %v2215 = vunpack.c.h.b16 %v1942
    %v2216 = vunpack.c.l.b16 %v1943
    %v2217 = vunpack.c.h.b16 %v1943
    %v2218 = vunpack.c.l.b16 %v1944
    %v2219 = vunpack.c.h.b16 %v1944
    %v2220 = vunpack.c.l.b16 %v1945
    %v2221 = vunpack.c.h.b16 %v1945
    %v2222 = vunpack.c.l.b16 %v1946
    %v2223 = vunpack.c.h.b16 %v1946
    %v2224 = vunpack.c.l.b16 %v1947
    %v2225 = vunpack.c.h.b16 %v1947
    %v2226 = vunpack.c.l.b16 %v1948
    %v2227 = vunpack.c.h.b16 %v1948
    %v2228 = vunpack.c.l.b16 %v1949
    %v2229 = vunpack.c.h.b16 %v1949
    %v2230 = vunpack.c.l.b16 %v1950
    %v2231 = vunpack.c.h.b16 %v1950
    %v2232 = vunpack.c.l.b16 %v1951
    %v2233 = vunpack.c.h.b16 %v1951
    %v2234 = vunpack.c.l.b16 %v1952
    %v2235 = vunpack.c.h.b16 %v1952
    %v2236 = vunpack.c.l.b16 %v1953
    %v2237 = vunpack.c.h.b16 %v1953
    %v2238 = vunpack.c.l.b16 %v1954
    %v2239 = vunpack.c.h.b16 %v1954
    %v2240 = vunpack.c.l.b16 %v1955
    %v2241 = vunpack.c.h.b16 %v1955
    %v2242 = vunpack.c.l.b16 %v1956
    %v2243 = vunpack.c.h.b16 %v1956
    %v2244 = vunpack.c.l.b16 %v1957
    %v2245 = vunpack.c.h.b16 %v1957
    %v2246 = vunpack.c.l.b16 %v1958
    %v2247 = vunpack.c.h.b16 %v1958
    %v2248 = vunpack.c.l.b16 %v1959
    %v2249 = vunpack.c.h.b16 %v1959
    %v2250 = vunpack.c.l.b16 %v1960
    %v2251 = vunpack.c.h.b16 %v1960
    %v2252 = vunpack.c.l.b16 %v1961
    %v2253 = vunpack.c.h.b16 %v1961
    %v2254 = vunpack.c.l.b16 %v1962
    %v2255 = vunpack.c.h.b16 %v1962
    %v2256 = vunpack.c.l.b16 %v1963
    %v2257 = vunpack.c.h.b16 %v1963
    %v2258 = vpack.c.b16 %v2072, %v2066
    %v2259 = vpack.c.b16 %v2073, %v2067
    %v2260 = vpack.c.b16 %v2074, %v2068
    %v2261 = vpack.c.b16 %v2075, %v2069
    %v2262 = vpack.c.b16 %v2076, %v2070
    %v2263 = vpack.c.b16 %v2077, %v2071
    %v2264 = vpack.c.b16 %v2084, %v2078
    %v2265 = vpack.c.b16 %v2085, %v2079
    %v2266 = vpack.c.b16 %v2086, %v2080
    %v2267 = vpack.c.b16 %v2087, %v2081
    %v2268 = vpack.c.b16 %v2088, %v2082
    %v2269 = vpack.c.b16 %v2089, %v2083
    %v2270 = vpack.c.b16 %v2096, %v2090
    %v2271 = vpack.c.b16 %v2097, %v2091
    %v2272 = vpack.c.b16 %v2098, %v2092
    %v2273 = vpack.c.b16 %v2099, %v2093
    %v2274 = vpack.c.b16 %v2100, %v2094
    %v2275 = vpack.c.b16 %v2101, %v2095
    %v2276 = vpack.c.b16 %v2108, %v2102
    %v2277 = vpack.c.b16 %v2109, %v2103
    %v2278 = vpack.c.b16 %v2110, %v2104
    %v2279 = vpack.c.b16 %v2111, %v2105
    %v2280 = vpack.c.b16 %v2112, %v2106
    %v2281 = vpack.c.b16 %v2113, %v2107
    %v2282 = vpack.c.b16 %v2120, %v2114
    %v2283 = vpack.c.b16 %v2121, %v2115
    %v2284 = vpack.c.b16 %v2122, %v2116
    %v2285 = vpack.c.b16 %v2123, %v2117
    %v2286 = vpack.c.b16 %v2124, %v2118
    %v2287 = vpack.c.b16 %v2125, %v2119
    %v2288 = vpack.c.b16 %v2132, %v2126
    %v2289 = vpack.c.b16 %v2133, %v2127
    %v2290 = vpack.c.b16 %v2134, %v2128
    %v2291 = vpack.c.b16 %v2135, %v2129
    %v2292 = vpack.c.b16 %v2136, %v2130
    %v2293 = vpack.c.b16 %v2137, %v2131
    %v2294 = vpack.c.b16 %v2144, %v2138
    %v2295 = vpack.c.b16 %v2145, %v2139
    %v2296 = vpack.c.b16 %v2146, %v2140
    %v2297 = vpack.c.b16 %v2147, %v2141
    %v2298 = vpack.c.b16 %v2148, %v2142
    %v2299 = vpack.c.b16 %v2149, %v2143
    %v2300 = vpack.c.b16 %v2156, %v2150
    %v2301 = vpack.c.b16 %v2157, %v2151
    %v2302 = vpack.c.b16 %v2158, %v2152
    %v2303 = vpack.c.b16 %v2159, %v2153
    %v2304 = vpack.c.b16 %v2160, %v2154
    %v2305 = vpack.c.b16 %v2161, %v2155
    %v2306 = vpack.c.b16 %v2168, %v2162
    %v2307 = vpack.c.b16 %v2169, %v2163
    %v2308 = vpack.c.b16 %v2170, %v2164
    %v2309 = vpack.c.b16 %v2171, %v2165
    %v2310 = vpack.c.b16 %v2172, %v2166
    %v2311 = vpack.c.b16 %v2173, %v2167
    %v2312 = vpack.c.b16 %v2180, %v2174
    %v2313 = vpack.c.b16 %v2181, %v2175
    %v2314 = vpack.c.b16 %v2182, %v2176
    %v2315 = vpack.c.b16 %v2183, %v2177
    %v2316 = vpack.c.b16 %v2184, %v2178
    %v2317 = vpack.c.b16 %v2185, %v2179
    %v2318 = vpack.c.b16 %v2192, %v2186
    %v2319 = vpack.c.b16 %v2193, %v2187
    %v2320 = vpack.c.b16 %v2194, %v2188
    %v2321 = vpack.c.b16 %v2195, %v2189
    %v2322 = vpack.c.b16 %v2196, %v2190
    %v2323 = vpack.c.b16 %v2197, %v2191
    %v2324 = vpack.c.b16 %v2204, %v2198
    %v2325 = vpack.c.b16 %v2205, %v2199
    %v2326 = vpack.c.b16 %v2206, %v2200
    %v2327 = vpack.c.b16 %v2207, %v2201
    %v2328 = vpack.c.b16 %v2208, %v2202
    %v2329 = vpack.c.b16 %v2209, %v2203
    %v2330 = vpack.c.b16 %v2216, %v2210
    %v2331 = vpack.c.b16 %v2217, %v2211
    %v2332 = vpack.c.b16 %v2218, %v2212
    %v2333 = vpack.c.b16 %v2219, %v2213
    %v2334 = vpack.c.b16 %v2220, %v2214
    %v2335 = vpack.c.b16 %v2221, %v2215
    %v2336 = vpack.c.b16 %v2228, %v2222
    %v2337 = vpack.c.b16 %v2229, %v2223
    %v2338 = vpack.c.b16 %v2230, %v2224
    %v2339 = vpack.c.b16 %v2231, %v2225
    %v2340 = vpack.c.b16 %v2232, %v2226
    %v2341 = vpack.c.b16 %v2233, %v2227
    %v2342 = vpack.c.b16 %v2240, %v2234
    %v2343 = vpack.c.b16 %v2241, %v2235
    %v2344 = vpack.c.b16 %v2242, %v2236
    %v2345 = vpack.c.b16 %v2243, %v2237
    %v2346 = vpack.c.b16 %v2244, %v2238
    %v2347 = vpack.c.b16 %v2245, %v2239
    %v2348 = vpack.c.b16 %v2252, %v2246
    %v2349 = vpack.c.b16 %v2253, %v2247
    %v2350 = vpack.c.b16 %v2254, %v2248
    %v2351 = vpack.c.b16 %v2255, %v2249
    %v2352 = vpack.c.b16 %v2256, %v2250
    %v2353 = vpack.c.b16 %v2257, %v2251
    %2450 = vmatprep.subr.bf16.mxu0 %v2259
    %2451 = vmatpush1.bf16.msra.mxu0 %v2258
    %2452 = vmatprep.subr.bf16.mxu0 %v2265
    %2453 = vmatpush1.bf16.msra.mxu0 %v2264
    %2454 = vmatprep.subr.bf16.mxu0 %v2271
    %2455 = vmatpush1.bf16.msra.mxu0 %v2270
    %2456 = vmatprep.subr.bf16.mxu0 %v2277
    %2457 = vmatpush1.bf16.msra.mxu0 %v2276
    %2458 = vmatprep.subr.bf16.mxu0 %v2283
    %2459 = vmatpush1.bf16.msra.mxu0 %v2282
    %2460 = vmatprep.subr.bf16.mxu0 %v2289
    %2461 = vmatpush1.bf16.msra.mxu0 %v2288
    %2462 = vmatprep.subr.bf16.mxu0 %v2295
    %2463 = vmatpush1.bf16.msra.mxu0 %v2294
    %2464 = vmatprep.subr.bf16.mxu0 %v2301
    %2465 = vmatpush1.bf16.msra.mxu0 %v2300
    %2466 = vmatprep.subr.bf16.mxu0 %v2307
    %2467 = vmatpush1.bf16.msra.mxu0 %v2306
    %2468 = vmatprep.subr.bf16.mxu0 %v2313
    %2469 = vmatpush1.bf16.msra.mxu0 %v2312
    %2470 = vmatprep.subr.bf16.mxu0 %v2319
    %2471 = vmatpush1.bf16.msra.mxu0 %v2318
    %2472 = vmatprep.subr.bf16.mxu0 %v2325
    %2473 = vmatpush1.bf16.msra.mxu0 %v2324
    %2474 = vmatprep.subr.bf16.mxu0 %v2331
    %2475 = vmatpush1.bf16.msra.mxu0 %v2330
    %2476 = vmatprep.subr.bf16.mxu0 %v2337
    %2477 = vmatpush1.bf16.msra.mxu0 %v2336
    %2478 = vmatprep.subr.bf16.mxu0 %v2343
    %2479 = vmatpush1.bf16.msra.mxu0 %v2342
    %2480 = vmatprep.subr.bf16.mxu0 %v2349
    %2481 = vmatpush1.bf16.msra.mxu0 %v2348
    %2482 = vmatprep.mubr.bf16.mxu0 %v1967
    %2483 = vmatmul.mubr.bf16.gmra.mrb[0].mxu0 %v1966
    %v2484 = vpop.f32.mrb[0].mxu0
    %v2485 = vadd.f32 0.0, %v2484
    %v2486 = vpop.f32.mrb[0].mxu0
    %v2487 = vadd.f32 0.0, %v2486
    %v2488 = vpop.f32.mrb[0].mxu0
    %v2489 = vpop.f32.mrb[0].mxu0
    %2490 = vdwg.mxu0
    %2491 = vmatprep.subr.bf16.mxu0 %v2261
    %2492 = vmatpush1.bf16.msra.mxu0 %v2260
    %2493 = vmatprep.subr.bf16.mxu0 %v2267
    %2494 = vmatpush1.bf16.msra.mxu0 %v2266
    %2495 = vmatprep.subr.bf16.mxu0 %v2273
    %2496 = vmatpush1.bf16.msra.mxu0 %v2272
    %2497 = vmatprep.subr.bf16.mxu0 %v2279
    %2498 = vmatpush1.bf16.msra.mxu0 %v2278
    %2499 = vmatprep.subr.bf16.mxu0 %v2285
    %2500 = vmatpush1.bf16.msra.mxu0 %v2284
    %2501 = vmatprep.subr.bf16.mxu0 %v2291
    %2502 = vmatpush1.bf16.msra.mxu0 %v2290
    %2503 = vmatprep.subr.bf16.mxu0 %v2297
    %2504 = vmatpush1.bf16.msra.mxu0 %v2296
    %2505 = vmatprep.subr.bf16.mxu0 %v2303
    %2506 = vmatpush1.bf16.msra.mxu0 %v2302
    %2507 = vmatprep.subr.bf16.mxu0 %v2309
    %2508 = vmatpush1.bf16.msra.mxu0 %v2308
    %2509 = vmatprep.subr.bf16.mxu0 %v2315
    %2510 = vmatpush1.bf16.msra.mxu0 %v2314
    %2511 = vmatprep.subr.bf16.mxu0 %v2321
    %2512 = vmatpush1.bf16.msra.mxu0 %v2320
    %2513 = vmatprep.subr.bf16.mxu0 %v2327
    %2514 = vmatpush1.bf16.msra.mxu0 %v2326
    %2515 = vmatprep.subr.bf16.mxu0 %v2333
    %2516 = vmatpush1.bf16.msra.mxu0 %v2332
    %2517 = vmatprep.subr.bf16.mxu0 %v2339
    %2518 = vmatpush1.bf16.msra.mxu0 %v2338
    %2519 = vmatprep.subr.bf16.mxu0 %v2345
    %2520 = vmatpush1.bf16.msra.mxu0 %v2344
    %2521 = vmatprep.subr.bf16.mxu0 %v2351
    %2522 = vmatpush1.bf16.msra.mxu0 %v2350
    %2523 = vmatprep.mubr.bf16.mxu0 %v1967
    %2524 = vmatmul.mubr.bf16.gmra.mrb[0].mxu0 %v1966
    %v2525 = vpop.f32.mrb[0].mxu0
    %v2526 = vadd.f32 0.0, %v2525
    %v2527 = vpop.f32.mrb[0].mxu0
    %v2528 = vadd.f32 0.0, %v2527
    %v2529 = vpop.f32.mrb[0].mxu0
    %v2530 = vpop.f32.mrb[0].mxu0
    %2531 = vdwg.mxu0
    %2532 = vmatprep.subr.bf16.mxu0 %v2263
    %2533 = vmatpush1.bf16.msra.mxu0 %v2262
    %2534 = vmatprep.subr.bf16.mxu0 %v2269
    %2535 = vmatpush1.bf16.msra.mxu0 %v2268
    %2536 = vmatprep.subr.bf16.mxu0 %v2275
    %2537 = vmatpush1.bf16.msra.mxu0 %v2274
    %2538 = vmatprep.subr.bf16.mxu0 %v2281
    %2539 = vmatpush1.bf16.msra.mxu0 %v2280
    %2540 = vmatprep.subr.bf16.mxu0 %v2287
    %2541 = vmatpush1.bf16.msra.mxu0 %v2286
    %2542 = vmatprep.subr.bf16.mxu0 %v2293
    %2543 = vmatpush1.bf16.msra.mxu0 %v2292
    %2544 = vmatprep.subr.bf16.mxu0 %v2299
    %2545 = vmatpush1.bf16.msra.mxu0 %v2298
    %2546 = vmatprep.subr.bf16.mxu0 %v2305
    %2547 = vmatpush1.bf16.msra.mxu0 %v2304
    %2548 = vmatprep.subr.bf16.mxu0 %v2311
    %2549 = vmatpush1.bf16.msra.mxu0 %v2310
    %2550 = vmatprep.subr.bf16.mxu0 %v2317
    %2551 = vmatpush1.bf16.msra.mxu0 %v2316
    %2552 = vmatprep.subr.bf16.mxu0 %v2323
    %2553 = vmatpush1.bf16.msra.mxu0 %v2322
    %2554 = vmatprep.subr.bf16.mxu0 %v2329
    %2555 = vmatpush1.bf16.msra.mxu0 %v2328
    %2556 = vmatprep.subr.bf16.mxu0 %v2335
    %2557 = vmatpush1.bf16.msra.mxu0 %v2334
    %2558 = vmatprep.subr.bf16.mxu0 %v2341
    %2559 = vmatpush1.bf16.msra.mxu0 %v2340
    %2560 = vmatprep.subr.bf16.mxu0 %v2347
    %2561 = vmatpush1.bf16.msra.mxu0 %v2346
    %2562 = vmatprep.subr.bf16.mxu0 %v2353
    %2563 = vmatpush1.bf16.msra.mxu0 %v2352
    %2564 = vmatprep.mubr.bf16.mxu0 %v1967
    %2565 = vmatmul.mubr.bf16.gmra.mrb[0].mxu0 %v1966
    %v2566 = vpop.f32.mrb[0].mxu0
    %v2567 = vadd.f32 0.0, %v2566
    %v2568 = vpop.f32.mrb[0].mxu0
    %v2569 = vadd.f32 0.0, %v2568
    %v2570 = vpop.f32.mrb[0].mxu0
    %v2571 = vpop.f32.mrb[0].mxu0
    %2572 = vdwg.mxu0
    %v2575 = vrot.slane %v2485, 4
    %v2576 = vrot.slane %v2487, 4
    %v2579 = vadd.f32 %v1860, %v2575
    %v2580 = vadd.f32 %v1861, %v2576
    %v2581 = vxor.u32 %v2579, 2147483648
    %v2582 = vxor.u32 %v2580, 2147483648
    %v2583 = vmul.f32 %v2581, 1.442695
    %v2584 = vpow.pop %v2583
    %v2585 = vmul.f32 %v2582, 1.442695
    %v2586 = vpow.pop %v2585
    %v2587 = vadd.f32 %v2584, 1.0
    %v2588 = vadd.f32 %v2586, 1.0
    %v2589 = vrcp.pop %v2587
    %v2590 = vmul.f32 1.0, %v2589
    %v2591 = vrcp.pop %v2588
    %v2592 = vmul.f32 1.0, %v2591
    %v2595 = vrot.slane %v2526, 4
    %v2596 = vrot.slane %v2528, 4
    %v2599 = vadd.f32 %v1862, %v2595
    %v2600 = vadd.f32 %v1863, %v2596
    %v2601 = vxor.u32 %v2599, 2147483648
    %v2602 = vxor.u32 %v2600, 2147483648
    %v2603 = vmul.f32 %v2601, 1.442695
    %v2604 = vpow.pop %v2603
    %v2605 = vmul.f32 %v2602, 1.442695
    %v2606 = vpow.pop %v2605
    %v2607 = vadd.f32 %v2604, 1.0
    %v2608 = vadd.f32 %v2606, 1.0
    %v2609 = vrcp.pop %v2607
    %v2610 = vmul.f32 1.0, %v2609
    %v2611 = vrcp.pop %v2608
    %v2612 = vmul.f32 1.0, %v2611
    %v2613 = vld [vmem:[%s3] sm:$0x3]
    %v2615 = vlaneseq
    %v2616 = vshrl.u32 %v2615, 7
    %v2617 = vsub.s32 0, %v2616
    %v2618 = vrot.slane %v2613, %v2617
    %v2619 = vlaneseq
    %v2620 = vshrl.u32 %v2619, 7
    %v2621 = vsub.s32 1, %v2620
    %v2622 = vrot.slane %v2613, %v2621
    %v2625 = vadd.f32 %v2567, %v2618
    %v2626 = vadd.f32 %v2569, %v2622
    %v2629 = vrot.slane %v2625, 4
    %v2630 = vrot.slane %v2626, 4
    %v2633 = vmul.f32 %v2590, %v2629
    %v2634 = vmul.f32 %v2592, %v2630
    %v2635 = vadd.f32 %v1864, %v2633
    %v2636 = vadd.f32 %v1865, %v2634
    %v2637 = vtanh.pop %v2635
    %v2638 = vtanh.pop %v2636
    %v2639 = vsub.f32 1.0, %v2610
    %v2640 = vsub.f32 1.0, %v2612
    %v2641 = vmul.f32 %v2639, %v2637
    %v2642 = vmul.f32 %v2640, %v2638
    %v2645 = vrot.slane %v1856, 6
    %v2646 = vrot.slane %v1857, 6
    %v2649 = vmul.f32 %v2610, %v2645
    %v2650 = vmul.f32 %v2612, %v2646
    %v2651 = vadd.f32 %v2641, %v2649
    %v2652 = vadd.f32 %v2642, %v2650
    %2653 = vst [vmem:[#allocation3] sm:$0x30] %v2651
    %2654 = vst [vmem:[#allocation3 + $0x8] sm:$0x30] %v2652
    %v2655 = vld [vmem:[#allocation2] sm:$0xc0]
    %v2656 = vld [vmem:[#allocation2 + $0x8] sm:$0xc0]
    %v2657 = vld [vmem:[#allocation2 + $0x10] sm:$0xc0]
    %v2658 = vld [vmem:[#allocation2 + $0x18] sm:$0xc0]
    %v2659 = vld [vmem:[#allocation2 + $0x20] sm:$0xc0]
    %v2660 = vld [vmem:[#allocation2 + $0x28] sm:$0xc0]
    %v2661 = vpack.c.bf16 %v2651, %v2651
    %v2662 = vpack.c.bf16 %v2652, %v2652
    %v2663 = vld [vmem:[#allocation4] sm:$0xff]
    %v2664 = vld [vmem:[#allocation4 + $0x8] sm:$0xff]
    %v2665 = vld [vmem:[#allocation4 + $0x10] sm:$0xff]
    %v2666 = vld [vmem:[#allocation4 + $0x18] sm:$0xff]
    %v2667 = vld [vmem:[#allocation4 + $0x20] sm:$0xff]
    %v2668 = vld [vmem:[#allocation4 + $0x28] sm:$0xff]
    %v2669 = vld [vmem:[#allocation4 + $0x30] sm:$0xff]
    %v2670 = vld [vmem:[#allocation4 + $0x38] sm:$0xff]
    %v2671 = vld [vmem:[#allocation4 + $0x40] sm:$0xff]
    %v2672 = vld [vmem:[#allocation4 + $0x48] sm:$0xff]
    %v2673 = vld [vmem:[#allocation4 + $0x50] sm:$0xff]
    %v2674 = vld [vmem:[#allocation4 + $0x58] sm:$0xff]
    %v2675 = vld [vmem:[#allocation4 + $0x60] sm:$0xff]
    %v2676 = vld [vmem:[#allocation4 + $0x68] sm:$0xff]
    %v2677 = vld [vmem:[#allocation4 + $0x70] sm:$0xff]
    %v2678 = vld [vmem:[#allocation4 + $0x78] sm:$0xff]
    %v2679 = vld [vmem:[#allocation4 + $0x80] sm:$0xff]
    %v2680 = vld [vmem:[#allocation4 + $0x88] sm:$0xff]
    %v2681 = vld [vmem:[#allocation4 + $0x90] sm:$0xff]
    %v2682 = vld [vmem:[#allocation4 + $0x98] sm:$0xff]
    %v2683 = vld [vmem:[#allocation4 + $0xa0] sm:$0xff]
    %v2684 = vld [vmem:[#allocation4 + $0xa8] sm:$0xff]
    %v2685 = vld [vmem:[#allocation4 + $0xb0] sm:$0xff]
    %v2686 = vld [vmem:[#allocation4 + $0xb8] sm:$0xff]
    %v2687 = vld [vmem:[#allocation4 + $0xc0] sm:$0xff]
    %v2688 = vld [vmem:[#allocation4 + $0xc8] sm:$0xff]
    %v2689 = vld [vmem:[#allocation4 + $0xd0] sm:$0xff]
    %v2690 = vld [vmem:[#allocation4 + $0xd8] sm:$0xff]
    %v2691 = vld [vmem:[#allocation4 + $0xe0] sm:$0xff]
    %v2692 = vld [vmem:[#allocation4 + $0xe8] sm:$0xff]
    %v2693 = vld [vmem:[#allocation4 + $0xf0] sm:$0xff]
    %v2694 = vld [vmem:[#allocation4 + $0xf8] sm:$0xff]
    %v2695 = vld [vmem:[#allocation4 + $0x100] sm:$0xff]
    %v2696 = vld [vmem:[#allocation4 + $0x108] sm:$0xff]
    %v2697 = vld [vmem:[#allocation4 + $0x110] sm:$0xff]
    %v2698 = vld [vmem:[#allocation4 + $0x118] sm:$0xff]
    %v2699 = vld [vmem:[#allocation4 + $0x120] sm:$0xff]
    %v2700 = vld [vmem:[#allocation4 + $0x128] sm:$0xff]
    %v2701 = vld [vmem:[#allocation4 + $0x130] sm:$0xff]
    %v2702 = vld [vmem:[#allocation4 + $0x138] sm:$0xff]
    %v2703 = vld [vmem:[#allocation4 + $0x140] sm:$0xff]
    %v2704 = vld [vmem:[#allocation4 + $0x148] sm:$0xff]
    %v2705 = vld [vmem:[#allocation4 + $0x150] sm:$0xff]
    %v2706 = vld [vmem:[#allocation4 + $0x158] sm:$0xff]
    %v2707 = vld [vmem:[#allocation4 + $0x160] sm:$0xff]
    %v2708 = vld [vmem:[#allocation4 + $0x168] sm:$0xff]
    %v2709 = vld [vmem:[#allocation4 + $0x170] sm:$0xff]
    %v2710 = vld [vmem:[#allocation4 + $0x178] sm:$0xff]
    %v2711 = vld [vmem:[#allocation4 + $0x180] sm:$0xff]
    %v2712 = vld [vmem:[#allocation4 + $0x188] sm:$0xff]
    %v2713 = vld [vmem:[#allocation4 + $0x190] sm:$0xff]
    %v2714 = vld [vmem:[#allocation4 + $0x198] sm:$0xff]
    %v2715 = vld [vmem:[#allocation4 + $0x1a0] sm:$0xff]
    %v2716 = vld [vmem:[#allocation4 + $0x1a8] sm:$0xff]
    %v2717 = vld [vmem:[#allocation4 + $0x1b0] sm:$0xff]
    %v2718 = vld [vmem:[#allocation4 + $0x1b8] sm:$0xff]
    %v2719 = vld [vmem:[#allocation4 + $0x1c0] sm:$0xff]
    %v2720 = vld [vmem:[#allocation4 + $0x1c8] sm:$0xff]
    %v2721 = vld [vmem:[#allocation4 + $0x1d0] sm:$0xff]
    %v2722 = vld [vmem:[#allocation4 + $0x1d8] sm:$0xff]
    %v2723 = vld [vmem:[#allocation4 + $0x1e0] sm:$0xff]
    %v2724 = vld [vmem:[#allocation4 + $0x1e8] sm:$0xff]
    %v2725 = vld [vmem:[#allocation4 + $0x1f0] sm:$0xff]
    %v2726 = vld [vmem:[#allocation4 + $0x1f8] sm:$0xff]
    %v2727 = vld [vmem:[#allocation4 + $0x200] sm:$0xff]
    %v2728 = vld [vmem:[#allocation4 + $0x208] sm:$0xff]
    %v2729 = vld [vmem:[#allocation4 + $0x210] sm:$0xff]
    %v2730 = vld [vmem:[#allocation4 + $0x218] sm:$0xff]
    %v2731 = vld [vmem:[#allocation4 + $0x220] sm:$0xff]
    %v2732 = vld [vmem:[#allocation4 + $0x228] sm:$0xff]
    %v2733 = vld [vmem:[#allocation4 + $0x230] sm:$0xff]
    %v2734 = vld [vmem:[#allocation4 + $0x238] sm:$0xff]
    %v2735 = vld [vmem:[#allocation4 + $0x240] sm:$0xff]
    %v2736 = vld [vmem:[#allocation4 + $0x248] sm:$0xff]
    %v2737 = vld [vmem:[#allocation4 + $0x250] sm:$0xff]
    %v2738 = vld [vmem:[#allocation4 + $0x258] sm:$0xff]
    %v2739 = vld [vmem:[#allocation4 + $0x260] sm:$0xff]
    %v2740 = vld [vmem:[#allocation4 + $0x268] sm:$0xff]
    %v2741 = vld [vmem:[#allocation4 + $0x270] sm:$0xff]
    %v2742 = vld [vmem:[#allocation4 + $0x278] sm:$0xff]
    %v2743 = vld [vmem:[#allocation4 + $0x280] sm:$0xff]
    %v2744 = vld [vmem:[#allocation4 + $0x288] sm:$0xff]
    %v2745 = vld [vmem:[#allocation4 + $0x290] sm:$0xff]
    %v2746 = vld [vmem:[#allocation4 + $0x298] sm:$0xff]
    %v2747 = vld [vmem:[#allocation4 + $0x2a0] sm:$0xff]
    %v2748 = vld [vmem:[#allocation4 + $0x2a8] sm:$0xff]
    %v2749 = vld [vmem:[#allocation4 + $0x2b0] sm:$0xff]
    %v2750 = vld [vmem:[#allocation4 + $0x2b8] sm:$0xff]
    %v2751 = vld [vmem:[#allocation4 + $0x2c0] sm:$0xff]
    %v2752 = vld [vmem:[#allocation4 + $0x2c8] sm:$0xff]
    %v2753 = vld [vmem:[#allocation4 + $0x2d0] sm:$0xff]
    %v2754 = vld [vmem:[#allocation4 + $0x2d8] sm:$0xff]
    %v2755 = vld [vmem:[#allocation4 + $0x2e0] sm:$0xff]
    %v2756 = vld [vmem:[#allocation4 + $0x2e8] sm:$0xff]
    %v2757 = vld [vmem:[#allocation4 + $0x2f0] sm:$0xff]
    %v2758 = vld [vmem:[#allocation4 + $0x2f8] sm:$0xff]
    %v2761 = vrot.slane %v2661, 2
    %v2762 = vrot.slane %v2662, 2
    %v2861 = vunpack.c.l.b16 %v2663
    %v2862 = vunpack.c.h.b16 %v2663
    %v2863 = vunpack.c.l.b16 %v2664
    %v2864 = vunpack.c.h.b16 %v2664
    %v2865 = vunpack.c.l.b16 %v2665
    %v2866 = vunpack.c.h.b16 %v2665
    %v2867 = vunpack.c.l.b16 %v2666
    %v2868 = vunpack.c.h.b16 %v2666
    %v2869 = vunpack.c.l.b16 %v2667
    %v2870 = vunpack.c.h.b16 %v2667
    %v2871 = vunpack.c.l.b16 %v2668
    %v2872 = vunpack.c.h.b16 %v2668
    %v2873 = vunpack.c.l.b16 %v2669
    %v2874 = vunpack.c.h.b16 %v2669
    %v2875 = vunpack.c.l.b16 %v2670
    %v2876 = vunpack.c.h.b16 %v2670
    %v2877 = vunpack.c.l.b16 %v2671
    %v2878 = vunpack.c.h.b16 %v2671
    %v2879 = vunpack.c.l.b16 %v2672
    %v2880 = vunpack.c.h.b16 %v2672
    %v2881 = vunpack.c.l.b16 %v2673
    %v2882 = vunpack.c.h.b16 %v2673
    %v2883 = vunpack.c.l.b16 %v2674
    %v2884 = vunpack.c.h.b16 %v2674
    %v2885 = vunpack.c.l.b16 %v2675
    %v2886 = vunpack.c.h.b16 %v2675
    %v2887 = vunpack.c.l.b16 %v2676
    %v2888 = vunpack.c.h.b16 %v2676
    %v2889 = vunpack.c.l.b16 %v2677
    %v2890 = vunpack.c.h.b16 %v2677
    %v2891 = vunpack.c.l.b16 %v2678
    %v2892 = vunpack.c.h.b16 %v2678
    %v2893 = vunpack.c.l.b16 %v2679
    %v2894 = vunpack.c.h.b16 %v2679
    %v2895 = vunpack.c.l.b16 %v2680
    %v2896 = vunpack.c.h.b16 %v2680
    %v2897 = vunpack.c.l.b16 %v2681
    %v2898 = vunpack.c.h.b16 %v2681
    %v2899 = vunpack.c.l.b16 %v2682
    %v2900 = vunpack.c.h.b16 %v2682
    %v2901 = vunpack.c.l.b16 %v2683
    %v2902 = vunpack.c.h.b16 %v2683
    %v2903 = vunpack.c.l.b16 %v2684
    %v2904 = vunpack.c.h.b16 %v2684
    %v2905 = vunpack.c.l.b16 %v2685
    %v2906 = vunpack.c.h.b16 %v2685
    %v2907 = vunpack.c.l.b16 %v2686
    %v2908 = vunpack.c.h.b16 %v2686
    %v2909 = vunpack.c.l.b16 %v2687
    %v2910 = vunpack.c.h.b16 %v2687
    %v2911 = vunpack.c.l.b16 %v2688
    %v2912 = vunpack.c.h.b16 %v2688
    %v2913 = vunpack.c.l.b16 %v2689
    %v2914 = vunpack.c.h.b16 %v2689
    %v2915 = vunpack.c.l.b16 %v2690
    %v2916 = vunpack.c.h.b16 %v2690
    %v2917 = vunpack.c.l.b16 %v2691
    %v2918 = vunpack.c.h.b16 %v2691
    %v2919 = vunpack.c.l.b16 %v2692
    %v2920 = vunpack.c.h.b16 %v2692
    %v2921 = vunpack.c.l.b16 %v2693
    %v2922 = vunpack.c.h.b16 %v2693
    %v2923 = vunpack.c.l.b16 %v2694
    %v2924 = vunpack.c.h.b16 %v2694
    %v2925 = vunpack.c.l.b16 %v2695
    %v2926 = vunpack.c.h.b16 %v2695
    %v2927 = vunpack.c.l.b16 %v2696
    %v2928 = vunpack.c.h.b16 %v2696
    %v2929 = vunpack.c.l.b16 %v2697
    %v2930 = vunpack.c.h.b16 %v2697
    %v2931 = vunpack.c.l.b16 %v2698
    %v2932 = vunpack.c.h.b16 %v2698
    %v2933 = vunpack.c.l.b16 %v2699
    %v2934 = vunpack.c.h.b16 %v2699
    %v2935 = vunpack.c.l.b16 %v2700
    %v2936 = vunpack.c.h.b16 %v2700
    %v2937 = vunpack.c.l.b16 %v2701
    %v2938 = vunpack.c.h.b16 %v2701
    %v2939 = vunpack.c.l.b16 %v2702
    %v2940 = vunpack.c.h.b16 %v2702
    %v2941 = vunpack.c.l.b16 %v2703
    %v2942 = vunpack.c.h.b16 %v2703
    %v2943 = vunpack.c.l.b16 %v2704
    %v2944 = vunpack.c.h.b16 %v2704
    %v2945 = vunpack.c.l.b16 %v2705
    %v2946 = vunpack.c.h.b16 %v2705
    %v2947 = vunpack.c.l.b16 %v2706
    %v2948 = vunpack.c.h.b16 %v2706
    %v2949 = vunpack.c.l.b16 %v2707
    %v2950 = vunpack.c.h.b16 %v2707
    %v2951 = vunpack.c.l.b16 %v2708
    %v2952 = vunpack.c.h.b16 %v2708
    %v2953 = vunpack.c.l.b16 %v2709
    %v2954 = vunpack.c.h.b16 %v2709
    %v2955 = vunpack.c.l.b16 %v2710
    %v2956 = vunpack.c.h.b16 %v2710
    %v2957 = vunpack.c.l.b16 %v2711
    %v2958 = vunpack.c.h.b16 %v2711
    %v2959 = vunpack.c.l.b16 %v2712
    %v2960 = vunpack.c.h.b16 %v2712
    %v2961 = vunpack.c.l.b16 %v2713
    %v2962 = vunpack.c.h.b16 %v2713
    %v2963 = vunpack.c.l.b16 %v2714
    %v2964 = vunpack.c.h.b16 %v2714
    %v2965 = vunpack.c.l.b16 %v2715
    %v2966 = vunpack.c.h.b16 %v2715
    %v2967 = vunpack.c.l.b16 %v2716
    %v2968 = vunpack.c.h.b16 %v2716
    %v2969 = vunpack.c.l.b16 %v2717
    %v2970 = vunpack.c.h.b16 %v2717
    %v2971 = vunpack.c.l.b16 %v2718
    %v2972 = vunpack.c.h.b16 %v2718
    %v2973 = vunpack.c.l.b16 %v2719
    %v2974 = vunpack.c.h.b16 %v2719
    %v2975 = vunpack.c.l.b16 %v2720
    %v2976 = vunpack.c.h.b16 %v2720
    %v2977 = vunpack.c.l.b16 %v2721
    %v2978 = vunpack.c.h.b16 %v2721
    %v2979 = vunpack.c.l.b16 %v2722
    %v2980 = vunpack.c.h.b16 %v2722
    %v2981 = vunpack.c.l.b16 %v2723
    %v2982 = vunpack.c.h.b16 %v2723
    %v2983 = vunpack.c.l.b16 %v2724
    %v2984 = vunpack.c.h.b16 %v2724
    %v2985 = vunpack.c.l.b16 %v2725
    %v2986 = vunpack.c.h.b16 %v2725
    %v2987 = vunpack.c.l.b16 %v2726
    %v2988 = vunpack.c.h.b16 %v2726
    %v2989 = vunpack.c.l.b16 %v2727
    %v2990 = vunpack.c.h.b16 %v2727
    %v2991 = vunpack.c.l.b16 %v2728
    %v2992 = vunpack.c.h.b16 %v2728
    %v2993 = vunpack.c.l.b16 %v2729
    %v2994 = vunpack.c.h.b16 %v2729
    %v2995 = vunpack.c.l.b16 %v2730
    %v2996 = vunpack.c.h.b16 %v2730
    %v2997 = vunpack.c.l.b16 %v2731
    %v2998 = vunpack.c.h.b16 %v2731
    %v2999 = vunpack.c.l.b16 %v2732
    %v3000 = vunpack.c.h.b16 %v2732
    %v3001 = vunpack.c.l.b16 %v2733
    %v3002 = vunpack.c.h.b16 %v2733
    %v3003 = vunpack.c.l.b16 %v2734
    %v3004 = vunpack.c.h.b16 %v2734
    %v3005 = vunpack.c.l.b16 %v2735
    %v3006 = vunpack.c.h.b16 %v2735
    %v3007 = vunpack.c.l.b16 %v2736
    %v3008 = vunpack.c.h.b16 %v2736
    %v3009 = vunpack.c.l.b16 %v2737
    %v3010 = vunpack.c.h.b16 %v2737
    %v3011 = vunpack.c.l.b16 %v2738
    %v3012 = vunpack.c.h.b16 %v2738
    %v3013 = vunpack.c.l.b16 %v2739
    %v3014 = vunpack.c.h.b16 %v2739
    %v3015 = vunpack.c.l.b16 %v2740
    %v3016 = vunpack.c.h.b16 %v2740
    %v3017 = vunpack.c.l.b16 %v2741
    %v3018 = vunpack.c.h.b16 %v2741
    %v3019 = vunpack.c.l.b16 %v2742
    %v3020 = vunpack.c.h.b16 %v2742
    %v3021 = vunpack.c.l.b16 %v2743
    %v3022 = vunpack.c.h.b16 %v2743
    %v3023 = vunpack.c.l.b16 %v2744
    %v3024 = vunpack.c.h.b16 %v2744
    %v3025 = vunpack.c.l.b16 %v2745
    %v3026 = vunpack.c.h.b16 %v2745
    %v3027 = vunpack.c.l.b16 %v2746
    %v3028 = vunpack.c.h.b16 %v2746
    %v3029 = vunpack.c.l.b16 %v2747
    %v3030 = vunpack.c.h.b16 %v2747
    %v3031 = vunpack.c.l.b16 %v2748
    %v3032 = vunpack.c.h.b16 %v2748
    %v3033 = vunpack.c.l.b16 %v2749
    %v3034 = vunpack.c.h.b16 %v2749
    %v3035 = vunpack.c.l.b16 %v2750
    %v3036 = vunpack.c.h.b16 %v2750
    %v3037 = vunpack.c.l.b16 %v2751
    %v3038 = vunpack.c.h.b16 %v2751
    %v3039 = vunpack.c.l.b16 %v2752
    %v3040 = vunpack.c.h.b16 %v2752
    %v3041 = vunpack.c.l.b16 %v2753
    %v3042 = vunpack.c.h.b16 %v2753
    %v3043 = vunpack.c.l.b16 %v2754
    %v3044 = vunpack.c.h.b16 %v2754
    %v3045 = vunpack.c.l.b16 %v2755
    %v3046 = vunpack.c.h.b16 %v2755
    %v3047 = vunpack.c.l.b16 %v2756
    %v3048 = vunpack.c.h.b16 %v2756
    %v3049 = vunpack.c.l.b16 %v2757
    %v3050 = vunpack.c.h.b16 %v2757
    %v3051 = vunpack.c.l.b16 %v2758
    %v3052 = vunpack.c.h.b16 %v2758
    %v3053 = vpack.c.b16 %v2867, %v2861
    %v3054 = vpack.c.b16 %v2868, %v2862
    %v3055 = vpack.c.b16 %v2869, %v2863
    %v3056 = vpack.c.b16 %v2870, %v2864
    %v3057 = vpack.c.b16 %v2871, %v2865
    %v3058 = vpack.c.b16 %v2872, %v2866
    %v3059 = vpack.c.b16 %v2879, %v2873
    %v3060 = vpack.c.b16 %v2880, %v2874
    %v3061 = vpack.c.b16 %v2881, %v2875
    %v3062 = vpack.c.b16 %v2882, %v2876
    %v3063 = vpack.c.b16 %v2883, %v2877
    %v3064 = vpack.c.b16 %v2884, %v2878
    %v3065 = vpack.c.b16 %v2891, %v2885
    %v3066 = vpack.c.b16 %v2892, %v2886
    %v3067 = vpack.c.b16 %v2893, %v2887
    %v3068 = vpack.c.b16 %v2894, %v2888
    %v3069 = vpack.c.b16 %v2895, %v2889
    %v3070 = vpack.c.b16 %v2896, %v2890
    %v3071 = vpack.c.b16 %v2903, %v2897
    %v3072 = vpack.c.b16 %v2904, %v2898
    %v3073 = vpack.c.b16 %v2905, %v2899
    %v3074 = vpack.c.b16 %v2906, %v2900
    %v3075 = vpack.c.b16 %v2907, %v2901
    %v3076 = vpack.c.b16 %v2908, %v2902
    %v3077 = vpack.c.b16 %v2915, %v2909
    %v3078 = vpack.c.b16 %v2916, %v2910
    %v3079 = vpack.c.b16 %v2917, %v2911
    %v3080 = vpack.c.b16 %v2918, %v2912
    %v3081 = vpack.c.b16 %v2919, %v2913
    %v3082 = vpack.c.b16 %v2920, %v2914
    %v3083 = vpack.c.b16 %v2927, %v2921
    %v3084 = vpack.c.b16 %v2928, %v2922
    %v3085 = vpack.c.b16 %v2929, %v2923
    %v3086 = vpack.c.b16 %v2930, %v2924
    %v3087 = vpack.c.b16 %v2931, %v2925
    %v3088 = vpack.c.b16 %v2932, %v2926
    %v3089 = vpack.c.b16 %v2939, %v2933
    %v3090 = vpack.c.b16 %v2940, %v2934
    %v3091 = vpack.c.b16 %v2941, %v2935
    %v3092 = vpack.c.b16 %v2942, %v2936
    %v3093 = vpack.c.b16 %v2943, %v2937
    %v3094 = vpack.c.b16 %v2944, %v2938
    %v3095 = vpack.c.b16 %v2951, %v2945
    %v3096 = vpack.c.b16 %v2952, %v2946
    %v3097 = vpack.c.b16 %v2953, %v2947
    %v3098 = vpack.c.b16 %v2954, %v2948
    %v3099 = vpack.c.b16 %v2955, %v2949
    %v3100 = vpack.c.b16 %v2956, %v2950
    %v3101 = vpack.c.b16 %v2963, %v2957
    %v3102 = vpack.c.b16 %v2964, %v2958
    %v3103 = vpack.c.b16 %v2965, %v2959
    %v3104 = vpack.c.b16 %v2966, %v2960
    %v3105 = vpack.c.b16 %v2967, %v2961
    %v3106 = vpack.c.b16 %v2968, %v2962
    %v3107 = vpack.c.b16 %v2975, %v2969
    %v3108 = vpack.c.b16 %v2976, %v2970
    %v3109 = vpack.c.b16 %v2977, %v2971
    %v3110 = vpack.c.b16 %v2978, %v2972
    %v3111 = vpack.c.b16 %v2979, %v2973
    %v3112 = vpack.c.b16 %v2980, %v2974
    %v3113 = vpack.c.b16 %v2987, %v2981
    %v3114 = vpack.c.b16 %v2988, %v2982
    %v3115 = vpack.c.b16 %v2989, %v2983
    %v3116 = vpack.c.b16 %v2990, %v2984
    %v3117 = vpack.c.b16 %v2991, %v2985
    %v3118 = vpack.c.b16 %v2992, %v2986
    %v3119 = vpack.c.b16 %v2999, %v2993
    %v3120 = vpack.c.b16 %v3000, %v2994
    %v3121 = vpack.c.b16 %v3001, %v2995
    %v3122 = vpack.c.b16 %v3002, %v2996
    %v3123 = vpack.c.b16 %v3003, %v2997
    %v3124 = vpack.c.b16 %v3004, %v2998
    %v3125 = vpack.c.b16 %v3011, %v3005
    %v3126 = vpack.c.b16 %v3012, %v3006
    %v3127 = vpack.c.b16 %v3013, %v3007
    %v3128 = vpack.c.b16 %v3014, %v3008
    %v3129 = vpack.c.b16 %v3015, %v3009
    %v3130 = vpack.c.b16 %v3016, %v3010
    %v3131 = vpack.c.b16 %v3023, %v3017
    %v3132 = vpack.c.b16 %v3024, %v3018
    %v3133 = vpack.c.b16 %v3025, %v3019
    %v3134 = vpack.c.b16 %v3026, %v3020
    %v3135 = vpack.c.b16 %v3027, %v3021
    %v3136 = vpack.c.b16 %v3028, %v3022
    %v3137 = vpack.c.b16 %v3035, %v3029
    %v3138 = vpack.c.b16 %v3036, %v3030
    %v3139 = vpack.c.b16 %v3037, %v3031
    %v3140 = vpack.c.b16 %v3038, %v3032
    %v3141 = vpack.c.b16 %v3039, %v3033
    %v3142 = vpack.c.b16 %v3040, %v3034
    %v3143 = vpack.c.b16 %v3047, %v3041
    %v3144 = vpack.c.b16 %v3048, %v3042
    %v3145 = vpack.c.b16 %v3049, %v3043
    %v3146 = vpack.c.b16 %v3050, %v3044
    %v3147 = vpack.c.b16 %v3051, %v3045
    %v3148 = vpack.c.b16 %v3052, %v3046
    %3245 = vmatprep.subr.bf16.mxu0 %v3054
    %3246 = vmatpush1.bf16.msra.mxu0 %v3053
    %3247 = vmatprep.subr.bf16.mxu0 %v3060
    %3248 = vmatpush1.bf16.msra.mxu0 %v3059
    %3249 = vmatprep.subr.bf16.mxu0 %v3066
    %3250 = vmatpush1.bf16.msra.mxu0 %v3065
    %3251 = vmatprep.subr.bf16.mxu0 %v3072
    %3252 = vmatpush1.bf16.msra.mxu0 %v3071
    %3253 = vmatprep.subr.bf16.mxu0 %v3078
    %3254 = vmatpush1.bf16.msra.mxu0 %v3077
    %3255 = vmatprep.subr.bf16.mxu0 %v3084
    %3256 = vmatpush1.bf16.msra.mxu0 %v3083
    %3257 = vmatprep.subr.bf16.mxu0 %v3090
    %3258 = vmatpush1.bf16.msra.mxu0 %v3089
    %3259 = vmatprep.subr.bf16.mxu0 %v3096
    %3260 = vmatpush1.bf16.msra.mxu0 %v3095
    %3261 = vmatprep.subr.bf16.mxu0 %v3102
    %3262 = vmatpush1.bf16.msra.mxu0 %v3101
    %3263 = vmatprep.subr.bf16.mxu0 %v3108
    %3264 = vmatpush1.bf16.msra.mxu0 %v3107
    %3265 = vmatprep.subr.bf16.mxu0 %v3114
    %3266 = vmatpush1.bf16.msra.mxu0 %v3113
    %3267 = vmatprep.subr.bf16.mxu0 %v3120
    %3268 = vmatpush1.bf16.msra.mxu0 %v3119
    %3269 = vmatprep.subr.bf16.mxu0 %v3126
    %3270 = vmatpush1.bf16.msra.mxu0 %v3125
    %3271 = vmatprep.subr.bf16.mxu0 %v3132
    %3272 = vmatpush1.bf16.msra.mxu0 %v3131
    %3273 = vmatprep.subr.bf16.mxu0 %v3138
    %3274 = vmatpush1.bf16.msra.mxu0 %v3137
    %3275 = vmatprep.subr.bf16.mxu0 %v3144
    %3276 = vmatpush1.bf16.msra.mxu0 %v3143
    %3277 = vmatprep.mubr.bf16.mxu0 %v2762
    %3278 = vmatmul.mubr.bf16.gmra.mrb[0].mxu0 %v2761
    %v3279 = vpop.f32.mrb[0].mxu0
    %v3280 = vadd.f32 0.0, %v3279
    %v3281 = vpop.f32.mrb[0].mxu0
    %v3282 = vadd.f32 0.0, %v3281
    %v3283 = vpop.f32.mrb[0].mxu0
    %v3284 = vpop.f32.mrb[0].mxu0
    %3285 = vdwg.mxu0
    %3286 = vmatprep.subr.bf16.mxu0 %v3056
    %3287 = vmatpush1.bf16.msra.mxu0 %v3055
    %3288 = vmatprep.subr.bf16.mxu0 %v3062
    %3289 = vmatpush1.bf16.msra.mxu0 %v3061
    %3290 = vmatprep.subr.bf16.mxu0 %v3068
    %3291 = vmatpush1.bf16.msra.mxu0 %v3067
    %3292 = vmatprep.subr.bf16.mxu0 %v3074
    %3293 = vmatpush1.bf16.msra.mxu0 %v3073
    %3294 = vmatprep.subr.bf16.mxu0 %v3080
    %3295 = vmatpush1.bf16.msra.mxu0 %v3079
    %3296 = vmatprep.subr.bf16.mxu0 %v3086
    %3297 = vmatpush1.bf16.msra.mxu0 %v3085
    %3298 = vmatprep.subr.bf16.mxu0 %v3092
    %3299 = vmatpush1.bf16.msra.mxu0 %v3091
    %3300 = vmatprep.subr.bf16.mxu0 %v3098
    %3301 = vmatpush1.bf16.msra.mxu0 %v3097
    %3302 = vmatprep.subr.bf16.mxu0 %v3104
    %3303 = vmatpush1.bf16.msra.mxu0 %v3103
    %3304 = vmatprep.subr.bf16.mxu0 %v3110
    %3305 = vmatpush1.bf16.msra.mxu0 %v3109
    %3306 = vmatprep.subr.bf16.mxu0 %v3116
    %3307 = vmatpush1.bf16.msra.mxu0 %v3115
    %3308 = vmatprep.subr.bf16.mxu0 %v3122
    %3309 = vmatpush1.bf16.msra.mxu0 %v3121
    %3310 = vmatprep.subr.bf16.mxu0 %v3128
    %3311 = vmatpush1.bf16.msra.mxu0 %v3127
    %3312 = vmatprep.subr.bf16.mxu0 %v3134
    %3313 = vmatpush1.bf16.msra.mxu0 %v3133
    %3314 = vmatprep.subr.bf16.mxu0 %v3140
    %3315 = vmatpush1.bf16.msra.mxu0 %v3139
    %3316 = vmatprep.subr.bf16.mxu0 %v3146
    %3317 = vmatpush1.bf16.msra.mxu0 %v3145
    %3318 = vmatprep.mubr.bf16.mxu0 %v2762
    %3319 = vmatmul.mubr.bf16.gmra.mrb[0].mxu0 %v2761
    %v3320 = vpop.f32.mrb[0].mxu0
    %v3321 = vadd.f32 0.0, %v3320
    %v3322 = vpop.f32.mrb[0].mxu0
    %v3323 = vadd.f32 0.0, %v3322
    %v3324 = vpop.f32.mrb[0].mxu0
    %v3325 = vpop.f32.mrb[0].mxu0
    %3326 = vdwg.mxu0
    %3327 = vmatprep.subr.bf16.mxu0 %v3058
    %3328 = vmatpush1.bf16.msra.mxu0 %v3057
    %3329 = vmatprep.subr.bf16.mxu0 %v3064
    %3330 = vmatpush1.bf16.msra.mxu0 %v3063
    %3331 = vmatprep.subr.bf16.mxu0 %v3070
    %3332 = vmatpush1.bf16.msra.mxu0 %v3069
    %3333 = vmatprep.subr.bf16.mxu0 %v3076
    %3334 = vmatpush1.bf16.msra.mxu0 %v3075
    %3335 = vmatprep.subr.bf16.mxu0 %v3082
    %3336 = vmatpush1.bf16.msra.mxu0 %v3081
    %3337 = vmatprep.subr.bf16.mxu0 %v3088
    %3338 = vmatpush1.bf16.msra.mxu0 %v3087
    %3339 = vmatprep.subr.bf16.mxu0 %v3094
    %3340 = vmatpush1.bf16.msra.mxu0 %v3093
    %3341 = vmatprep.subr.bf16.mxu0 %v3100
    %3342 = vmatpush1.bf16.msra.mxu0 %v3099
    %3343 = vmatprep.subr.bf16.mxu0 %v3106
    %3344 = vmatpush1.bf16.msra.mxu0 %v3105
    %3345 = vmatprep.subr.bf16.mxu0 %v3112
    %3346 = vmatpush1.bf16.msra.mxu0 %v3111
    %3347 = vmatprep.subr.bf16.mxu0 %v3118
    %3348 = vmatpush1.bf16.msra.mxu0 %v3117
    %3349 = vmatprep.subr.bf16.mxu0 %v3124
    %3350 = vmatpush1.bf16.msra.mxu0 %v3123
    %3351 = vmatprep.subr.bf16.mxu0 %v3130
    %3352 = vmatpush1.bf16.msra.mxu0 %v3129
    %3353 = vmatprep.subr.bf16.mxu0 %v3136
    %3354 = vmatpush1.bf16.msra.mxu0 %v3135
    %3355 = vmatprep.subr.bf16.mxu0 %v3142
    %3356 = vmatpush1.bf16.msra.mxu0 %v3141
    %3357 = vmatprep.subr.bf16.mxu0 %v3148
    %3358 = vmatpush1.bf16.msra.mxu0 %v3147
    %3359 = vmatprep.mubr.bf16.mxu0 %v2762
    %3360 = vmatmul.mubr.bf16.gmra.mrb[0].mxu0 %v2761
    %v3361 = vpop.f32.mrb[0].mxu0
    %v3362 = vadd.f32 0.0, %v3361
    %v3363 = vpop.f32.mrb[0].mxu0
    %v3364 = vadd.f32 0.0, %v3363
    %v3365 = vpop.f32.mrb[0].mxu0
    %v3366 = vpop.f32.mrb[0].mxu0
    %3367 = vdwg.mxu0
    %v3370 = vrot.slane %v3280, 2
    %v3371 = vrot.slane %v3282, 2
    %v3374 = vadd.f32 %v2655, %v3370
    %v3375 = vadd.f32 %v2656, %v3371
    %v3376 = vxor.u32 %v3374, 2147483648
    %v3377 = vxor.u32 %v3375, 2147483648
    %v3378 = vmul.f32 %v3376, 1.442695
    %v3379 = vpow.pop %v3378
    %v3380 = vmul.f32 %v3377, 1.442695
    %v3381 = vpow.pop %v3380
    %v3382 = vadd.f32 %v3379, 1.0
    %v3383 = vadd.f32 %v3381, 1.0
    %v3384 = vrcp.pop %v3382
    %v3385 = vmul.f32 1.0, %v3384
    %v3386 = vrcp.pop %v3383
    %v3387 = vmul.f32 1.0, %v3386
    %v3390 = vrot.slane %v3321, 2
    %v3391 = vrot.slane %v3323, 2
    %v3394 = vadd.f32 %v2657, %v3390
    %v3395 = vadd.f32 %v2658, %v3391
    %v3396 = vxor.u32 %v3394, 2147483648
    %v3397 = vxor.u32 %v3395, 2147483648
    %v3398 = vmul.f32 %v3396, 1.442695
    %v3399 = vpow.pop %v3398
    %v3400 = vmul.f32 %v3397, 1.442695
    %v3401 = vpow.pop %v3400
    %v3402 = vadd.f32 %v3399, 1.0
    %v3403 = vadd.f32 %v3401, 1.0
    %v3404 = vrcp.pop %v3402
    %v3405 = vmul.f32 1.0, %v3404
    %v3406 = vrcp.pop %v3403
    %v3407 = vmul.f32 1.0, %v3406
    %v3408 = vld [vmem:[%s3] sm:$0x3]
    %v3410 = vlaneseq
    %v3411 = vshrl.u32 %v3410, 7
    %v3412 = vsub.s32 0, %v3411
    %v3413 = vrot.slane %v3408, %v3412
    %v3414 = vlaneseq
    %v3415 = vshrl.u32 %v3414, 7
    %v3416 = vsub.s32 1, %v3415
    %v3417 = vrot.slane %v3408, %v3416
    %v3420 = vadd.f32 %v3362, %v3413
    %v3421 = vadd.f32 %v3364, %v3417
    %v3424 = vrot.slane %v3420, 2
    %v3425 = vrot.slane %v3421, 2
    %v3428 = vmul.f32 %v3385, %v3424
    %v3429 = vmul.f32 %v3387, %v3425
    %v3430 = vadd.f32 %v2659, %v3428
    %v3431 = vadd.f32 %v2660, %v3429
    %v3432 = vtanh.pop %v3430
    %v3433 = vtanh.pop %v3431
    %v3434 = vsub.f32 1.0, %v3405
    %v3435 = vsub.f32 1.0, %v3407
    %v3436 = vmul.f32 %v3434, %v3432
    %v3437 = vmul.f32 %v3435, %v3433
    %v3440 = vrot.slane %v2651, 6
    %v3441 = vrot.slane %v2652, 6
    %v3444 = vmul.f32 %v3405, %v3440
    %v3445 = vmul.f32 %v3407, %v3441
    %v3446 = vadd.f32 %v3436, %v3444
    %v3447 = vadd.f32 %v3437, %v3445
    %3448 = vst [vmem:[#allocation3] sm:$0xc0] %v3446
    %3449 = vst [vmem:[#allocation3 + $0x8] sm:$0xc0] %v3447
    %v3450 = vld [vmem:[#allocation2 + $0x30] sm:$0x3]
    %v3451 = vld [vmem:[#allocation2 + $0x38] sm:$0x3]
    %v3452 = vld [vmem:[#allocation2 + $0x40] sm:$0x3]
    %v3453 = vld [vmem:[#allocation2 + $0x48] sm:$0x3]
    %v3454 = vld [vmem:[#allocation2 + $0x50] sm:$0x3]
    %v3455 = vld [vmem:[#allocation2 + $0x58] sm:$0x3]
    %v3456 = vpack.c.bf16 %v3446, %v3446
    %v3457 = vpack.c.bf16 %v3447, %v3447
    %v3458 = vld [vmem:[#allocation4] sm:$0xff]
    %v3459 = vld [vmem:[#allocation4 + $0x8] sm:$0xff]
    %v3460 = vld [vmem:[#allocation4 + $0x10] sm:$0xff]
    %v3461 = vld [vmem:[#allocation4 + $0x18] sm:$0xff]
    %v3462 = vld [vmem:[#allocation4 + $0x20] sm:$0xff]
    %v3463 = vld [vmem:[#allocation4 + $0x28] sm:$0xff]
    %v3464 = vld [vmem:[#allocation4 + $0x30] sm:$0xff]
    %v3465 = vld [vmem:[#allocation4 + $0x38] sm:$0xff]
    %v3466 = vld [vmem:[#allocation4 + $0x40] sm:$0xff]
    %v3467 = vld [vmem:[#allocation4 + $0x48] sm:$0xff]
    %v3468 = vld [vmem:[#allocation4 + $0x50] sm:$0xff]
    %v3469 = vld [vmem:[#allocation4 + $0x58] sm:$0xff]
    %v3470 = vld [vmem:[#allocation4 + $0x60] sm:$0xff]
    %v3471 = vld [vmem:[#allocation4 + $0x68] sm:$0xff]
    %v3472 = vld [vmem:[#allocation4 + $0x70] sm:$0xff]
    %v3473 = vld [vmem:[#allocation4 + $0x78] sm:$0xff]
    %v3474 = vld [vmem:[#allocation4 + $0x80] sm:$0xff]
    %v3475 = vld [vmem:[#allocation4 + $0x88] sm:$0xff]
    %v3476 = vld [vmem:[#allocation4 + $0x90] sm:$0xff]
    %v3477 = vld [vmem:[#allocation4 + $0x98] sm:$0xff]
    %v3478 = vld [vmem:[#allocation4 + $0xa0] sm:$0xff]
    %v3479 = vld [vmem:[#allocation4 + $0xa8] sm:$0xff]
    %v3480 = vld [vmem:[#allocation4 + $0xb0] sm:$0xff]
    %v3481 = vld [vmem:[#allocation4 + $0xb8] sm:$0xff]
    %v3482 = vld [vmem:[#allocation4 + $0xc0] sm:$0xff]
    %v3483 = vld [vmem:[#allocation4 + $0xc8] sm:$0xff]
    %v3484 = vld [vmem:[#allocation4 + $0xd0] sm:$0xff]
    %v3485 = vld [vmem:[#allocation4 + $0xd8] sm:$0xff]
    %v3486 = vld [vmem:[#allocation4 + $0xe0] sm:$0xff]
    %v3487 = vld [vmem:[#allocation4 + $0xe8] sm:$0xff]
    %v3488 = vld [vmem:[#allocation4 + $0xf0] sm:$0xff]
    %v3489 = vld [vmem:[#allocation4 + $0xf8] sm:$0xff]
    %v3490 = vld [vmem:[#allocation4 + $0x100] sm:$0xff]
    %v3491 = vld [vmem:[#allocation4 + $0x108] sm:$0xff]
    %v3492 = vld [vmem:[#allocation4 + $0x110] sm:$0xff]
    %v3493 = vld [vmem:[#allocation4 + $0x118] sm:$0xff]
    %v3494 = vld [vmem:[#allocation4 + $0x120] sm:$0xff]
    %v3495 = vld [vmem:[#allocation4 + $0x128] sm:$0xff]
    %v3496 = vld [vmem:[#allocation4 + $0x130] sm:$0xff]
    %v3497 = vld [vmem:[#allocation4 + $0x138] sm:$0xff]
    %v3498 = vld [vmem:[#allocation4 + $0x140] sm:$0xff]
    %v3499 = vld [vmem:[#allocation4 + $0x148] sm:$0xff]
    %v3500 = vld [vmem:[#allocation4 + $0x150] sm:$0xff]
    %v3501 = vld [vmem:[#allocation4 + $0x158] sm:$0xff]
    %v3502 = vld [vmem:[#allocation4 + $0x160] sm:$0xff]
    %v3503 = vld [vmem:[#allocation4 + $0x168] sm:$0xff]
    %v3504 = vld [vmem:[#allocation4 + $0x170] sm:$0xff]
    %v3505 = vld [vmem:[#allocation4 + $0x178] sm:$0xff]
    %v3506 = vld [vmem:[#allocation4 + $0x180] sm:$0xff]
    %v3507 = vld [vmem:[#allocation4 + $0x188] sm:$0xff]
    %v3508 = vld [vmem:[#allocation4 + $0x190] sm:$0xff]
    %v3509 = vld [vmem:[#allocation4 + $0x198] sm:$0xff]
    %v3510 = vld [vmem:[#allocation4 + $0x1a0] sm:$0xff]
    %v3511 = vld [vmem:[#allocation4 + $0x1a8] sm:$0xff]
    %v3512 = vld [vmem:[#allocation4 + $0x1b0] sm:$0xff]
    %v3513 = vld [vmem:[#allocation4 + $0x1b8] sm:$0xff]
    %v3514 = vld [vmem:[#allocation4 + $0x1c0] sm:$0xff]
    %v3515 = vld [vmem:[#allocation4 + $0x1c8] sm:$0xff]
    %v3516 = vld [vmem:[#allocation4 + $0x1d0] sm:$0xff]
    %v3517 = vld [vmem:[#allocation4 + $0x1d8] sm:$0xff]
    %v3518 = vld [vmem:[#allocation4 + $0x1e0] sm:$0xff]
    %v3519 = vld [vmem:[#allocation4 + $0x1e8] sm:$0xff]
    %v3520 = vld [vmem:[#allocation4 + $0x1f0] sm:$0xff]
    %v3521 = vld [vmem:[#allocation4 + $0x1f8] sm:$0xff]
    %v3522 = vld [vmem:[#allocation4 + $0x200] sm:$0xff]
    %v3523 = vld [vmem:[#allocation4 + $0x208] sm:$0xff]
    %v3524 = vld [vmem:[#allocation4 + $0x210] sm:$0xff]
    %v3525 = vld [vmem:[#allocation4 + $0x218] sm:$0xff]
    %v3526 = vld [vmem:[#allocation4 + $0x220] sm:$0xff]
    %v3527 = vld [vmem:[#allocation4 + $0x228] sm:$0xff]
    %v3528 = vld [vmem:[#allocation4 + $0x230] sm:$0xff]
    %v3529 = vld [vmem:[#allocation4 + $0x238] sm:$0xff]
    %v3530 = vld [vmem:[#allocation4 + $0x240] sm:$0xff]
    %v3531 = vld [vmem:[#allocation4 + $0x248] sm:$0xff]
    %v3532 = vld [vmem:[#allocation4 + $0x250] sm:$0xff]
    %v3533 = vld [vmem:[#allocation4 + $0x258] sm:$0xff]
    %v3534 = vld [vmem:[#allocation4 + $0x260] sm:$0xff]
    %v3535 = vld [vmem:[#allocation4 + $0x268] sm:$0xff]
    %v3536 = vld [vmem:[#allocation4 + $0x270] sm:$0xff]
    %v3537 = vld [vmem:[#allocation4 + $0x278] sm:$0xff]
    %v3538 = vld [vmem:[#allocation4 + $0x280] sm:$0xff]
    %v3539 = vld [vmem:[#allocation4 + $0x288] sm:$0xff]
    %v3540 = vld [vmem:[#allocation4 + $0x290] sm:$0xff]
    %v3541 = vld [vmem:[#allocation4 + $0x298] sm:$0xff]
    %v3542 = vld [vmem:[#allocation4 + $0x2a0] sm:$0xff]
    %v3543 = vld [vmem:[#allocation4 + $0x2a8] sm:$0xff]
    %v3544 = vld [vmem:[#allocation4 + $0x2b0] sm:$0xff]
    %v3545 = vld [vmem:[#allocation4 + $0x2b8] sm:$0xff]
    %v3546 = vld [vmem:[#allocation4 + $0x2c0] sm:$0xff]
    %v3547 = vld [vmem:[#allocation4 + $0x2c8] sm:$0xff]
    %v3548 = vld [vmem:[#allocation4 + $0x2d0] sm:$0xff]
    %v3549 = vld [vmem:[#allocation4 + $0x2d8] sm:$0xff]
    %v3550 = vld [vmem:[#allocation4 + $0x2e0] sm:$0xff]
    %v3551 = vld [vmem:[#allocation4 + $0x2e8] sm:$0xff]
    %v3552 = vld [vmem:[#allocation4 + $0x2f0] sm:$0xff]
    %v3553 = vld [vmem:[#allocation4 + $0x2f8] sm:$0xff]
    %v3556 = vrot.slane %v3456, 3
    %v3557 = vrot.slane %v3457, 3
    %v3656 = vunpack.c.l.b16 %v3458
    %v3657 = vunpack.c.h.b16 %v3458
    %v3658 = vunpack.c.l.b16 %v3459
    %v3659 = vunpack.c.h.b16 %v3459
    %v3660 = vunpack.c.l.b16 %v3460
    %v3661 = vunpack.c.h.b16 %v3460
    %v3662 = vunpack.c.l.b16 %v3461
    %v3663 = vunpack.c.h.b16 %v3461
    %v3664 = vunpack.c.l.b16 %v3462
    %v3665 = vunpack.c.h.b16 %v3462
    %v3666 = vunpack.c.l.b16 %v3463
    %v3667 = vunpack.c.h.b16 %v3463
    %v3668 = vunpack.c.l.b16 %v3464
    %v3669 = vunpack.c.h.b16 %v3464
    %v3670 = vunpack.c.l.b16 %v3465
    %v3671 = vunpack.c.h.b16 %v3465
    %v3672 = vunpack.c.l.b16 %v3466
    %v3673 = vunpack.c.h.b16 %v3466
    %v3674 = vunpack.c.l.b16 %v3467
    %v3675 = vunpack.c.h.b16 %v3467
    %v3676 = vunpack.c.l.b16 %v3468
    %v3677 = vunpack.c.h.b16 %v3468
    %v3678 = vunpack.c.l.b16 %v3469
    %v3679 = vunpack.c.h.b16 %v3469
    %v3680 = vunpack.c.l.b16 %v3470
    %v3681 = vunpack.c.h.b16 %v3470
    %v3682 = vunpack.c.l.b16 %v3471
    %v3683 = vunpack.c.h.b16 %v3471
    %v3684 = vunpack.c.l.b16 %v3472
    %v3685 = vunpack.c.h.b16 %v3472
    %v3686 = vunpack.c.l.b16 %v3473
    %v3687 = vunpack.c.h.b16 %v3473
    %v3688 = vunpack.c.l.b16 %v3474
    %v3689 = vunpack.c.h.b16 %v3474
    %v3690 = vunpack.c.l.b16 %v3475
    %v3691 = vunpack.c.h.b16 %v3475
    %v3692 = vunpack.c.l.b16 %v3476
    %v3693 = vunpack.c.h.b16 %v3476
    %v3694 = vunpack.c.l.b16 %v3477
    %v3695 = vunpack.c.h.b16 %v3477
    %v3696 = vunpack.c.l.b16 %v3478
    %v3697 = vunpack.c.h.b16 %v3478
    %v3698 = vunpack.c.l.b16 %v3479
    %v3699 = vunpack.c.h.b16 %v3479
    %v3700 = vunpack.c.l.b16 %v3480
    %v3701 = vunpack.c.h.b16 %v3480
    %v3702 = vunpack.c.l.b16 %v3481
    %v3703 = vunpack.c.h.b16 %v3481
    %v3704 = vunpack.c.l.b16 %v3482
    %v3705 = vunpack.c.h.b16 %v3482
    %v3706 = vunpack.c.l.b16 %v3483
    %v3707 = vunpack.c.h.b16 %v3483
    %v3708 = vunpack.c.l.b16 %v3484
    %v3709 = vunpack.c.h.b16 %v3484
    %v3710 = vunpack.c.l.b16 %v3485
    %v3711 = vunpack.c.h.b16 %v3485
    %v3712 = vunpack.c.l.b16 %v3486
    %v3713 = vunpack.c.h.b16 %v3486
    %v3714 = vunpack.c.l.b16 %v3487
    %v3715 = vunpack.c.h.b16 %v3487
    %v3716 = vunpack.c.l.b16 %v3488
    %v3717 = vunpack.c.h.b16 %v3488
    %v3718 = vunpack.c.l.b16 %v3489
    %v3719 = vunpack.c.h.b16 %v3489
    %v3720 = vunpack.c.l.b16 %v3490
    %v3721 = vunpack.c.h.b16 %v3490
    %v3722 = vunpack.c.l.b16 %v3491
    %v3723 = vunpack.c.h.b16 %v3491
    %v3724 = vunpack.c.l.b16 %v3492
    %v3725 = vunpack.c.h.b16 %v3492
    %v3726 = vunpack.c.l.b16 %v3493
    %v3727 = vunpack.c.h.b16 %v3493
    %v3728 = vunpack.c.l.b16 %v3494
    %v3729 = vunpack.c.h.b16 %v3494
    %v3730 = vunpack.c.l.b16 %v3495
    %v3731 = vunpack.c.h.b16 %v3495
    %v3732 = vunpack.c.l.b16 %v3496
    %v3733 = vunpack.c.h.b16 %v3496
    %v3734 = vunpack.c.l.b16 %v3497
    %v3735 = vunpack.c.h.b16 %v3497
    %v3736 = vunpack.c.l.b16 %v3498
    %v3737 = vunpack.c.h.b16 %v3498
    %v3738 = vunpack.c.l.b16 %v3499
    %v3739 = vunpack.c.h.b16 %v3499
    %v3740 = vunpack.c.l.b16 %v3500
    %v3741 = vunpack.c.h.b16 %v3500
    %v3742 = vunpack.c.l.b16 %v3501
    %v3743 = vunpack.c.h.b16 %v3501
    %v3744 = vunpack.c.l.b16 %v3502
    %v3745 = vunpack.c.h.b16 %v3502
    %v3746 = vunpack.c.l.b16 %v3503
    %v3747 = vunpack.c.h.b16 %v3503
    %v3748 = vunpack.c.l.b16 %v3504
    %v3749 = vunpack.c.h.b16 %v3504
    %v3750 = vunpack.c.l.b16 %v3505
    %v3751 = vunpack.c.h.b16 %v3505
    %v3752 = vunpack.c.l.b16 %v3506
    %v3753 = vunpack.c.h.b16 %v3506
    %v3754 = vunpack.c.l.b16 %v3507
    %v3755 = vunpack.c.h.b16 %v3507
    %v3756 = vunpack.c.l.b16 %v3508
    %v3757 = vunpack.c.h.b16 %v3508
    %v3758 = vunpack.c.l.b16 %v3509
    %v3759 = vunpack.c.h.b16 %v3509
    %v3760 = vunpack.c.l.b16 %v3510
    %v3761 = vunpack.c.h.b16 %v3510
    %v3762 = vunpack.c.l.b16 %v3511
    %v3763 = vunpack.c.h.b16 %v3511
    %v3764 = vunpack.c.l.b16 %v3512
    %v3765 = vunpack.c.h.b16 %v3512
    %v3766 = vunpack.c.l.b16 %v3513
    %v3767 = vunpack.c.h.b16 %v3513
    %v3768 = vunpack.c.l.b16 %v3514
    %v3769 = vunpack.c.h.b16 %v3514
    %v3770 = vunpack.c.l.b16 %v3515
    %v3771 = vunpack.c.h.b16 %v3515
    %v3772 = vunpack.c.l.b16 %v3516
    %v3773 = vunpack.c.h.b16 %v3516
    %v3774 = vunpack.c.l.b16 %v3517
    %v3775 = vunpack.c.h.b16 %v3517
    %v3776 = vunpack.c.l.b16 %v3518
    %v3777 = vunpack.c.h.b16 %v3518
    %v3778 = vunpack.c.l.b16 %v3519
    %v3779 = vunpack.c.h.b16 %v3519
    %v3780 = vunpack.c.l.b16 %v3520
    %v3781 = vunpack.c.h.b16 %v3520
    %v3782 = vunpack.c.l.b16 %v3521
    %v3783 = vunpack.c.h.b16 %v3521
    %v3784 = vunpack.c.l.b16 %v3522
    %v3785 = vunpack.c.h.b16 %v3522
    %v3786 = vunpack.c.l.b16 %v3523
    %v3787 = vunpack.c.h.b16 %v3523
    %v3788 = vunpack.c.l.b16 %v3524
    %v3789 = vunpack.c.h.b16 %v3524
    %v3790 = vunpack.c.l.b16 %v3525
    %v3791 = vunpack.c.h.b16 %v3525
    %v3792 = vunpack.c.l.b16 %v3526
    %v3793 = vunpack.c.h.b16 %v3526
    %v3794 = vunpack.c.l.b16 %v3527
    %v3795 = vunpack.c.h.b16 %v3527
    %v3796 = vunpack.c.l.b16 %v3528
    %v3797 = vunpack.c.h.b16 %v3528
    %v3798 = vunpack.c.l.b16 %v3529
    %v3799 = vunpack.c.h.b16 %v3529
    %v3800 = vunpack.c.l.b16 %v3530
    %v3801 = vunpack.c.h.b16 %v3530
    %v3802 = vunpack.c.l.b16 %v3531
    %v3803 = vunpack.c.h.b16 %v3531
    %v3804 = vunpack.c.l.b16 %v3532
    %v3805 = vunpack.c.h.b16 %v3532
    %v3806 = vunpack.c.l.b16 %v3533
    %v3807 = vunpack.c.h.b16 %v3533
    %v3808 = vunpack.c.l.b16 %v3534
    %v3809 = vunpack.c.h.b16 %v3534
    %v3810 = vunpack.c.l.b16 %v3535
    %v3811 = vunpack.c.h.b16 %v3535
    %v3812 = vunpack.c.l.b16 %v3536
    %v3813 = vunpack.c.h.b16 %v3536
    %v3814 = vunpack.c.l.b16 %v3537
    %v3815 = vunpack.c.h.b16 %v3537
    %v3816 = vunpack.c.l.b16 %v3538
    %v3817 = vunpack.c.h.b16 %v3538
    %v3818 = vunpack.c.l.b16 %v3539
    %v3819 = vunpack.c.h.b16 %v3539
    %v3820 = vunpack.c.l.b16 %v3540
    %v3821 = vunpack.c.h.b16 %v3540
    %v3822 = vunpack.c.l.b16 %v3541
    %v3823 = vunpack.c.h.b16 %v3541
    %v3824 = vunpack.c.l.b16 %v3542
    %v3825 = vunpack.c.h.b16 %v3542
    %v3826 = vunpack.c.l.b16 %v3543
    %v3827 = vunpack.c.h.b16 %v3543
    %v3828 = vunpack.c.l.b16 %v3544
    %v3829 = vunpack.c.h.b16 %v3544
    %v3830 = vunpack.c.l.b16 %v3545
    %v3831 = vunpack.c.h.b16 %v3545
    %v3832 = vunpack.c.l.b16 %v3546
    %v3833 = vunpack.c.h.b16 %v3546
    %v3834 = vunpack.c.l.b16 %v3547
    %v3835 = vunpack.c.h.b16 %v3547
    %v3836 = vunpack.c.l.b16 %v3548
    %v3837 = vunpack.c.h.b16 %v3548
    %v3838 = vunpack.c.l.b16 %v3549
    %v3839 = vunpack.c.h.b16 %v3549
    %v3840 = vunpack.c.l.b16 %v3550
    %v3841 = vunpack.c.h.b16 %v3550
    %v3842 = vunpack.c.l.b16 %v3551
    %v3843 = vunpack.c.h.b16 %v3551
    %v3844 = vunpack.c.l.b16 %v3552
    %v3845 = vunpack.c.h.b16 %v3552
    %v3846 = vunpack.c.l.b16 %v3553
    %v3847 = vunpack.c.h.b16 %v3553
    %v3848 = vpack.c.b16 %v3662, %v3656
    %v3849 = vpack.c.b16 %v3663, %v3657
    %v3850 = vpack.c.b16 %v3664, %v3658
    %v3851 = vpack.c.b16 %v3665, %v3659
    %v3852 = vpack.c.b16 %v3666, %v3660
    %v3853 = vpack.c.b16 %v3667, %v3661
    %v3854 = vpack.c.b16 %v3674, %v3668
    %v3855 = vpack.c.b16 %v3675, %v3669
    %v3856 = vpack.c.b16 %v3676, %v3670
    %v3857 = vpack.c.b16 %v3677, %v3671
    %v3858 = vpack.c.b16 %v3678, %v3672
    %v3859 = vpack.c.b16 %v3679, %v3673
    %v3860 = vpack.c.b16 %v3686, %v3680
    %v3861 = vpack.c.b16 %v3687, %v3681
    %v3862 = vpack.c.b16 %v3688, %v3682
    %v3863 = vpack.c.b16 %v3689, %v3683
    %v3864 = vpack.c.b16 %v3690, %v3684
    %v3865 = vpack.c.b16 %v3691, %v3685
    %v3866 = vpack.c.b16 %v3698, %v3692
    %v3867 = vpack.c.b16 %v3699, %v3693
    %v3868 = vpack.c.b16 %v3700, %v3694
    %v3869 = vpack.c.b16 %v3701, %v3695
    %v3870 = vpack.c.b16 %v3702, %v3696
    %v3871 = vpack.c.b16 %v3703, %v3697
    %v3872 = vpack.c.b16 %v3710, %v3704
    %v3873 = vpack.c.b16 %v3711, %v3705
    %v3874 = vpack.c.b16 %v3712, %v3706
    %v3875 = vpack.c.b16 %v3713, %v3707
    %v3876 = vpack.c.b16 %v3714, %v3708
    %v3877 = vpack.c.b16 %v3715, %v3709
    %v3878 = vpack.c.b16 %v3722, %v3716
    %v3879 = vpack.c.b16 %v3723, %v3717
    %v3880 = vpack.c.b16 %v3724, %v3718
    %v3881 = vpack.c.b16 %v3725, %v3719
    %v3882 = vpack.c.b16 %v3726, %v3720
    %v3883 = vpack.c.b16 %v3727, %v3721
    %v3884 = vpack.c.b16 %v3734, %v3728
    %v3885 = vpack.c.b16 %v3735, %v3729
    %v3886 = vpack.c.b16 %v3736, %v3730
    %v3887 = vpack.c.b16 %v3737, %v3731
    %v3888 = vpack.c.b16 %v3738, %v3732
    %v3889 = vpack.c.b16 %v3739, %v3733
    %v3890 = vpack.c.b16 %v3746, %v3740
    %v3891 = vpack.c.b16 %v3747, %v3741
    %v3892 = vpack.c.b16 %v3748, %v3742
    %v3893 = vpack.c.b16 %v3749, %v3743
    %v3894 = vpack.c.b16 %v3750, %v3744
    %v3895 = vpack.c.b16 %v3751, %v3745
    %v3896 = vpack.c.b16 %v3758, %v3752
    %v3897 = vpack.c.b16 %v3759, %v3753
    %v3898 = vpack.c.b16 %v3760, %v3754
    %v3899 = vpack.c.b16 %v3761, %v3755
    %v3900 = vpack.c.b16 %v3762, %v3756
    %v3901 = vpack.c.b16 %v3763, %v3757
    %v3902 = vpack.c.b16 %v3770, %v3764
    %v3903 = vpack.c.b16 %v3771, %v3765
    %v3904 = vpack.c.b16 %v3772, %v3766
    %v3905 = vpack.c.b16 %v3773, %v3767
    %v3906 = vpack.c.b16 %v3774, %v3768
    %v3907 = vpack.c.b16 %v3775, %v3769
    %v3908 = vpack.c.b16 %v3782, %v3776
    %v3909 = vpack.c.b16 %v3783, %v3777
    %v3910 = vpack.c.b16 %v3784, %v3778
    %v3911 = vpack.c.b16 %v3785, %v3779
    %v3912 = vpack.c.b16 %v3786, %v3780
    %v3913 = vpack.c.b16 %v3787, %v3781
    %v3914 = vpack.c.b16 %v3794, %v3788
    %v3915 = vpack.c.b16 %v3795, %v3789
    %v3916 = vpack.c.b16 %v3796, %v3790
    %v3917 = vpack.c.b16 %v3797, %v3791
    %v3918 = vpack.c.b16 %v3798, %v3792
    %v3919 = vpack.c.b16 %v3799, %v3793
    %v3920 = vpack.c.b16 %v3806, %v3800
    %v3921 = vpack.c.b16 %v3807, %v3801
    %v3922 = vpack.c.b16 %v3808, %v3802
    %v3923 = vpack.c.b16 %v3809, %v3803
    %v3924 = vpack.c.b16 %v3810, %v3804
    %v3925 = vpack.c.b16 %v3811, %v3805
    %v3926 = vpack.c.b16 %v3818, %v3812
    %v3927 = vpack.c.b16 %v3819, %v3813
    %v3928 = vpack.c.b16 %v3820, %v3814
    %v3929 = vpack.c.b16 %v3821, %v3815
    %v3930 = vpack.c.b16 %v3822, %v3816
    %v3931 = vpack.c.b16 %v3823, %v3817
    %v3932 = vpack.c.b16 %v3830, %v3824
    %v3933 = vpack.c.b16 %v3831, %v3825
    %v3934 = vpack.c.b16 %v3832, %v3826
    %v3935 = vpack.c.b16 %v3833, %v3827
    %v3936 = vpack.c.b16 %v3834, %v3828
    %v3937 = vpack.c.b16 %v3835, %v3829
    %v3938 = vpack.c.b16 %v3842, %v3836
    %v3939 = vpack.c.b16 %v3843, %v3837
    %v3940 = vpack.c.b16 %v3844, %v3838
    %v3941 = vpack.c.b16 %v3845, %v3839
    %v3942 = vpack.c.b16 %v3846, %v3840
    %v3943 = vpack.c.b16 %v3847, %v3841
    %4040 = vmatprep.subr.bf16.mxu0 %v3849
    %4041 = vmatpush1.bf16.msra.mxu0 %v3848
    %4042 = vmatprep.subr.bf16.mxu0 %v3855
    %4043 = vmatpush1.bf16.msra.mxu0 %v3854
    %4044 = vmatprep.subr.bf16.mxu0 %v3861
    %4045 = vmatpush1.bf16.msra.mxu0 %v3860
    %4046 = vmatprep.subr.bf16.mxu0 %v3867
    %4047 = vmatpush1.bf16.msra.mxu0 %v3866
    %4048 = vmatprep.subr.bf16.mxu0 %v3873
    %4049 = vmatpush1.bf16.msra.mxu0 %v3872
    %4050 = vmatprep.subr.bf16.mxu0 %v3879
    %4051 = vmatpush1.bf16.msra.mxu0 %v3878
    %4052 = vmatprep.subr.bf16.mxu0 %v3885
    %4053 = vmatpush1.bf16.msra.mxu0 %v3884
    %4054 = vmatprep.subr.bf16.mxu0 %v3891
    %4055 = vmatpush1.bf16.msra.mxu0 %v3890
    %4056 = vmatprep.subr.bf16.mxu0 %v3897
    %4057 = vmatpush1.bf16.msra.mxu0 %v3896
    %4058 = vmatprep.subr.bf16.mxu0 %v3903
    %4059 = vmatpush1.bf16.msra.mxu0 %v3902
    %4060 = vmatprep.subr.bf16.mxu0 %v3909
    %4061 = vmatpush1.bf16.msra.mxu0 %v3908
    %4062 = vmatprep.subr.bf16.mxu0 %v3915
    %4063 = vmatpush1.bf16.msra.mxu0 %v3914
    %4064 = vmatprep.subr.bf16.mxu0 %v3921
    %4065 = vmatpush1.bf16.msra.mxu0 %v3920
    %4066 = vmatprep.subr.bf16.mxu0 %v3927
    %4067 = vmatpush1.bf16.msra.mxu0 %v3926
    %4068 = vmatprep.subr.bf16.mxu0 %v3933
    %4069 = vmatpush1.bf16.msra.mxu0 %v3932
    %4070 = vmatprep.subr.bf16.mxu0 %v3939
    %4071 = vmatpush1.bf16.msra.mxu0 %v3938
    %4072 = vmatprep.mubr.bf16.mxu0 %v3557
    %4073 = vmatmul.mubr.bf16.gmra.mrb[0].mxu0 %v3556
    %v4074 = vpop.f32.mrb[0].mxu0
    %v4075 = vadd.f32 0.0, %v4074
    %v4076 = vpop.f32.mrb[0].mxu0
    %v4077 = vadd.f32 0.0, %v4076
    %v4078 = vpop.f32.mrb[0].mxu0
    %v4079 = vpop.f32.mrb[0].mxu0
    %4080 = vdwg.mxu0
    %4081 = vmatprep.subr.bf16.mxu0 %v3851
    %4082 = vmatpush1.bf16.msra.mxu0 %v3850
    %4083 = vmatprep.subr.bf16.mxu0 %v3857
    %4084 = vmatpush1.bf16.msra.mxu0 %v3856
    %4085 = vmatprep.subr.bf16.mxu0 %v3863
    %4086 = vmatpush1.bf16.msra.mxu0 %v3862
    %4087 = vmatprep.subr.bf16.mxu0 %v3869
    %4088 = vmatpush1.bf16.msra.mxu0 %v3868
    %4089 = vmatprep.subr.bf16.mxu0 %v3875
    %4090 = vmatpush1.bf16.msra.mxu0 %v3874
    %4091 = vmatprep.subr.bf16.mxu0 %v3881
    %4092 = vmatpush1.bf16.msra.mxu0 %v3880
    %4093 = vmatprep.subr.bf16.mxu0 %v3887
    %4094 = vmatpush1.bf16.msra.mxu0 %v3886
    %4095 = vmatprep.subr.bf16.mxu0 %v3893
    %4096 = vmatpush1.bf16.msra.mxu0 %v3892
    %4097 = vmatprep.subr.bf16.mxu0 %v3899
    %4098 = vmatpush1.bf16.msra.mxu0 %v3898
    %4099 = vmatprep.subr.bf16.mxu0 %v3905
    %4100 = vmatpush1.bf16.msra.mxu0 %v3904
    %4101 = vmatprep.subr.bf16.mxu0 %v3911
    %4102 = vmatpush1.bf16.msra.mxu0 %v3910
    %4103 = vmatprep.subr.bf16.mxu0 %v3917
    %4104 = vmatpush1.bf16.msra.mxu0 %v3916
    %4105 = vmatprep.subr.bf16.mxu0 %v3923
    %4106 = vmatpush1.bf16.msra.mxu0 %v3922
    %4107 = vmatprep.subr.bf16.mxu0 %v3929
    %4108 = vmatpush1.bf16.msra.mxu0 %v3928
    %4109 = vmatprep.subr.bf16.mxu0 %v3935
    %4110 = vmatpush1.bf16.msra.mxu0 %v3934
    %4111 = vmatprep.subr.bf16.mxu0 %v3941
    %4112 = vmatpush1.bf16.msra.mxu0 %v3940
    %4113 = vmatprep.mubr.bf16.mxu0 %v3557
    %4114 = vmatmul.mubr.bf16.gmra.mrb[0].mxu0 %v3556
    %v4115 = vpop.f32.mrb[0].mxu0
    %v4116 = vadd.f32 0.0, %v4115
    %v4117 = vpop.f32.mrb[0].mxu0
    %v4118 = vadd.f32 0.0, %v4117
    %v4119 = vpop.f32.mrb[0].mxu0
    %v4120 = vpop.f32.mrb[0].mxu0
    %4121 = vdwg.mxu0
    %4122 = vmatprep.subr.bf16.mxu0 %v3853
    %4123 = vmatpush1.bf16.msra.mxu0 %v3852
    %4124 = vmatprep.subr.bf16.mxu0 %v3859
    %4125 = vmatpush1.bf16.msra.mxu0 %v3858
    %4126 = vmatprep.subr.bf16.mxu0 %v3865
    %4127 = vmatpush1.bf16.msra.mxu0 %v3864
    %4128 = vmatprep.subr.bf16.mxu0 %v3871
    %4129 = vmatpush1.bf16.msra.mxu0 %v3870
    %4130 = vmatprep.subr.bf16.mxu0 %v3877
    %4131 = vmatpush1.bf16.msra.mxu0 %v3876
    %4132 = vmatprep.subr.bf16.mxu0 %v3883
    %4133 = vmatpush1.bf16.msra.mxu0 %v3882
    %4134 = vmatprep.subr.bf16.mxu0 %v3889
    %4135 = vmatpush1.bf16.msra.mxu0 %v3888
    %4136 = vmatprep.subr.bf16.mxu0 %v3895
    %4137 = vmatpush1.bf16.msra.mxu0 %v3894
    %4138 = vmatprep.subr.bf16.mxu0 %v3901
    %4139 = vmatpush1.bf16.msra.mxu0 %v3900
    %4140 = vmatprep.subr.bf16.mxu0 %v3907
    %4141 = vmatpush1.bf16.msra.mxu0 %v3906
    %4142 = vmatprep.subr.bf16.mxu0 %v3913
    %4143 = vmatpush1.bf16.msra.mxu0 %v3912
    %4144 = vmatprep.subr.bf16.mxu0 %v3919
    %4145 = vmatpush1.bf16.msra.mxu0 %v3918
    %4146 = vmatprep.subr.bf16.mxu0 %v3925
    %4147 = vmatpush1.bf16.msra.mxu0 %v3924
    %4148 = vmatprep.subr.bf16.mxu0 %v3931
    %4149 = vmatpush1.bf16.msra.mxu0 %v3930
    %4150 = vmatprep.subr.bf16.mxu0 %v3937
    %4151 = vmatpush1.bf16.msra.mxu0 %v3936
    %4152 = vmatprep.subr.bf16.mxu0 %v3943
    %4153 = vmatpush1.bf16.msra.mxu0 %v3942
    %4154 = vmatprep.mubr.bf16.mxu0 %v3557
    %4155 = vmatmul.mubr.bf16.gmra.mrb[0].mxu0 %v3556
    %v4156 = vpop.f32.mrb[0].mxu0
    %v4157 = vadd.f32 0.0, %v4156
    %v4158 = vpop.f32.mrb[0].mxu0
    %v4159 = vadd.f32 0.0, %v4158
    %v4160 = vpop.f32.mrb[0].mxu0
    %v4161 = vpop.f32.mrb[0].mxu0
    %4162 = vdwg.mxu0
    %v4163 = vadd.f32 %v3450, %v4075
    %v4164 = vadd.f32 %v3451, %v4077
    %v4165 = vxor.u32 %v4163, 2147483648
    %v4166 = vxor.u32 %v4164, 2147483648
    %v4167 = vmul.f32 %v4165, 1.442695
    %v4168 = vpow.pop %v4167
    %v4169 = vmul.f32 %v4166, 1.442695
    %v4170 = vpow.pop %v4169
    %v4171 = vadd.f32 %v4168, 1.0
    %v4172 = vadd.f32 %v4170, 1.0
    %v4173 = vrcp.pop %v4171
    %v4174 = vmul.f32 1.0, %v4173
    %v4175 = vrcp.pop %v4172
    %v4176 = vmul.f32 1.0, %v4175
    %v4177 = vadd.f32 %v3452, %v4116
    %v4178 = vadd.f32 %v3453, %v4118
    %v4179 = vxor.u32 %v4177, 2147483648
    %v4180 = vxor.u32 %v4178, 2147483648
    %v4181 = vmul.f32 %v4179, 1.442695
    %v4182 = vpow.pop %v4181
    %v4183 = vmul.f32 %v4180, 1.442695
    %v4184 = vpow.pop %v4183
    %v4185 = vadd.f32 %v4182, 1.0
    %v4186 = vadd.f32 %v4184, 1.0
    %v4187 = vrcp.pop %v4185
    %v4188 = vmul.f32 1.0, %v4187
    %v4189 = vrcp.pop %v4186
    %v4190 = vmul.f32 1.0, %v4189
    %v4191 = vld [vmem:[%s3] sm:$0x3]
    %v4193 = vlaneseq
    %v4194 = vshrl.u32 %v4193, 7
    %v4195 = vsub.s32 0, %v4194
    %v4196 = vrot.slane %v4191, %v4195
    %v4197 = vlaneseq
    %v4198 = vshrl.u32 %v4197, 7
    %v4199 = vsub.s32 1, %v4198
    %v4200 = vrot.slane %v4191, %v4199
    %v4203 = vadd.f32 %v4157, %v4196
    %v4204 = vadd.f32 %v4159, %v4200
    %v4205 = vmul.f32 %v4174, %v4203
    %v4206 = vmul.f32 %v4176, %v4204
    %v4207 = vadd.f32 %v3454, %v4205
    %v4208 = vadd.f32 %v3455, %v4206
    %v4209 = vtanh.pop %v4207
    %v4210 = vtanh.pop %v4208
    %v4211 = vsub.f32 1.0, %v4188
    %v4212 = vsub.f32 1.0, %v4190
    %v4213 = vmul.f32 %v4211, %v4209
    %v4214 = vmul.f32 %v4212, %v4210
    %v4217 = vrot.slane %v3446, 6
    %v4218 = vrot.slane %v3447, 6
    %v4221 = vmul.f32 %v4188, %v4217
    %v4222 = vmul.f32 %v4190, %v4218
    %v4223 = vadd.f32 %v4213, %v4221
    %v4224 = vadd.f32 %v4214, %v4222
    %4225 = vst [vmem:[#allocation3 + $0x10] sm:$0x3] %v4223
    %4226 = vst [vmem:[#allocation3 + $0x18] sm:$0x3] %v4224
    %v4227 = vld [vmem:[#allocation2 + $0x30] sm:$0xc]
    %v4228 = vld [vmem:[#allocation2 + $0x38] sm:$0xc]
    %v4229 = vld [vmem:[#allocation2 + $0x40] sm:$0xc]
    %v4230 = vld [vmem:[#allocation2 + $0x48] sm:$0xc]
    %v4231 = vld [vmem:[#allocation2 + $0x50] sm:$0xc]
    %v4232 = vld [vmem:[#allocation2 + $0x58] sm:$0xc]
    %v4233 = vpack.c.bf16 %v4223, %v4223
    %v4234 = vpack.c.bf16 %v4224, %v4224
    %v4235 = vld [vmem:[#allocation4] sm:$0xff]
    %v4236 = vld [vmem:[#allocation4 + $0x8] sm:$0xff]
    %v4237 = vld [vmem:[#allocation4 + $0x10] sm:$0xff]
    %v4238 = vld [vmem:[#allocation4 + $0x18] sm:$0xff]
    %v4239 = vld [vmem:[#allocation4 + $0x20] sm:$0xff]
    %v4240 = vld [vmem:[#allocation4 + $0x28] sm:$0xff]
    %v4241 = vld [vmem:[#allocation4 + $0x30] sm:$0xff]
    %v4242 = vld [vmem:[#allocation4 + $0x38] sm:$0xff]
    %v4243 = vld [vmem:[#allocation4 + $0x40] sm:$0xff]
    %v4244 = vld [vmem:[#allocation4 + $0x48] sm:$0xff]
    %v4245 = vld [vmem:[#allocation4 + $0x50] sm:$0xff]
    %v4246 = vld [vmem:[#allocation4 + $0x58] sm:$0xff]
    %v4247 = vld [vmem:[#allocation4 + $0x60] sm:$0xff]
    %v4248 = vld [vmem:[#allocation4 + $0x68] sm:$0xff]
    %v4249 = vld [vmem:[#allocation4 + $0x70] sm:$0xff]
    %v4250 = vld [vmem:[#allocation4 + $0x78] sm:$0xff]
    %v4251 = vld [vmem:[#allocation4 + $0x80] sm:$0xff]
    %v4252 = vld [vmem:[#allocation4 + $0x88] sm:$0xff]
    %v4253 = vld [vmem:[#allocation4 + $0x90] sm:$0xff]
    %v4254 = vld [vmem:[#allocation4 + $0x98] sm:$0xff]
    %v4255 = vld [vmem:[#allocation4 + $0xa0] sm:$0xff]
    %v4256 = vld [vmem:[#allocation4 + $0xa8] sm:$0xff]
    %v4257 = vld [vmem:[#allocation4 + $0xb0] sm:$0xff]
    %v4258 = vld [vmem:[#allocation4 + $0xb8] sm:$0xff]
    %v4259 = vld [vmem:[#allocation4 + $0xc0] sm:$0xff]
    %v4260 = vld [vmem:[#allocation4 + $0xc8] sm:$0xff]
    %v4261 = vld [vmem:[#allocation4 + $0xd0] sm:$0xff]
    %v4262 = vld [vmem:[#allocation4 + $0xd8] sm:$0xff]
    %v4263 = vld [vmem:[#allocation4 + $0xe0] sm:$0xff]
    %v4264 = vld [vmem:[#allocation4 + $0xe8] sm:$0xff]
    %v4265 = vld [vmem:[#allocation4 + $0xf0] sm:$0xff]
    %v4266 = vld [vmem:[#allocation4 + $0xf8] sm:$0xff]
    %v4267 = vld [vmem:[#allocation4 + $0x100] sm:$0xff]
    %v4268 = vld [vmem:[#allocation4 + $0x108] sm:$0xff]
    %v4269 = vld [vmem:[#allocation4 + $0x110] sm:$0xff]
    %v4270 = vld [vmem:[#allocation4 + $0x118] sm:$0xff]
    %v4271 = vld [vmem:[#allocation4 + $0x120] sm:$0xff]
    %v4272 = vld [vmem:[#allocation4 + $0x128] sm:$0xff]
    %v4273 = vld [vmem:[#allocation4 + $0x130] sm:$0xff]
    %v4274 = vld [vmem:[#allocation4 + $0x138] sm:$0xff]
    %v4275 = vld [vmem:[#allocation4 + $0x140] sm:$0xff]
    %v4276 = vld [vmem:[#allocation4 + $0x148] sm:$0xff]
    %v4277 = vld [vmem:[#allocation4 + $0x150] sm:$0xff]
    %v4278 = vld [vmem:[#allocation4 + $0x158] sm:$0xff]
    %v4279 = vld [vmem:[#allocation4 + $0x160] sm:$0xff]
    %v4280 = vld [vmem:[#allocation4 + $0x168] sm:$0xff]
    %v4281 = vld [vmem:[#allocation4 + $0x170] sm:$0xff]
    %v4282 = vld [vmem:[#allocation4 + $0x178] sm:$0xff]
    %v4283 = vld [vmem:[#allocation4 + $0x180] sm:$0xff]
    %v4284 = vld [vmem:[#allocation4 + $0x188] sm:$0xff]
    %v4285 = vld [vmem:[#allocation4 + $0x190] sm:$0xff]
    %v4286 = vld [vmem:[#allocation4 + $0x198] sm:$0xff]
    %v4287 = vld [vmem:[#allocation4 + $0x1a0] sm:$0xff]
    %v4288 = vld [vmem:[#allocation4 + $0x1a8] sm:$0xff]
    %v4289 = vld [vmem:[#allocation4 + $0x1b0] sm:$0xff]
    %v4290 = vld [vmem:[#allocation4 + $0x1b8] sm:$0xff]
    %v4291 = vld [vmem:[#allocation4 + $0x1c0] sm:$0xff]
    %v4292 = vld [vmem:[#allocation4 + $0x1c8] sm:$0xff]
    %v4293 = vld [vmem:[#allocation4 + $0x1d0] sm:$0xff]
    %v4294 = vld [vmem:[#allocation4 + $0x1d8] sm:$0xff]
    %v4295 = vld [vmem:[#allocation4 + $0x1e0] sm:$0xff]
    %v4296 = vld [vmem:[#allocation4 + $0x1e8] sm:$0xff]
    %v4297 = vld [vmem:[#allocation4 + $0x1f0] sm:$0xff]
    %v4298 = vld [vmem:[#allocation4 + $0x1f8] sm:$0xff]
    %v4299 = vld [vmem:[#allocation4 + $0x200] sm:$0xff]
    %v4300 = vld [vmem:[#allocation4 + $0x208] sm:$0xff]
    %v4301 = vld [vmem:[#allocation4 + $0x210] sm:$0xff]
    %v4302 = vld [vmem:[#allocation4 + $0x218] sm:$0xff]
    %v4303 = vld [vmem:[#allocation4 + $0x220] sm:$0xff]
    %v4304 = vld [vmem:[#allocation4 + $0x228] sm:$0xff]
    %v4305 = vld [vmem:[#allocation4 + $0x230] sm:$0xff]
    %v4306 = vld [vmem:[#allocation4 + $0x238] sm:$0xff]
    %v4307 = vld [vmem:[#allocation4 + $0x240] sm:$0xff]
    %v4308 = vld [vmem:[#allocation4 + $0x248] sm:$0xff]
    %v4309 = vld [vmem:[#allocation4 + $0x250] sm:$0xff]
    %v4310 = vld [vmem:[#allocation4 + $0x258] sm:$0xff]
    %v4311 = vld [vmem:[#allocation4 + $0x260] sm:$0xff]
    %v4312 = vld [vmem:[#allocation4 + $0x268] sm:$0xff]
    %v4313 = vld [vmem:[#allocation4 + $0x270] sm:$0xff]
    %v4314 = vld [vmem:[#allocation4 + $0x278] sm:$0xff]
    %v4315 = vld [vmem:[#allocation4 + $0x280] sm:$0xff]
    %v4316 = vld [vmem:[#allocation4 + $0x288] sm:$0xff]
    %v4317 = vld [vmem:[#allocation4 + $0x290] sm:$0xff]
    %v4318 = vld [vmem:[#allocation4 + $0x298] sm:$0xff]
    %v4319 = vld [vmem:[#allocation4 + $0x2a0] sm:$0xff]
    %v4320 = vld [vmem:[#allocation4 + $0x2a8] sm:$0xff]
    %v4321 = vld [vmem:[#allocation4 + $0x2b0] sm:$0xff]
    %v4322 = vld [vmem:[#allocation4 + $0x2b8] sm:$0xff]
    %v4323 = vld [vmem:[#allocation4 + $0x2c0] sm:$0xff]
    %v4324 = vld [vmem:[#allocation4 + $0x2c8] sm:$0xff]
    %v4325 = vld [vmem:[#allocation4 + $0x2d0] sm:$0xff]
    %v4326 = vld [vmem:[#allocation4 + $0x2d8] sm:$0xff]
    %v4327 = vld [vmem:[#allocation4 + $0x2e0] sm:$0xff]
    %v4328 = vld [vmem:[#allocation4 + $0x2e8] sm:$0xff]
    %v4329 = vld [vmem:[#allocation4 + $0x2f0] sm:$0xff]
    %v4330 = vld [vmem:[#allocation4 + $0x2f8] sm:$0xff]
    %v4427 = vunpack.c.l.b16 %v4235
    %v4428 = vunpack.c.h.b16 %v4235
    %v4429 = vunpack.c.l.b16 %v4236
    %v4430 = vunpack.c.h.b16 %v4236
    %v4431 = vunpack.c.l.b16 %v4237
    %v4432 = vunpack.c.h.b16 %v4237
    %v4433 = vunpack.c.l.b16 %v4238
    %v4434 = vunpack.c.h.b16 %v4238
    %v4435 = vunpack.c.l.b16 %v4239
    %v4436 = vunpack.c.h.b16 %v4239
    %v4437 = vunpack.c.l.b16 %v4240
    %v4438 = vunpack.c.h.b16 %v4240
    %v4439 = vunpack.c.l.b16 %v4241
    %v4440 = vunpack.c.h.b16 %v4241
    %v4441 = vunpack.c.l.b16 %v4242
    %v4442 = vunpack.c.h.b16 %v4242
    %v4443 = vunpack.c.l.b16 %v4243
    %v4444 = vunpack.c.h.b16 %v4243
    %v4445 = vunpack.c.l.b16 %v4244
    %v4446 = vunpack.c.h.b16 %v4244
    %v4447 = vunpack.c.l.b16 %v4245
    %v4448 = vunpack.c.h.b16 %v4245
    %v4449 = vunpack.c.l.b16 %v4246
    %v4450 = vunpack.c.h.b16 %v4246
    %v4451 = vunpack.c.l.b16 %v4247
    %v4452 = vunpack.c.h.b16 %v4247
    %v4453 = vunpack.c.l.b16 %v4248
    %v4454 = vunpack.c.h.b16 %v4248
    %v4455 = vunpack.c.l.b16 %v4249
    %v4456 = vunpack.c.h.b16 %v4249
    %v4457 = vunpack.c.l.b16 %v4250
    %v4458 = vunpack.c.h.b16 %v4250
    %v4459 = vunpack.c.l.b16 %v4251
    %v4460 = vunpack.c.h.b16 %v4251
    %v4461 = vunpack.c.l.b16 %v4252
    %v4462 = vunpack.c.h.b16 %v4252
    %v4463 = vunpack.c.l.b16 %v4253
    %v4464 = vunpack.c.h.b16 %v4253
    %v4465 = vunpack.c.l.b16 %v4254
    %v4466 = vunpack.c.h.b16 %v4254
    %v4467 = vunpack.c.l.b16 %v4255
    %v4468 = vunpack.c.h.b16 %v4255
    %v4469 = vunpack.c.l.b16 %v4256
    %v4470 = vunpack.c.h.b16 %v4256
    %v4471 = vunpack.c.l.b16 %v4257
    %v4472 = vunpack.c.h.b16 %v4257
    %v4473 = vunpack.c.l.b16 %v4258
    %v4474 = vunpack.c.h.b16 %v4258
    %v4475 = vunpack.c.l.b16 %v4259
    %v4476 = vunpack.c.h.b16 %v4259
    %v4477 = vunpack.c.l.b16 %v4260
    %v4478 = vunpack.c.h.b16 %v4260
    %v4479 = vunpack.c.l.b16 %v4261
    %v4480 = vunpack.c.h.b16 %v4261
    %v4481 = vunpack.c.l.b16 %v4262
    %v4482 = vunpack.c.h.b16 %v4262
    %v4483 = vunpack.c.l.b16 %v4263
    %v4484 = vunpack.c.h.b16 %v4263
    %v4485 = vunpack.c.l.b16 %v4264
    %v4486 = vunpack.c.h.b16 %v4264
    %v4487 = vunpack.c.l.b16 %v4265
    %v4488 = vunpack.c.h.b16 %v4265
    %v4489 = vunpack.c.l.b16 %v4266
    %v4490 = vunpack.c.h.b16 %v4266
    %v4491 = vunpack.c.l.b16 %v4267
    %v4492 = vunpack.c.h.b16 %v4267
    %v4493 = vunpack.c.l.b16 %v4268
    %v4494 = vunpack.c.h.b16 %v4268
    %v4495 = vunpack.c.l.b16 %v4269
    %v4496 = vunpack.c.h.b16 %v4269
    %v4497 = vunpack.c.l.b16 %v4270
    %v4498 = vunpack.c.h.b16 %v4270
    %v4499 = vunpack.c.l.b16 %v4271
    %v4500 = vunpack.c.h.b16 %v4271
    %v4501 = vunpack.c.l.b16 %v4272
    %v4502 = vunpack.c.h.b16 %v4272
    %v4503 = vunpack.c.l.b16 %v4273
    %v4504 = vunpack.c.h.b16 %v4273
    %v4505 = vunpack.c.l.b16 %v4274
    %v4506 = vunpack.c.h.b16 %v4274
    %v4507 = vunpack.c.l.b16 %v4275
    %v4508 = vunpack.c.h.b16 %v4275
    %v4509 = vunpack.c.l.b16 %v4276
    %v4510 = vunpack.c.h.b16 %v4276
    %v4511 = vunpack.c.l.b16 %v4277
    %v4512 = vunpack.c.h.b16 %v4277
    %v4513 = vunpack.c.l.b16 %v4278
    %v4514 = vunpack.c.h.b16 %v4278
    %v4515 = vunpack.c.l.b16 %v4279
    %v4516 = vunpack.c.h.b16 %v4279
    %v4517 = vunpack.c.l.b16 %v4280
    %v4518 = vunpack.c.h.b16 %v4280
    %v4519 = vunpack.c.l.b16 %v4281
    %v4520 = vunpack.c.h.b16 %v4281
    %v4521 = vunpack.c.l.b16 %v4282
    %v4522 = vunpack.c.h.b16 %v4282
    %v4523 = vunpack.c.l.b16 %v4283
    %v4524 = vunpack.c.h.b16 %v4283
    %v4525 = vunpack.c.l.b16 %v4284
    %v4526 = vunpack.c.h.b16 %v4284
    %v4527 = vunpack.c.l.b16 %v4285
    %v4528 = vunpack.c.h.b16 %v4285
    %v4529 = vunpack.c.l.b16 %v4286
    %v4530 = vunpack.c.h.b16 %v4286
    %v4531 = vunpack.c.l.b16 %v4287
    %v4532 = vunpack.c.h.b16 %v4287
    %v4533 = vunpack.c.l.b16 %v4288
    %v4534 = vunpack.c.h.b16 %v4288
    %v4535 = vunpack.c.l.b16 %v4289
    %v4536 = vunpack.c.h.b16 %v4289
    %v4537 = vunpack.c.l.b16 %v4290
    %v4538 = vunpack.c.h.b16 %v4290
    %v4539 = vunpack.c.l.b16 %v4291
    %v4540 = vunpack.c.h.b16 %v4291
    %v4541 = vunpack.c.l.b16 %v4292
    %v4542 = vunpack.c.h.b16 %v4292
    %v4543 = vunpack.c.l.b16 %v4293
    %v4544 = vunpack.c.h.b16 %v4293
    %v4545 = vunpack.c.l.b16 %v4294
    %v4546 = vunpack.c.h.b16 %v4294
    %v4547 = vunpack.c.l.b16 %v4295
    %v4548 = vunpack.c.h.b16 %v4295
    %v4549 = vunpack.c.l.b16 %v4296
    %v4550 = vunpack.c.h.b16 %v4296
    %v4551 = vunpack.c.l.b16 %v4297
    %v4552 = vunpack.c.h.b16 %v4297
    %v4553 = vunpack.c.l.b16 %v4298
    %v4554 = vunpack.c.h.b16 %v4298
    %v4555 = vunpack.c.l.b16 %v4299
    %v4556 = vunpack.c.h.b16 %v4299
    %v4557 = vunpack.c.l.b16 %v4300
    %v4558 = vunpack.c.h.b16 %v4300
    %v4559 = vunpack.c.l.b16 %v4301
    %v4560 = vunpack.c.h.b16 %v4301
    %v4561 = vunpack.c.l.b16 %v4302
    %v4562 = vunpack.c.h.b16 %v4302
    %v4563 = vunpack.c.l.b16 %v4303
    %v4564 = vunpack.c.h.b16 %v4303
    %v4565 = vunpack.c.l.b16 %v4304
    %v4566 = vunpack.c.h.b16 %v4304
    %v4567 = vunpack.c.l.b16 %v4305
    %v4568 = vunpack.c.h.b16 %v4305
    %v4569 = vunpack.c.l.b16 %v4306
    %v4570 = vunpack.c.h.b16 %v4306
    %v4571 = vunpack.c.l.b16 %v4307
    %v4572 = vunpack.c.h.b16 %v4307
    %v4573 = vunpack.c.l.b16 %v4308
    %v4574 = vunpack.c.h.b16 %v4308
    %v4575 = vunpack.c.l.b16 %v4309
    %v4576 = vunpack.c.h.b16 %v4309
    %v4577 = vunpack.c.l.b16 %v4310
    %v4578 = vunpack.c.h.b16 %v4310
    %v4579 = vunpack.c.l.b16 %v4311
    %v4580 = vunpack.c.h.b16 %v4311
    %v4581 = vunpack.c.l.b16 %v4312
    %v4582 = vunpack.c.h.b16 %v4312
    %v4583 = vunpack.c.l.b16 %v4313
    %v4584 = vunpack.c.h.b16 %v4313
    %v4585 = vunpack.c.l.b16 %v4314
    %v4586 = vunpack.c.h.b16 %v4314
    %v4587 = vunpack.c.l.b16 %v4315
    %v4588 = vunpack.c.h.b16 %v4315
    %v4589 = vunpack.c.l.b16 %v4316
    %v4590 = vunpack.c.h.b16 %v4316
    %v4591 = vunpack.c.l.b16 %v4317
    %v4592 = vunpack.c.h.b16 %v4317
    %v4593 = vunpack.c.l.b16 %v4318
    %v4594 = vunpack.c.h.b16 %v4318
    %v4595 = vunpack.c.l.b16 %v4319
    %v4596 = vunpack.c.h.b16 %v4319
    %v4597 = vunpack.c.l.b16 %v4320
    %v4598 = vunpack.c.h.b16 %v4320
    %v4599 = vunpack.c.l.b16 %v4321
    %v4600 = vunpack.c.h.b16 %v4321
    %v4601 = vunpack.c.l.b16 %v4322
    %v4602 = vunpack.c.h.b16 %v4322
    %v4603 = vunpack.c.l.b16 %v4323
    %v4604 = vunpack.c.h.b16 %v4323
    %v4605 = vunpack.c.l.b16 %v4324
    %v4606 = vunpack.c.h.b16 %v4324
    %v4607 = vunpack.c.l.b16 %v4325
    %v4608 = vunpack.c.h.b16 %v4325
    %v4609 = vunpack.c.l.b16 %v4326
    %v4610 = vunpack.c.h.b16 %v4326
    %v4611 = vunpack.c.l.b16 %v4327
    %v4612 = vunpack.c.h.b16 %v4327
    %v4613 = vunpack.c.l.b16 %v4328
    %v4614 = vunpack.c.h.b16 %v4328
    %v4615 = vunpack.c.l.b16 %v4329
    %v4616 = vunpack.c.h.b16 %v4329
    %v4617 = vunpack.c.l.b16 %v4330
    %v4618 = vunpack.c.h.b16 %v4330
    %v4619 = vpack.c.b16 %v4433, %v4427
    %v4620 = vpack.c.b16 %v4434, %v4428
    %v4621 = vpack.c.b16 %v4435, %v4429
    %v4622 = vpack.c.b16 %v4436, %v4430
    %v4623 = vpack.c.b16 %v4437, %v4431
    %v4624 = vpack.c.b16 %v4438, %v4432
    %v4625 = vpack.c.b16 %v4445, %v4439
    %v4626 = vpack.c.b16 %v4446, %v4440
    %v4627 = vpack.c.b16 %v4447, %v4441
    %v4628 = vpack.c.b16 %v4448, %v4442
    %v4629 = vpack.c.b16 %v4449, %v4443
    %v4630 = vpack.c.b16 %v4450, %v4444
    %v4631 = vpack.c.b16 %v4457, %v4451
    %v4632 = vpack.c.b16 %v4458, %v4452
    %v4633 = vpack.c.b16 %v4459, %v4453
    %v4634 = vpack.c.b16 %v4460, %v4454
    %v4635 = vpack.c.b16 %v4461, %v4455
    %v4636 = vpack.c.b16 %v4462, %v4456
    %v4637 = vpack.c.b16 %v4469, %v4463
    %v4638 = vpack.c.b16 %v4470, %v4464
    %v4639 = vpack.c.b16 %v4471, %v4465
    %v4640 = vpack.c.b16 %v4472, %v4466
    %v4641 = vpack.c.b16 %v4473, %v4467
    %v4642 = vpack.c.b16 %v4474, %v4468
    %v4643 = vpack.c.b16 %v4481, %v4475
    %v4644 = vpack.c.b16 %v4482, %v4476
    %v4645 = vpack.c.b16 %v4483, %v4477
    %v4646 = vpack.c.b16 %v4484, %v4478
    %v4647 = vpack.c.b16 %v4485, %v4479
    %v4648 = vpack.c.b16 %v4486, %v4480
    %v4649 = vpack.c.b16 %v4493, %v4487
    %v4650 = vpack.c.b16 %v4494, %v4488
    %v4651 = vpack.c.b16 %v4495, %v4489
    %v4652 = vpack.c.b16 %v4496, %v4490
    %v4653 = vpack.c.b16 %v4497, %v4491
    %v4654 = vpack.c.b16 %v4498, %v4492
    %v4655 = vpack.c.b16 %v4505, %v4499
    %v4656 = vpack.c.b16 %v4506, %v4500
    %v4657 = vpack.c.b16 %v4507, %v4501
    %v4658 = vpack.c.b16 %v4508, %v4502
    %v4659 = vpack.c.b16 %v4509, %v4503
    %v4660 = vpack.c.b16 %v4510, %v4504
    %v4661 = vpack.c.b16 %v4517, %v4511
    %v4662 = vpack.c.b16 %v4518, %v4512
    %v4663 = vpack.c.b16 %v4519, %v4513
    %v4664 = vpack.c.b16 %v4520, %v4514
    %v4665 = vpack.c.b16 %v4521, %v4515
    %v4666 = vpack.c.b16 %v4522, %v4516
    %v4667 = vpack.c.b16 %v4529, %v4523
    %v4668 = vpack.c.b16 %v4530, %v4524
    %v4669 = vpack.c.b16 %v4531, %v4525
    %v4670 = vpack.c.b16 %v4532, %v4526
    %v4671 = vpack.c.b16 %v4533, %v4527
    %v4672 = vpack.c.b16 %v4534, %v4528
    %v4673 = vpack.c.b16 %v4541, %v4535
    %v4674 = vpack.c.b16 %v4542, %v4536
    %v4675 = vpack.c.b16 %v4543, %v4537
    %v4676 = vpack.c.b16 %v4544, %v4538
    %v4677 = vpack.c.b16 %v4545, %v4539
    %v4678 = vpack.c.b16 %v4546, %v4540
    %v4679 = vpack.c.b16 %v4553, %v4547
    %v4680 = vpack.c.b16 %v4554, %v4548
    %v4681 = vpack.c.b16 %v4555, %v4549
    %v4682 = vpack.c.b16 %v4556, %v4550
    %v4683 = vpack.c.b16 %v4557, %v4551
    %v4684 = vpack.c.b16 %v4558, %v4552
    %v4685 = vpack.c.b16 %v4565, %v4559
    %v4686 = vpack.c.b16 %v4566, %v4560
    %v4687 = vpack.c.b16 %v4567, %v4561
    %v4688 = vpack.c.b16 %v4568, %v4562
    %v4689 = vpack.c.b16 %v4569, %v4563
    %v4690 = vpack.c.b16 %v4570, %v4564
    %v4691 = vpack.c.b16 %v4577, %v4571
    %v4692 = vpack.c.b16 %v4578, %v4572
    %v4693 = vpack.c.b16 %v4579, %v4573
    %v4694 = vpack.c.b16 %v4580, %v4574
    %v4695 = vpack.c.b16 %v4581, %v4575
    %v4696 = vpack.c.b16 %v4582, %v4576
    %v4697 = vpack.c.b16 %v4589, %v4583
    %v4698 = vpack.c.b16 %v4590, %v4584
    %v4699 = vpack.c.b16 %v4591, %v4585
    %v4700 = vpack.c.b16 %v4592, %v4586
    %v4701 = vpack.c.b16 %v4593, %v4587
    %v4702 = vpack.c.b16 %v4594, %v4588
    %v4703 = vpack.c.b16 %v4601, %v4595
    %v4704 = vpack.c.b16 %v4602, %v4596
    %v4705 = vpack.c.b16 %v4603, %v4597
    %v4706 = vpack.c.b16 %v4604, %v4598
    %v4707 = vpack.c.b16 %v4605, %v4599
    %v4708 = vpack.c.b16 %v4606, %v4600
    %v4709 = vpack.c.b16 %v4613, %v4607
    %v4710 = vpack.c.b16 %v4614, %v4608
    %v4711 = vpack.c.b16 %v4615, %v4609
    %v4712 = vpack.c.b16 %v4616, %v4610
    %v4713 = vpack.c.b16 %v4617, %v4611
    %v4714 = vpack.c.b16 %v4618, %v4612
    %4811 = vmatprep.subr.bf16.mxu0 %v4620
    %4812 = vmatpush1.bf16.msra.mxu0 %v4619
    %4813 = vmatprep.subr.bf16.mxu0 %v4626
    %4814 = vmatpush1.bf16.msra.mxu0 %v4625
    %4815 = vmatprep.subr.bf16.mxu0 %v4632
    %4816 = vmatpush1.bf16.msra.mxu0 %v4631
    %4817 = vmatprep.subr.bf16.mxu0 %v4638
    %4818 = vmatpush1.bf16.msra.mxu0 %v4637
    %4819 = vmatprep.subr.bf16.mxu0 %v4644
    %4820 = vmatpush1.bf16.msra.mxu0 %v4643
    %4821 = vmatprep.subr.bf16.mxu0 %v4650
    %4822 = vmatpush1.bf16.msra.mxu0 %v4649
    %4823 = vmatprep.subr.bf16.mxu0 %v4656
    %4824 = vmatpush1.bf16.msra.mxu0 %v4655
    %4825 = vmatprep.subr.bf16.mxu0 %v4662
    %4826 = vmatpush1.bf16.msra.mxu0 %v4661
    %4827 = vmatprep.subr.bf16.mxu0 %v4668
    %4828 = vmatpush1.bf16.msra.mxu0 %v4667
    %4829 = vmatprep.subr.bf16.mxu0 %v4674
    %4830 = vmatpush1.bf16.msra.mxu0 %v4673
    %4831 = vmatprep.subr.bf16.mxu0 %v4680
    %4832 = vmatpush1.bf16.msra.mxu0 %v4679
    %4833 = vmatprep.subr.bf16.mxu0 %v4686
    %4834 = vmatpush1.bf16.msra.mxu0 %v4685
    %4835 = vmatprep.subr.bf16.mxu0 %v4692
    %4836 = vmatpush1.bf16.msra.mxu0 %v4691
    %4837 = vmatprep.subr.bf16.mxu0 %v4698
    %4838 = vmatpush1.bf16.msra.mxu0 %v4697
    %4839 = vmatprep.subr.bf16.mxu0 %v4704
    %4840 = vmatpush1.bf16.msra.mxu0 %v4703
    %4841 = vmatprep.subr.bf16.mxu0 %v4710
    %4842 = vmatpush1.bf16.msra.mxu0 %v4709
    %4843 = vmatprep.mubr.bf16.mxu0 %v4234
    %4844 = vmatmul.mubr.bf16.gmra.mrb[0].mxu0 %v4233
    %v4845 = vpop.f32.mrb[0].mxu0
    %v4846 = vadd.f32 0.0, %v4845
    %v4847 = vpop.f32.mrb[0].mxu0
    %v4848 = vadd.f32 0.0, %v4847
    %v4849 = vpop.f32.mrb[0].mxu0
    %v4850 = vpop.f32.mrb[0].mxu0
    %4851 = vdwg.mxu0
    %4852 = vmatprep.subr.bf16.mxu0 %v4622
    %4853 = vmatpush1.bf16.msra.mxu0 %v4621
    %4854 = vmatprep.subr.bf16.mxu0 %v4628
    %4855 = vmatpush1.bf16.msra.mxu0 %v4627
    %4856 = vmatprep.subr.bf16.mxu0 %v4634
    %4857 = vmatpush1.bf16.msra.mxu0 %v4633
    %4858 = vmatprep.subr.bf16.mxu0 %v4640
    %4859 = vmatpush1.bf16.msra.mxu0 %v4639
    %4860 = vmatprep.subr.bf16.mxu0 %v4646
    %4861 = vmatpush1.bf16.msra.mxu0 %v4645
    %4862 = vmatprep.subr.bf16.mxu0 %v4652
    %4863 = vmatpush1.bf16.msra.mxu0 %v4651
    %4864 = vmatprep.subr.bf16.mxu0 %v4658
    %4865 = vmatpush1.bf16.msra.mxu0 %v4657
    %4866 = vmatprep.subr.bf16.mxu0 %v4664
    %4867 = vmatpush1.bf16.msra.mxu0 %v4663
    %4868 = vmatprep.subr.bf16.mxu0 %v4670
    %4869 = vmatpush1.bf16.msra.mxu0 %v4669
    %4870 = vmatprep.subr.bf16.mxu0 %v4676
    %4871 = vmatpush1.bf16.msra.mxu0 %v4675
    %4872 = vmatprep.subr.bf16.mxu0 %v4682
    %4873 = vmatpush1.bf16.msra.mxu0 %v4681
    %4874 = vmatprep.subr.bf16.mxu0 %v4688
    %4875 = vmatpush1.bf16.msra.mxu0 %v4687
    %4876 = vmatprep.subr.bf16.mxu0 %v4694
    %4877 = vmatpush1.bf16.msra.mxu0 %v4693
    %4878 = vmatprep.subr.bf16.mxu0 %v4700
    %4879 = vmatpush1.bf16.msra.mxu0 %v4699
    %4880 = vmatprep.subr.bf16.mxu0 %v4706
    %4881 = vmatpush1.bf16.msra.mxu0 %v4705
    %4882 = vmatprep.subr.bf16.mxu0 %v4712
    %4883 = vmatpush1.bf16.msra.mxu0 %v4711
    %4884 = vmatprep.mubr.bf16.mxu0 %v4234
    %4885 = vmatmul.mubr.bf16.gmra.mrb[0].mxu0 %v4233
    %v4886 = vpop.f32.mrb[0].mxu0
    %v4887 = vadd.f32 0.0, %v4886
    %v4888 = vpop.f32.mrb[0].mxu0
    %v4889 = vadd.f32 0.0, %v4888
    %v4890 = vpop.f32.mrb[0].mxu0
    %v4891 = vpop.f32.mrb[0].mxu0
    %4892 = vdwg.mxu0
    %4893 = vmatprep.subr.bf16.mxu0 %v4624
    %4894 = vmatpush1.bf16.msra.mxu0 %v4623
    %4895 = vmatprep.subr.bf16.mxu0 %v4630
    %4896 = vmatpush1.bf16.msra.mxu0 %v4629
    %4897 = vmatprep.subr.bf16.mxu0 %v4636
    %4898 = vmatpush1.bf16.msra.mxu0 %v4635
    %4899 = vmatprep.subr.bf16.mxu0 %v4642
    %4900 = vmatpush1.bf16.msra.mxu0 %v4641
    %4901 = vmatprep.subr.bf16.mxu0 %v4648
    %4902 = vmatpush1.bf16.msra.mxu0 %v4647
    %4903 = vmatprep.subr.bf16.mxu0 %v4654
    %4904 = vmatpush1.bf16.msra.mxu0 %v4653
    %4905 = vmatprep.subr.bf16.mxu0 %v4660
    %4906 = vmatpush1.bf16.msra.mxu0 %v4659
    %4907 = vmatprep.subr.bf16.mxu0 %v4666
    %4908 = vmatpush1.bf16.msra.mxu0 %v4665
    %4909 = vmatprep.subr.bf16.mxu0 %v4672
    %4910 = vmatpush1.bf16.msra.mxu0 %v4671
    %4911 = vmatprep.subr.bf16.mxu0 %v4678
    %4912 = vmatpush1.bf16.msra.mxu0 %v4677
    %4913 = vmatprep.subr.bf16.mxu0 %v4684
    %4914 = vmatpush1.bf16.msra.mxu0 %v4683
    %4915 = vmatprep.subr.bf16.mxu0 %v4690
    %4916 = vmatpush1.bf16.msra.mxu0 %v4689
    %4917 = vmatprep.subr.bf16.mxu0 %v4696
    %4918 = vmatpush1.bf16.msra.mxu0 %v4695
    %4919 = vmatprep.subr.bf16.mxu0 %v4702
    %4920 = vmatpush1.bf16.msra.mxu0 %v4701
    %4921 = vmatprep.subr.bf16.mxu0 %v4708
    %4922 = vmatpush1.bf16.msra.mxu0 %v4707
    %4923 = vmatprep.subr.bf16.mxu0 %v4714
    %4924 = vmatpush1.bf16.msra.mxu0 %v4713
    %4925 = vmatprep.mubr.bf16.mxu0 %v4234
    %4926 = vmatmul.mubr.bf16.gmra.mrb[0].mxu0 %v4233
    %v4927 = vpop.f32.mrb[0].mxu0
    %v4928 = vadd.f32 0.0, %v4927
    %v4929 = vpop.f32.mrb[0].mxu0
    %v4930 = vadd.f32 0.0, %v4929
    %v4931 = vpop.f32.mrb[0].mxu0
    %v4932 = vpop.f32.mrb[0].mxu0
    %4933 = vdwg.mxu0
    %v4936 = vrot.slane %v4846, 6
    %v4937 = vrot.slane %v4848, 6
    %v4940 = vadd.f32 %v4227, %v4936
    %v4941 = vadd.f32 %v4228, %v4937
    %v4942 = vxor.u32 %v4940, 2147483648
    %v4943 = vxor.u32 %v4941, 2147483648
    %v4944 = vmul.f32 %v4942, 1.442695
    %v4945 = vpow.pop %v4944
    %v4946 = vmul.f32 %v4943, 1.442695
    %v4947 = vpow.pop %v4946
    %v4948 = vadd.f32 %v4945, 1.0
    %v4949 = vadd.f32 %v4947, 1.0
    %v4950 = vrcp.pop %v4948
    %v4951 = vmul.f32 1.0, %v4950
    %v4952 = vrcp.pop %v4949
    %v4953 = vmul.f32 1.0, %v4952
    %v4956 = vrot.slane %v4887, 6
    %v4957 = vrot.slane %v4889, 6
    %v4960 = vadd.f32 %v4229, %v4956
    %v4961 = vadd.f32 %v4230, %v4957
    %v4962 = vxor.u32 %v4960, 2147483648
    %v4963 = vxor.u32 %v4961, 2147483648
    %v4964 = vmul.f32 %v4962, 1.442695
    %v4965 = vpow.pop %v4964
    %v4966 = vmul.f32 %v4963, 1.442695
    %v4967 = vpow.pop %v4966
    %v4968 = vadd.f32 %v4965, 1.0
    %v4969 = vadd.f32 %v4967, 1.0
    %v4970 = vrcp.pop %v4968
    %v4971 = vmul.f32 1.0, %v4970
    %v4972 = vrcp.pop %v4969
    %v4973 = vmul.f32 1.0, %v4972
    %v4974 = vld [vmem:[%s3] sm:$0x3]
    %v4976 = vlaneseq
    %v4977 = vshrl.u32 %v4976, 7
    %v4978 = vsub.s32 0, %v4977
    %v4979 = vrot.slane %v4974, %v4978
    %v4980 = vlaneseq
    %v4981 = vshrl.u32 %v4980, 7
    %v4982 = vsub.s32 1, %v4981
    %v4983 = vrot.slane %v4974, %v4982
    %v4986 = vadd.f32 %v4928, %v4979
    %v4987 = vadd.f32 %v4930, %v4983
    %v4990 = vrot.slane %v4986, 6
    %v4991 = vrot.slane %v4987, 6
    %v4994 = vmul.f32 %v4951, %v4990
    %v4995 = vmul.f32 %v4953, %v4991
    %v4996 = vadd.f32 %v4231, %v4994
    %v4997 = vadd.f32 %v4232, %v4995
    %v4998 = vtanh.pop %v4996
    %v4999 = vtanh.pop %v4997
    %v5000 = vsub.f32 1.0, %v4971
    %v5001 = vsub.f32 1.0, %v4973
    %v5002 = vmul.f32 %v5000, %v4998
    %v5003 = vmul.f32 %v5001, %v4999
    %v5006 = vrot.slane %v4223, 6
    %v5007 = vrot.slane %v4224, 6
    %v5010 = vmul.f32 %v4971, %v5006
    %v5011 = vmul.f32 %v4973, %v5007
    %v5012 = vadd.f32 %v5002, %v5010
    %v5013 = vadd.f32 %v5003, %v5011
    %5014 = vst [vmem:[#allocation3 + $0x10] sm:$0xc] %v5012
    %5015 = vst [vmem:[#allocation3 + $0x18] sm:$0xc] %v5013
    %v5016 = vld [vmem:[#allocation2 + $0x30] sm:$0x30]
    %v5017 = vld [vmem:[#allocation2 + $0x38] sm:$0x30]
    %v5018 = vld [vmem:[#allocation2 + $0x40] sm:$0x30]
    %v5019 = vld [vmem:[#allocation2 + $0x48] sm:$0x30]
    %v5020 = vld [vmem:[#allocation2 + $0x50] sm:$0x30]
    %v5021 = vld [vmem:[#allocation2 + $0x58] sm:$0x30]
    %v5022 = vpack.c.bf16 %v5012, %v5012
    %v5023 = vpack.c.bf16 %v5013, %v5013
    %v5024 = vld [vmem:[#allocation4] sm:$0xff]
    %v5025 = vld [vmem:[#allocation4 + $0x8] sm:$0xff]
    %v5026 = vld [vmem:[#allocation4 + $0x10] sm:$0xff]
    %v5027 = vld [vmem:[#allocation4 + $0x18] sm:$0xff]
    %v5028 = vld [vmem:[#allocation4 + $0x20] sm:$0xff]
    %v5029 = vld [vmem:[#allocation4 + $0x28] sm:$0xff]
    %v5030 = vld [vmem:[#allocation4 + $0x30] sm:$0xff]
    %v5031 = vld [vmem:[#allocation4 + $0x38] sm:$0xff]
    %v5032 = vld [vmem:[#allocation4 + $0x40] sm:$0xff]
    %v5033 = vld [vmem:[#allocation4 + $0x48] sm:$0xff]
    %v5034 = vld [vmem:[#allocation4 + $0x50] sm:$0xff]
    %v5035 = vld [vmem:[#allocation4 + $0x58] sm:$0xff]
    %v5036 = vld [vmem:[#allocation4 + $0x60] sm:$0xff]
    %v5037 = vld [vmem:[#allocation4 + $0x68] sm:$0xff]
    %v5038 = vld [vmem:[#allocation4 + $0x70] sm:$0xff]
    %v5039 = vld [vmem:[#allocation4 + $0x78] sm:$0xff]
    %v5040 = vld [vmem:[#allocation4 + $0x80] sm:$0xff]
    %v5041 = vld [vmem:[#allocation4 + $0x88] sm:$0xff]
    %v5042 = vld [vmem:[#allocation4 + $0x90] sm:$0xff]
    %v5043 = vld [vmem:[#allocation4 + $0x98] sm:$0xff]
    %v5044 = vld [vmem:[#allocation4 + $0xa0] sm:$0xff]
    %v5045 = vld [vmem:[#allocation4 + $0xa8] sm:$0xff]
    %v5046 = vld [vmem:[#allocation4 + $0xb0] sm:$0xff]
    %v5047 = vld [vmem:[#allocation4 + $0xb8] sm:$0xff]
    %v5048 = vld [vmem:[#allocation4 + $0xc0] sm:$0xff]
    %v5049 = vld [vmem:[#allocation4 + $0xc8] sm:$0xff]
    %v5050 = vld [vmem:[#allocation4 + $0xd0] sm:$0xff]
    %v5051 = vld [vmem:[#allocation4 + $0xd8] sm:$0xff]
    %v5052 = vld [vmem:[#allocation4 + $0xe0] sm:$0xff]
    %v5053 = vld [vmem:[#allocation4 + $0xe8] sm:$0xff]
    %v5054 = vld [vmem:[#allocation4 + $0xf0] sm:$0xff]
    %v5055 = vld [vmem:[#allocation4 + $0xf8] sm:$0xff]
    %v5056 = vld [vmem:[#allocation4 + $0x100] sm:$0xff]
    %v5057 = vld [vmem:[#allocation4 + $0x108] sm:$0xff]
    %v5058 = vld [vmem:[#allocation4 + $0x110] sm:$0xff]
    %v5059 = vld [vmem:[#allocation4 + $0x118] sm:$0xff]
    %v5060 = vld [vmem:[#allocation4 + $0x120] sm:$0xff]
    %v5061 = vld [vmem:[#allocation4 + $0x128] sm:$0xff]
    %v5062 = vld [vmem:[#allocation4 + $0x130] sm:$0xff]
    %v5063 = vld [vmem:[#allocation4 + $0x138] sm:$0xff]
    %v5064 = vld [vmem:[#allocation4 + $0x140] sm:$0xff]
    %v5065 = vld [vmem:[#allocation4 + $0x148] sm:$0xff]
    %v5066 = vld [vmem:[#allocation4 + $0x150] sm:$0xff]
    %v5067 = vld [vmem:[#allocation4 + $0x158] sm:$0xff]
    %v5068 = vld [vmem:[#allocation4 + $0x160] sm:$0xff]
    %v5069 = vld [vmem:[#allocation4 + $0x168] sm:$0xff]
    %v5070 = vld [vmem:[#allocation4 + $0x170] sm:$0xff]
    %v5071 = vld [vmem:[#allocation4 + $0x178] sm:$0xff]
    %v5072 = vld [vmem:[#allocation4 + $0x180] sm:$0xff]
    %v5073 = vld [vmem:[#allocation4 + $0x188] sm:$0xff]
    %v5074 = vld [vmem:[#allocation4 + $0x190] sm:$0xff]
    %v5075 = vld [vmem:[#allocation4 + $0x198] sm:$0xff]
    %v5076 = vld [vmem:[#allocation4 + $0x1a0] sm:$0xff]
    %v5077 = vld [vmem:[#allocation4 + $0x1a8] sm:$0xff]
    %v5078 = vld [vmem:[#allocation4 + $0x1b0] sm:$0xff]
    %v5079 = vld [vmem:[#allocation4 + $0x1b8] sm:$0xff]
    %v5080 = vld [vmem:[#allocation4 + $0x1c0] sm:$0xff]
    %v5081 = vld [vmem:[#allocation4 + $0x1c8] sm:$0xff]
    %v5082 = vld [vmem:[#allocation4 + $0x1d0] sm:$0xff]
    %v5083 = vld [vmem:[#allocation4 + $0x1d8] sm:$0xff]
    %v5084 = vld [vmem:[#allocation4 + $0x1e0] sm:$0xff]
    %v5085 = vld [vmem:[#allocation4 + $0x1e8] sm:$0xff]
    %v5086 = vld [vmem:[#allocation4 + $0x1f0] sm:$0xff]
    %v5087 = vld [vmem:[#allocation4 + $0x1f8] sm:$0xff]
    %v5088 = vld [vmem:[#allocation4 + $0x200] sm:$0xff]
    %v5089 = vld [vmem:[#allocation4 + $0x208] sm:$0xff]
    %v5090 = vld [vmem:[#allocation4 + $0x210] sm:$0xff]
    %v5091 = vld [vmem:[#allocation4 + $0x218] sm:$0xff]
    %v5092 = vld [vmem:[#allocation4 + $0x220] sm:$0xff]
    %v5093 = vld [vmem:[#allocation4 + $0x228] sm:$0xff]
    %v5094 = vld [vmem:[#allocation4 + $0x230] sm:$0xff]
    %v5095 = vld [vmem:[#allocation4 + $0x238] sm:$0xff]
    %v5096 = vld [vmem:[#allocation4 + $0x240] sm:$0xff]
    %v5097 = vld [vmem:[#allocation4 + $0x248] sm:$0xff]
    %v5098 = vld [vmem:[#allocation4 + $0x250] sm:$0xff]
    %v5099 = vld [vmem:[#allocation4 + $0x258] sm:$0xff]
    %v5100 = vld [vmem:[#allocation4 + $0x260] sm:$0xff]
    %v5101 = vld [vmem:[#allocation4 + $0x268] sm:$0xff]
    %v5102 = vld [vmem:[#allocation4 + $0x270] sm:$0xff]
    %v5103 = vld [vmem:[#allocation4 + $0x278] sm:$0xff]
    %v5104 = vld [vmem:[#allocation4 + $0x280] sm:$0xff]
    %v5105 = vld [vmem:[#allocation4 + $0x288] sm:$0xff]
    %v5106 = vld [vmem:[#allocation4 + $0x290] sm:$0xff]
    %v5107 = vld [vmem:[#allocation4 + $0x298] sm:$0xff]
    %v5108 = vld [vmem:[#allocation4 + $0x2a0] sm:$0xff]
    %v5109 = vld [vmem:[#allocation4 + $0x2a8] sm:$0xff]
    %v5110 = vld [vmem:[#allocation4 + $0x2b0] sm:$0xff]
    %v5111 = vld [vmem:[#allocation4 + $0x2b8] sm:$0xff]
    %v5112 = vld [vmem:[#allocation4 + $0x2c0] sm:$0xff]
    %v5113 = vld [vmem:[#allocation4 + $0x2c8] sm:$0xff]
    %v5114 = vld [vmem:[#allocation4 + $0x2d0] sm:$0xff]
    %v5115 = vld [vmem:[#allocation4 + $0x2d8] sm:$0xff]
    %v5116 = vld [vmem:[#allocation4 + $0x2e0] sm:$0xff]
    %v5117 = vld [vmem:[#allocation4 + $0x2e8] sm:$0xff]
    %v5118 = vld [vmem:[#allocation4 + $0x2f0] sm:$0xff]
    %v5119 = vld [vmem:[#allocation4 + $0x2f8] sm:$0xff]
    %v5122 = vrot.slane %v5022, 1
    %v5123 = vrot.slane %v5023, 1
    %v5222 = vunpack.c.l.b16 %v5024
    %v5223 = vunpack.c.h.b16 %v5024
    %v5224 = vunpack.c.l.b16 %v5025
    %v5225 = vunpack.c.h.b16 %v5025
    %v5226 = vunpack.c.l.b16 %v5026
    %v5227 = vunpack.c.h.b16 %v5026
    %v5228 = vunpack.c.l.b16 %v5027
    %v5229 = vunpack.c.h.b16 %v5027
    %v5230 = vunpack.c.l.b16 %v5028
    %v5231 = vunpack.c.h.b16 %v5028
    %v5232 = vunpack.c.l.b16 %v5029
    %v5233 = vunpack.c.h.b16 %v5029
    %v5234 = vunpack.c.l.b16 %v5030
    %v5235 = vunpack.c.h.b16 %v5030
    %v5236 = vunpack.c.l.b16 %v5031
    %v5237 = vunpack.c.h.b16 %v5031
    %v5238 = vunpack.c.l.b16 %v5032
    %v5239 = vunpack.c.h.b16 %v5032
    %v5240 = vunpack.c.l.b16 %v5033
    %v5241 = vunpack.c.h.b16 %v5033
    %v5242 = vunpack.c.l.b16 %v5034
    %v5243 = vunpack.c.h.b16 %v5034
    %v5244 = vunpack.c.l.b16 %v5035
    %v5245 = vunpack.c.h.b16 %v5035
    %v5246 = vunpack.c.l.b16 %v5036
    %v5247 = vunpack.c.h.b16 %v5036
    %v5248 = vunpack.c.l.b16 %v5037
    %v5249 = vunpack.c.h.b16 %v5037
    %v5250 = vunpack.c.l.b16 %v5038
    %v5251 = vunpack.c.h.b16 %v5038
    %v5252 = vunpack.c.l.b16 %v5039
    %v5253 = vunpack.c.h.b16 %v5039
    %v5254 = vunpack.c.l.b16 %v5040
    %v5255 = vunpack.c.h.b16 %v5040
    %v5256 = vunpack.c.l.b16 %v5041
    %v5257 = vunpack.c.h.b16 %v5041
    %v5258 = vunpack.c.l.b16 %v5042
    %v5259 = vunpack.c.h.b16 %v5042
    %v5260 = vunpack.c.l.b16 %v5043
    %v5261 = vunpack.c.h.b16 %v5043
    %v5262 = vunpack.c.l.b16 %v5044
    %v5263 = vunpack.c.h.b16 %v5044
    %v5264 = vunpack.c.l.b16 %v5045
    %v5265 = vunpack.c.h.b16 %v5045
    %v5266 = vunpack.c.l.b16 %v5046
    %v5267 = vunpack.c.h.b16 %v5046
    %v5268 = vunpack.c.l.b16 %v5047
    %v5269 = vunpack.c.h.b16 %v5047
    %v5270 = vunpack.c.l.b16 %v5048
    %v5271 = vunpack.c.h.b16 %v5048
    %v5272 = vunpack.c.l.b16 %v5049
    %v5273 = vunpack.c.h.b16 %v5049
    %v5274 = vunpack.c.l.b16 %v5050
    %v5275 = vunpack.c.h.b16 %v5050
    %v5276 = vunpack.c.l.b16 %v5051
    %v5277 = vunpack.c.h.b16 %v5051
    %v5278 = vunpack.c.l.b16 %v5052
    %v5279 = vunpack.c.h.b16 %v5052
    %v5280 = vunpack.c.l.b16 %v5053
    %v5281 = vunpack.c.h.b16 %v5053
    %v5282 = vunpack.c.l.b16 %v5054
    %v5283 = vunpack.c.h.b16 %v5054
    %v5284 = vunpack.c.l.b16 %v5055
    %v5285 = vunpack.c.h.b16 %v5055
    %v5286 = vunpack.c.l.b16 %v5056
    %v5287 = vunpack.c.h.b16 %v5056
    %v5288 = vunpack.c.l.b16 %v5057
    %v5289 = vunpack.c.h.b16 %v5057
    %v5290 = vunpack.c.l.b16 %v5058
    %v5291 = vunpack.c.h.b16 %v5058
    %v5292 = vunpack.c.l.b16 %v5059
    %v5293 = vunpack.c.h.b16 %v5059
    %v5294 = vunpack.c.l.b16 %v5060
    %v5295 = vunpack.c.h.b16 %v5060
    %v5296 = vunpack.c.l.b16 %v5061
    %v5297 = vunpack.c.h.b16 %v5061
    %v5298 = vunpack.c.l.b16 %v5062
    %v5299 = vunpack.c.h.b16 %v5062
    %v5300 = vunpack.c.l.b16 %v5063
    %v5301 = vunpack.c.h.b16 %v5063
    %v5302 = vunpack.c.l.b16 %v5064
    %v5303 = vunpack.c.h.b16 %v5064
    %v5304 = vunpack.c.l.b16 %v5065
    %v5305 = vunpack.c.h.b16 %v5065
    %v5306 = vunpack.c.l.b16 %v5066
    %v5307 = vunpack.c.h.b16 %v5066
    %v5308 = vunpack.c.l.b16 %v5067
    %v5309 = vunpack.c.h.b16 %v5067
    %v5310 = vunpack.c.l.b16 %v5068
    %v5311 = vunpack.c.h.b16 %v5068
    %v5312 = vunpack.c.l.b16 %v5069
    %v5313 = vunpack.c.h.b16 %v5069
    %v5314 = vunpack.c.l.b16 %v5070
    %v5315 = vunpack.c.h.b16 %v5070
    %v5316 = vunpack.c.l.b16 %v5071
    %v5317 = vunpack.c.h.b16 %v5071
    %v5318 = vunpack.c.l.b16 %v5072
    %v5319 = vunpack.c.h.b16 %v5072
    %v5320 = vunpack.c.l.b16 %v5073
    %v5321 = vunpack.c.h.b16 %v5073
    %v5322 = vunpack.c.l.b16 %v5074
    %v5323 = vunpack.c.h.b16 %v5074
    %v5324 = vunpack.c.l.b16 %v5075
    %v5325 = vunpack.c.h.b16 %v5075
    %v5326 = vunpack.c.l.b16 %v5076
    %v5327 = vunpack.c.h.b16 %v5076
    %v5328 = vunpack.c.l.b16 %v5077
    %v5329 = vunpack.c.h.b16 %v5077
    %v5330 = vunpack.c.l.b16 %v5078
    %v5331 = vunpack.c.h.b16 %v5078
    %v5332 = vunpack.c.l.b16 %v5079
    %v5333 = vunpack.c.h.b16 %v5079
    %v5334 = vunpack.c.l.b16 %v5080
    %v5335 = vunpack.c.h.b16 %v5080
    %v5336 = vunpack.c.l.b16 %v5081
    %v5337 = vunpack.c.h.b16 %v5081
    %v5338 = vunpack.c.l.b16 %v5082
    %v5339 = vunpack.c.h.b16 %v5082
    %v5340 = vunpack.c.l.b16 %v5083
    %v5341 = vunpack.c.h.b16 %v5083
    %v5342 = vunpack.c.l.b16 %v5084
    %v5343 = vunpack.c.h.b16 %v5084
    %v5344 = vunpack.c.l.b16 %v5085
    %v5345 = vunpack.c.h.b16 %v5085
    %v5346 = vunpack.c.l.b16 %v5086
    %v5347 = vunpack.c.h.b16 %v5086
    %v5348 = vunpack.c.l.b16 %v5087
    %v5349 = vunpack.c.h.b16 %v5087
    %v5350 = vunpack.c.l.b16 %v5088
    %v5351 = vunpack.c.h.b16 %v5088
    %v5352 = vunpack.c.l.b16 %v5089
    %v5353 = vunpack.c.h.b16 %v5089
    %v5354 = vunpack.c.l.b16 %v5090
    %v5355 = vunpack.c.h.b16 %v5090
    %v5356 = vunpack.c.l.b16 %v5091
    %v5357 = vunpack.c.h.b16 %v5091
    %v5358 = vunpack.c.l.b16 %v5092
    %v5359 = vunpack.c.h.b16 %v5092
    %v5360 = vunpack.c.l.b16 %v5093
    %v5361 = vunpack.c.h.b16 %v5093
    %v5362 = vunpack.c.l.b16 %v5094
    %v5363 = vunpack.c.h.b16 %v5094
    %v5364 = vunpack.c.l.b16 %v5095
    %v5365 = vunpack.c.h.b16 %v5095
    %v5366 = vunpack.c.l.b16 %v5096
    %v5367 = vunpack.c.h.b16 %v5096
    %v5368 = vunpack.c.l.b16 %v5097
    %v5369 = vunpack.c.h.b16 %v5097
    %v5370 = vunpack.c.l.b16 %v5098
    %v5371 = vunpack.c.h.b16 %v5098
    %v5372 = vunpack.c.l.b16 %v5099
    %v5373 = vunpack.c.h.b16 %v5099
    %v5374 = vunpack.c.l.b16 %v5100
    %v5375 = vunpack.c.h.b16 %v5100
    %v5376 = vunpack.c.l.b16 %v5101
    %v5377 = vunpack.c.h.b16 %v5101
    %v5378 = vunpack.c.l.b16 %v5102
    %v5379 = vunpack.c.h.b16 %v5102
    %v5380 = vunpack.c.l.b16 %v5103
    %v5381 = vunpack.c.h.b16 %v5103
    %v5382 = vunpack.c.l.b16 %v5104
    %v5383 = vunpack.c.h.b16 %v5104
    %v5384 = vunpack.c.l.b16 %v5105
    %v5385 = vunpack.c.h.b16 %v5105
    %v5386 = vunpack.c.l.b16 %v5106
    %v5387 = vunpack.c.h.b16 %v5106
    %v5388 = vunpack.c.l.b16 %v5107
    %v5389 = vunpack.c.h.b16 %v5107
    %v5390 = vunpack.c.l.b16 %v5108
    %v5391 = vunpack.c.h.b16 %v5108
    %v5392 = vunpack.c.l.b16 %v5109
    %v5393 = vunpack.c.h.b16 %v5109
    %v5394 = vunpack.c.l.b16 %v5110
    %v5395 = vunpack.c.h.b16 %v5110
    %v5396 = vunpack.c.l.b16 %v5111
    %v5397 = vunpack.c.h.b16 %v5111
    %v5398 = vunpack.c.l.b16 %v5112
    %v5399 = vunpack.c.h.b16 %v5112
    %v5400 = vunpack.c.l.b16 %v5113
    %v5401 = vunpack.c.h.b16 %v5113
    %v5402 = vunpack.c.l.b16 %v5114
    %v5403 = vunpack.c.h.b16 %v5114
    %v5404 = vunpack.c.l.b16 %v5115
    %v5405 = vunpack.c.h.b16 %v5115
    %v5406 = vunpack.c.l.b16 %v5116
    %v5407 = vunpack.c.h.b16 %v5116
    %v5408 = vunpack.c.l.b16 %v5117
    %v5409 = vunpack.c.h.b16 %v5117
    %v5410 = vunpack.c.l.b16 %v5118
    %v5411 = vunpack.c.h.b16 %v5118
    %v5412 = vunpack.c.l.b16 %v5119
    %v5413 = vunpack.c.h.b16 %v5119
    %v5414 = vpack.c.b16 %v5228, %v5222
    %v5415 = vpack.c.b16 %v5229, %v5223
    %v5416 = vpack.c.b16 %v5230, %v5224
    %v5417 = vpack.c.b16 %v5231, %v5225
    %v5418 = vpack.c.b16 %v5232, %v5226
    %v5419 = vpack.c.b16 %v5233, %v5227
    %v5420 = vpack.c.b16 %v5240, %v5234
    %v5421 = vpack.c.b16 %v5241, %v5235
    %v5422 = vpack.c.b16 %v5242, %v5236
    %v5423 = vpack.c.b16 %v5243, %v5237
    %v5424 = vpack.c.b16 %v5244, %v5238
    %v5425 = vpack.c.b16 %v5245, %v5239
    %v5426 = vpack.c.b16 %v5252, %v5246
    %v5427 = vpack.c.b16 %v5253, %v5247
    %v5428 = vpack.c.b16 %v5254, %v5248
    %v5429 = vpack.c.b16 %v5255, %v5249
    %v5430 = vpack.c.b16 %v5256, %v5250
    %v5431 = vpack.c.b16 %v5257, %v5251
    %v5432 = vpack.c.b16 %v5264, %v5258
    %v5433 = vpack.c.b16 %v5265, %v5259
    %v5434 = vpack.c.b16 %v5266, %v5260
    %v5435 = vpack.c.b16 %v5267, %v5261
    %v5436 = vpack.c.b16 %v5268, %v5262
    %v5437 = vpack.c.b16 %v5269, %v5263
    %v5438 = vpack.c.b16 %v5276, %v5270
    %v5439 = vpack.c.b16 %v5277, %v5271
    %v5440 = vpack.c.b16 %v5278, %v5272
    %v5441 = vpack.c.b16 %v5279, %v5273
    %v5442 = vpack.c.b16 %v5280, %v5274
    %v5443 = vpack.c.b16 %v5281, %v5275
    %v5444 = vpack.c.b16 %v5288, %v5282
    %v5445 = vpack.c.b16 %v5289, %v5283
    %v5446 = vpack.c.b16 %v5290, %v5284
    %v5447 = vpack.c.b16 %v5291, %v5285
    %v5448 = vpack.c.b16 %v5292, %v5286
    %v5449 = vpack.c.b16 %v5293, %v5287
    %v5450 = vpack.c.b16 %v5300, %v5294
    %v5451 = vpack.c.b16 %v5301, %v5295
    %v5452 = vpack.c.b16 %v5302, %v5296
    %v5453 = vpack.c.b16 %v5303, %v5297
    %v5454 = vpack.c.b16 %v5304, %v5298
    %v5455 = vpack.c.b16 %v5305, %v5299
    %v5456 = vpack.c.b16 %v5312, %v5306
    %v5457 = vpack.c.b16 %v5313, %v5307
    %v5458 = vpack.c.b16 %v5314, %v5308
    %v5459 = vpack.c.b16 %v5315, %v5309
    %v5460 = vpack.c.b16 %v5316, %v5310
    %v5461 = vpack.c.b16 %v5317, %v5311
    %v5462 = vpack.c.b16 %v5324, %v5318
    %v5463 = vpack.c.b16 %v5325, %v5319
    %v5464 = vpack.c.b16 %v5326, %v5320
    %v5465 = vpack.c.b16 %v5327, %v5321
    %v5466 = vpack.c.b16 %v5328, %v5322
    %v5467 = vpack.c.b16 %v5329, %v5323
    %v5468 = vpack.c.b16 %v5336, %v5330
    %v5469 = vpack.c.b16 %v5337, %v5331
    %v5470 = vpack.c.b16 %v5338, %v5332
    %v5471 = vpack.c.b16 %v5339, %v5333
    %v5472 = vpack.c.b16 %v5340, %v5334
    %v5473 = vpack.c.b16 %v5341, %v5335
    %v5474 = vpack.c.b16 %v5348, %v5342
    %v5475 = vpack.c.b16 %v5349, %v5343
    %v5476 = vpack.c.b16 %v5350, %v5344
    %v5477 = vpack.c.b16 %v5351, %v5345
    %v5478 = vpack.c.b16 %v5352, %v5346
    %v5479 = vpack.c.b16 %v5353, %v5347
    %v5480 = vpack.c.b16 %v5360, %v5354
    %v5481 = vpack.c.b16 %v5361, %v5355
    %v5482 = vpack.c.b16 %v5362, %v5356
    %v5483 = vpack.c.b16 %v5363, %v5357
    %v5484 = vpack.c.b16 %v5364, %v5358
    %v5485 = vpack.c.b16 %v5365, %v5359
    %v5486 = vpack.c.b16 %v5372, %v5366
    %v5487 = vpack.c.b16 %v5373, %v5367
    %v5488 = vpack.c.b16 %v5374, %v5368
    %v5489 = vpack.c.b16 %v5375, %v5369
    %v5490 = vpack.c.b16 %v5376, %v5370
    %v5491 = vpack.c.b16 %v5377, %v5371
    %v5492 = vpack.c.b16 %v5384, %v5378
    %v5493 = vpack.c.b16 %v5385, %v5379
    %v5494 = vpack.c.b16 %v5386, %v5380
    %v5495 = vpack.c.b16 %v5387, %v5381
    %v5496 = vpack.c.b16 %v5388, %v5382
    %v5497 = vpack.c.b16 %v5389, %v5383
    %v5498 = vpack.c.b16 %v5396, %v5390
    %v5499 = vpack.c.b16 %v5397, %v5391
    %v5500 = vpack.c.b16 %v5398, %v5392
    %v5501 = vpack.c.b16 %v5399, %v5393
    %v5502 = vpack.c.b16 %v5400, %v5394
    %v5503 = vpack.c.b16 %v5401, %v5395
    %v5504 = vpack.c.b16 %v5408, %v5402
    %v5505 = vpack.c.b16 %v5409, %v5403
    %v5506 = vpack.c.b16 %v5410, %v5404
    %v5507 = vpack.c.b16 %v5411, %v5405
    %v5508 = vpack.c.b16 %v5412, %v5406
    %v5509 = vpack.c.b16 %v5413, %v5407
    %5606 = vmatprep.subr.bf16.mxu0 %v5415
    %5607 = vmatpush1.bf16.msra.mxu0 %v5414
    %5608 = vmatprep.subr.bf16.mxu0 %v5421
    %5609 = vmatpush1.bf16.msra.mxu0 %v5420
    %5610 = vmatprep.subr.bf16.mxu0 %v5427
    %5611 = vmatpush1.bf16.msra.mxu0 %v5426
    %5612 = vmatprep.subr.bf16.mxu0 %v5433
    %5613 = vmatpush1.bf16.msra.mxu0 %v5432
    %5614 = vmatprep.subr.bf16.mxu0 %v5439
    %5615 = vmatpush1.bf16.msra.mxu0 %v5438
    %5616 = vmatprep.subr.bf16.mxu0 %v5445
    %5617 = vmatpush1.bf16.msra.mxu0 %v5444
    %5618 = vmatprep.subr.bf16.mxu0 %v5451
    %5619 = vmatpush1.bf16.msra.mxu0 %v5450
    %5620 = vmatprep.subr.bf16.mxu0 %v5457
    %5621 = vmatpush1.bf16.msra.mxu0 %v5456
    %5622 = vmatprep.subr.bf16.mxu0 %v5463
    %5623 = vmatpush1.bf16.msra.mxu0 %v5462
    %5624 = vmatprep.subr.bf16.mxu0 %v5469
    %5625 = vmatpush1.bf16.msra.mxu0 %v5468
    %5626 = vmatprep.subr.bf16.mxu0 %v5475
    %5627 = vmatpush1.bf16.msra.mxu0 %v5474
    %5628 = vmatprep.subr.bf16.mxu0 %v5481
    %5629 = vmatpush1.bf16.msra.mxu0 %v5480
    %5630 = vmatprep.subr.bf16.mxu0 %v5487
    %5631 = vmatpush1.bf16.msra.mxu0 %v5486
    %5632 = vmatprep.subr.bf16.mxu0 %v5493
    %5633 = vmatpush1.bf16.msra.mxu0 %v5492
    %5634 = vmatprep.subr.bf16.mxu0 %v5499
    %5635 = vmatpush1.bf16.msra.mxu0 %v5498
    %5636 = vmatprep.subr.bf16.mxu0 %v5505
    %5637 = vmatpush1.bf16.msra.mxu0 %v5504
    %5638 = vmatprep.mubr.bf16.mxu0 %v5123
    %5639 = vmatmul.mubr.bf16.gmra.mrb[0].mxu0 %v5122
    %v5640 = vpop.f32.mrb[0].mxu0
    %v5641 = vadd.f32 0.0, %v5640
    %v5642 = vpop.f32.mrb[0].mxu0
    %v5643 = vadd.f32 0.0, %v5642
    %v5644 = vpop.f32.mrb[0].mxu0
    %v5645 = vpop.f32.mrb[0].mxu0
    %5646 = vdwg.mxu0
    %5647 = vmatprep.subr.bf16.mxu0 %v5417
    %5648 = vmatpush1.bf16.msra.mxu0 %v5416
    %5649 = vmatprep.subr.bf16.mxu0 %v5423
    %5650 = vmatpush1.bf16.msra.mxu0 %v5422
    %5651 = vmatprep.subr.bf16.mxu0 %v5429
    %5652 = vmatpush1.bf16.msra.mxu0 %v5428
    %5653 = vmatprep.subr.bf16.mxu0 %v5435
    %5654 = vmatpush1.bf16.msra.mxu0 %v5434
    %5655 = vmatprep.subr.bf16.mxu0 %v5441
    %5656 = vmatpush1.bf16.msra.mxu0 %v5440
    %5657 = vmatprep.subr.bf16.mxu0 %v5447
    %5658 = vmatpush1.bf16.msra.mxu0 %v5446
    %5659 = vmatprep.subr.bf16.mxu0 %v5453
    %5660 = vmatpush1.bf16.msra.mxu0 %v5452
    %5661 = vmatprep.subr.bf16.mxu0 %v5459
    %5662 = vmatpush1.bf16.msra.mxu0 %v5458
    %5663 = vmatprep.subr.bf16.mxu0 %v5465
    %5664 = vmatpush1.bf16.msra.mxu0 %v5464
    %5665 = vmatprep.subr.bf16.mxu0 %v5471
    %5666 = vmatpush1.bf16.msra.mxu0 %v5470
    %5667 = vmatprep.subr.bf16.mxu0 %v5477
    %5668 = vmatpush1.bf16.msra.mxu0 %v5476
    %5669 = vmatprep.subr.bf16.mxu0 %v5483
    %5670 = vmatpush1.bf16.msra.mxu0 %v5482
    %5671 = vmatprep.subr.bf16.mxu0 %v5489
    %5672 = vmatpush1.bf16.msra.mxu0 %v5488
    %5673 = vmatprep.subr.bf16.mxu0 %v5495
    %5674 = vmatpush1.bf16.msra.mxu0 %v5494
    %5675 = vmatprep.subr.bf16.mxu0 %v5501
    %5676 = vmatpush1.bf16.msra.mxu0 %v5500
    %5677 = vmatprep.subr.bf16.mxu0 %v5507
    %5678 = vmatpush1.bf16.msra.mxu0 %v5506
    %5679 = vmatprep.mubr.bf16.mxu0 %v5123
    %5680 = vmatmul.mubr.bf16.gmra.mrb[0].mxu0 %v5122
    %v5681 = vpop.f32.mrb[0].mxu0
    %v5682 = vadd.f32 0.0, %v5681
    %v5683 = vpop.f32.mrb[0].mxu0
    %v5684 = vadd.f32 0.0, %v5683
    %v5685 = vpop.f32.mrb[0].mxu0
    %v5686 = vpop.f32.mrb[0].mxu0
    %5687 = vdwg.mxu0
    %5688 = vmatprep.subr.bf16.mxu0 %v5419
    %5689 = vmatpush1.bf16.msra.mxu0 %v5418
    %5690 = vmatprep.subr.bf16.mxu0 %v5425
    %5691 = vmatpush1.bf16.msra.mxu0 %v5424
    %5692 = vmatprep.subr.bf16.mxu0 %v5431
    %5693 = vmatpush1.bf16.msra.mxu0 %v5430
    %5694 = vmatprep.subr.bf16.mxu0 %v5437
    %5695 = vmatpush1.bf16.msra.mxu0 %v5436
    %5696 = vmatprep.subr.bf16.mxu0 %v5443
    %5697 = vmatpush1.bf16.msra.mxu0 %v5442
    %5698 = vmatprep.subr.bf16.mxu0 %v5449
    %5699 = vmatpush1.bf16.msra.mxu0 %v5448
    %5700 = vmatprep.subr.bf16.mxu0 %v5455
    %5701 = vmatpush1.bf16.msra.mxu0 %v5454
    %5702 = vmatprep.subr.bf16.mxu0 %v5461
    %5703 = vmatpush1.bf16.msra.mxu0 %v5460
    %5704 = vmatprep.subr.bf16.mxu0 %v5467
    %5705 = vmatpush1.bf16.msra.mxu0 %v5466
    %5706 = vmatprep.subr.bf16.mxu0 %v5473
    %5707 = vmatpush1.bf16.msra.mxu0 %v5472
    %5708 = vmatprep.subr.bf16.mxu0 %v5479
    %5709 = vmatpush1.bf16.msra.mxu0 %v5478
    %5710 = vmatprep.subr.bf16.mxu0 %v5485
    %5711 = vmatpush1.bf16.msra.mxu0 %v5484
    %5712 = vmatprep.subr.bf16.mxu0 %v5491
    %5713 = vmatpush1.bf16.msra.mxu0 %v5490
    %5714 = vmatprep.subr.bf16.mxu0 %v5497
    %5715 = vmatpush1.bf16.msra.mxu0 %v5496
    %5716 = vmatprep.subr.bf16.mxu0 %v5503
    %5717 = vmatpush1.bf16.msra.mxu0 %v5502
    %5718 = vmatprep.subr.bf16.mxu0 %v5509
    %5719 = vmatpush1.bf16.msra.mxu0 %v5508
    %5720 = vmatprep.mubr.bf16.mxu0 %v5123
    %5721 = vmatmul.mubr.bf16.gmra.mrb[0].mxu0 %v5122
    %v5722 = vpop.f32.mrb[0].mxu0
    %v5723 = vadd.f32 0.0, %v5722
    %v5724 = vpop.f32.mrb[0].mxu0
    %v5725 = vadd.f32 0.0, %v5724
    %v5726 = vpop.f32.mrb[0].mxu0
    %v5727 = vpop.f32.mrb[0].mxu0
    %5728 = vdwg.mxu0
    %v5731 = vrot.slane %v5641, 4
    %v5732 = vrot.slane %v5643, 4
    %v5735 = vadd.f32 %v5016, %v5731
    %v5736 = vadd.f32 %v5017, %v5732
    %v5737 = vxor.u32 %v5735, 2147483648
    %v5738 = vxor.u32 %v5736, 2147483648
    %v5739 = vmul.f32 %v5737, 1.442695
    %v5740 = vpow.pop %v5739
    %v5741 = vmul.f32 %v5738, 1.442695
    %v5742 = vpow.pop %v5741
    %v5743 = vadd.f32 %v5740, 1.0
    %v5744 = vadd.f32 %v5742, 1.0
    %v5745 = vrcp.pop %v5743
    %v5746 = vmul.f32 1.0, %v5745
    %v5747 = vrcp.pop %v5744
    %v5748 = vmul.f32 1.0, %v5747
    %v5751 = vrot.slane %v5682, 4
    %v5752 = vrot.slane %v5684, 4
    %v5755 = vadd.f32 %v5018, %v5751
    %v5756 = vadd.f32 %v5019, %v5752
    %v5757 = vxor.u32 %v5755, 2147483648
    %v5758 = vxor.u32 %v5756, 2147483648
    %v5759 = vmul.f32 %v5757, 1.442695
    %v5760 = vpow.pop %v5759
    %v5761 = vmul.f32 %v5758, 1.442695
    %v5762 = vpow.pop %v5761
    %v5763 = vadd.f32 %v5760, 1.0
    %v5764 = vadd.f32 %v5762, 1.0
    %v5765 = vrcp.pop %v5763
    %v5766 = vmul.f32 1.0, %v5765
    %v5767 = vrcp.pop %v5764
    %v5768 = vmul.f32 1.0, %v5767
    %v5769 = vld [vmem:[%s3] sm:$0x3]
    %v5771 = vlaneseq
    %v5772 = vshrl.u32 %v5771, 7
    %v5773 = vsub.s32 0, %v5772
    %v5774 = vrot.slane %v5769, %v5773
    %v5775 = vlaneseq
    %v5776 = vshrl.u32 %v5775, 7
    %v5777 = vsub.s32 1, %v5776
    %v5778 = vrot.slane %v5769, %v5777
    %v5781 = vadd.f32 %v5723, %v5774
    %v5782 = vadd.f32 %v5725, %v5778
    %v5785 = vrot.slane %v5781, 4
    %v5786 = vrot.slane %v5782, 4
    %v5789 = vmul.f32 %v5746, %v5785
    %v5790 = vmul.f32 %v5748, %v5786
    %v5791 = vadd.f32 %v5020, %v5789
    %v5792 = vadd.f32 %v5021, %v5790
    %v5793 = vtanh.pop %v5791
    %v5794 = vtanh.pop %v5792
    %v5795 = vsub.f32 1.0, %v5766
    %v5796 = vsub.f32 1.0, %v5768
    %v5797 = vmul.f32 %v5795, %v5793
    %v5798 = vmul.f32 %v5796, %v5794
    %v5801 = vrot.slane %v5012, 6
    %v5802 = vrot.slane %v5013, 6
    %v5805 = vmul.f32 %v5766, %v5801
    %v5806 = vmul.f32 %v5768, %v5802
    %v5807 = vadd.f32 %v5797, %v5805
    %v5808 = vadd.f32 %v5798, %v5806
    %5809 = vst [vmem:[#allocation3 + $0x10] sm:$0x30] %v5807
    %5810 = vst [vmem:[#allocation3 + $0x18] sm:$0x30] %v5808
    %v5811 = vld [vmem:[#allocation2 + $0x30] sm:$0xc0]
    %v5812 = vld [vmem:[#allocation2 + $0x38] sm:$0xc0]
    %v5813 = vld [vmem:[#allocation2 + $0x40] sm:$0xc0]
    %v5814 = vld [vmem:[#allocation2 + $0x48] sm:$0xc0]
    %v5815 = vld [vmem:[#allocation2 + $0x50] sm:$0xc0]
    %v5816 = vld [vmem:[#allocation2 + $0x58] sm:$0xc0]
    %v5817 = vpack.c.bf16 %v5807, %v5807
    %v5818 = vpack.c.bf16 %v5808, %v5808
    %v5819 = vld [vmem:[#allocation4] sm:$0xff]
    %v5820 = vld [vmem:[#allocation4 + $0x8] sm:$0xff]
    %v5821 = vld [vmem:[#allocation4 + $0x10] sm:$0xff]
    %v5822 = vld [vmem:[#allocation4 + $0x18] sm:$0xff]
    %v5823 = vld [vmem:[#allocation4 + $0x20] sm:$0xff]
    %v5824 = vld [vmem:[#allocation4 + $0x28] sm:$0xff]
    %v5825 = vld [vmem:[#allocation4 + $0x30] sm:$0xff]
    %v5826 = vld [vmem:[#allocation4 + $0x38] sm:$0xff]
    %v5827 = vld [vmem:[#allocation4 + $0x40] sm:$0xff]
    %v5828 = vld [vmem:[#allocation4 + $0x48] sm:$0xff]
    %v5829 = vld [vmem:[#allocation4 + $0x50] sm:$0xff]
    %v5830 = vld [vmem:[#allocation4 + $0x58] sm:$0xff]
    %v5831 = vld [vmem:[#allocation4 + $0x60] sm:$0xff]
    %v5832 = vld [vmem:[#allocation4 + $0x68] sm:$0xff]
    %v5833 = vld [vmem:[#allocation4 + $0x70] sm:$0xff]
    %v5834 = vld [vmem:[#allocation4 + $0x78] sm:$0xff]
    %v5835 = vld [vmem:[#allocation4 + $0x80] sm:$0xff]
    %v5836 = vld [vmem:[#allocation4 + $0x88] sm:$0xff]
    %v5837 = vld [vmem:[#allocation4 + $0x90] sm:$0xff]
    %v5838 = vld [vmem:[#allocation4 + $0x98] sm:$0xff]
    %v5839 = vld [vmem:[#allocation4 + $0xa0] sm:$0xff]
    %v5840 = vld [vmem:[#allocation4 + $0xa8] sm:$0xff]
    %v5841 = vld [vmem:[#allocation4 + $0xb0] sm:$0xff]
    %v5842 = vld [vmem:[#allocation4 + $0xb8] sm:$0xff]
    %v5843 = vld [vmem:[#allocation4 + $0xc0] sm:$0xff]
    %v5844 = vld [vmem:[#allocation4 + $0xc8] sm:$0xff]
    %v5845 = vld [vmem:[#allocation4 + $0xd0] sm:$0xff]
    %v5846 = vld [vmem:[#allocation4 + $0xd8] sm:$0xff]
    %v5847 = vld [vmem:[#allocation4 + $0xe0] sm:$0xff]
    %v5848 = vld [vmem:[#allocation4 + $0xe8] sm:$0xff]
    %v5849 = vld [vmem:[#allocation4 + $0xf0] sm:$0xff]
    %v5850 = vld [vmem:[#allocation4 + $0xf8] sm:$0xff]
    %v5851 = vld [vmem:[#allocation4 + $0x100] sm:$0xff]
    %v5852 = vld [vmem:[#allocation4 + $0x108] sm:$0xff]
    %v5853 = vld [vmem:[#allocation4 + $0x110] sm:$0xff]
    %v5854 = vld [vmem:[#allocation4 + $0x118] sm:$0xff]
    %v5855 = vld [vmem:[#allocation4 + $0x120] sm:$0xff]
    %v5856 = vld [vmem:[#allocation4 + $0x128] sm:$0xff]
    %v5857 = vld [vmem:[#allocation4 + $0x130] sm:$0xff]
    %v5858 = vld [vmem:[#allocation4 + $0x138] sm:$0xff]
    %v5859 = vld [vmem:[#allocation4 + $0x140] sm:$0xff]
    %v5860 = vld [vmem:[#allocation4 + $0x148] sm:$0xff]
    %v5861 = vld [vmem:[#allocation4 + $0x150] sm:$0xff]
    %v5862 = vld [vmem:[#allocation4 + $0x158] sm:$0xff]
    %v5863 = vld [vmem:[#allocation4 + $0x160] sm:$0xff]
    %v5864 = vld [vmem:[#allocation4 + $0x168] sm:$0xff]
    %v5865 = vld [vmem:[#allocation4 + $0x170] sm:$0xff]
    %v5866 = vld [vmem:[#allocation4 + $0x178] sm:$0xff]
    %v5867 = vld [vmem:[#allocation4 + $0x180] sm:$0xff]
    %v5868 = vld [vmem:[#allocation4 + $0x188] sm:$0xff]
    %v5869 = vld [vmem:[#allocation4 + $0x190] sm:$0xff]
    %v5870 = vld [vmem:[#allocation4 + $0x198] sm:$0xff]
    %v5871 = vld [vmem:[#allocation4 + $0x1a0] sm:$0xff]
    %v5872 = vld [vmem:[#allocation4 + $0x1a8] sm:$0xff]
    %v5873 = vld [vmem:[#allocation4 + $0x1b0] sm:$0xff]
    %v5874 = vld [vmem:[#allocation4 + $0x1b8] sm:$0xff]
    %v5875 = vld [vmem:[#allocation4 + $0x1c0] sm:$0xff]
    %v5876 = vld [vmem:[#allocation4 + $0x1c8] sm:$0xff]
    %v5877 = vld [vmem:[#allocation4 + $0x1d0] sm:$0xff]
    %v5878 = vld [vmem:[#allocation4 + $0x1d8] sm:$0xff]
    %v5879 = vld [vmem:[#allocation4 + $0x1e0] sm:$0xff]
    %v5880 = vld [vmem:[#allocation4 + $0x1e8] sm:$0xff]
    %v5881 = vld [vmem:[#allocation4 + $0x1f0] sm:$0xff]
    %v5882 = vld [vmem:[#allocation4 + $0x1f8] sm:$0xff]
    %v5883 = vld [vmem:[#allocation4 + $0x200] sm:$0xff]
    %v5884 = vld [vmem:[#allocation4 + $0x208] sm:$0xff]
    %v5885 = vld [vmem:[#allocation4 + $0x210] sm:$0xff]
    %v5886 = vld [vmem:[#allocation4 + $0x218] sm:$0xff]
    %v5887 = vld [vmem:[#allocation4 + $0x220] sm:$0xff]
    %v5888 = vld [vmem:[#allocation4 + $0x228] sm:$0xff]
    %v5889 = vld [vmem:[#allocation4 + $0x230] sm:$0xff]
    %v5890 = vld [vmem:[#allocation4 + $0x238] sm:$0xff]
    %v5891 = vld [vmem:[#allocation4 + $0x240] sm:$0xff]
    %v5892 = vld [vmem:[#allocation4 + $0x248] sm:$0xff]
    %v5893 = vld [vmem:[#allocation4 + $0x250] sm:$0xff]
    %v5894 = vld [vmem:[#allocation4 + $0x258] sm:$0xff]
    %v5895 = vld [vmem:[#allocation4 + $0x260] sm:$0xff]
    %v5896 = vld [vmem:[#allocation4 + $0x268] sm:$0xff]
    %v5897 = vld [vmem:[#allocation4 + $0x270] sm:$0xff]
    %v5898 = vld [vmem:[#allocation4 + $0x278] sm:$0xff]
    %v5899 = vld [vmem:[#allocation4 + $0x280] sm:$0xff]
    %v5900 = vld [vmem:[#allocation4 + $0x288] sm:$0xff]
    %v5901 = vld [vmem:[#allocation4 + $0x290] sm:$0xff]
    %v5902 = vld [vmem:[#allocation4 + $0x298] sm:$0xff]
    %v5903 = vld [vmem:[#allocation4 + $0x2a0] sm:$0xff]
    %v5904 = vld [vmem:[#allocation4 + $0x2a8] sm:$0xff]
    %v5905 = vld [vmem:[#allocation4 + $0x2b0] sm:$0xff]
    %v5906 = vld [vmem:[#allocation4 + $0x2b8] sm:$0xff]
    %v5907 = vld [vmem:[#allocation4 + $0x2c0] sm:$0xff]
    %v5908 = vld [vmem:[#allocation4 + $0x2c8] sm:$0xff]
    %v5909 = vld [vmem:[#allocation4 + $0x2d0] sm:$0xff]
    %v5910 = vld [vmem:[#allocation4 + $0x2d8] sm:$0xff]
    %v5911 = vld [vmem:[#allocation4 + $0x2e0] sm:$0xff]
    %v5912 = vld [vmem:[#allocation4 + $0x2e8] sm:$0xff]
    %v5913 = vld [vmem:[#allocation4 + $0x2f0] sm:$0xff]
    %v5914 = vld [vmem:[#allocation4 + $0x2f8] sm:$0xff]
    %v5917 = vrot.slane %v5817, 2
    %v5918 = vrot.slane %v5818, 2
    %v6017 = vunpack.c.l.b16 %v5819
    %v6018 = vunpack.c.h.b16 %v5819
    %v6019 = vunpack.c.l.b16 %v5820
    %v6020 = vunpack.c.h.b16 %v5820
    %v6021 = vunpack.c.l.b16 %v5821
    %v6022 = vunpack.c.h.b16 %v5821
    %v6023 = vunpack.c.l.b16 %v5822
    %v6024 = vunpack.c.h.b16 %v5822
    %v6025 = vunpack.c.l.b16 %v5823
    %v6026 = vunpack.c.h.b16 %v5823
    %v6027 = vunpack.c.l.b16 %v5824
    %v6028 = vunpack.c.h.b16 %v5824
    %v6029 = vunpack.c.l.b16 %v5825
    %v6030 = vunpack.c.h.b16 %v5825
    %v6031 = vunpack.c.l.b16 %v5826
    %v6032 = vunpack.c.h.b16 %v5826
    %v6033 = vunpack.c.l.b16 %v5827
    %v6034 = vunpack.c.h.b16 %v5827
    %v6035 = vunpack.c.l.b16 %v5828
    %v6036 = vunpack.c.h.b16 %v5828
    %v6037 = vunpack.c.l.b16 %v5829
    %v6038 = vunpack.c.h.b16 %v5829
    %v6039 = vunpack.c.l.b16 %v5830
    %v6040 = vunpack.c.h.b16 %v5830
    %v6041 = vunpack.c.l.b16 %v5831
    %v6042 = vunpack.c.h.b16 %v5831
    %v6043 = vunpack.c.l.b16 %v5832
    %v6044 = vunpack.c.h.b16 %v5832
    %v6045 = vunpack.c.l.b16 %v5833
    %v6046 = vunpack.c.h.b16 %v5833
    %v6047 = vunpack.c.l.b16 %v5834
    %v6048 = vunpack.c.h.b16 %v5834
    %v6049 = vunpack.c.l.b16 %v5835
    %v6050 = vunpack.c.h.b16 %v5835
    %v6051 = vunpack.c.l.b16 %v5836
    %v6052 = vunpack.c.h.b16 %v5836
    %v6053 = vunpack.c.l.b16 %v5837
    %v6054 = vunpack.c.h.b16 %v5837
    %v6055 = vunpack.c.l.b16 %v5838
    %v6056 = vunpack.c.h.b16 %v5838
    %v6057 = vunpack.c.l.b16 %v5839
    %v6058 = vunpack.c.h.b16 %v5839
    %v6059 = vunpack.c.l.b16 %v5840
    %v6060 = vunpack.c.h.b16 %v5840
    %v6061 = vunpack.c.l.b16 %v5841
    %v6062 = vunpack.c.h.b16 %v5841
    %v6063 = vunpack.c.l.b16 %v5842
    %v6064 = vunpack.c.h.b16 %v5842
    %v6065 = vunpack.c.l.b16 %v5843
    %v6066 = vunpack.c.h.b16 %v5843
    %v6067 = vunpack.c.l.b16 %v5844
    %v6068 = vunpack.c.h.b16 %v5844
    %v6069 = vunpack.c.l.b16 %v5845
    %v6070 = vunpack.c.h.b16 %v5845
    %v6071 = vunpack.c.l.b16 %v5846
    %v6072 = vunpack.c.h.b16 %v5846
    %v6073 = vunpack.c.l.b16 %v5847
    %v6074 = vunpack.c.h.b16 %v5847
    %v6075 = vunpack.c.l.b16 %v5848
    %v6076 = vunpack.c.h.b16 %v5848
    %v6077 = vunpack.c.l.b16 %v5849
    %v6078 = vunpack.c.h.b16 %v5849
    %v6079 = vunpack.c.l.b16 %v5850
    %v6080 = vunpack.c.h.b16 %v5850
    %v6081 = vunpack.c.l.b16 %v5851
    %v6082 = vunpack.c.h.b16 %v5851
    %v6083 = vunpack.c.l.b16 %v5852
    %v6084 = vunpack.c.h.b16 %v5852
    %v6085 = vunpack.c.l.b16 %v5853
    %v6086 = vunpack.c.h.b16 %v5853
    %v6087 = vunpack.c.l.b16 %v5854
    %v6088 = vunpack.c.h.b16 %v5854
    %v6089 = vunpack.c.l.b16 %v5855
    %v6090 = vunpack.c.h.b16 %v5855
    %v6091 = vunpack.c.l.b16 %v5856
    %v6092 = vunpack.c.h.b16 %v5856
    %v6093 = vunpack.c.l.b16 %v5857
    %v6094 = vunpack.c.h.b16 %v5857
    %v6095 = vunpack.c.l.b16 %v5858
    %v6096 = vunpack.c.h.b16 %v5858
    %v6097 = vunpack.c.l.b16 %v5859
    %v6098 = vunpack.c.h.b16 %v5859
    %v6099 = vunpack.c.l.b16 %v5860
    %v6100 = vunpack.c.h.b16 %v5860
    %v6101 = vunpack.c.l.b16 %v5861
    %v6102 = vunpack.c.h.b16 %v5861
    %v6103 = vunpack.c.l.b16 %v5862
    %v6104 = vunpack.c.h.b16 %v5862
    %v6105 = vunpack.c.l.b16 %v5863
    %v6106 = vunpack.c.h.b16 %v5863
    %v6107 = vunpack.c.l.b16 %v5864
    %v6108 = vunpack.c.h.b16 %v5864
    %v6109 = vunpack.c.l.b16 %v5865
    %v6110 = vunpack.c.h.b16 %v5865
    %v6111 = vunpack.c.l.b16 %v5866
    %v6112 = vunpack.c.h.b16 %v5866
    %v6113 = vunpack.c.l.b16 %v5867
    %v6114 = vunpack.c.h.b16 %v5867
    %v6115 = vunpack.c.l.b16 %v5868
    %v6116 = vunpack.c.h.b16 %v5868
    %v6117 = vunpack.c.l.b16 %v5869
    %v6118 = vunpack.c.h.b16 %v5869
    %v6119 = vunpack.c.l.b16 %v5870
    %v6120 = vunpack.c.h.b16 %v5870
    %v6121 = vunpack.c.l.b16 %v5871
    %v6122 = vunpack.c.h.b16 %v5871
    %v6123 = vunpack.c.l.b16 %v5872
    %v6124 = vunpack.c.h.b16 %v5872
    %v6125 = vunpack.c.l.b16 %v5873
    %v6126 = vunpack.c.h.b16 %v5873
    %v6127 = vunpack.c.l.b16 %v5874
    %v6128 = vunpack.c.h.b16 %v5874
    %v6129 = vunpack.c.l.b16 %v5875
    %v6130 = vunpack.c.h.b16 %v5875
    %v6131 = vunpack.c.l.b16 %v5876
    %v6132 = vunpack.c.h.b16 %v5876
    %v6133 = vunpack.c.l.b16 %v5877
    %v6134 = vunpack.c.h.b16 %v5877
    %v6135 = vunpack.c.l.b16 %v5878
    %v6136 = vunpack.c.h.b16 %v5878
    %v6137 = vunpack.c.l.b16 %v5879
    %v6138 = vunpack.c.h.b16 %v5879
    %v6139 = vunpack.c.l.b16 %v5880
    %v6140 = vunpack.c.h.b16 %v5880
    %v6141 = vunpack.c.l.b16 %v5881
    %v6142 = vunpack.c.h.b16 %v5881
    %v6143 = vunpack.c.l.b16 %v5882
    %v6144 = vunpack.c.h.b16 %v5882
    %v6145 = vunpack.c.l.b16 %v5883
    %v6146 = vunpack.c.h.b16 %v5883
    %v6147 = vunpack.c.l.b16 %v5884
    %v6148 = vunpack.c.h.b16 %v5884
    %v6149 = vunpack.c.l.b16 %v5885
    %v6150 = vunpack.c.h.b16 %v5885
    %v6151 = vunpack.c.l.b16 %v5886
    %v6152 = vunpack.c.h.b16 %v5886
    %v6153 = vunpack.c.l.b16 %v5887
    %v6154 = vunpack.c.h.b16 %v5887
    %v6155 = vunpack.c.l.b16 %v5888
    %v6156 = vunpack.c.h.b16 %v5888
    %v6157 = vunpack.c.l.b16 %v5889
    %v6158 = vunpack.c.h.b16 %v5889
    %v6159 = vunpack.c.l.b16 %v5890
    %v6160 = vunpack.c.h.b16 %v5890
    %v6161 = vunpack.c.l.b16 %v5891
    %v6162 = vunpack.c.h.b16 %v5891
    %v6163 = vunpack.c.l.b16 %v5892
    %v6164 = vunpack.c.h.b16 %v5892
    %v6165 = vunpack.c.l.b16 %v5893
    %v6166 = vunpack.c.h.b16 %v5893
    %v6167 = vunpack.c.l.b16 %v5894
    %v6168 = vunpack.c.h.b16 %v5894
    %v6169 = vunpack.c.l.b16 %v5895
    %v6170 = vunpack.c.h.b16 %v5895
    %v6171 = vunpack.c.l.b16 %v5896
    %v6172 = vunpack.c.h.b16 %v5896
    %v6173 = vunpack.c.l.b16 %v5897
    %v6174 = vunpack.c.h.b16 %v5897
    %v6175 = vunpack.c.l.b16 %v5898
    %v6176 = vunpack.c.h.b16 %v5898
    %v6177 = vunpack.c.l.b16 %v5899
    %v6178 = vunpack.c.h.b16 %v5899
    %v6179 = vunpack.c.l.b16 %v5900
    %v6180 = vunpack.c.h.b16 %v5900
    %v6181 = vunpack.c.l.b16 %v5901
    %v6182 = vunpack.c.h.b16 %v5901
    %v6183 = vunpack.c.l.b16 %v5902
    %v6184 = vunpack.c.h.b16 %v5902
    %v6185 = vunpack.c.l.b16 %v5903
    %v6186 = vunpack.c.h.b16 %v5903
    %v6187 = vunpack.c.l.b16 %v5904
    %v6188 = vunpack.c.h.b16 %v5904
    %v6189 = vunpack.c.l.b16 %v5905
    %v6190 = vunpack.c.h.b16 %v5905
    %v6191 = vunpack.c.l.b16 %v5906
    %v6192 = vunpack.c.h.b16 %v5906
    %v6193 = vunpack.c.l.b16 %v5907
    %v6194 = vunpack.c.h.b16 %v5907
    %v6195 = vunpack.c.l.b16 %v5908
    %v6196 = vunpack.c.h.b16 %v5908
    %v6197 = vunpack.c.l.b16 %v5909
    %v6198 = vunpack.c.h.b16 %v5909
    %v6199 = vunpack.c.l.b16 %v5910
    %v6200 = vunpack.c.h.b16 %v5910
    %v6201 = vunpack.c.l.b16 %v5911
    %v6202 = vunpack.c.h.b16 %v5911
    %v6203 = vunpack.c.l.b16 %v5912
    %v6204 = vunpack.c.h.b16 %v5912
    %v6205 = vunpack.c.l.b16 %v5913
    %v6206 = vunpack.c.h.b16 %v5913
    %v6207 = vunpack.c.l.b16 %v5914
    %v6208 = vunpack.c.h.b16 %v5914
    %v6209 = vpack.c.b16 %v6023, %v6017
    %v6210 = vpack.c.b16 %v6024, %v6018
    %v6211 = vpack.c.b16 %v6025, %v6019
    %v6212 = vpack.c.b16 %v6026, %v6020
    %v6213 = vpack.c.b16 %v6027, %v6021
    %v6214 = vpack.c.b16 %v6028, %v6022
    %v6215 = vpack.c.b16 %v6035, %v6029
    %v6216 = vpack.c.b16 %v6036, %v6030
    %v6217 = vpack.c.b16 %v6037, %v6031
    %v6218 = vpack.c.b16 %v6038, %v6032
    %v6219 = vpack.c.b16 %v6039, %v6033
    %v6220 = vpack.c.b16 %v6040, %v6034
    %v6221 = vpack.c.b16 %v6047, %v6041
    %v6222 = vpack.c.b16 %v6048, %v6042
    %v6223 = vpack.c.b16 %v6049, %v6043
    %v6224 = vpack.c.b16 %v6050, %v6044
    %v6225 = vpack.c.b16 %v6051, %v6045
    %v6226 = vpack.c.b16 %v6052, %v6046
    %v6227 = vpack.c.b16 %v6059, %v6053
    %v6228 = vpack.c.b16 %v6060, %v6054
    %v6229 = vpack.c.b16 %v6061, %v6055
    %v6230 = vpack.c.b16 %v6062, %v6056
    %v6231 = vpack.c.b16 %v6063, %v6057
    %v6232 = vpack.c.b16 %v6064, %v6058
    %v6233 = vpack.c.b16 %v6071, %v6065
    %v6234 = vpack.c.b16 %v6072, %v6066
    %v6235 = vpack.c.b16 %v6073, %v6067
    %v6236 = vpack.c.b16 %v6074, %v6068
    %v6237 = vpack.c.b16 %v6075, %v6069
    %v6238 = vpack.c.b16 %v6076, %v6070
    %v6239 = vpack.c.b16 %v6083, %v6077
    %v6240 = vpack.c.b16 %v6084, %v6078
    %v6241 = vpack.c.b16 %v6085, %v6079
    %v6242 = vpack.c.b16 %v6086, %v6080
    %v6243 = vpack.c.b16 %v6087, %v6081
    %v6244 = vpack.c.b16 %v6088, %v6082
    %v6245 = vpack.c.b16 %v6095, %v6089
    %v6246 = vpack.c.b16 %v6096, %v6090
    %v6247 = vpack.c.b16 %v6097, %v6091
    %v6248 = vpack.c.b16 %v6098, %v6092
    %v6249 = vpack.c.b16 %v6099, %v6093
    %v6250 = vpack.c.b16 %v6100, %v6094
    %v6251 = vpack.c.b16 %v6107, %v6101
    %v6252 = vpack.c.b16 %v6108, %v6102
    %v6253 = vpack.c.b16 %v6109, %v6103
    %v6254 = vpack.c.b16 %v6110, %v6104
    %v6255 = vpack.c.b16 %v6111, %v6105
    %v6256 = vpack.c.b16 %v6112, %v6106
    %v6257 = vpack.c.b16 %v6119, %v6113
    %v6258 = vpack.c.b16 %v6120, %v6114
    %v6259 = vpack.c.b16 %v6121, %v6115
    %v6260 = vpack.c.b16 %v6122, %v6116
    %v6261 = vpack.c.b16 %v6123, %v6117
    %v6262 = vpack.c.b16 %v6124, %v6118
    %v6263 = vpack.c.b16 %v6131, %v6125
    %v6264 = vpack.c.b16 %v6132, %v6126
    %v6265 = vpack.c.b16 %v6133, %v6127
    %v6266 = vpack.c.b16 %v6134, %v6128
    %v6267 = vpack.c.b16 %v6135, %v6129
    %v6268 = vpack.c.b16 %v6136, %v6130
    %v6269 = vpack.c.b16 %v6143, %v6137
    %v6270 = vpack.c.b16 %v6144, %v6138
    %v6271 = vpack.c.b16 %v6145, %v6139
    %v6272 = vpack.c.b16 %v6146, %v6140
    %v6273 = vpack.c.b16 %v6147, %v6141
    %v6274 = vpack.c.b16 %v6148, %v6142
    %v6275 = vpack.c.b16 %v6155, %v6149
    %v6276 = vpack.c.b16 %v6156, %v6150
    %v6277 = vpack.c.b16 %v6157, %v6151
    %v6278 = vpack.c.b16 %v6158, %v6152
    %v6279 = vpack.c.b16 %v6159, %v6153
    %v6280 = vpack.c.b16 %v6160, %v6154
    %v6281 = vpack.c.b16 %v6167, %v6161
    %v6282 = vpack.c.b16 %v6168, %v6162
    %v6283 = vpack.c.b16 %v6169, %v6163
    %v6284 = vpack.c.b16 %v6170, %v6164
    %v6285 = vpack.c.b16 %v6171, %v6165
    %v6286 = vpack.c.b16 %v6172, %v6166
    %v6287 = vpack.c.b16 %v6179, %v6173
    %v6288 = vpack.c.b16 %v6180, %v6174
    %v6289 = vpack.c.b16 %v6181, %v6175
    %v6290 = vpack.c.b16 %v6182, %v6176
    %v6291 = vpack.c.b16 %v6183, %v6177
    %v6292 = vpack.c.b16 %v6184, %v6178
    %v6293 = vpack.c.b16 %v6191, %v6185
    %v6294 = vpack.c.b16 %v6192, %v6186
    %v6295 = vpack.c.b16 %v6193, %v6187
    %v6296 = vpack.c.b16 %v6194, %v6188
    %v6297 = vpack.c.b16 %v6195, %v6189
    %v6298 = vpack.c.b16 %v6196, %v6190
    %v6299 = vpack.c.b16 %v6203, %v6197
    %v6300 = vpack.c.b16 %v6204, %v6198
    %v6301 = vpack.c.b16 %v6205, %v6199
    %v6302 = vpack.c.b16 %v6206, %v6200
    %v6303 = vpack.c.b16 %v6207, %v6201
    %v6304 = vpack.c.b16 %v6208, %v6202
    %6401 = vmatprep.subr.bf16.mxu0 %v6210
    %6402 = vmatpush1.bf16.msra.mxu0 %v6209
    %6403 = vmatprep.subr.bf16.mxu0 %v6216
    %6404 = vmatpush1.bf16.msra.mxu0 %v6215
    %6405 = vmatprep.subr.bf16.mxu0 %v6222
    %6406 = vmatpush1.bf16.msra.mxu0 %v6221
    %6407 = vmatprep.subr.bf16.mxu0 %v6228
    %6408 = vmatpush1.bf16.msra.mxu0 %v6227
    %6409 = vmatprep.subr.bf16.mxu0 %v6234
    %6410 = vmatpush1.bf16.msra.mxu0 %v6233
    %6411 = vmatprep.subr.bf16.mxu0 %v6240
    %6412 = vmatpush1.bf16.msra.mxu0 %v6239
    %6413 = vmatprep.subr.bf16.mxu0 %v6246
    %6414 = vmatpush1.bf16.msra.mxu0 %v6245
    %6415 = vmatprep.subr.bf16.mxu0 %v6252
    %6416 = vmatpush1.bf16.msra.mxu0 %v6251
    %6417 = vmatprep.subr.bf16.mxu0 %v6258
    %6418 = vmatpush1.bf16.msra.mxu0 %v6257
    %6419 = vmatprep.subr.bf16.mxu0 %v6264
    %6420 = vmatpush1.bf16.msra.mxu0 %v6263
    %6421 = vmatprep.subr.bf16.mxu0 %v6270
    %6422 = vmatpush1.bf16.msra.mxu0 %v6269
    %6423 = vmatprep.subr.bf16.mxu0 %v6276
    %6424 = vmatpush1.bf16.msra.mxu0 %v6275
    %6425 = vmatprep.subr.bf16.mxu0 %v6282
    %6426 = vmatpush1.bf16.msra.mxu0 %v6281
    %6427 = vmatprep.subr.bf16.mxu0 %v6288
    %6428 = vmatpush1.bf16.msra.mxu0 %v6287
    %6429 = vmatprep.subr.bf16.mxu0 %v6294
    %6430 = vmatpush1.bf16.msra.mxu0 %v6293
    %6431 = vmatprep.subr.bf16.mxu0 %v6300
    %6432 = vmatpush1.bf16.msra.mxu0 %v6299
    %6433 = vmatprep.mubr.bf16.mxu0 %v5918
    %6434 = vmatmul.mubr.bf16.gmra.mrb[0].mxu0 %v5917
    %v6435 = vpop.f32.mrb[0].mxu0
    %v6436 = vadd.f32 0.0, %v6435
    %v6437 = vpop.f32.mrb[0].mxu0
    %v6438 = vadd.f32 0.0, %v6437
    %v6439 = vpop.f32.mrb[0].mxu0
    %v6440 = vpop.f32.mrb[0].mxu0
    %6441 = vdwg.mxu0
    %6442 = vmatprep.subr.bf16.mxu0 %v6212
    %6443 = vmatpush1.bf16.msra.mxu0 %v6211
    %6444 = vmatprep.subr.bf16.mxu0 %v6218
    %6445 = vmatpush1.bf16.msra.mxu0 %v6217
    %6446 = vmatprep.subr.bf16.mxu0 %v6224
    %6447 = vmatpush1.bf16.msra.mxu0 %v6223
    %6448 = vmatprep.subr.bf16.mxu0 %v6230
    %6449 = vmatpush1.bf16.msra.mxu0 %v6229
    %6450 = vmatprep.subr.bf16.mxu0 %v6236
    %6451 = vmatpush1.bf16.msra.mxu0 %v6235
    %6452 = vmatprep.subr.bf16.mxu0 %v6242
    %6453 = vmatpush1.bf16.msra.mxu0 %v6241
    %6454 = vmatprep.subr.bf16.mxu0 %v6248
    %6455 = vmatpush1.bf16.msra.mxu0 %v6247
    %6456 = vmatprep.subr.bf16.mxu0 %v6254
    %6457 = vmatpush1.bf16.msra.mxu0 %v6253
    %6458 = vmatprep.subr.bf16.mxu0 %v6260
    %6459 = vmatpush1.bf16.msra.mxu0 %v6259
    %6460 = vmatprep.subr.bf16.mxu0 %v6266
    %6461 = vmatpush1.bf16.msra.mxu0 %v6265
    %6462 = vmatprep.subr.bf16.mxu0 %v6272
    %6463 = vmatpush1.bf16.msra.mxu0 %v6271
    %6464 = vmatprep.subr.bf16.mxu0 %v6278
    %6465 = vmatpush1.bf16.msra.mxu0 %v6277
    %6466 = vmatprep.subr.bf16.mxu0 %v6284
    %6467 = vmatpush1.bf16.msra.mxu0 %v6283
    %6468 = vmatprep.subr.bf16.mxu0 %v6290
    %6469 = vmatpush1.bf16.msra.mxu0 %v6289
    %6470 = vmatprep.subr.bf16.mxu0 %v6296
    %6471 = vmatpush1.bf16.msra.mxu0 %v6295
    %6472 = vmatprep.subr.bf16.mxu0 %v6302
    %6473 = vmatpush1.bf16.msra.mxu0 %v6301
    %6474 = vmatprep.mubr.bf16.mxu0 %v5918
    %6475 = vmatmul.mubr.bf16.gmra.mrb[0].mxu0 %v5917
    %v6476 = vpop.f32.mrb[0].mxu0
    %v6477 = vadd.f32 0.0, %v6476
    %v6478 = vpop.f32.mrb[0].mxu0
    %v6479 = vadd.f32 0.0, %v6478
    %v6480 = vpop.f32.mrb[0].mxu0
    %v6481 = vpop.f32.mrb[0].mxu0
    %6482 = vdwg.mxu0
    %6483 = vmatprep.subr.bf16.mxu0 %v6214
    %6484 = vmatpush1.bf16.msra.mxu0 %v6213
    %6485 = vmatprep.subr.bf16.mxu0 %v6220
    %6486 = vmatpush1.bf16.msra.mxu0 %v6219
    %6487 = vmatprep.subr.bf16.mxu0 %v6226
    %6488 = vmatpush1.bf16.msra.mxu0 %v6225
    %6489 = vmatprep.subr.bf16.mxu0 %v6232
    %6490 = vmatpush1.bf16.msra.mxu0 %v6231
    %6491 = vmatprep.subr.bf16.mxu0 %v6238
    %6492 = vmatpush1.bf16.msra.mxu0 %v6237
    %6493 = vmatprep.subr.bf16.mxu0 %v6244
    %6494 = vmatpush1.bf16.msra.mxu0 %v6243
    %6495 = vmatprep.subr.bf16.mxu0 %v6250
    %6496 = vmatpush1.bf16.msra.mxu0 %v6249
    %6497 = vmatprep.subr.bf16.mxu0 %v6256
    %6498 = vmatpush1.bf16.msra.mxu0 %v6255
    %6499 = vmatprep.subr.bf16.mxu0 %v6262
    %6500 = vmatpush1.bf16.msra.mxu0 %v6261
    %6501 = vmatprep.subr.bf16.mxu0 %v6268
    %6502 = vmatpush1.bf16.msra.mxu0 %v6267
    %6503 = vmatprep.subr.bf16.mxu0 %v6274
    %6504 = vmatpush1.bf16.msra.mxu0 %v6273
    %6505 = vmatprep.subr.bf16.mxu0 %v6280
    %6506 = vmatpush1.bf16.msra.mxu0 %v6279
    %6507 = vmatprep.subr.bf16.mxu0 %v6286
    %6508 = vmatpush1.bf16.msra.mxu0 %v6285
    %6509 = vmatprep.subr.bf16.mxu0 %v6292
    %6510 = vmatpush1.bf16.msra.mxu0 %v6291
    %6511 = vmatprep.subr.bf16.mxu0 %v6298
    %6512 = vmatpush1.bf16.msra.mxu0 %v6297
    %6513 = vmatprep.subr.bf16.mxu0 %v6304
    %6514 = vmatpush1.bf16.msra.mxu0 %v6303
    %6515 = vmatprep.mubr.bf16.mxu0 %v5918
    %6516 = vmatmul.mubr.bf16.gmra.mrb[0].mxu0 %v5917
    %v6517 = vpop.f32.mrb[0].mxu0
    %v6518 = vadd.f32 0.0, %v6517
    %v6519 = vpop.f32.mrb[0].mxu0
    %v6520 = vadd.f32 0.0, %v6519
    %v6521 = vpop.f32.mrb[0].mxu0
    %v6522 = vpop.f32.mrb[0].mxu0
    %6523 = vdwg.mxu0
    %v6526 = vrot.slane %v6436, 2
    %v6527 = vrot.slane %v6438, 2
    %v6530 = vadd.f32 %v5811, %v6526
    %v6531 = vadd.f32 %v5812, %v6527
    %v6532 = vxor.u32 %v6530, 2147483648
    %v6533 = vxor.u32 %v6531, 2147483648
    %v6534 = vmul.f32 %v6532, 1.442695
    %v6535 = vpow.pop %v6534
    %v6536 = vmul.f32 %v6533, 1.442695
    %v6537 = vpow.pop %v6536
    %v6538 = vadd.f32 %v6535, 1.0
    %v6539 = vadd.f32 %v6537, 1.0
    %v6540 = vrcp.pop %v6538
    %v6541 = vmul.f32 1.0, %v6540
    %v6542 = vrcp.pop %v6539
    %v6543 = vmul.f32 1.0, %v6542
    %v6546 = vrot.slane %v6477, 2
    %v6547 = vrot.slane %v6479, 2
    %v6550 = vadd.f32 %v5813, %v6546
    %v6551 = vadd.f32 %v5814, %v6547
    %v6552 = vxor.u32 %v6550, 2147483648
    %v6553 = vxor.u32 %v6551, 2147483648
    %v6554 = vmul.f32 %v6552, 1.442695
    %v6555 = vpow.pop %v6554
    %v6556 = vmul.f32 %v6553, 1.442695
    %v6557 = vpow.pop %v6556
    %v6558 = vadd.f32 %v6555, 1.0
    %v6559 = vadd.f32 %v6557, 1.0
    %v6560 = vrcp.pop %v6558
    %v6561 = vmul.f32 1.0, %v6560
    %v6562 = vrcp.pop %v6559
    %v6563 = vmul.f32 1.0, %v6562
    %v6564 = vld [vmem:[%s3] sm:$0x3]
    %v6566 = vlaneseq
    %v6567 = vshrl.u32 %v6566, 7
    %v6568 = vsub.s32 0, %v6567
    %v6569 = vrot.slane %v6564, %v6568
    %v6570 = vlaneseq
    %v6571 = vshrl.u32 %v6570, 7
    %v6572 = vsub.s32 1, %v6571
    %v6573 = vrot.slane %v6564, %v6572
    %v6576 = vadd.f32 %v6518, %v6569
    %v6577 = vadd.f32 %v6520, %v6573
    %v6580 = vrot.slane %v6576, 2
    %v6581 = vrot.slane %v6577, 2
    %v6584 = vmul.f32 %v6541, %v6580
    %v6585 = vmul.f32 %v6543, %v6581
    %v6586 = vadd.f32 %v5815, %v6584
    %v6587 = vadd.f32 %v5816, %v6585
    %v6588 = vtanh.pop %v6586
    %v6589 = vtanh.pop %v6587
    %v6590 = vsub.f32 1.0, %v6561
    %v6591 = vsub.f32 1.0, %v6563
    %v6592 = vmul.f32 %v6590, %v6588
    %v6593 = vmul.f32 %v6591, %v6589
    %v6596 = vrot.slane %v5807, 6
    %v6597 = vrot.slane %v5808, 6
    %v6600 = vmul.f32 %v6561, %v6596
    %v6601 = vmul.f32 %v6563, %v6597
    %v6602 = vadd.f32 %v6592, %v6600
    %v6603 = vadd.f32 %v6593, %v6601
    %6604 = vst [vmem:[#allocation3 + $0x10] sm:$0xc0] %v6602
    %6605 = vst [vmem:[#allocation3 + $0x18] sm:$0xc0] %v6603
    %v6606 = vld [vmem:[#allocation3] sm:$0xff]
    %v6607 = vld [vmem:[#allocation3 + $0x8] sm:$0xff]
    %v6608 = vld [vmem:[#allocation3 + $0x10] sm:$0xff]
    %v6609 = vld [vmem:[#allocation3 + $0x18] sm:$0xff]
    %v6610 = vpack.c.bf16 %v6608, %v6606
    %v6611 = vpack.c.bf16 %v6609, %v6607
    %v6612 = vld [vmem:[#allocation7] sm:$0xff]
    %v6613 = vld [vmem:[#allocation7 + $0x8] sm:$0xff]
    %v6614 = vld [vmem:[#allocation7 + $0x10] sm:$0xff]
    %v6615 = vld [vmem:[#allocation7 + $0x18] sm:$0xff]
    %v6616 = vld [vmem:[#allocation7 + $0x20] sm:$0xff]
    %v6617 = vld [vmem:[#allocation7 + $0x28] sm:$0xff]
    %v6618 = vld [vmem:[#allocation7 + $0x30] sm:$0xff]
    %v6619 = vld [vmem:[#allocation7 + $0x38] sm:$0xff]
    %v6620 = vld [vmem:[#allocation7 + $0x40] sm:$0xff]
    %v6621 = vld [vmem:[#allocation7 + $0x48] sm:$0xff]
    %v6622 = vld [vmem:[#allocation7 + $0x50] sm:$0xff]
    %v6623 = vld [vmem:[#allocation7 + $0x58] sm:$0xff]
    %v6624 = vld [vmem:[#allocation7 + $0x60] sm:$0xff]
    %v6625 = vld [vmem:[#allocation7 + $0x68] sm:$0xff]
    %v6626 = vld [vmem:[#allocation7 + $0x70] sm:$0xff]
    %v6627 = vld [vmem:[#allocation7 + $0x78] sm:$0xff]
    %v6628 = vld [vmem:[#allocation7 + $0x80] sm:$0xff]
    %v6629 = vld [vmem:[#allocation7 + $0x88] sm:$0xff]
    %v6630 = vld [vmem:[#allocation7 + $0x90] sm:$0xff]
    %v6631 = vld [vmem:[#allocation7 + $0x98] sm:$0xff]
    %v6632 = vld [vmem:[#allocation7 + $0xa0] sm:$0xff]
    %v6633 = vld [vmem:[#allocation7 + $0xa8] sm:$0xff]
    %v6634 = vld [vmem:[#allocation7 + $0xb0] sm:$0xff]
    %v6635 = vld [vmem:[#allocation7 + $0xb8] sm:$0xff]
    %v6636 = vld [vmem:[#allocation7 + $0xc0] sm:$0xff]
    %v6637 = vld [vmem:[#allocation7 + $0xc8] sm:$0xff]
    %v6638 = vld [vmem:[#allocation7 + $0xd0] sm:$0xff]
    %v6639 = vld [vmem:[#allocation7 + $0xd8] sm:$0xff]
    %v6640 = vld [vmem:[#allocation7 + $0xe0] sm:$0xff]
    %v6641 = vld [vmem:[#allocation7 + $0xe8] sm:$0xff]
    %v6642 = vld [vmem:[#allocation7 + $0xf0] sm:$0xff]
    %v6643 = vld [vmem:[#allocation7 + $0xf8] sm:$0xff]
    %v6644 = vld [vmem:[#allocation7 + $0x100] sm:$0xff]
    %v6645 = vld [vmem:[#allocation7 + $0x108] sm:$0xff]
    %v6646 = vld [vmem:[#allocation7 + $0x110] sm:$0xff]
    %v6647 = vld [vmem:[#allocation7 + $0x118] sm:$0xff]
    %v6648 = vld [vmem:[#allocation7 + $0x120] sm:$0xff]
    %v6649 = vld [vmem:[#allocation7 + $0x128] sm:$0xff]
    %v6650 = vld [vmem:[#allocation7 + $0x130] sm:$0xff]
    %v6651 = vld [vmem:[#allocation7 + $0x138] sm:$0xff]
    %v6652 = vld [vmem:[#allocation7 + $0x140] sm:$0xff]
    %v6653 = vld [vmem:[#allocation7 + $0x148] sm:$0xff]
    %v6654 = vld [vmem:[#allocation7 + $0x150] sm:$0xff]
    %v6655 = vld [vmem:[#allocation7 + $0x158] sm:$0xff]
    %v6656 = vld [vmem:[#allocation7 + $0x160] sm:$0xff]
    %v6657 = vld [vmem:[#allocation7 + $0x168] sm:$0xff]
    %v6658 = vld [vmem:[#allocation7 + $0x170] sm:$0xff]
    %v6659 = vld [vmem:[#allocation7 + $0x178] sm:$0xff]
    %v6660 = vld [vmem:[#allocation7 + $0x180] sm:$0xff]
    %v6661 = vld [vmem:[#allocation7 + $0x188] sm:$0xff]
    %v6662 = vld [vmem:[#allocation7 + $0x190] sm:$0xff]
    %v6663 = vld [vmem:[#allocation7 + $0x198] sm:$0xff]
    %v6664 = vld [vmem:[#allocation7 + $0x1a0] sm:$0xff]
    %v6665 = vld [vmem:[#allocation7 + $0x1a8] sm:$0xff]
    %v6666 = vld [vmem:[#allocation7 + $0x1b0] sm:$0xff]
    %v6667 = vld [vmem:[#allocation7 + $0x1b8] sm:$0xff]
    %v6668 = vld [vmem:[#allocation7 + $0x1c0] sm:$0xff]
    %v6669 = vld [vmem:[#allocation7 + $0x1c8] sm:$0xff]
    %v6670 = vld [vmem:[#allocation7 + $0x1d0] sm:$0xff]
    %v6671 = vld [vmem:[#allocation7 + $0x1d8] sm:$0xff]
    %v6672 = vld [vmem:[#allocation7 + $0x1e0] sm:$0xff]
    %v6673 = vld [vmem:[#allocation7 + $0x1e8] sm:$0xff]
    %v6674 = vld [vmem:[#allocation7 + $0x1f0] sm:$0xff]
    %v6675 = vld [vmem:[#allocation7 + $0x1f8] sm:$0xff]
    %v6676 = vld [vmem:[%s6] sm:$0xf]
    %v6678 = vlaneseq
    %v6679 = vshrl.u32 %v6678, 7
    %v6680 = vsub.s32 0, %v6679
    %v6681 = vrot.slane %v6676, %v6680
    %v6682 = vlaneseq
    %v6683 = vshrl.u32 %v6682, 7
    %v6684 = vsub.s32 1, %v6683
    %v6685 = vrot.slane %v6676, %v6684
    %v6686 = vlaneseq
    %v6687 = vshrl.u32 %v6686, 7
    %v6688 = vsub.s32 2, %v6687
    %v6689 = vrot.slane %v6676, %v6688
    %v6690 = vlaneseq
    %v6691 = vshrl.u32 %v6690, 7
    %v6692 = vsub.s32 3, %v6691
    %v6693 = vrot.slane %v6676, %v6692
    %v6762 = vunpack.c.l.b16 %v6612
    %v6763 = vunpack.c.h.b16 %v6612
    %v6764 = vunpack.c.l.b16 %v6613
    %v6765 = vunpack.c.h.b16 %v6613
    %v6766 = vunpack.c.l.b16 %v6614
    %v6767 = vunpack.c.h.b16 %v6614
    %v6768 = vunpack.c.l.b16 %v6615
    %v6769 = vunpack.c.h.b16 %v6615
    %v6770 = vunpack.c.l.b16 %v6616
    %v6771 = vunpack.c.h.b16 %v6616
    %v6772 = vunpack.c.l.b16 %v6617
    %v6773 = vunpack.c.h.b16 %v6617
    %v6774 = vunpack.c.l.b16 %v6618
    %v6775 = vunpack.c.h.b16 %v6618
    %v6776 = vunpack.c.l.b16 %v6619
    %v6777 = vunpack.c.h.b16 %v6619
    %v6778 = vunpack.c.l.b16 %v6620
    %v6779 = vunpack.c.h.b16 %v6620
    %v6780 = vunpack.c.l.b16 %v6621
    %v6781 = vunpack.c.h.b16 %v6621
    %v6782 = vunpack.c.l.b16 %v6622
    %v6783 = vunpack.c.h.b16 %v6622
    %v6784 = vunpack.c.l.b16 %v6623
    %v6785 = vunpack.c.h.b16 %v6623
    %v6786 = vunpack.c.l.b16 %v6624
    %v6787 = vunpack.c.h.b16 %v6624
    %v6788 = vunpack.c.l.b16 %v6625
    %v6789 = vunpack.c.h.b16 %v6625
    %v6790 = vunpack.c.l.b16 %v6626
    %v6791 = vunpack.c.h.b16 %v6626
    %v6792 = vunpack.c.l.b16 %v6627
    %v6793 = vunpack.c.h.b16 %v6627
    %v6794 = vunpack.c.l.b16 %v6628
    %v6795 = vunpack.c.h.b16 %v6628
    %v6796 = vunpack.c.l.b16 %v6629
    %v6797 = vunpack.c.h.b16 %v6629
    %v6798 = vunpack.c.l.b16 %v6630
    %v6799 = vunpack.c.h.b16 %v6630
    %v6800 = vunpack.c.l.b16 %v6631
    %v6801 = vunpack.c.h.b16 %v6631
    %v6802 = vunpack.c.l.b16 %v6632
    %v6803 = vunpack.c.h.b16 %v6632
    %v6804 = vunpack.c.l.b16 %v6633
    %v6805 = vunpack.c.h.b16 %v6633
    %v6806 = vunpack.c.l.b16 %v6634
    %v6807 = vunpack.c.h.b16 %v6634
    %v6808 = vunpack.c.l.b16 %v6635
    %v6809 = vunpack.c.h.b16 %v6635
    %v6810 = vunpack.c.l.b16 %v6636
    %v6811 = vunpack.c.h.b16 %v6636
    %v6812 = vunpack.c.l.b16 %v6637
    %v6813 = vunpack.c.h.b16 %v6637
    %v6814 = vunpack.c.l.b16 %v6638
    %v6815 = vunpack.c.h.b16 %v6638
    %v6816 = vunpack.c.l.b16 %v6639
    %v6817 = vunpack.c.h.b16 %v6639
    %v6818 = vunpack.c.l.b16 %v6640
    %v6819 = vunpack.c.h.b16 %v6640
    %v6820 = vunpack.c.l.b16 %v6641
    %v6821 = vunpack.c.h.b16 %v6641
    %v6822 = vunpack.c.l.b16 %v6642
    %v6823 = vunpack.c.h.b16 %v6642
    %v6824 = vunpack.c.l.b16 %v6643
    %v6825 = vunpack.c.h.b16 %v6643
    %v6826 = vunpack.c.l.b16 %v6644
    %v6827 = vunpack.c.h.b16 %v6644
    %v6828 = vunpack.c.l.b16 %v6645
    %v6829 = vunpack.c.h.b16 %v6645
    %v6830 = vunpack.c.l.b16 %v6646
    %v6831 = vunpack.c.h.b16 %v6646
    %v6832 = vunpack.c.l.b16 %v6647
    %v6833 = vunpack.c.h.b16 %v6647
    %v6834 = vunpack.c.l.b16 %v6648
    %v6835 = vunpack.c.h.b16 %v6648
    %v6836 = vunpack.c.l.b16 %v6649
    %v6837 = vunpack.c.h.b16 %v6649
    %v6838 = vunpack.c.l.b16 %v6650
    %v6839 = vunpack.c.h.b16 %v6650
    %v6840 = vunpack.c.l.b16 %v6651
    %v6841 = vunpack.c.h.b16 %v6651
    %v6842 = vunpack.c.l.b16 %v6652
    %v6843 = vunpack.c.h.b16 %v6652
    %v6844 = vunpack.c.l.b16 %v6653
    %v6845 = vunpack.c.h.b16 %v6653
    %v6846 = vunpack.c.l.b16 %v6654
    %v6847 = vunpack.c.h.b16 %v6654
    %v6848 = vunpack.c.l.b16 %v6655
    %v6849 = vunpack.c.h.b16 %v6655
    %v6850 = vunpack.c.l.b16 %v6656
    %v6851 = vunpack.c.h.b16 %v6656
    %v6852 = vunpack.c.l.b16 %v6657
    %v6853 = vunpack.c.h.b16 %v6657
    %v6854 = vunpack.c.l.b16 %v6658
    %v6855 = vunpack.c.h.b16 %v6658
    %v6856 = vunpack.c.l.b16 %v6659
    %v6857 = vunpack.c.h.b16 %v6659
    %v6858 = vunpack.c.l.b16 %v6660
    %v6859 = vunpack.c.h.b16 %v6660
    %v6860 = vunpack.c.l.b16 %v6661
    %v6861 = vunpack.c.h.b16 %v6661
    %v6862 = vunpack.c.l.b16 %v6662
    %v6863 = vunpack.c.h.b16 %v6662
    %v6864 = vunpack.c.l.b16 %v6663
    %v6865 = vunpack.c.h.b16 %v6663
    %v6866 = vunpack.c.l.b16 %v6664
    %v6867 = vunpack.c.h.b16 %v6664
    %v6868 = vunpack.c.l.b16 %v6665
    %v6869 = vunpack.c.h.b16 %v6665
    %v6870 = vunpack.c.l.b16 %v6666
    %v6871 = vunpack.c.h.b16 %v6666
    %v6872 = vunpack.c.l.b16 %v6667
    %v6873 = vunpack.c.h.b16 %v6667
    %v6874 = vunpack.c.l.b16 %v6668
    %v6875 = vunpack.c.h.b16 %v6668
    %v6876 = vunpack.c.l.b16 %v6669
    %v6877 = vunpack.c.h.b16 %v6669
    %v6878 = vunpack.c.l.b16 %v6670
    %v6879 = vunpack.c.h.b16 %v6670
    %v6880 = vunpack.c.l.b16 %v6671
    %v6881 = vunpack.c.h.b16 %v6671
    %v6882 = vunpack.c.l.b16 %v6672
    %v6883 = vunpack.c.h.b16 %v6672
    %v6884 = vunpack.c.l.b16 %v6673
    %v6885 = vunpack.c.h.b16 %v6673
    %v6886 = vunpack.c.l.b16 %v6674
    %v6887 = vunpack.c.h.b16 %v6674
    %v6888 = vunpack.c.l.b16 %v6675
    %v6889 = vunpack.c.h.b16 %v6675
    %v6890 = vpack.c.b16 %v6766, %v6762
    %v6891 = vpack.c.b16 %v6767, %v6763
    %v6892 = vpack.c.b16 %v6768, %v6764
    %v6893 = vpack.c.b16 %v6769, %v6765
    %v6894 = vpack.c.b16 %v6774, %v6770
    %v6895 = vpack.c.b16 %v6775, %v6771
    %v6896 = vpack.c.b16 %v6776, %v6772
    %v6897 = vpack.c.b16 %v6777, %v6773
    %v6898 = vpack.c.b16 %v6782, %v6778
    %v6899 = vpack.c.b16 %v6783, %v6779
    %v6900 = vpack.c.b16 %v6784, %v6780
    %v6901 = vpack.c.b16 %v6785, %v6781
    %v6902 = vpack.c.b16 %v6790, %v6786
    %v6903 = vpack.c.b16 %v6791, %v6787
    %v6904 = vpack.c.b16 %v6792, %v6788
    %v6905 = vpack.c.b16 %v6793, %v6789
    %v6906 = vpack.c.b16 %v6798, %v6794
    %v6907 = vpack.c.b16 %v6799, %v6795
    %v6908 = vpack.c.b16 %v6800, %v6796
    %v6909 = vpack.c.b16 %v6801, %v6797
    %v6910 = vpack.c.b16 %v6806, %v6802
    %v6911 = vpack.c.b16 %v6807, %v6803
    %v6912 = vpack.c.b16 %v6808, %v6804
    %v6913 = vpack.c.b16 %v6809, %v6805
    %v6914 = vpack.c.b16 %v6814, %v6810
    %v6915 = vpack.c.b16 %v6815, %v6811
    %v6916 = vpack.c.b16 %v6816, %v6812
    %v6917 = vpack.c.b16 %v6817, %v6813
    %v6918 = vpack.c.b16 %v6822, %v6818
    %v6919 = vpack.c.b16 %v6823, %v6819
    %v6920 = vpack.c.b16 %v6824, %v6820
    %v6921 = vpack.c.b16 %v6825, %v6821
    %v6922 = vpack.c.b16 %v6830, %v6826
    %v6923 = vpack.c.b16 %v6831, %v6827
    %v6924 = vpack.c.b16 %v6832, %v6828
    %v6925 = vpack.c.b16 %v6833, %v6829
    %v6926 = vpack.c.b16 %v6838, %v6834
    %v6927 = vpack.c.b16 %v6839, %v6835
    %v6928 = vpack.c.b16 %v6840, %v6836
    %v6929 = vpack.c.b16 %v6841, %v6837
    %v6930 = vpack.c.b16 %v6846, %v6842
    %v6931 = vpack.c.b16 %v6847, %v6843
    %v6932 = vpack.c.b16 %v6848, %v6844
    %v6933 = vpack.c.b16 %v6849, %v6845
    %v6934 = vpack.c.b16 %v6854, %v6850
    %v6935 = vpack.c.b16 %v6855, %v6851
    %v6936 = vpack.c.b16 %v6856, %v6852
    %v6937 = vpack.c.b16 %v6857, %v6853
    %v6938 = vpack.c.b16 %v6862, %v6858
    %v6939 = vpack.c.b16 %v6863, %v6859
    %v6940 = vpack.c.b16 %v6864, %v6860
    %v6941 = vpack.c.b16 %v6865, %v6861
    %v6942 = vpack.c.b16 %v6870, %v6866
    %v6943 = vpack.c.b16 %v6871, %v6867
    %v6944 = vpack.c.b16 %v6872, %v6868
    %v6945 = vpack.c.b16 %v6873, %v6869
    %v6946 = vpack.c.b16 %v6878, %v6874
    %v6947 = vpack.c.b16 %v6879, %v6875
    %v6948 = vpack.c.b16 %v6880, %v6876
    %v6949 = vpack.c.b16 %v6881, %v6877
    %v6950 = vpack.c.b16 %v6886, %v6882
    %v6951 = vpack.c.b16 %v6887, %v6883
    %v6952 = vpack.c.b16 %v6888, %v6884
    %v6953 = vpack.c.b16 %v6889, %v6885
    %7018 = vmatprep.subr.bf16.mxu0 %v6891
    %7019 = vmatpush1.bf16.msra.mxu0 %v6890
    %7020 = vmatprep.subr.bf16.mxu0 %v6895
    %7021 = vmatpush1.bf16.msra.mxu0 %v6894
    %7022 = vmatprep.subr.bf16.mxu0 %v6899
    %7023 = vmatpush1.bf16.msra.mxu0 %v6898
    %7024 = vmatprep.subr.bf16.mxu0 %v6903
    %7025 = vmatpush1.bf16.msra.mxu0 %v6902
    %7026 = vmatprep.subr.bf16.mxu0 %v6907
    %7027 = vmatpush1.bf16.msra.mxu0 %v6906
    %7028 = vmatprep.subr.bf16.mxu0 %v6911
    %7029 = vmatpush1.bf16.msra.mxu0 %v6910
    %7030 = vmatprep.subr.bf16.mxu0 %v6915
    %7031 = vmatpush1.bf16.msra.mxu0 %v6914
    %7032 = vmatprep.subr.bf16.mxu0 %v6919
    %7033 = vmatpush1.bf16.msra.mxu0 %v6918
    %7034 = vmatprep.subr.bf16.mxu0 %v6923
    %7035 = vmatpush1.bf16.msra.mxu0 %v6922
    %7036 = vmatprep.subr.bf16.mxu0 %v6927
    %7037 = vmatpush1.bf16.msra.mxu0 %v6926
    %7038 = vmatprep.subr.bf16.mxu0 %v6931
    %7039 = vmatpush1.bf16.msra.mxu0 %v6930
    %7040 = vmatprep.subr.bf16.mxu0 %v6935
    %7041 = vmatpush1.bf16.msra.mxu0 %v6934
    %7042 = vmatprep.subr.bf16.mxu0 %v6939
    %7043 = vmatpush1.bf16.msra.mxu0 %v6938
    %7044 = vmatprep.subr.bf16.mxu0 %v6943
    %7045 = vmatpush1.bf16.msra.mxu0 %v6942
    %7046 = vmatprep.subr.bf16.mxu0 %v6947
    %7047 = vmatpush1.bf16.msra.mxu0 %v6946
    %7048 = vmatprep.subr.bf16.mxu0 %v6951
    %7049 = vmatpush1.bf16.msra.mxu0 %v6950
    %7050 = vmatprep.mubr.bf16.mxu0 %v6611
    %7051 = vmatmul.mubr.bf16.gmra.mrb[0].mxu0 %v6610
    %v7052 = vpop.f32.mrb[0].mxu0
    %v7053 = vadd.f32 %v6681, %v7052
    %v7054 = vpop.f32.mrb[0].mxu0
    %v7055 = vadd.f32 %v6685, %v7054
    %v7056 = vpop.f32.mrb[0].mxu0
    %v7057 = vadd.f32 %v6681, %v7056
    %v7058 = vpop.f32.mrb[0].mxu0
    %v7059 = vadd.f32 %v6685, %v7058
    %7060 = vdwg.mxu0
    %7061 = vmatprep.subr.bf16.mxu0 %v6893
    %7062 = vmatpush1.bf16.msra.mxu0 %v6892
    %7063 = vmatprep.subr.bf16.mxu0 %v6897
    %7064 = vmatpush1.bf16.msra.mxu0 %v6896
    %7065 = vmatprep.subr.bf16.mxu0 %v6901
    %7066 = vmatpush1.bf16.msra.mxu0 %v6900
    %7067 = vmatprep.subr.bf16.mxu0 %v6905
    %7068 = vmatpush1.bf16.msra.mxu0 %v6904
    %7069 = vmatprep.subr.bf16.mxu0 %v6909
    %7070 = vmatpush1.bf16.msra.mxu0 %v6908
    %7071 = vmatprep.subr.bf16.mxu0 %v6913
    %7072 = vmatpush1.bf16.msra.mxu0 %v6912
    %7073 = vmatprep.subr.bf16.mxu0 %v6917
    %7074 = vmatpush1.bf16.msra.mxu0 %v6916
    %7075 = vmatprep.subr.bf16.mxu0 %v6921
    %7076 = vmatpush1.bf16.msra.mxu0 %v6920
    %7077 = vmatprep.subr.bf16.mxu0 %v6925
    %7078 = vmatpush1.bf16.msra.mxu0 %v6924
    %7079 = vmatprep.subr.bf16.mxu0 %v6929
    %7080 = vmatpush1.bf16.msra.mxu0 %v6928
    %7081 = vmatprep.subr.bf16.mxu0 %v6933
    %7082 = vmatpush1.bf16.msra.mxu0 %v6932
    %7083 = vmatprep.subr.bf16.mxu0 %v6937
    %7084 = vmatpush1.bf16.msra.mxu0 %v6936
    %7085 = vmatprep.subr.bf16.mxu0 %v6941
    %7086 = vmatpush1.bf16.msra.mxu0 %v6940
    %7087 = vmatprep.subr.bf16.mxu0 %v6945
    %7088 = vmatpush1.bf16.msra.mxu0 %v6944
    %7089 = vmatprep.subr.bf16.mxu0 %v6949
    %7090 = vmatpush1.bf16.msra.mxu0 %v6948
    %7091 = vmatprep.subr.bf16.mxu0 %v6953
    %7092 = vmatpush1.bf16.msra.mxu0 %v6952
    %7093 = vmatprep.mubr.bf16.mxu0 %v6611
    %7094 = vmatmul.mubr.bf16.gmra.mrb[0].mxu0 %v6610
    %v7095 = vpop.f32.mrb[0].mxu0
    %v7096 = vadd.f32 %v6689, %v7095
    %v7097 = vpop.f32.mrb[0].mxu0
    %v7098 = vadd.f32 %v6693, %v7097
    %v7099 = vpop.f32.mrb[0].mxu0
    %v7100 = vadd.f32 %v6689, %v7099
    %v7101 = vpop.f32.mrb[0].mxu0
    %v7102 = vadd.f32 %v6693, %v7101
    %7103 = vdwg.mxu0
    %v7104 = vmax.f32 %v7053, 0.0
    %v7105 = vmax.f32 %v7055, 0.0
    %v7106 = vmax.f32 %v7096, 0.0
    %v7107 = vmax.f32 %v7098, 0.0
    %v7108 = vmax.f32 %v7057, 0.0
    %v7109 = vmax.f32 %v7059, 0.0
    %v7110 = vmax.f32 %v7100, 0.0
    %v7111 = vmax.f32 %v7102, 0.0
    %v7112 = vpack.c.bf16 %v7108, %v7104
    %v7113 = vpack.c.bf16 %v7109, %v7105
    %v7114 = vpack.c.bf16 %v7110, %v7106
    %v7115 = vpack.c.bf16 %v7111, %v7107
    %v7116 = vld [vmem:[#allocation9] sm:$0xff]
    %v7117 = vld [vmem:[#allocation9 + $0x8] sm:$0xff]
    %v7118 = vld [vmem:[#allocation9 + $0x10] sm:$0xff]
    %v7119 = vld [vmem:[#allocation9 + $0x18] sm:$0xff]
    %v7120 = vld [vmem:[#allocation9 + $0x20] sm:$0xff]
    %v7121 = vld [vmem:[#allocation9 + $0x28] sm:$0xff]
    %v7122 = vld [vmem:[#allocation9 + $0x30] sm:$0xff]
    %v7123 = vld [vmem:[#allocation9 + $0x38] sm:$0xff]
    %v7124 = vld [vmem:[#allocation9 + $0x40] sm:$0xff]
    %v7125 = vld [vmem:[#allocation9 + $0x48] sm:$0xff]
    %v7126 = vld [vmem:[#allocation9 + $0x50] sm:$0xff]
    %v7127 = vld [vmem:[#allocation9 + $0x58] sm:$0xff]
    %v7128 = vld [vmem:[#allocation9 + $0x60] sm:$0xff]
    %v7129 = vld [vmem:[#allocation9 + $0x68] sm:$0xff]
    %v7130 = vld [vmem:[#allocation9 + $0x70] sm:$0xff]
    %v7131 = vld [vmem:[#allocation9 + $0x78] sm:$0xff]
    %v7132 = vld [vmem:[#allocation9 + $0x80] sm:$0xff]
    %v7133 = vld [vmem:[#allocation9 + $0x88] sm:$0xff]
    %v7134 = vld [vmem:[#allocation9 + $0x90] sm:$0xff]
    %v7135 = vld [vmem:[#allocation9 + $0x98] sm:$0xff]
    %v7136 = vld [vmem:[#allocation9 + $0xa0] sm:$0xff]
    %v7137 = vld [vmem:[#allocation9 + $0xa8] sm:$0xff]
    %v7138 = vld [vmem:[#allocation9 + $0xb0] sm:$0xff]
    %v7139 = vld [vmem:[#allocation9 + $0xb8] sm:$0xff]
    %v7140 = vld [vmem:[#allocation9 + $0xc0] sm:$0xff]
    %v7141 = vld [vmem:[#allocation9 + $0xc8] sm:$0xff]
    %v7142 = vld [vmem:[#allocation9 + $0xd0] sm:$0xff]
    %v7143 = vld [vmem:[#allocation9 + $0xd8] sm:$0xff]
    %v7144 = vld [vmem:[#allocation9 + $0xe0] sm:$0xff]
    %v7145 = vld [vmem:[#allocation9 + $0xe8] sm:$0xff]
    %v7146 = vld [vmem:[#allocation9 + $0xf0] sm:$0xff]
    %v7147 = vld [vmem:[#allocation9 + $0xf8] sm:$0xff]
    %v7148 = vld [vmem:[#allocation9 + $0x100] sm:$0xff]
    %v7149 = vld [vmem:[#allocation9 + $0x108] sm:$0xff]
    %v7150 = vld [vmem:[#allocation9 + $0x110] sm:$0xff]
    %v7151 = vld [vmem:[#allocation9 + $0x118] sm:$0xff]
    %v7152 = vld [vmem:[#allocation9 + $0x120] sm:$0xff]
    %v7153 = vld [vmem:[#allocation9 + $0x128] sm:$0xff]
    %v7154 = vld [vmem:[#allocation9 + $0x130] sm:$0xff]
    %v7155 = vld [vmem:[#allocation9 + $0x138] sm:$0xff]
    %v7156 = vld [vmem:[#allocation9 + $0x140] sm:$0xff]
    %v7157 = vld [vmem:[#allocation9 + $0x148] sm:$0xff]
    %v7158 = vld [vmem:[#allocation9 + $0x150] sm:$0xff]
    %v7159 = vld [vmem:[#allocation9 + $0x158] sm:$0xff]
    %v7160 = vld [vmem:[#allocation9 + $0x160] sm:$0xff]
    %v7161 = vld [vmem:[#allocation9 + $0x168] sm:$0xff]
    %v7162 = vld [vmem:[#allocation9 + $0x170] sm:$0xff]
    %v7163 = vld [vmem:[#allocation9 + $0x178] sm:$0xff]
    %v7164 = vld [vmem:[#allocation9 + $0x180] sm:$0xff]
    %v7165 = vld [vmem:[#allocation9 + $0x188] sm:$0xff]
    %v7166 = vld [vmem:[#allocation9 + $0x190] sm:$0xff]
    %v7167 = vld [vmem:[#allocation9 + $0x198] sm:$0xff]
    %v7168 = vld [vmem:[#allocation9 + $0x1a0] sm:$0xff]
    %v7169 = vld [vmem:[#allocation9 + $0x1a8] sm:$0xff]
    %v7170 = vld [vmem:[#allocation9 + $0x1b0] sm:$0xff]
    %v7171 = vld [vmem:[#allocation9 + $0x1b8] sm:$0xff]
    %v7172 = vld [vmem:[#allocation9 + $0x1c0] sm:$0xff]
    %v7173 = vld [vmem:[#allocation9 + $0x1c8] sm:$0xff]
    %v7174 = vld [vmem:[#allocation9 + $0x1d0] sm:$0xff]
    %v7175 = vld [vmem:[#allocation9 + $0x1d8] sm:$0xff]
    %v7176 = vld [vmem:[#allocation9 + $0x1e0] sm:$0xff]
    %v7177 = vld [vmem:[#allocation9 + $0x1e8] sm:$0xff]
    %v7178 = vld [vmem:[#allocation9 + $0x1f0] sm:$0xff]
    %v7179 = vld [vmem:[#allocation9 + $0x1f8] sm:$0xff]
    %v7180 = vld [vmem:[%s8] sm:$0x3]
    %v7182 = vlaneseq
    %v7183 = vshrl.u32 %v7182, 7
    %v7184 = vsub.s32 0, %v7183
    %v7185 = vrot.slane %v7180, %v7184
    %v7186 = vlaneseq
    %v7187 = vshrl.u32 %v7186, 7
    %v7188 = vsub.s32 1, %v7187
    %v7189 = vrot.slane %v7180, %v7188
    %v7256 = vunpack.c.l.b16 %v7116
    %v7257 = vunpack.c.h.b16 %v7116
    %v7258 = vunpack.c.l.b16 %v7117
    %v7259 = vunpack.c.h.b16 %v7117
    %v7260 = vunpack.c.l.b16 %v7118
    %v7261 = vunpack.c.h.b16 %v7118
    %v7262 = vunpack.c.l.b16 %v7119
    %v7263 = vunpack.c.h.b16 %v7119
    %v7264 = vunpack.c.l.b16 %v7120
    %v7265 = vunpack.c.h.b16 %v7120
    %v7266 = vunpack.c.l.b16 %v7121
    %v7267 = vunpack.c.h.b16 %v7121
    %v7268 = vunpack.c.l.b16 %v7122
    %v7269 = vunpack.c.h.b16 %v7122
    %v7270 = vunpack.c.l.b16 %v7123
    %v7271 = vunpack.c.h.b16 %v7123
    %v7272 = vunpack.c.l.b16 %v7124
    %v7273 = vunpack.c.h.b16 %v7124
    %v7274 = vunpack.c.l.b16 %v7125
    %v7275 = vunpack.c.h.b16 %v7125
    %v7276 = vunpack.c.l.b16 %v7126
    %v7277 = vunpack.c.h.b16 %v7126
    %v7278 = vunpack.c.l.b16 %v7127
    %v7279 = vunpack.c.h.b16 %v7127
    %v7280 = vunpack.c.l.b16 %v7128
    %v7281 = vunpack.c.h.b16 %v7128
    %v7282 = vunpack.c.l.b16 %v7129
    %v7283 = vunpack.c.h.b16 %v7129
    %v7284 = vunpack.c.l.b16 %v7130
    %v7285 = vunpack.c.h.b16 %v7130
    %v7286 = vunpack.c.l.b16 %v7131
    %v7287 = vunpack.c.h.b16 %v7131
    %v7288 = vunpack.c.l.b16 %v7132
    %v7289 = vunpack.c.h.b16 %v7132
    %v7290 = vunpack.c.l.b16 %v7133
    %v7291 = vunpack.c.h.b16 %v7133
    %v7292 = vunpack.c.l.b16 %v7134
    %v7293 = vunpack.c.h.b16 %v7134
    %v7294 = vunpack.c.l.b16 %v7135
    %v7295 = vunpack.c.h.b16 %v7135
    %v7296 = vunpack.c.l.b16 %v7136
    %v7297 = vunpack.c.h.b16 %v7136
    %v7298 = vunpack.c.l.b16 %v7137
    %v7299 = vunpack.c.h.b16 %v7137
    %v7300 = vunpack.c.l.b16 %v7138
    %v7301 = vunpack.c.h.b16 %v7138
    %v7302 = vunpack.c.l.b16 %v7139
    %v7303 = vunpack.c.h.b16 %v7139
    %v7304 = vunpack.c.l.b16 %v7140
    %v7305 = vunpack.c.h.b16 %v7140
    %v7306 = vunpack.c.l.b16 %v7141
    %v7307 = vunpack.c.h.b16 %v7141
    %v7308 = vunpack.c.l.b16 %v7142
    %v7309 = vunpack.c.h.b16 %v7142
    %v7310 = vunpack.c.l.b16 %v7143
    %v7311 = vunpack.c.h.b16 %v7143
    %v7312 = vunpack.c.l.b16 %v7144
    %v7313 = vunpack.c.h.b16 %v7144
    %v7314 = vunpack.c.l.b16 %v7145
    %v7315 = vunpack.c.h.b16 %v7145
    %v7316 = vunpack.c.l.b16 %v7146
    %v7317 = vunpack.c.h.b16 %v7146
    %v7318 = vunpack.c.l.b16 %v7147
    %v7319 = vunpack.c.h.b16 %v7147
    %v7320 = vunpack.c.l.b16 %v7148
    %v7321 = vunpack.c.h.b16 %v7148
    %v7322 = vunpack.c.l.b16 %v7149
    %v7323 = vunpack.c.h.b16 %v7149
    %v7324 = vunpack.c.l.b16 %v7150
    %v7325 = vunpack.c.h.b16 %v7150
    %v7326 = vunpack.c.l.b16 %v7151
    %v7327 = vunpack.c.h.b16 %v7151
    %v7328 = vunpack.c.l.b16 %v7152
    %v7329 = vunpack.c.h.b16 %v7152
    %v7330 = vunpack.c.l.b16 %v7153
    %v7331 = vunpack.c.h.b16 %v7153
    %v7332 = vunpack.c.l.b16 %v7154
    %v7333 = vunpack.c.h.b16 %v7154
    %v7334 = vunpack.c.l.b16 %v7155
    %v7335 = vunpack.c.h.b16 %v7155
    %v7336 = vunpack.c.l.b16 %v7156
    %v7337 = vunpack.c.h.b16 %v7156
    %v7338 = vunpack.c.l.b16 %v7157
    %v7339 = vunpack.c.h.b16 %v7157
    %v7340 = vunpack.c.l.b16 %v7158
    %v7341 = vunpack.c.h.b16 %v7158
    %v7342 = vunpack.c.l.b16 %v7159
    %v7343 = vunpack.c.h.b16 %v7159
    %v7344 = vunpack.c.l.b16 %v7160
    %v7345 = vunpack.c.h.b16 %v7160
    %v7346 = vunpack.c.l.b16 %v7161
    %v7347 = vunpack.c.h.b16 %v7161
    %v7348 = vunpack.c.l.b16 %v7162
    %v7349 = vunpack.c.h.b16 %v7162
    %v7350 = vunpack.c.l.b16 %v7163
    %v7351 = vunpack.c.h.b16 %v7163
    %v7352 = vunpack.c.l.b16 %v7164
    %v7353 = vunpack.c.h.b16 %v7164
    %v7354 = vunpack.c.l.b16 %v7165
    %v7355 = vunpack.c.h.b16 %v7165
    %v7356 = vunpack.c.l.b16 %v7166
    %v7357 = vunpack.c.h.b16 %v7166
    %v7358 = vunpack.c.l.b16 %v7167
    %v7359 = vunpack.c.h.b16 %v7167
    %v7360 = vunpack.c.l.b16 %v7168
    %v7361 = vunpack.c.h.b16 %v7168
    %v7362 = vunpack.c.l.b16 %v7169
    %v7363 = vunpack.c.h.b16 %v7169
    %v7364 = vunpack.c.l.b16 %v7170
    %v7365 = vunpack.c.h.b16 %v7170
    %v7366 = vunpack.c.l.b16 %v7171
    %v7367 = vunpack.c.h.b16 %v7171
    %v7368 = vunpack.c.l.b16 %v7172
    %v7369 = vunpack.c.h.b16 %v7172
    %v7370 = vunpack.c.l.b16 %v7173
    %v7371 = vunpack.c.h.b16 %v7173
    %v7372 = vunpack.c.l.b16 %v7174
    %v7373 = vunpack.c.h.b16 %v7174
    %v7374 = vunpack.c.l.b16 %v7175
    %v7375 = vunpack.c.h.b16 %v7175
    %v7376 = vunpack.c.l.b16 %v7176
    %v7377 = vunpack.c.h.b16 %v7176
    %v7378 = vunpack.c.l.b16 %v7177
    %v7379 = vunpack.c.h.b16 %v7177
    %v7380 = vunpack.c.l.b16 %v7178
    %v7381 = vunpack.c.h.b16 %v7178
    %v7382 = vunpack.c.l.b16 %v7179
    %v7383 = vunpack.c.h.b16 %v7179
    %v7384 = vpack.c.b16 %v7258, %v7256
    %v7385 = vpack.c.b16 %v7259, %v7257
    %v7386 = vpack.c.b16 %v7262, %v7260
    %v7387 = vpack.c.b16 %v7263, %v7261
    %v7388 = vpack.c.b16 %v7266, %v7264
    %v7389 = vpack.c.b16 %v7267, %v7265
    %v7390 = vpack.c.b16 %v7270, %v7268
    %v7391 = vpack.c.b16 %v7271, %v7269
    %v7392 = vpack.c.b16 %v7274, %v7272
    %v7393 = vpack.c.b16 %v7275, %v7273
    %v7394 = vpack.c.b16 %v7278, %v7276
    %v7395 = vpack.c.b16 %v7279, %v7277
    %v7396 = vpack.c.b16 %v7282, %v7280
    %v7397 = vpack.c.b16 %v7283, %v7281
    %v7398 = vpack.c.b16 %v7286, %v7284
    %v7399 = vpack.c.b16 %v7287, %v7285
    %v7400 = vpack.c.b16 %v7290, %v7288
    %v7401 = vpack.c.b16 %v7291, %v7289
    %v7402 = vpack.c.b16 %v7294, %v7292
    %v7403 = vpack.c.b16 %v7295, %v7293
    %v7404 = vpack.c.b16 %v7298, %v7296
    %v7405 = vpack.c.b16 %v7299, %v7297
    %v7406 = vpack.c.b16 %v7302, %v7300
    %v7407 = vpack.c.b16 %v7303, %v7301
    %v7408 = vpack.c.b16 %v7306, %v7304
    %v7409 = vpack.c.b16 %v7307, %v7305
    %v7410 = vpack.c.b16 %v7310, %v7308
    %v7411 = vpack.c.b16 %v7311, %v7309
    %v7412 = vpack.c.b16 %v7314, %v7312
    %v7413 = vpack.c.b16 %v7315, %v7313
    %v7414 = vpack.c.b16 %v7318, %v7316
    %v7415 = vpack.c.b16 %v7319, %v7317
    %v7416 = vpack.c.b16 %v7322, %v7320
    %v7417 = vpack.c.b16 %v7323, %v7321
    %v7418 = vpack.c.b16 %v7326, %v7324
    %v7419 = vpack.c.b16 %v7327, %v7325
    %v7420 = vpack.c.b16 %v7330, %v7328
    %v7421 = vpack.c.b16 %v7331, %v7329
    %v7422 = vpack.c.b16 %v7334, %v7332
    %v7423 = vpack.c.b16 %v7335, %v7333
    %v7424 = vpack.c.b16 %v7338, %v7336
    %v7425 = vpack.c.b16 %v7339, %v7337
    %v7426 = vpack.c.b16 %v7342, %v7340
    %v7427 = vpack.c.b16 %v7343, %v7341
    %v7428 = vpack.c.b16 %v7346, %v7344
    %v7429 = vpack.c.b16 %v7347, %v7345
    %v7430 = vpack.c.b16 %v7350, %v7348
    %v7431 = vpack.c.b16 %v7351, %v7349
    %v7432 = vpack.c.b16 %v7354, %v7352
    %v7433 = vpack.c.b16 %v7355, %v7353
    %v7434 = vpack.c.b16 %v7358, %v7356
    %v7435 = vpack.c.b16 %v7359, %v7357
    %v7436 = vpack.c.b16 %v7362, %v7360
    %v7437 = vpack.c.b16 %v7363, %v7361
    %v7438 = vpack.c.b16 %v7366, %v7364
    %v7439 = vpack.c.b16 %v7367, %v7365
    %v7440 = vpack.c.b16 %v7370, %v7368
    %v7441 = vpack.c.b16 %v7371, %v7369
    %v7442 = vpack.c.b16 %v7374, %v7372
    %v7443 = vpack.c.b16 %v7375, %v7373
    %v7444 = vpack.c.b16 %v7378, %v7376
    %v7445 = vpack.c.b16 %v7379, %v7377
    %v7446 = vpack.c.b16 %v7382, %v7380
    %v7447 = vpack.c.b16 %v7383, %v7381
    %7512 = vmatprep.subr.bf16.mxu0 %v7385
    %7513 = vmatpush1.bf16.msra.mxu0 %v7384
    %7514 = vmatprep.subr.bf16.mxu0 %v7387
    %7515 = vmatpush1.bf16.msra.mxu0 %v7386
    %7516 = vmatprep.subr.bf16.mxu0 %v7389
    %7517 = vmatpush1.bf16.msra.mxu0 %v7388
    %7518 = vmatprep.subr.bf16.mxu0 %v7391
    %7519 = vmatpush1.bf16.msra.mxu0 %v7390
    %7520 = vmatprep.subr.bf16.mxu0 %v7393
    %7521 = vmatpush1.bf16.msra.mxu0 %v7392
    %7522 = vmatprep.subr.bf16.mxu0 %v7395
    %7523 = vmatpush1.bf16.msra.mxu0 %v7394
    %7524 = vmatprep.subr.bf16.mxu0 %v7397
    %7525 = vmatpush1.bf16.msra.mxu0 %v7396
    %7526 = vmatprep.subr.bf16.mxu0 %v7399
    %7527 = vmatpush1.bf16.msra.mxu0 %v7398
    %7528 = vmatprep.subr.bf16.mxu0 %v7401
    %7529 = vmatpush1.bf16.msra.mxu0 %v7400
    %7530 = vmatprep.subr.bf16.mxu0 %v7403
    %7531 = vmatpush1.bf16.msra.mxu0 %v7402
    %7532 = vmatprep.subr.bf16.mxu0 %v7405
    %7533 = vmatpush1.bf16.msra.mxu0 %v7404
    %7534 = vmatprep.subr.bf16.mxu0 %v7407
    %7535 = vmatpush1.bf16.msra.mxu0 %v7406
    %7536 = vmatprep.subr.bf16.mxu0 %v7409
    %7537 = vmatpush1.bf16.msra.mxu0 %v7408
    %7538 = vmatprep.subr.bf16.mxu0 %v7411
    %7539 = vmatpush1.bf16.msra.mxu0 %v7410
    %7540 = vmatprep.subr.bf16.mxu0 %v7413
    %7541 = vmatpush1.bf16.msra.mxu0 %v7412
    %7542 = vmatprep.subr.bf16.mxu0 %v7415
    %7543 = vmatpush1.bf16.msra.mxu0 %v7414
    %7544 = vmatprep.mubr.bf16.mxu0 %v7113
    %7545 = vmatmul.mubr.bf16.gmra.mrb[0].mxu0 %v7112
    %v7546 = vpop.f32.mrb[0].mxu0
    %v7547 = vadd.f32 %v7185, %v7546
    %v7548 = vpop.f32.mrb[0].mxu0
    %v7549 = vadd.f32 %v7189, %v7548
    %v7550 = vpop.f32.mrb[0].mxu0
    %v7551 = vadd.f32 %v7185, %v7550
    %v7552 = vpop.f32.mrb[0].mxu0
    %v7553 = vadd.f32 %v7189, %v7552
    %7554 = vdwg.mxu0
    %7555 = vmatprep.subr.bf16.mxu0 %v7417
    %7556 = vmatpush1.bf16.msra.mxu0 %v7416
    %7557 = vmatprep.subr.bf16.mxu0 %v7419
    %7558 = vmatpush1.bf16.msra.mxu0 %v7418
    %7559 = vmatprep.subr.bf16.mxu0 %v7421
    %7560 = vmatpush1.bf16.msra.mxu0 %v7420
    %7561 = vmatprep.subr.bf16.mxu0 %v7423
    %7562 = vmatpush1.bf16.msra.mxu0 %v7422
    %7563 = vmatprep.subr.bf16.mxu0 %v7425
    %7564 = vmatpush1.bf16.msra.mxu0 %v7424
    %7565 = vmatprep.subr.bf16.mxu0 %v7427
    %7566 = vmatpush1.bf16.msra.mxu0 %v7426
    %7567 = vmatprep.subr.bf16.mxu0 %v7429
    %7568 = vmatpush1.bf16.msra.mxu0 %v7428
    %7569 = vmatprep.subr.bf16.mxu0 %v7431
    %7570 = vmatpush1.bf16.msra.mxu0 %v7430
    %7571 = vmatprep.subr.bf16.mxu0 %v7433
    %7572 = vmatpush1.bf16.msra.mxu0 %v7432
    %7573 = vmatprep.subr.bf16.mxu0 %v7435
    %7574 = vmatpush1.bf16.msra.mxu0 %v7434
    %7575 = vmatprep.subr.bf16.mxu0 %v7437
    %7576 = vmatpush1.bf16.msra.mxu0 %v7436
    %7577 = vmatprep.subr.bf16.mxu0 %v7439
    %7578 = vmatpush1.bf16.msra.mxu0 %v7438
    %7579 = vmatprep.subr.bf16.mxu0 %v7441
    %7580 = vmatpush1.bf16.msra.mxu0 %v7440
    %7581 = vmatprep.subr.bf16.mxu0 %v7443
    %7582 = vmatpush1.bf16.msra.mxu0 %v7442
    %7583 = vmatprep.subr.bf16.mxu0 %v7445
    %7584 = vmatpush1.bf16.msra.mxu0 %v7444
    %7585 = vmatprep.subr.bf16.mxu0 %v7447
    %7586 = vmatpush1.bf16.msra.mxu0 %v7446
    %7587 = vmatprep.mubr.bf16.mxu0 %v7115
    %7588 = vmatmul.mubr.bf16.gmra.mrb[0].mxu0 %v7114
    %v7589 = vpop.f32.mrb[0].mxu0
    %v7590 = vadd.f32 %v7547, %v7589
    %v7591 = vpop.f32.mrb[0].mxu0
    %v7592 = vadd.f32 %v7549, %v7591
    %v7593 = vpop.f32.mrb[0].mxu0
    %v7594 = vadd.f32 %v7551, %v7593
    %v7595 = vpop.f32.mrb[0].mxu0
    %v7596 = vadd.f32 %v7553, %v7595
    %7597 = vdwg.mxu0
    %v7598 = vmax.f32 %v7590, 0.0
    %v7599 = vmax.f32 %v7592, 0.0
    %v7600 = vmax.f32 %v7594, 0.0
    %v7601 = vmax.f32 %v7596, 0.0
    %v7602 = vld [vmem:[%s9] sm:$0x3]
    %v7604 = vlaneseq
    %v7605 = vshrl.u32 %v7604, 7
    %v7606 = vsub.s32 0, %v7605
    %v7607 = vrot.slane %v7602, %v7606
    %v7608 = vlaneseq
    %v7609 = vshrl.u32 %v7608, 7
    %v7610 = vsub.s32 1, %v7609
    %v7611 = vrot.slane %v7602, %v7610
    %v7614 = vmul.f32 %v7598, %v7607
    %v7615 = vmul.f32 %v7599, %v7611
    %v7616 = vmul.f32 %v7600, %v7607
    %v7617 = vmul.f32 %v7601, %v7611
    %v7618 = vadd.f32 %v7614, %v7615
    %7619 = vadd.xlane.f32.xlu0 %v7618
    %v7620 = vpop.xlane.xlu0 %7619
    %v7621 = vadd.f32 %v7616, %v7617
    %7622 = vadd.xlane.f32.xlu0 %v7621
    %v7623 = vpop.xlane.xlu0 %7622
    %v7624 = vmax.f32 %v7620, %v7623
    %v7625 = vrot.slane %v7624, 4
    %v7626 = vmax.f32 %v7624, %v7625
    %v7627 = vrot.slane %v7626, 2
    %v7628 = vmax.f32 %v7626, %v7627
    %v7629 = vrot.slane %v7628, 1
    %v7630 = vmax.f32 %v7628, %v7629
    %v7631 = vsub.f32 %v7620, %v7630
    %v7632 = vsub.f32 %v7623, %v7630
    %v7633 = vmul.f32 %v7631, 1.442695
    %v7634 = vpow.pop %v7633
    %v7635 = vmul.f32 %v7632, 1.442695
    %v7636 = vpow.pop %v7635
    %v7637 = vlaneseq
    %v7638 = vshrl.u32 %v7637, 7
    %v7639 = vadd.s32 %v7638, 8
    %v7640 = vlaneseq
    %v7641 = vand.u32 %v7640, 127
    %vm7642 = vcmp.lt.s32.totalorder %v7638, 0
    %v7643 = vsub.s32 0, %v7638
    %v7644 = vsel %vm7642, %v7643, %v7638
    %v7645 = vshrl.u32 %v7644, 1
    %v7646 = vand.u32 %v7644, 1
    %v7647 = vsub.s32 0, %v7646
    %v7648 = vsel %vm7642, %v7647, %v7646
    %vm7649 = vcmp.lt.s32.totalorder %v7639, 0
    %v7650 = vsub.s32 0, %v7639
    %v7651 = vsel %vm7649, %v7650, %v7639
    %v7652 = vshrl.u32 %v7651, 1
    %v7653 = vand.u32 %v7651, 1
    %v7654 = vsub.s32 0, %v7653
    %v7655 = vsel %vm7649, %v7654, %v7653
    %vm7656 = vcmp.ne.s32.totalorder %v7648, 0
    %vm7657 = vcmp.ne.s32.totalorder %v7655, 0
    %vm7658 = vcmp.lt.s32.totalorder %v7648, 0
    %vm7659 = vcmp.lt.s32.totalorder %v7655, 0
    %vm7660 = vmand %vm7658, %vm7656
    %vm7661 = vmand %vm7659, %vm7657
    %v7662 = vadd.s32 %v7648, 2
    %v7663 = vadd.s32 %v7655, 2
    %v7664 = vsel %vm7660, %v7662, %v7648
    %v7665 = vsel %vm7661, %v7663, %v7655
    %vm7666 = vcmp.lt.s32.totalorder %v7641, 0
    %v7667 = vsub.s32 0, %v7641
    %v7668 = vsel %vm7666, %v7667, %v7641
    %v7669 = vshrl.u32 %v7668, 1
    %v7670 = vand.u32 %v7668, 1
    %v7671 = vsub.s32 0, %v7670
    %v7672 = vsel %vm7666, %v7671, %v7670
    %vm7673 = vcmp.ne.s32.totalorder %v7672, 0
    %vm7674 = vcmp.lt.s32.totalorder %v7672, 0
    %vm7675 = vmand %vm7674, %vm7673
    %v7676 = vadd.s32 %v7672, 2
    %v7677 = vsel %vm7675, %v7676, %v7672
    %vm7678 = vcmp.eq.s32.totalorder %v7664, %v7677
    %vm7679 = vcmp.eq.s32.totalorder %v7665, %v7677
    %v7680 = vsel %vm7678, 1, 0
    %v7681 = vsel %vm7679, 1, 0
    %v7682 = vcvt.s32.f32 %v7680
    %v7683 = vcvt.s32.f32 %v7681
    %v7684 = vmul.f32 %v6606, %v7634
    %v7685 = vmul.f32 %v6607, %v7634
    %v7686 = vmul.f32 %v6608, %v7636
    %v7687 = vmul.f32 %v6609, %v7636
    %vm7688 = vcmask 130048
    %v7690 = vsel %vm7688, %v7682, 0
    %v7693 = vsel %vm7688, %v7683, 0
    %7695 = vmatprep.subr.mxu0 %v7685
    %7696 = vmatpush1.msra.mxu0 %v7684
    %7697 = vmatprep.subr.mxu0 %v7687
    %7698 = vmatpush1.msra.mxu0 %v7686
    %7699 = vmatprep.subr.mxu0 0.0
    %7700 = vmatpush1.msra.mxu0 0.0
    %7701 = vmatprep.subr.mxu0 0.0
    %7702 = vmatpush1.msra.mxu0 0.0
    %7703 = vmatprep.subr.mxu0 0.0
    %7704 = vmatpush1.msra.mxu0 0.0
    %7705 = vmatprep.subr.mxu0 0.0
    %7706 = vmatpush1.msra.mxu0 0.0
    %7707 = vmatprep.subr.mxu0 0.0
    %7708 = vmatpush1.msra.mxu0 0.0
    %7709 = vmatprep.subr.mxu0 0.0
    %7710 = vmatpush1.msra.mxu0 0.0
    %7711 = vmatprep.subr.mxu0 0.0
    %7712 = vmatpush1.msra.mxu0 0.0
    %7713 = vmatprep.subr.mxu0 0.0
    %7714 = vmatpush1.msra.mxu0 0.0
    %7715 = vmatprep.subr.mxu0 0.0
    %7716 = vmatpush1.msra.mxu0 0.0
    %7717 = vmatprep.subr.mxu0 0.0
    %7718 = vmatpush1.msra.mxu0 0.0
    %7719 = vmatprep.subr.mxu0 0.0
    %7720 = vmatpush1.msra.mxu0 0.0
    %7721 = vmatprep.subr.mxu0 0.0
    %7722 = vmatpush1.msra.mxu0 0.0
    %7723 = vmatprep.subr.mxu0 0.0
    %7724 = vmatpush1.msra.mxu0 0.0
    %7725 = vmatprep.subr.mxu0 0.0
    %7726 = vmatpush1.msra.mxu0 0.0
    %7727 = vmatprep.subr.mxu0 0.0
    %7728 = vmatpush1.msra.mxu0 0.0
    %7729 = vmatprep.subr.mxu0 0.0
    %7730 = vmatpush1.msra.mxu0 0.0
    %7731 = vmatprep.subr.mxu0 0.0
    %7732 = vmatpush1.msra.mxu0 0.0
    %7733 = vmatprep.subr.mxu0 0.0
    %7734 = vmatpush1.msra.mxu0 0.0
    %7735 = vmatprep.subr.mxu0 0.0
    %7736 = vmatpush1.msra.mxu0 0.0
    %7737 = vmatprep.subr.mxu0 0.0
    %7738 = vmatpush1.msra.mxu0 0.0
    %7739 = vmatprep.subr.mxu0 0.0
    %7740 = vmatpush1.msra.mxu0 0.0
    %7741 = vmatprep.subr.mxu0 0.0
    %7742 = vmatpush1.msra.mxu0 0.0
    %7743 = vmatprep.subr.mxu0 0.0
    %7744 = vmatpush1.msra.mxu0 0.0
    %7745 = vmatprep.subr.mxu0 0.0
    %7746 = vmatpush1.msra.mxu0 0.0
    %7747 = vmatprep.subr.mxu0 0.0
    %7748 = vmatpush1.msra.mxu0 0.0
    %7749 = vmatprep.subr.mxu0 0.0
    %7750 = vmatpush1.msra.mxu0 0.0
    %7751 = vmatprep.subr.mxu0 0.0
    %7752 = vmatpush1.msra.mxu0 0.0
    %7753 = vmatprep.subr.mxu0 0.0
    %7754 = vmatpush1.msra.mxu0 0.0
    %7755 = vmatprep.subr.mxu0 0.0
    %7756 = vmatpush1.msra.mxu0 0.0
    %7757 = vmatprep.subr.mxu0 0.0
    %7758 = vmatpush1.msra.mxu0 0.0
    %7759 = vmatprep.mubr.f32.mxu0 0.0
    %7760 = vmatmul.mubr.f32.gmra.mrb[0].mxu0 %v7690
    %v7761 = vpop.f32.mrb[0].mxu0
    %v7762 = vadd.f32 0.0, %v7761
    %v7763 = vpop.f32.mrb[0].mxu0
    %v7764 = vadd.f32 0.0, %v7763
    %7765 = vmatprep.mubr.f32.mxu0 0.0
    %7766 = vmatmul.mubr.f32.gmra.mrb[0].mxu0 %v7693
    %v7767 = vpop.f32.mrb[0].mxu0
    %v7768 = vpop.f32.mrb[0].mxu0
    %7769 = vdwg.mxu0
    %7770 = vmatprep.subr.mxu0 0.0
    %7771 = vmatpush1.msra.mxu0 %v7634
    %7772 = vmatprep.subr.mxu0 0.0
    %7773 = vmatpush1.msra.mxu0 %v7636
    %7774 = vmatprep.subr.mxu0 0.0
    %7775 = vmatpush1.msra.mxu0 0.0
    %7776 = vmatprep.subr.mxu0 0.0
    %7777 = vmatpush1.msra.mxu0 0.0
    %7778 = vmatprep.subr.mxu0 0.0
    %7779 = vmatpush1.msra.mxu0 0.0
    %7780 = vmatprep.subr.mxu0 0.0
    %7781 = vmatpush1.msra.mxu0 0.0
    %7782 = vmatprep.subr.mxu0 0.0
    %7783 = vmatpush1.msra.mxu0 0.0
    %7784 = vmatprep.subr.mxu0 0.0
    %7785 = vmatpush1.msra.mxu0 0.0
    %7786 = vmatprep.subr.mxu0 0.0
    %7787 = vmatpush1.msra.mxu0 0.0
    %7788 = vmatprep.subr.mxu0 0.0
    %7789 = vmatpush1.msra.mxu0 0.0
    %7790 = vmatprep.subr.mxu0 0.0
    %7791 = vmatpush1.msra.mxu0 0.0
    %7792 = vmatprep.subr.mxu0 0.0
    %7793 = vmatpush1.msra.mxu0 0.0
    %7794 = vmatprep.subr.mxu0 0.0
    %7795 = vmatpush1.msra.mxu0 0.0
    %7796 = vmatprep.subr.mxu0 0.0
    %7797 = vmatpush1.msra.mxu0 0.0
    %7798 = vmatprep.subr.mxu0 0.0
    %7799 = vmatpush1.msra.mxu0 0.0
    %7800 = vmatprep.subr.mxu0 0.0
    %7801 = vmatpush1.msra.mxu0 0.0
    %7802 = vmatprep.subr.mxu0 0.0
    %7803 = vmatpush1.msra.mxu0 0.0
    %7804 = vmatprep.subr.mxu0 0.0
    %7805 = vmatpush1.msra.mxu0 0.0
    %7806 = vmatprep.subr.mxu0 0.0
    %7807 = vmatpush1.msra.mxu0 0.0
    %7808 = vmatprep.subr.mxu0 0.0
    %7809 = vmatpush1.msra.mxu0 0.0
    %7810 = vmatprep.subr.mxu0 0.0
    %7811 = vmatpush1.msra.mxu0 0.0
    %7812 = vmatprep.subr.mxu0 0.0
    %7813 = vmatpush1.msra.mxu0 0.0
    %7814 = vmatprep.subr.mxu0 0.0
    %7815 = vmatpush1.msra.mxu0 0.0
    %7816 = vmatprep.subr.mxu0 0.0
    %7817 = vmatpush1.msra.mxu0 0.0
    %7818 = vmatprep.subr.mxu0 0.0
    %7819 = vmatpush1.msra.mxu0 0.0
    %7820 = vmatprep.subr.mxu0 0.0
    %7821 = vmatpush1.msra.mxu0 0.0
    %7822 = vmatprep.subr.mxu0 0.0
    %7823 = vmatpush1.msra.mxu0 0.0
    %7824 = vmatprep.subr.mxu0 0.0
    %7825 = vmatpush1.msra.mxu0 0.0
    %7826 = vmatprep.subr.mxu0 0.0
    %7827 = vmatpush1.msra.mxu0 0.0
    %7828 = vmatprep.subr.mxu0 0.0
    %7829 = vmatpush1.msra.mxu0 0.0
    %7830 = vmatprep.subr.mxu0 0.0
    %7831 = vmatpush1.msra.mxu0 0.0
    %7832 = vmatprep.subr.mxu0 0.0
    %7833 = vmatpush1.msra.mxu0 0.0
    %7834 = vmatprep.mubr.f32.mxu0 0.0
    %7835 = vmatmul.mubr.f32.gmra.mrb[0].mxu0 %v7690
    %v7836 = vpop.f32.mrb[0].mxu0
    %v7837 = vadd.f32 0.0, %v7836
    %v7838 = vpop.f32.mrb[0].mxu0
    %7839 = vmatprep.mubr.f32.mxu0 0.0
    %7840 = vmatmul.mubr.f32.gmra.mrb[0].mxu0 %v7693
    %v7841 = vpop.f32.mrb[0].mxu0
    %v7842 = vpop.f32.mrb[0].mxu0
    %7843 = vdwg.mxu0
    %7845 = vset.pattern.permute.xlu0 0
    %7846 = vperm.xlu0 %7845, %v7837
    %v7847 = vpop.permute.xlu0 %7846
    %v7849 = vrcp.pop %v7847
    %v7850 = vmul.f32 %v7762, %v7849
    %v7851 = vmul.f32 %v7764, %v7849
    %v7852 = vld [vmem:[%s10] sm:$0xff]
    %v7853 = vld [vmem:[%s10 + $0x8] sm:$0xff]
    %v7854 = vld [vmem:[%s10 + $0x10] sm:$0xff]
    %v7855 = vld [vmem:[%s10 + $0x18] sm:$0xff]
    %v7856 = vld [vmem:[%s10 + $0x20] sm:$0xff]
    %v7857 = vld [vmem:[%s10 + $0x28] sm:$0xff]
    %v7858 = vld [vmem:[%s10 + $0x30] sm:$0xff]
    %v7859 = vld [vmem:[%s10 + $0x38] sm:$0xff]
    %v7860 = vld [vmem:[%s10 + $0x40] sm:$0xff]
    %v7861 = vld [vmem:[%s10 + $0x48] sm:$0xff]
    %v7862 = vld [vmem:[%s10 + $0x50] sm:$0xff]
    %v7863 = vld [vmem:[%s10 + $0x58] sm:$0xff]
    %v7864 = vld [vmem:[%s10 + $0x60] sm:$0xff]
    %v7865 = vld [vmem:[%s10 + $0x68] sm:$0xff]
    %v7866 = vld [vmem:[%s10 + $0x70] sm:$0xff]
    %v7867 = vld [vmem:[%s10 + $0x78] sm:$0xff]
    %v7868 = vld [vmem:[%s10 + $0x80] sm:$0xff]
    %v7869 = vld [vmem:[%s10 + $0x88] sm:$0xff]
    %v7870 = vld [vmem:[%s10 + $0x90] sm:$0xff]
    %v7871 = vld [vmem:[%s10 + $0x98] sm:$0xff]
    %v7872 = vld [vmem:[%s10 + $0xa0] sm:$0xff]
    %v7873 = vld [vmem:[%s10 + $0xa8] sm:$0xff]
    %v7874 = vld [vmem:[%s10 + $0xb0] sm:$0xff]
    %v7875 = vld [vmem:[%s10 + $0xb8] sm:$0xff]
    %v7876 = vld [vmem:[%s10 + $0xc0] sm:$0xff]
    %v7877 = vld [vmem:[%s10 + $0xc8] sm:$0xff]
    %v7878 = vld [vmem:[%s10 + $0xd0] sm:$0xff]
    %v7879 = vld [vmem:[%s10 + $0xd8] sm:$0xff]
    %v7880 = vld [vmem:[%s10 + $0xe0] sm:$0xff]
    %v7881 = vld [vmem:[%s10 + $0xe8] sm:$0xff]
    %v7882 = vld [vmem:[%s10 + $0xf0] sm:$0xff]
    %v7883 = vld [vmem:[%s10 + $0xf8] sm:$0xff]
    %v7884 = vld [vmem:[%s11] sm:$0x1]
    %v7886 = vlaneseq
    %v7887 = vshrl.u32 %v7886, 7
    %v7888 = vsub.s32 0, %v7887
    %v7889 = vrot.slane %v7884, %v7888
    %7891 = vmatprep.subr.mxu0 0.0
    %7892 = vmatpush1.msra.mxu0 %v7852
    %7893 = vmatprep.subr.mxu0 0.0
    %7894 = vmatpush1.msra.mxu0 %v7853
    %7895 = vmatprep.subr.mxu0 0.0
    %7896 = vmatpush1.msra.mxu0 %v7854
    %7897 = vmatprep.subr.mxu0 0.0
    %7898 = vmatpush1.msra.mxu0 %v7855
    %7899 = vmatprep.subr.mxu0 0.0
    %7900 = vmatpush1.msra.mxu0 %v7856
    %7901 = vmatprep.subr.mxu0 0.0
    %7902 = vmatpush1.msra.mxu0 %v7857
    %7903 = vmatprep.subr.mxu0 0.0
    %7904 = vmatpush1.msra.mxu0 %v7858
    %7905 = vmatprep.subr.mxu0 0.0
    %7906 = vmatpush1.msra.mxu0 %v7859
    %7907 = vmatprep.subr.mxu0 0.0
    %7908 = vmatpush1.msra.mxu0 %v7860
    %7909 = vmatprep.subr.mxu0 0.0
    %7910 = vmatpush1.msra.mxu0 %v7861
    %7911 = vmatprep.subr.mxu0 0.0
    %7912 = vmatpush1.msra.mxu0 %v7862
    %7913 = vmatprep.subr.mxu0 0.0
    %7914 = vmatpush1.msra.mxu0 %v7863
    %7915 = vmatprep.subr.mxu0 0.0
    %7916 = vmatpush1.msra.mxu0 %v7864
    %7917 = vmatprep.subr.mxu0 0.0
    %7918 = vmatpush1.msra.mxu0 %v7865
    %7919 = vmatprep.subr.mxu0 0.0
    %7920 = vmatpush1.msra.mxu0 %v7866
    %7921 = vmatprep.subr.mxu0 0.0
    %7922 = vmatpush1.msra.mxu0 %v7867
    %7923 = vmatprep.subr.mxu0 0.0
    %7924 = vmatpush1.msra.mxu0 %v7868
    %7925 = vmatprep.subr.mxu0 0.0
    %7926 = vmatpush1.msra.mxu0 %v7869
    %7927 = vmatprep.subr.mxu0 0.0
    %7928 = vmatpush1.msra.mxu0 %v7870
    %7929 = vmatprep.subr.mxu0 0.0
    %7930 = vmatpush1.msra.mxu0 %v7871
    %7931 = vmatprep.subr.mxu0 0.0
    %7932 = vmatpush1.msra.mxu0 %v7872
    %7933 = vmatprep.subr.mxu0 0.0
    %7934 = vmatpush1.msra.mxu0 %v7873
    %7935 = vmatprep.subr.mxu0 0.0
    %7936 = vmatpush1.msra.mxu0 %v7874
    %7937 = vmatprep.subr.mxu0 0.0
    %7938 = vmatpush1.msra.mxu0 %v7875
    %7939 = vmatprep.subr.mxu0 0.0
    %7940 = vmatpush1.msra.mxu0 %v7876
    %7941 = vmatprep.subr.mxu0 0.0
    %7942 = vmatpush1.msra.mxu0 %v7877
    %7943 = vmatprep.subr.mxu0 0.0
    %7944 = vmatpush1.msra.mxu0 %v7878
    %7945 = vmatprep.subr.mxu0 0.0
    %7946 = vmatpush1.msra.mxu0 %v7879
    %7947 = vmatprep.subr.mxu0 0.0
    %7948 = vmatpush1.msra.mxu0 %v7880
    %7949 = vmatprep.subr.mxu0 0.0
    %7950 = vmatpush1.msra.mxu0 %v7881
    %7951 = vmatprep.subr.mxu0 0.0
    %7952 = vmatpush1.msra.mxu0 %v7882
    %7953 = vmatprep.subr.mxu0 0.0
    %7954 = vmatpush1.msra.mxu0 %v7883
    %7955 = vmatprep.mubr.f32.mxu0 %v7851
    %7956 = vmatmul.mubr.f32.gmra.mrb[0].mxu0 %v7850
    %v7957 = vpop.f32.mrb[0].mxu0
    %v7958 = vadd.f32 %v7889, %v7957
    %v7959 = vpop.f32.mrb[0].mxu0
    %7960 = vdwg.mxu0
    %vm7961 = vcmask 66560
    %7962 = vst.msk [vmem:[#allocation10] sm:$0x3] %vm7961, %v7958
    // Predicated region
    $region62: #{attention_pos_rnn_forward.1} parent=1 // pred_check
      _
    $region63: #{attention_pos_rnn_forward.1} parent=1 // pred_check_branch
      %7964 = sbr.rel (0) target = $region65
    $region64: #{attention_pos_rnn_forward.1} parent=1 // pred_region
      %s7966 = ssub.s32 32, 32
      %7967 = vsyncadd [#allocation6], %s7966
      %s7969 = sshll.u32 [#allocation10], 4
      %s7970 = int_to_ptr.vmem [resolvable:$true] %s7969
      %7972 = dma.vmem_to_hbm [thread:$0]  %s7970, 32, %s12, [#allocation6]
    $region65: #{attention_pos_rnn_forward.1} parent=1 // pred_fallthru
      _
    // Predicated region
    $region66: #{attention_pos_rnn_forward.1} parent=1 // pred_check
      _
    $region67: #{attention_pos_rnn_forward.1} parent=1 // pred_check_branch
      %7974 = sbr.rel (0) target = $region69
    $region68: #{attention_pos_rnn_forward.1} parent=1 // pred_region
      %7975 = dma.done [#allocation6], 32
    $region69: #{attention_pos_rnn_forward.1} parent=1 // pred_fallthru
      _
    %7976 = vsyncpa [#allocation5], 1
    %7977 = vsyncpa [#allocation8], 1
    %7978 = vsyncpa [#allocation6], 1

</llo_original>
